<compile_context>
chip_gen: v7x
topology: tpu7x:2x2x1
jax: 0.10.0
libtpu: 0.0.40
codegen_flags: <defaults>
</compile_context>

<pallas_src>
import jax
import jax.numpy as jnp
from jax.experimental import pallas as pl
from jax.experimental.pallas import tpu as pltpu

# ---- hyper-parameters (HahowRanker defaults; small TPU-friendly vocab) -----------
NUM_COURSES = 127                      # -> linear output = num_courses + 1 = 128
DIM_EMBED   = 256                      # d_model (module default)
NUM_HEADS   = 8                        # nhead   (module default)
HEAD_DIM    = DIM_EMBED // NUM_HEADS
DIM_FF      = 2048                     # PyTorch TransformerEncoderLayer default
FF_CHUNK    = 512                      # feed-forward inner-dim tile
NUM_LAYERS  = 2
LN_EPS      = 1e-5
VOCAB       = NUM_COURSES + 2          # nn.Embedding(num_courses + 2, dim_embed)
NUM_OUT     = NUM_COURSES + 1          # nn.Linear(dim_embed, num_courses + 1)


# ----------------------------- Pallas kernel --------------------------------------

def _layer_norm(x, gamma, beta):
    mu = jnp.mean(x, axis=-1, keepdims=True)
    var = jnp.mean(jnp.square(x - mu), axis=-1, keepdims=True)
    return (x - mu) * jax.lax.rsqrt(var + LN_EPS) * gamma + beta


def _make_kernel(N):
    """One encoder layer per grid step; output head gated to the last step."""
    D = DIM_EMBED

    def kernel(x_ref, bias_ref,
               wqkv_ref, bqkv_ref, wo_ref, bo_ref,
               w1_ref, b1_ref, w2_ref, b2_ref,
               g1_ref, bt1_ref, g2_ref, bt2_ref,
               wout_ref, bout_ref,
               o_ref, x_sc):
        l = pl.program_id(0)

        @pl.when(l == 0)
        def _():
            x_sc[...] = x_ref[...]

        x = x_sc[...]                                         # (N, D) f32

        # ---------------- self-attention ----------------
        qkv = jnp.dot(x.astype(jnp.bfloat16), wqkv_ref[...],
                      preferred_element_type=jnp.float32) + bqkv_ref[...]
        q = qkv[:, :D] * (HEAD_DIM ** -0.5)                   # scale once on full q
        k = qkv[:, D:2 * D]
        v = qkv[:, 2 * D:]

        def heads(t):  # (N, D) f32 -> (H, N, HEAD_DIM) bf16 (MXU inputs)
            return jnp.stack(
                [t[:, h * HEAD_DIM:(h + 1) * HEAD_DIM] for h in range(NUM_HEADS)],
                axis=0).astype(jnp.bfloat16)

        qh, kh, vh = heads(q), heads(k), heads(v)
        s = jnp.einsum('hqd,hkd->hqk', qh, kh,
                       preferred_element_type=jnp.float32)    # (H, N, N)
        s = s + bias_ref[...]          # block-diag batch mask + key padding (-inf)
        m = jnp.max(s, axis=-1, keepdims=True)
        p = jnp.exp(s - m)
        # exact divide (no approx recip): fully-masked rows stay NaN (PyTorch parity)
        p = p / jnp.sum(p, axis=-1, keepdims=True)
        ctx_h = jnp.einsum('hqk,hkd->hqd', p.astype(jnp.bfloat16), vh,
                           preferred_element_type=jnp.float32)  # (H, N, HEAD_DIM)
        ctx = jnp.concatenate([ctx_h[h] for h in range(NUM_HEADS)], axis=-1)  # (N, D)

        attn = jnp.dot(ctx.astype(jnp.bfloat16), wo_ref[...],
                       preferred_element_type=jnp.float32) + bo_ref[...]
        x = _layer_norm(x + attn, g1_ref[...], bt1_ref[...])

        # ---------------- feed-forward (ReLU), tiled over DIM_FF ----------------
        xb = x.astype(jnp.bfloat16)
        ff = jnp.zeros((N, D), jnp.float32)
        for c in range(0, DIM_FF, FF_CHUNK):
            h1 = jnp.dot(xb, w1_ref[:, c:c + FF_CHUNK],
                         preferred_element_type=jnp.float32) + b1_ref[:, c:c + FF_CHUNK]
            h1 = jnp.maximum(h1, 0.0).astype(jnp.bfloat16)
            ff = ff + jnp.dot(h1, w2_ref[c:c + FF_CHUNK, :],
                              preferred_element_type=jnp.float32)
        x = _layer_norm(x + ff + b2_ref[...], g2_ref[...], bt2_ref[...])

        x_sc[...] = x                                         # carry to next layer

        # ---------------- head: masked_fill(isnan, 0) + linear ----------------
        @pl.when(l == NUM_LAYERS - 1)
        def _():
            xz = jnp.where(jnp.isnan(x), 0.0, x)
            o_ref[...] = jnp.dot(xz.astype(jnp.bfloat16), wout_ref[...],
                                 preferred_element_type=jnp.float32) + bout_ref[...]

    return kernel


# ----------------------------- pallas_call wrapper --------------------------------

def hahow_ranker_forward(params, tokens, padding_mask, attrs=None):
    # `attrs` accepted (like the PyTorch forward) but unused by the reference model.
    kp = params["kernel"]
    B, S = tokens.shape
    N = B * S

    # TODO(synk): embedding gather could be fused via scalar-prefetched token ids;
    # it is tiny here so it stays in the wrapper.
    x = jnp.take(params["embed"], tokens, axis=0).astype(jnp.float32)
    x = x.reshape(N, DIM_EMBED)

    # flattened-batch attention bias: -inf for cross-batch pairs and padded keys.
    rows = jnp.arange(N) // S
    key_pad = padding_mask.reshape(N)
    valid = (rows[:, None] == rows[None, :]) & (~key_pad)[None, :]
    bias = jnp.where(valid, 0.0, -jnp.inf).astype(jnp.float32)        # (N, N)

    args = (x, bias,
            kp["wqkv"], kp["bqkv"], kp["wo"], kp["bo"],
            kp["w1"], kp["b1"], kp["w2"], kp["b2"],
            kp["g1"], kp["bt1"], kp["g2"], kp["bt2"],
            kp["w_out"], kp["b_out"])

    def const_spec(a):
        nd = a.ndim
        return pl.BlockSpec(a.shape, lambda l, nd=nd: (0,) * nd)

    def layer_spec(a):  # (L, r, c) -> per-layer (r, c) block, leading dim squeezed
        return pl.BlockSpec((None,) + a.shape[1:], lambda l: (l, 0, 0))

    in_specs = ([const_spec(x), const_spec(bias)]
                + [layer_spec(a) for a in args[2:14]]
                + [const_spec(kp["w_out"]), const_spec(kp["b_out"])])

    # advisory cost estimate for XLA scheduling
    flops_dense = 2 * N * (DIM_EMBED * 3 * DIM_EMBED + DIM_EMBED * DIM_EMBED
                           + 2 * DIM_EMBED * DIM_FF)
    flops_attn = 4 * NUM_HEADS * N * N * HEAD_DIM
    flops = NUM_LAYERS * (flops_dense + flops_attn) + 2 * N * DIM_EMBED * NUM_OUT
    transcendentals = NUM_LAYERS * NUM_HEADS * N * N
    bytes_accessed = sum(int(a.size) * a.dtype.itemsize for a in args) + N * NUM_OUT * 4

    out = pl.pallas_call(
        _make_kernel(N),
        out_shape=jax.ShapeDtypeStruct((N, NUM_OUT), jnp.float32),
        grid=(NUM_LAYERS,),
        in_specs=in_specs,
        out_specs=pl.BlockSpec((N, NUM_OUT), lambda l: (0, 0)),
        scratch_shapes=[pltpu.VMEM((N, DIM_EMBED), jnp.float32)],
        compiler_params=pltpu.CompilerParams(
            dimension_semantics=("arbitrary",),
            vmem_limit_bytes=32 * 1024 * 1024),    # need ~6 MiB; valid on v5e/v6e/v7x
        cost_estimate=pl.CostEstimate(flops=flops,
                                      transcendentals=transcendentals,
                                      bytes_accessed=bytes_accessed),
    )(*args)
    return out.reshape(B, S, NUM_OUT)


# ----------------------------- pure-JAX reference --------------------------------

def _ln_ref(x, g, b):
    mu = jnp.mean(x, axis=-1, keepdims=True)
    var = jnp.mean(jnp.square(x - mu), axis=-1, keepdims=True)
    return (x - mu) * jax.lax.rsqrt(var + LN_EPS) * g + b


def reference_forward(params, tokens, padding_mask, attrs=None):
    x = jnp.take(params["embed"], tokens, axis=0).astype(jnp.float32)
    B, S, D = x.shape
    bias = jnp.where(padding_mask, -jnp.inf, 0.0).astype(jnp.float32)[:, None, None, :]
    for (wqkv, bqkv, wo, bo, w1, b1, w2, b2, g1, bt1, g2, bt2) in params["layers"]:
        qkv = x @ wqkv + bqkv
        q, k, v = jnp.split(qkv, 3, axis=-1)
        sh = lambda t: t.reshape(B, S, NUM_HEADS, HEAD_DIM).transpose(0, 2, 1, 3)
        qh, kh, vh = sh(q), sh(k), sh(v)
        s = jnp.einsum("bhqd,bhkd->bhqk", qh * (HEAD_DIM ** -0.5), kh) + bias
        p = jax.nn.softmax(s, axis=-1)
        oh = jnp.einsum("bhqk,bhkd->bhqd", p, vh)
        o = oh.transpose(0, 2, 1, 3).reshape(B, S, D)
        attn = o @ wo + bo
        x = _ln_ref(x + attn, g1, bt1)
        ff = jnp.maximum(x @ w1 + b1, 0.0) @ w2 + b2
        x = _ln_ref(x + ff, g2, bt2)
    x = jnp.where(jnp.isnan(x), 0.0, x)
    return x @ params["w_out_t"] + params["b_out"]


# ----------------------------- parameter init ------------------------------------

def prepare_kernel_params(params):
    """Stack per-layer params along a leading axis; matmul weights -> bf16."""
    Ls = params["layers"]
    stk = lambda i: jnp.stack([l[i] for l in Ls])
    return {
        "wqkv": stk(0).astype(jnp.bfloat16), "bqkv": stk(1),
        "wo":   stk(2).astype(jnp.bfloat16), "bo":   stk(3),
        "w1":   stk(4).astype(jnp.bfloat16), "b1":   stk(5),
        "w2":   stk(6).astype(jnp.bfloat16), "b2":   stk(7),
        "g1":   stk(8), "bt1": stk(9), "g2": stk(10), "bt2": stk(11),
        "w_out": params["w_out_t"].astype(jnp.bfloat16),
        "b_out": params["b_out"],
    }


def init_params(key):
    def dense(k, shape, scale=0.02):
        w = scale * jax.random.normal(k, shape, dtype=jnp.float32)
        # round matmul weights to bf16-representable values so the kernel's bf16
        # copies are exact casts of the reference's f32 weights
        return w.astype(jnp.bfloat16).astype(jnp.float32)

    def small(k, shape, scale=0.01):
        return scale * jax.random.normal(k, shape, dtype=jnp.float32)

    keys = iter(jax.random.split(key, 64))
    params = {"embed": dense(next(keys), (VOCAB, DIM_EMBED))}
    layers = []
    for _ in range(NUM_LAYERS):
        layers.append((
            dense(next(keys), (DIM_EMBED, 3 * DIM_EMBED)),
            small(next(keys), (1, 3 * DIM_EMBED)),
            dense(next(keys), (DIM_EMBED, DIM_EMBED)),
            small(next(keys), (1, DIM_EMBED)),
            dense(next(keys), (DIM_EMBED, DIM_FF)),
            small(next(keys), (1, DIM_FF)),
            dense(next(keys), (DIM_FF, DIM_EMBED)),
            small(next(keys), (1, DIM_EMBED)),
            1.0 + small(next(keys), (1, DIM_EMBED)),   # LN1 gamma
            small(next(keys), (1, DIM_EMBED)),         # LN1 beta
            1.0 + small(next(keys), (1, DIM_EMBED)),   # LN2 gamma
            small(next(keys), (1, DIM_EMBED)),         # LN2 beta
        ))
    params["layers"] = layers
    params["w_out_t"] = dense(next(keys), (DIM_EMBED, NUM_OUT))
    params["b_out"] = small(next(keys), (1, NUM_OUT))
    params["kernel"] = prepare_kernel_params(params)
    return params


# ----------------------------- main ----------------------------------------------

if __name__ == "__main__":
    key = jax.random.PRNGKey(0)
    k_param, k_tok, k_attr = jax.random.split(key, 3)

    B, S = 2, 8
    params = init_params(k_param)
    tokens = jax.random.randint(k_tok, (B, S), 0, VOCAB, dtype=jnp.int32)
    padding_mask = jnp.array(
        [[False] * S,
         [False] * (S - 3) + [True] * 3], dtype=jnp.bool_)
    attrs = jax.random.normal(k_attr, (B, 4), dtype=jnp.float32)   # unused by forward

    out = hahow_ranker_forward(params, tokens, padding_mask, attrs)
    out = jax.block_until_ready(out)

    ref = jax.block_until_ready(reference_forward(params, tokens, padding_mask, attrs))

    assert out.shape == (B, S, NUM_OUT), out.shape
    assert not bool(jnp.any(jnp.isnan(out)))
    if not bool(jnp.allclose(out, ref, atol=5e-2, rtol=5e-2)):
        raise AssertionError("Pallas output does not match reference")

    print("KERNEL_OK")
</pallas_src>

<mosaic_0001>
module attributes {stable_mosaic.version = 11 : i64} {
  func.func @kernel(%arg0: i32, %arg1: memref<16x256xf32, #tpu.memory_space<vmem>>, %arg2: memref<16x16xf32, #tpu.memory_space<vmem>>, %arg3: memref<1x256x768xbf16, #tpu.memory_space<vmem>>, %arg4: memref<1x1x768xf32, #tpu.memory_space<vmem>>, %arg5: memref<1x256x256xbf16, #tpu.memory_space<vmem>>, %arg6: memref<1x1x256xf32, #tpu.memory_space<vmem>>, %arg7: memref<1x256x2048xbf16, #tpu.memory_space<vmem>>, %arg8: memref<1x1x2048xf32, #tpu.memory_space<vmem>>, %arg9: memref<1x2048x256xbf16, #tpu.memory_space<vmem>>, %arg10: memref<1x1x256xf32, #tpu.memory_space<vmem>>, %arg11: memref<1x1x256xf32, #tpu.memory_space<vmem>>, %arg12: memref<1x1x256xf32, #tpu.memory_space<vmem>>, %arg13: memref<1x1x256xf32, #tpu.memory_space<vmem>>, %arg14: memref<1x1x256xf32, #tpu.memory_space<vmem>>, %arg15: memref<256x128xbf16, #tpu.memory_space<vmem>>, %arg16: memref<1x128xf32, #tpu.memory_space<vmem>>, %arg17: memref<16x128xf32, #tpu.memory_space<vmem>>, %arg18: memref<16x256xf32, #tpu.memory_space<vmem>>) attributes {dimension_semantics = [#tpu.dimension_semantics<arbitrary>], iteration_bounds = array<i64: 2>, scalar_prefetch = 0 : i64, scratch_operands = 1 : i64, tpu.core_type = #tpu.core_type<tc>, window_params = [{pipeline_mode = #tpu.pipeline_mode<synchronous>, transform_indices = @transform_0, window_bounds = array<i64: 16, 256>}, {pipeline_mode = #tpu.pipeline_mode<synchronous>, transform_indices = @transform_1, window_bounds = array<i64: 16, 16>}, {transform_indices = @transform_2, window_bounds = array<i64: 1, 256, 768>}, {transform_indices = @transform_3, window_bounds = array<i64: 1, 1, 768>}, {transform_indices = @transform_4, window_bounds = array<i64: 1, 256, 256>}, {transform_indices = @transform_5, window_bounds = array<i64: 1, 1, 256>}, {transform_indices = @transform_6, window_bounds = array<i64: 1, 256, 2048>}, {transform_indices = @transform_7, window_bounds = array<i64: 1, 1, 2048>}, {transform_indices = @transform_8, window_bounds = array<i64: 1, 2048, 256>}, {transform_indices = @transform_9, window_bounds = array<i64: 1, 1, 256>}, {transform_indices = @transform_10, window_bounds = array<i64: 1, 1, 256>}, {transform_indices = @transform_11, window_bounds = array<i64: 1, 1, 256>}, {transform_indices = @transform_12, window_bounds = array<i64: 1, 1, 256>}, {transform_indices = @transform_13, window_bounds = array<i64: 1, 1, 256>}, {pipeline_mode = #tpu.pipeline_mode<synchronous>, transform_indices = @transform_14, window_bounds = array<i64: 256, 128>}, {pipeline_mode = #tpu.pipeline_mode<synchronous>, transform_indices = @transform_15, window_bounds = array<i64: 1, 128>}, {pipeline_mode = #tpu.pipeline_mode<synchronous>, transform_indices = @transform_16, window_bounds = array<i64: 16, 128>}]} {
    %c0_i32 = arith.constant 0 : i32
    %0 = arith.cmpi eq, %arg0, %c0_i32 : i32
    %1 = arith.extui %0 : i1 to i32
    %c0_i32_0 = arith.constant 0 : i32
    %2 = arith.cmpi ne, %1, %c0_i32_0 : i32
    scf.if %2 {
      %c0_96 = arith.constant 0 : index
      %c0_97 = arith.constant 0 : index
      %232 = vector.load %arg1[%c0_96, %c0_97] : memref<16x256xf32, #tpu.memory_space<vmem>>, vector<16x256xf32>
      %c0_98 = arith.constant 0 : index
      %c0_99 = arith.constant 0 : index
      %233 = vector.load %arg18[%c0_98, %c0_99] : memref<16x256xf32, #tpu.memory_space<vmem>>, vector<16x256xf32>
      tpu.vector_store %arg18[%c0_98, %c0_99], %232 {strides = array<i32>} : memref<16x256xf32, #tpu.memory_space<vmem>>, vector<16x256xf32>,
    } else {
    }
    %c0 = arith.constant 0 : index
    %c0_1 = arith.constant 0 : index
    %3 = vector.load %arg18[%c0, %c0_1] : memref<16x256xf32, #tpu.memory_space<vmem>>, vector<16x256xf32>
    %4 = arith.truncf %3 : vector<16x256xf32> to vector<16x256xbf16>
    %c0_2 = arith.constant 0 : index
    %c0_3 = arith.constant 0 : index
    %c0_4 = arith.constant 0 : index
    %5 = vector.load %arg3[%c0_2, %c0_3, %c0_4] : memref<1x256x768xbf16, #tpu.memory_space<vmem>>, vector<1x256x768xbf16>
    %6 = vector.shape_cast %5 : vector<1x256x768xbf16> to vector<256x768xbf16>
    %cst = arith.constant dense<0.000000e+00> : vector<16x768xf32>
    %7 = tpu.matmul %4, %6, %cst {dimension_numbers = #tpu.dot_dimension_numbers<[1], [0], [0], [1], [0, 0, 1, 1], [], []>} : vector<16x256xbf16>, vector<256x768xbf16>, vector<16x768xf32> -> vector<16x768xf32>
    %c0_5 = arith.constant 0 : index
    %c0_6 = arith.constant 0 : index
    %c0_7 = arith.constant 0 : index
    %8 = vector.load %arg4[%c0_5, %c0_6, %c0_7] : memref<1x1x768xf32, #tpu.memory_space<vmem>>, vector<1x1x768xf32>
    %9 = vector.shape_cast %8 : vector<1x1x768xf32> to vector<1x768xf32>
    %10 = vector.broadcast %9 : vector<1x768xf32> to vector<16x768xf32>
    %11 = arith.addf %7, %10 : vector<16x768xf32>
    %12 = vector.extract_strided_slice %11 {offsets = [0, 0], sizes = [16, 256], strides = [1, 1]} : vector<16x768xf32> to vector<16x256xf32>
    %cst_8 = arith.constant 0.176776692 : f32
    %13 = vector.broadcast %cst_8 : f32 to vector<16x256xf32>
    %14 = arith.mulf %12, %13 : vector<16x256xf32>
    %15 = vector.extract_strided_slice %11 {offsets = [0, 256], sizes = [16, 256], strides = [1, 1]} : vector<16x768xf32> to vector<16x256xf32>
    %16 = vector.extract_strided_slice %11 {offsets = [0, 512], sizes = [16, 256], strides = [1, 1]} : vector<16x768xf32> to vector<16x256xf32>
    %17 = vector.extract_strided_slice %14 {offsets = [0, 0], sizes = [16, 32], strides = [1, 1]} : vector<16x256xf32> to vector<16x32xf32>
    %18 = vector.extract_strided_slice %14 {offsets = [0, 32], sizes = [16, 32], strides = [1, 1]} : vector<16x256xf32> to vector<16x32xf32>
    %19 = vector.extract_strided_slice %14 {offsets = [0, 64], sizes = [16, 32], strides = [1, 1]} : vector<16x256xf32> to vector<16x32xf32>
    %20 = vector.extract_strided_slice %14 {offsets = [0, 96], sizes = [16, 32], strides = [1, 1]} : vector<16x256xf32> to vector<16x32xf32>
    %21 = vector.extract_strided_slice %14 {offsets = [0, 128], sizes = [16, 32], strides = [1, 1]} : vector<16x256xf32> to vector<16x32xf32>
    %22 = vector.extract_strided_slice %14 {offsets = [0, 160], sizes = [16, 32], strides = [1, 1]} : vector<16x256xf32> to vector<16x32xf32>
    %23 = vector.extract_strided_slice %14 {offsets = [0, 192], sizes = [16, 32], strides = [1, 1]} : vector<16x256xf32> to vector<16x32xf32>
    %24 = vector.extract_strided_slice %14 {offsets = [0, 224], sizes = [16, 32], strides = [1, 1]} : vector<16x256xf32> to vector<16x32xf32>
    %25 = vector.shape_cast %17 : vector<16x32xf32> to vector<1x16x32xf32>
    %26 = vector.shape_cast %18 : vector<16x32xf32> to vector<1x16x32xf32>
    %27 = vector.shape_cast %19 : vector<16x32xf32> to vector<1x16x32xf32>
    %28 = vector.shape_cast %20 : vector<16x32xf32> to vector<1x16x32xf32>
    %29 = vector.shape_cast %21 : vector<16x32xf32> to vector<1x16x32xf32>
    %30 = vector.shape_cast %22 : vector<16x32xf32> to vector<1x16x32xf32>
    %31 = vector.shape_cast %23 : vector<16x32xf32> to vector<1x16x32xf32>
    %32 = vector.shape_cast %24 : vector<16x32xf32> to vector<1x16x32xf32>
    %33 = tpu.concatenate %25, %26, %27, %28, %29, %30, %31, %32 in 0 : vector<1x16x32xf32>, vector<1x16x32xf32>, vector<1x16x32xf32>, vector<1x16x32xf32>, vector<1x16x32xf32>, vector<1x16x32xf32>, vector<1x16x32xf32>, vector<1x16x32xf32> -> vector<8x16x32xf32>
    %34 = arith.truncf %33 : vector<8x16x32xf32> to vector<8x16x32xbf16>
    %35 = vector.extract_strided_slice %15 {offsets = [0, 0], sizes = [16, 32], strides = [1, 1]} : vector<16x256xf32> to vector<16x32xf32>
    %36 = vector.extract_strided_slice %15 {offsets = [0, 32], sizes = [16, 32], strides = [1, 1]} : vector<16x256xf32> to vector<16x32xf32>
    %37 = vector.extract_strided_slice %15 {offsets = [0, 64], sizes = [16, 32], strides = [1, 1]} : vector<16x256xf32> to vector<16x32xf32>
    %38 = vector.extract_strided_slice %15 {offsets = [0, 96], sizes = [16, 32], strides = [1, 1]} : vector<16x256xf32> to vector<16x32xf32>
    %39 = vector.extract_strided_slice %15 {offsets = [0, 128], sizes = [16, 32], strides = [1, 1]} : vector<16x256xf32> to vector<16x32xf32>
    %40 = vector.extract_strided_slice %15 {offsets = [0, 160], sizes = [16, 32], strides = [1, 1]} : vector<16x256xf32> to vector<16x32xf32>
    %41 = vector.extract_strided_slice %15 {offsets = [0, 192], sizes = [16, 32], strides = [1, 1]} : vector<16x256xf32> to vector<16x32xf32>
    %42 = vector.extract_strided_slice %15 {offsets = [0, 224], sizes = [16, 32], strides = [1, 1]} : vector<16x256xf32> to vector<16x32xf32>
    %43 = vector.shape_cast %35 : vector<16x32xf32> to vector<1x16x32xf32>
    %44 = vector.shape_cast %36 : vector<16x32xf32> to vector<1x16x32xf32>
    %45 = vector.shape_cast %37 : vector<16x32xf32> to vector<1x16x32xf32>
    %46 = vector.shape_cast %38 : vector<16x32xf32> to vector<1x16x32xf32>
    %47 = vector.shape_cast %39 : vector<16x32xf32> to vector<1x16x32xf32>
    %48 = vector.shape_cast %40 : vector<16x32xf32> to vector<1x16x32xf32>
    %49 = vector.shape_cast %41 : vector<16x32xf32> to vector<1x16x32xf32>
    %50 = vector.shape_cast %42 : vector<16x32xf32> to vector<1x16x32xf32>
    %51 = tpu.concatenate %43, %44, %45, %46, %47, %48, %49, %50 in 0 : vector<1x16x32xf32>, vector<1x16x32xf32>, vector<1x16x32xf32>, vector<1x16x32xf32>, vector<1x16x32xf32>, vector<1x16x32xf32>, vector<1x16x32xf32>, vector<1x16x32xf32> -> vector<8x16x32xf32>
    %52 = arith.truncf %51 : vector<8x16x32xf32> to vector<8x16x32xbf16>
    %53 = vector.extract_strided_slice %16 {offsets = [0, 0], sizes = [16, 32], strides = [1, 1]} : vector<16x256xf32> to vector<16x32xf32>
    %54 = vector.extract_strided_slice %16 {offsets = [0, 32], sizes = [16, 32], strides = [1, 1]} : vector<16x256xf32> to vector<16x32xf32>
    %55 = vector.extract_strided_slice %16 {offsets = [0, 64], sizes = [16, 32], strides = [1, 1]} : vector<16x256xf32> to vector<16x32xf32>
    %56 = vector.extract_strided_slice %16 {offsets = [0, 96], sizes = [16, 32], strides = [1, 1]} : vector<16x256xf32> to vector<16x32xf32>
    %57 = vector.extract_strided_slice %16 {offsets = [0, 128], sizes = [16, 32], strides = [1, 1]} : vector<16x256xf32> to vector<16x32xf32>
    %58 = vector.extract_strided_slice %16 {offsets = [0, 160], sizes = [16, 32], strides = [1, 1]} : vector<16x256xf32> to vector<16x32xf32>
    %59 = vector.extract_strided_slice %16 {offsets = [0, 192], sizes = [16, 32], strides = [1, 1]} : vector<16x256xf32> to vector<16x32xf32>
    %60 = vector.extract_strided_slice %16 {offsets = [0, 224], sizes = [16, 32], strides = [1, 1]} : vector<16x256xf32> to vector<16x32xf32>
    %61 = vector.shape_cast %53 : vector<16x32xf32> to vector<1x16x32xf32>
    %62 = vector.shape_cast %54 : vector<16x32xf32> to vector<1x16x32xf32>
    %63 = vector.shape_cast %55 : vector<16x32xf32> to vector<1x16x32xf32>
    %64 = vector.shape_cast %56 : vector<16x32xf32> to vector<1x16x32xf32>
    %65 = vector.shape_cast %57 : vector<16x32xf32> to vector<1x16x32xf32>
    %66 = vector.shape_cast %58 : vector<16x32xf32> to vector<1x16x32xf32>
    %67 = vector.shape_cast %59 : vector<16x32xf32> to vector<1x16x32xf32>
    %68 = vector.shape_cast %60 : vector<16x32xf32> to vector<1x16x32xf32>
    %69 = tpu.concatenate %61, %62, %63, %64, %65, %66, %67, %68 in 0 : vector<1x16x32xf32>, vector<1x16x32xf32>, vector<1x16x32xf32>, vector<1x16x32xf32>, vector<1x16x32xf32>, vector<1x16x32xf32>, vector<1x16x32xf32>, vector<1x16x32xf32> -> vector<8x16x32xf32>
    %70 = arith.truncf %69 : vector<8x16x32xf32> to vector<8x16x32xbf16>
    "tpu.trace_start"() <{level = 10 : i32, message = "hqd,hkd->hqk"}> : () -> ()
    %cst_9 = arith.constant dense<0.000000e+00> : vector<8x16x16xf32>
    %71 = tpu.matmul %34, %52, %cst_9 {dimension_numbers = #tpu.dot_dimension_numbers<[2], [2], [1], [1], [0, 0, 0, 1, 1, 1], [0], [0]>} : vector<8x16x32xbf16>, vector<8x16x32xbf16>, vector<8x16x16xf32> -> vector<8x16x16xf32>
    "tpu.trace_stop"() : () -> ()
    %c0_10 = arith.constant 0 : index
    %c0_11 = arith.constant 0 : index
    %72 = vector.load %arg2[%c0_10, %c0_11] : memref<16x16xf32, #tpu.memory_space<vmem>>, vector<16x16xf32>
    %73 = vector.shape_cast %72 : vector<16x16xf32> to vector<1x16x16xf32>
    %74 = vector.broadcast %73 : vector<1x16x16xf32> to vector<8x16x16xf32>
    %75 = arith.addf %71, %74 : vector<8x16x16xf32>
    %cst_12 = arith.constant dense<0xFF800000> : vector<8x16xf32>
    %76 = vector.multi_reduction <maximumf>, %75, %cst_12 [2] : vector<8x16x16xf32> to vector<8x16xf32>
    %77 = vector.shape_cast %76 : vector<8x16xf32> to vector<8x16x1xf32>
    %78 = vector.broadcast %77 : vector<8x16x1xf32> to vector<8x16x16xf32>
    %79 = arith.subf %75, %78 : vector<8x16x16xf32>
    %80 = math.exp %79 : vector<8x16x16xf32>
    %cst_13 = arith.constant dense<0.000000e+00> : vector<8x16xf32>
    %81 = vector.multi_reduction <add>, %80, %cst_13 [2] : vector<8x16x16xf32> to vector<8x16xf32>
    %82 = vector.shape_cast %81 : vector<8x16xf32> to vector<8x16x1xf32>
    %83 = vector.broadcast %82 : vector<8x16x1xf32> to vector<8x16x16xf32>
    %84 = arith.divf %80, %83 : vector<8x16x16xf32>
    %85 = arith.truncf %84 : vector<8x16x16xf32> to vector<8x16x16xbf16>
    "tpu.trace_start"() <{level = 10 : i32, message = "hqk,hkd->hqd"}> : () -> ()
    %cst_14 = arith.constant dense<0.000000e+00> : vector<8x16x32xf32>
    %86 = tpu.matmul %85, %70, %cst_14 {dimension_numbers = #tpu.dot_dimension_numbers<[2], [1], [1], [2], [0, 0, 0, 1, 1, 2], [0], [0]>} : vector<8x16x16xbf16>, vector<8x16x32xbf16>, vector<8x16x32xf32> -> vector<8x16x32xf32>
    "tpu.trace_stop"() : () -> ()
    %87 = vector.extract_strided_slice %86 {offsets = [0, 0, 0], sizes = [1, 16, 32], strides = [1, 1, 1]} : vector<8x16x32xf32> to vector<1x16x32xf32>
    %88 = vector.shape_cast %87 : vector<1x16x32xf32> to vector<16x32xf32>
    %89 = vector.extract_strided_slice %86 {offsets = [1, 0, 0], sizes = [1, 16, 32], strides = [1, 1, 1]} : vector<8x16x32xf32> to vector<1x16x32xf32>
    %90 = vector.shape_cast %89 : vector<1x16x32xf32> to vector<16x32xf32>
    %91 = vector.extract_strided_slice %86 {offsets = [2, 0, 0], sizes = [1, 16, 32], strides = [1, 1, 1]} : vector<8x16x32xf32> to vector<1x16x32xf32>
    %92 = vector.shape_cast %91 : vector<1x16x32xf32> to vector<16x32xf32>
    %93 = vector.extract_strided_slice %86 {offsets = [3, 0, 0], sizes = [1, 16, 32], strides = [1, 1, 1]} : vector<8x16x32xf32> to vector<1x16x32xf32>
    %94 = vector.shape_cast %93 : vector<1x16x32xf32> to vector<16x32xf32>
    %95 = vector.extract_strided_slice %86 {offsets = [4, 0, 0], sizes = [1, 16, 32], strides = [1, 1, 1]} : vector<8x16x32xf32> to vector<1x16x32xf32>
    %96 = vector.shape_cast %95 : vector<1x16x32xf32> to vector<16x32xf32>
    %97 = vector.extract_strided_slice %86 {offsets = [5, 0, 0], sizes = [1, 16, 32], strides = [1, 1, 1]} : vector<8x16x32xf32> to vector<1x16x32xf32>
    %98 = vector.shape_cast %97 : vector<1x16x32xf32> to vector<16x32xf32>
    %99 = vector.extract_strided_slice %86 {offsets = [6, 0, 0], sizes = [1, 16, 32], strides = [1, 1, 1]} : vector<8x16x32xf32> to vector<1x16x32xf32>
    %100 = vector.shape_cast %99 : vector<1x16x32xf32> to vector<16x32xf32>
    %101 = vector.extract_strided_slice %86 {offsets = [7, 0, 0], sizes = [1, 16, 32], strides = [1, 1, 1]} : vector<8x16x32xf32> to vector<1x16x32xf32>
    %102 = vector.shape_cast %101 : vector<1x16x32xf32> to vector<16x32xf32>
    %103 = tpu.concatenate %88, %90, %92, %94, %96, %98, %100, %102 in 1 : vector<16x32xf32>, vector<16x32xf32>, vector<16x32xf32>, vector<16x32xf32>, vector<16x32xf32>, vector<16x32xf32>, vector<16x32xf32>, vector<16x32xf32> -> vector<16x256xf32>
    %104 = arith.truncf %103 : vector<16x256xf32> to vector<16x256xbf16>
    %c0_15 = arith.constant 0 : index
    %c0_16 = arith.constant 0 : index
    %c0_17 = arith.constant 0 : index
    %105 = vector.load %arg5[%c0_15, %c0_16, %c0_17] : memref<1x256x256xbf16, #tpu.memory_space<vmem>>, vector<1x256x256xbf16>
    %106 = vector.shape_cast %105 : vector<1x256x256xbf16> to vector<256x256xbf16>
    %cst_18 = arith.constant dense<0.000000e+00> : vector<16x256xf32>
    %107 = tpu.matmul %104, %106, %cst_18 {dimension_numbers = #tpu.dot_dimension_numbers<[1], [0], [0], [1], [0, 0, 1, 1], [], []>} : vector<16x256xbf16>, vector<256x256xbf16>, vector<16x256xf32> -> vector<16x256xf32>
    %c0_19 = arith.constant 0 : index
    %c0_20 = arith.constant 0 : index
    %c0_21 = arith.constant 0 : index
    %108 = vector.load %arg6[%c0_19, %c0_20, %c0_21] : memref<1x1x256xf32, #tpu.memory_space<vmem>>, vector<1x1x256xf32>
    %109 = vector.shape_cast %108 : vector<1x1x256xf32> to vector<1x256xf32>
    %110 = vector.broadcast %109 : vector<1x256xf32> to vector<16x256xf32>
    %111 = arith.addf %107, %110 : vector<16x256xf32>
    %112 = arith.addf %3, %111 : vector<16x256xf32>
    %c0_22 = arith.constant 0 : index
    %c0_23 = arith.constant 0 : index
    %c0_24 = arith.constant 0 : index
    %113 = vector.load %arg11[%c0_22, %c0_23, %c0_24] : memref<1x1x256xf32, #tpu.memory_space<vmem>>, vector<1x1x256xf32>
    %114 = vector.shape_cast %113 : vector<1x1x256xf32> to vector<1x256xf32>
    %c0_25 = arith.constant 0 : index
    %c0_26 = arith.constant 0 : index
    %c0_27 = arith.constant 0 : index
    %115 = vector.load %arg12[%c0_25, %c0_26, %c0_27] : memref<1x1x256xf32, #tpu.memory_space<vmem>>, vector<1x1x256xf32>
    %116 = vector.shape_cast %115 : vector<1x1x256xf32> to vector<1x256xf32>
    %cst_28 = arith.constant dense<0.000000e+00> : vector<16xf32>
    %117 = vector.multi_reduction <add>, %112, %cst_28 [1] : vector<16x256xf32> to vector<16xf32>
    %118 = vector.shape_cast %117 : vector<16xf32> to vector<16x1xf32>
    %cst_29 = arith.constant 2.560000e+02 : f32
    %119 = vector.broadcast %cst_29 : f32 to vector<16x1xf32>
    %120 = arith.divf %118, %119 : vector<16x1xf32>
    %121 = vector.broadcast %120 : vector<16x1xf32> to vector<16x256xf32>
    %122 = arith.subf %112, %121 : vector<16x256xf32>
    %123 = arith.mulf %122, %122 : vector<16x256xf32>
    %cst_30 = arith.constant dense<0.000000e+00> : vector<16xf32>
    %124 = vector.multi_reduction <add>, %123, %cst_30 [1] : vector<16x256xf32> to vector<16xf32>
    %125 = vector.shape_cast %124 : vector<16xf32> to vector<16x1xf32>
    %cst_31 = arith.constant 2.560000e+02 : f32
    %126 = vector.broadcast %cst_31 : f32 to vector<16x1xf32>
    %127 = arith.divf %125, %126 : vector<16x1xf32>
    %128 = vector.broadcast %120 : vector<16x1xf32> to vector<16x256xf32>
    %129 = arith.subf %112, %128 : vector<16x256xf32>
    %cst_32 = arith.constant 9.99999974E-6 : f32
    %130 = vector.broadcast %cst_32 : f32 to vector<16x1xf32>
    %131 = arith.addf %127, %130 : vector<16x1xf32>
    %132 = math.rsqrt %131 : vector<16x1xf32>
    %133 = vector.broadcast %132 : vector<16x1xf32> to vector<16x256xf32>
    %134 = arith.mulf %129, %133 : vector<16x256xf32>
    %135 = vector.broadcast %114 : vector<1x256xf32> to vector<16x256xf32>
    %136 = arith.mulf %134, %135 : vector<16x256xf32>
    %137 = vector.broadcast %116 : vector<1x256xf32> to vector<16x256xf32>
    %138 = arith.addf %136, %137 : vector<16x256xf32>
    %139 = arith.truncf %138 : vector<16x256xf32> to vector<16x256xbf16>
    %cst_33 = arith.constant 0.000000e+00 : f32
    %140 = vector.broadcast %cst_33 : f32 to vector<16x256xf32>
    %c0_34 = arith.constant 0 : index
    %c0_35 = arith.constant 0 : index
    %c0_36 = arith.constant 0 : index
    %141 = vector.load %arg7[%c0_34, %c0_35, %c0_36] : memref<1x256x2048xbf16, #tpu.memory_space<vmem>>, vector<1x256x512xbf16>
    %142 = vector.shape_cast %141 : vector<1x256x512xbf16> to vector<256x512xbf16>
    %cst_37 = arith.constant dense<0.000000e+00> : vector<16x512xf32>
    %143 = tpu.matmul %139, %142, %cst_37 {dimension_numbers = #tpu.dot_dimension_numbers<[1], [0], [0], [1], [0, 0, 1, 1], [], []>} : vector<16x256xbf16>, vector<256x512xbf16>, vector<16x512xf32> -> vector<16x512xf32>
    %c0_38 = arith.constant 0 : index
    %c0_39 = arith.constant 0 : index
    %c0_40 = arith.constant 0 : index
    %144 = vector.load %arg8[%c0_38, %c0_39, %c0_40] : memref<1x1x2048xf32, #tpu.memory_space<vmem>>, vector<1x1x512xf32>
    %145 = vector.shape_cast %144 : vector<1x1x512xf32> to vector<1x512xf32>
    %146 = vector.broadcast %145 : vector<1x512xf32> to vector<16x512xf32>
    %147 = arith.addf %143, %146 : vector<16x512xf32>
    %cst_41 = arith.constant 0.000000e+00 : f32
    %148 = vector.broadcast %cst_41 : f32 to vector<16x512xf32>
    %149 = arith.maximumf %147, %148 : vector<16x512xf32>
    %150 = arith.truncf %149 : vector<16x512xf32> to vector<16x512xbf16>
    %c0_42 = arith.constant 0 : index
    %c0_43 = arith.constant 0 : index
    %c0_44 = arith.constant 0 : index
    %151 = vector.load %arg9[%c0_42, %c0_43, %c0_44] : memref<1x2048x256xbf16, #tpu.memory_space<vmem>>, vector<1x512x256xbf16>
    %152 = vector.shape_cast %151 : vector<1x512x256xbf16> to vector<512x256xbf16>
    %cst_45 = arith.constant dense<0.000000e+00> : vector<16x256xf32>
    %153 = tpu.matmul %150, %152, %cst_45 {dimension_numbers = #tpu.dot_dimension_numbers<[1], [0], [0], [1], [0, 0, 1, 1], [], []>} : vector<16x512xbf16>, vector<512x256xbf16>, vector<16x256xf32> -> vector<16x256xf32>
    %154 = arith.addf %140, %153 : vector<16x256xf32>
    %c0_46 = arith.constant 0 : index
    %c0_47 = arith.constant 0 : index
    %c512 = arith.constant 512 : index
    %155 = vector.load %arg7[%c0_46, %c0_47, %c512] : memref<1x256x2048xbf16, #tpu.memory_space<vmem>>, vector<1x256x512xbf16>
    %156 = vector.shape_cast %155 : vector<1x256x512xbf16> to vector<256x512xbf16>
    %cst_48 = arith.constant dense<0.000000e+00> : vector<16x512xf32>
    %157 = tpu.matmul %139, %156, %cst_48 {dimension_numbers = #tpu.dot_dimension_numbers<[1], [0], [0], [1], [0, 0, 1, 1], [], []>} : vector<16x256xbf16>, vector<256x512xbf16>, vector<16x512xf32> -> vector<16x512xf32>
    %c0_49 = arith.constant 0 : index
    %c0_50 = arith.constant 0 : index
    %c512_51 = arith.constant 512 : index
    %158 = vector.load %arg8[%c0_49, %c0_50, %c512_51] : memref<1x1x2048xf32, #tpu.memory_space<vmem>>, vector<1x1x512xf32>
    %159 = vector.shape_cast %158 : vector<1x1x512xf32> to vector<1x512xf32>
    %160 = vector.broadcast %159 : vector<1x512xf32> to vector<16x512xf32>
    %161 = arith.addf %157, %160 : vector<16x512xf32>
    %cst_52 = arith.constant 0.000000e+00 : f32
    %162 = vector.broadcast %cst_52 : f32 to vector<16x512xf32>
    %163 = arith.maximumf %161, %162 : vector<16x512xf32>
    %164 = arith.truncf %163 : vector<16x512xf32> to vector<16x512xbf16>
    %c0_53 = arith.constant 0 : index
    %c512_54 = arith.constant 512 : index
    %c0_55 = arith.constant 0 : index
    %165 = vector.load %arg9[%c0_53, %c512_54, %c0_55] : memref<1x2048x256xbf16, #tpu.memory_space<vmem>>, vector<1x512x256xbf16>
    %166 = vector.shape_cast %165 : vector<1x512x256xbf16> to vector<512x256xbf16>
    %cst_56 = arith.constant dense<0.000000e+00> : vector<16x256xf32>
    %167 = tpu.matmul %164, %166, %cst_56 {dimension_numbers = #tpu.dot_dimension_numbers<[1], [0], [0], [1], [0, 0, 1, 1], [], []>} : vector<16x512xbf16>, vector<512x256xbf16>, vector<16x256xf32> -> vector<16x256xf32>
    %168 = arith.addf %154, %167 : vector<16x256xf32>
    %c0_57 = arith.constant 0 : index
    %c0_58 = arith.constant 0 : index
    %c1024 = arith.constant 1024 : index
    %169 = vector.load %arg7[%c0_57, %c0_58, %c1024] : memref<1x256x2048xbf16, #tpu.memory_space<vmem>>, vector<1x256x512xbf16>
    %170 = vector.shape_cast %169 : vector<1x256x512xbf16> to vector<256x512xbf16>
    %cst_59 = arith.constant dense<0.000000e+00> : vector<16x512xf32>
    %171 = tpu.matmul %139, %170, %cst_59 {dimension_numbers = #tpu.dot_dimension_numbers<[1], [0], [0], [1], [0, 0, 1, 1], [], []>} : vector<16x256xbf16>, vector<256x512xbf16>, vector<16x512xf32> -> vector<16x512xf32>
    %c0_60 = arith.constant 0 : index
    %c0_61 = arith.constant 0 : index
    %c1024_62 = arith.constant 1024 : index
    %172 = vector.load %arg8[%c0_60, %c0_61, %c1024_62] : memref<1x1x2048xf32, #tpu.memory_space<vmem>>, vector<1x1x512xf32>
    %173 = vector.shape_cast %172 : vector<1x1x512xf32> to vector<1x512xf32>
    %174 = vector.broadcast %173 : vector<1x512xf32> to vector<16x512xf32>
    %175 = arith.addf %171, %174 : vector<16x512xf32>
    %cst_63 = arith.constant 0.000000e+00 : f32
    %176 = vector.broadcast %cst_63 : f32 to vector<16x512xf32>
    %177 = arith.maximumf %175, %176 : vector<16x512xf32>
    %178 = arith.truncf %177 : vector<16x512xf32> to vector<16x512xbf16>
    %c0_64 = arith.constant 0 : index
    %c1024_65 = arith.constant 1024 : index
    %c0_66 = arith.constant 0 : index
    %179 = vector.load %arg9[%c0_64, %c1024_65, %c0_66] : memref<1x2048x256xbf16, #tpu.memory_space<vmem>>, vector<1x512x256xbf16>
    %180 = vector.shape_cast %179 : vector<1x512x256xbf16> to vector<512x256xbf16>
    %cst_67 = arith.constant dense<0.000000e+00> : vector<16x256xf32>
    %181 = tpu.matmul %178, %180, %cst_67 {dimension_numbers = #tpu.dot_dimension_numbers<[1], [0], [0], [1], [0, 0, 1, 1], [], []>} : vector<16x512xbf16>, vector<512x256xbf16>, vector<16x256xf32> -> vector<16x256xf32>
    %182 = arith.addf %168, %181 : vector<16x256xf32>
    %c0_68 = arith.constant 0 : index
    %c0_69 = arith.constant 0 : index
    %c1536 = arith.constant 1536 : index
    %183 = vector.load %arg7[%c0_68, %c0_69, %c1536] : memref<1x256x2048xbf16, #tpu.memory_space<vmem>>, vector<1x256x512xbf16>
    %184 = vector.shape_cast %183 : vector<1x256x512xbf16> to vector<256x512xbf16>
    %cst_70 = arith.constant dense<0.000000e+00> : vector<16x512xf32>
    %185 = tpu.matmul %139, %184, %cst_70 {dimension_numbers = #tpu.dot_dimension_numbers<[1], [0], [0], [1], [0, 0, 1, 1], [], []>} : vector<16x256xbf16>, vector<256x512xbf16>, vector<16x512xf32> -> vector<16x512xf32>
    %c0_71 = arith.constant 0 : index
    %c0_72 = arith.constant 0 : index
    %c1536_73 = arith.constant 1536 : index
    %186 = vector.load %arg8[%c0_71, %c0_72, %c1536_73] : memref<1x1x2048xf32, #tpu.memory_space<vmem>>, vector<1x1x512xf32>
    %187 = vector.shape_cast %186 : vector<1x1x512xf32> to vector<1x512xf32>
    %188 = vector.broadcast %187 : vector<1x512xf32> to vector<16x512xf32>
    %189 = arith.addf %185, %188 : vector<16x512xf32>
    %cst_74 = arith.constant 0.000000e+00 : f32
    %190 = vector.broadcast %cst_74 : f32 to vector<16x512xf32>
    %191 = arith.maximumf %189, %190 : vector<16x512xf32>
    %192 = arith.truncf %191 : vector<16x512xf32> to vector<16x512xbf16>
    %c0_75 = arith.constant 0 : index
    %c1536_76 = arith.constant 1536 : index
    %c0_77 = arith.constant 0 : index
    %193 = vector.load %arg9[%c0_75, %c1536_76, %c0_77] : memref<1x2048x256xbf16, #tpu.memory_space<vmem>>, vector<1x512x256xbf16>
    %194 = vector.shape_cast %193 : vector<1x512x256xbf16> to vector<512x256xbf16>
    %cst_78 = arith.constant dense<0.000000e+00> : vector<16x256xf32>
    %195 = tpu.matmul %192, %194, %cst_78 {dimension_numbers = #tpu.dot_dimension_numbers<[1], [0], [0], [1], [0, 0, 1, 1], [], []>} : vector<16x512xbf16>, vector<512x256xbf16>, vector<16x256xf32> -> vector<16x256xf32>
    %196 = arith.addf %182, %195 : vector<16x256xf32>
    %197 = arith.addf %138, %196 : vector<16x256xf32>
    %c0_79 = arith.constant 0 : index
    %c0_80 = arith.constant 0 : index
    %c0_81 = arith.constant 0 : index
    %198 = vector.load %arg10[%c0_79, %c0_80, %c0_81] : memref<1x1x256xf32, #tpu.memory_space<vmem>>, vector<1x1x256xf32>
    %199 = vector.shape_cast %198 : vector<1x1x256xf32> to vector<1x256xf32>
    %200 = vector.broadcast %199 : vector<1x256xf32> to vector<16x256xf32>
    %201 = arith.addf %197, %200 : vector<16x256xf32>
    %c0_82 = arith.constant 0 : index
    %c0_83 = arith.constant 0 : index
    %c0_84 = arith.constant 0 : index
    %202 = vector.load %arg13[%c0_82, %c0_83, %c0_84] : memref<1x1x256xf32, #tpu.memory_space<vmem>>, vector<1x1x256xf32>
    %203 = vector.shape_cast %202 : vector<1x1x256xf32> to vector<1x256xf32>
    %c0_85 = arith.constant 0 : index
    %c0_86 = arith.constant 0 : index
    %c0_87 = arith.constant 0 : index
    %204 = vector.load %arg14[%c0_85, %c0_86, %c0_87] : memref<1x1x256xf32, #tpu.memory_space<vmem>>, vector<1x1x256xf32>
    %205 = vector.shape_cast %204 : vector<1x1x256xf32> to vector<1x256xf32>
    %cst_88 = arith.constant dense<0.000000e+00> : vector<16xf32>
    %206 = vector.multi_reduction <add>, %201, %cst_88 [1] : vector<16x256xf32> to vector<16xf32>
    %207 = vector.shape_cast %206 : vector<16xf32> to vector<16x1xf32>
    %cst_89 = arith.constant 2.560000e+02 : f32
    %208 = vector.broadcast %cst_89 : f32 to vector<16x1xf32>
    %209 = arith.divf %207, %208 : vector<16x1xf32>
    %210 = vector.broadcast %209 : vector<16x1xf32> to vector<16x256xf32>
    %211 = arith.subf %201, %210 : vector<16x256xf32>
    %212 = arith.mulf %211, %211 : vector<16x256xf32>
    %cst_90 = arith.constant dense<0.000000e+00> : vector<16xf32>
    %213 = vector.multi_reduction <add>, %212, %cst_90 [1] : vector<16x256xf32> to vector<16xf32>
    %214 = vector.shape_cast %213 : vector<16xf32> to vector<16x1xf32>
    %cst_91 = arith.constant 2.560000e+02 : f32
    %215 = vector.broadcast %cst_91 : f32 to vector<16x1xf32>
    %216 = arith.divf %214, %215 : vector<16x1xf32>
    %217 = vector.broadcast %209 : vector<16x1xf32> to vector<16x256xf32>
    %218 = arith.subf %201, %217 : vector<16x256xf32>
    %cst_92 = arith.constant 9.99999974E-6 : f32
    %219 = vector.broadcast %cst_92 : f32 to vector<16x1xf32>
    %220 = arith.addf %216, %219 : vector<16x1xf32>
    %221 = math.rsqrt %220 : vector<16x1xf32>
    %222 = vector.broadcast %221 : vector<16x1xf32> to vector<16x256xf32>
    %223 = arith.mulf %218, %222 : vector<16x256xf32>
    %224 = vector.broadcast %203 : vector<1x256xf32> to vector<16x256xf32>
    %225 = arith.mulf %223, %224 : vector<16x256xf32>
    %226 = vector.broadcast %205 : vector<1x256xf32> to vector<16x256xf32>
    %227 = arith.addf %225, %226 : vector<16x256xf32>
    %c0_93 = arith.constant 0 : index
    %c0_94 = arith.constant 0 : index
    %228 = vector.load %arg18[%c0_93, %c0_94] : memref<16x256xf32, #tpu.memory_space<vmem>>, vector<16x256xf32>
    tpu.vector_store %arg18[%c0_93, %c0_94], %227 {strides = array<i32>} : memref<16x256xf32, #tpu.memory_space<vmem>>, vector<16x256xf32>,
    %c1_i32 = arith.constant 1 : i32
    %229 = arith.cmpi eq, %arg0, %c1_i32 : i32
    %230 = arith.extui %229 : i1 to i32
    %c0_i32_95 = arith.constant 0 : i32
    %231 = arith.cmpi ne, %230, %c0_i32_95 : i32
    scf.if %231 {
      %232 = arith.cmpf one, %227, %227 : vector<16x256xf32>
      %cst_96 = arith.constant 0.000000e+00 : f32
      %233 = vector.broadcast %cst_96 : f32 to vector<16x256xf32>
      %234 = arith.select %232, %233, %227 : vector<16x256xi1>, vector<16x256xf32>
      %235 = arith.truncf %234 : vector<16x256xf32> to vector<16x256xbf16>
      %c0_97 = arith.constant 0 : index
      %c0_98 = arith.constant 0 : index
      %236 = vector.load %arg15[%c0_97, %c0_98] : memref<256x128xbf16, #tpu.memory_space<vmem>>, vector<256x128xbf16>
      %cst_99 = arith.constant dense<0.000000e+00> : vector<16x128xf32>
      %237 = tpu.matmul %235, %236, %cst_99 {dimension_numbers = #tpu.dot_dimension_numbers<[1], [0], [0], [1], [0, 0, 1, 1], [], []>} : vector<16x256xbf16>, vector<256x128xbf16>, vector<16x128xf32> -> vector<16x128xf32>
      %c0_100 = arith.constant 0 : index
      %c0_101 = arith.constant 0 : index
      %238 = vector.load %arg16[%c0_100, %c0_101] : memref<1x128xf32, #tpu.memory_space<vmem>>, vector<1x128xf32>
      %239 = vector.broadcast %238 : vector<1x128xf32> to vector<16x128xf32>
      %240 = arith.addf %237, %239 : vector<16x128xf32>
      %c0_102 = arith.constant 0 : index
      %c0_103 = arith.constant 0 : index
      %241 = vector.load %arg17[%c0_102, %c0_103] : memref<16x128xf32, #tpu.memory_space<vmem>>, vector<16x128xf32>
      tpu.vector_store %arg17[%c0_102, %c0_103], %240 {strides = array<i32>} : memref<16x128xf32, #tpu.memory_space<vmem>>, vector<16x128xf32>,
    } else {
    }
    return
  }
  func.func @transform_0(%arg0: i32) -> (i32, i32) {
    %c0_i32 = arith.constant 0 : i32
    %c0_i32_0 = arith.constant 0 : i32
    %c0_i32_1 = arith.constant 0 : i32
    return %c0_i32, %c0_i32_0 : i32, i32
  }
  func.func @transform_1(%arg0: i32) -> (i32, i32) {
    %c0_i32 = arith.constant 0 : i32
    %c0_i32_0 = arith.constant 0 : i32
    %c0_i32_1 = arith.constant 0 : i32
    return %c0_i32, %c0_i32_0 : i32, i32
  }
  func.func @transform_2(%arg0: i32) -> (i32, i32, i32) {
    %c0_i32 = arith.constant 0 : i32
    %c0_i32_0 = arith.constant 0 : i32
    %c0_i32_1 = arith.constant 0 : i32
    return %arg0, %c0_i32, %c0_i32_0 : i32, i32, i32
  }
  func.func @transform_3(%arg0: i32) -> (i32, i32, i32) {
    %c0_i32 = arith.constant 0 : i32
    %c0_i32_0 = arith.constant 0 : i32
    %c0_i32_1 = arith.constant 0 : i32
    return %arg0, %c0_i32, %c0_i32_0 : i32, i32, i32
  }
  func.func @transform_4(%arg0: i32) -> (i32, i32, i32) {
    %c0_i32 = arith.constant 0 : i32
    %c0_i32_0 = arith.constant 0 : i32
    %c0_i32_1 = arith.constant 0 : i32
    return %arg0, %c0_i32, %c0_i32_0 : i32, i32, i32
  }
  func.func @transform_5(%arg0: i32) -> (i32, i32, i32) {
    %c0_i32 = arith.constant 0 : i32
    %c0_i32_0 = arith.constant 0 : i32
    %c0_i32_1 = arith.constant 0 : i32
    return %arg0, %c0_i32, %c0_i32_0 : i32, i32, i32
  }
  func.func @transform_6(%arg0: i32) -> (i32, i32, i32) {
    %c0_i32 = arith.constant 0 : i32
    %c0_i32_0 = arith.constant 0 : i32
    %c0_i32_1 = arith.constant 0 : i32
    return %arg0, %c0_i32, %c0_i32_0 : i32, i32, i32
  }
  func.func @transform_7(%arg0: i32) -> (i32, i32, i32) {
    %c0_i32 = arith.constant 0 : i32
    %c0_i32_0 = arith.constant 0 : i32
    %c0_i32_1 = arith.constant 0 : i32
    return %arg0, %c0_i32, %c0_i32_0 : i32, i32, i32
  }
  func.func @transform_8(%arg0: i32) -> (i32, i32, i32) {
    %c0_i32 = arith.constant 0 : i32
    %c0_i32_0 = arith.constant 0 : i32
    %c0_i32_1 = arith.constant 0 : i32
    return %arg0, %c0_i32, %c0_i32_0 : i32, i32, i32
  }
  func.func @transform_9(%arg0: i32) -> (i32, i32, i32) {
    %c0_i32 = arith.constant 0 : i32
    %c0_i32_0 = arith.constant 0 : i32
    %c0_i32_1 = arith.constant 0 : i32
    return %arg0, %c0_i32, %c0_i32_0 : i32, i32, i32
  }
  func.func @transform_10(%arg0: i32) -> (i32, i32, i32) {
    %c0_i32 = arith.constant 0 : i32
    %c0_i32_0 = arith.constant 0 : i32
    %c0_i32_1 = arith.constant 0 : i32
    return %arg0, %c0_i32, %c0_i32_0 : i32, i32, i32
  }
  func.func @transform_11(%arg0: i32) -> (i32, i32, i32) {
    %c0_i32 = arith.constant 0 : i32
    %c0_i32_0 = arith.constant 0 : i32
    %c0_i32_1 = arith.constant 0 : i32
    return %arg0, %c0_i32, %c0_i32_0 : i32, i32, i32
  }
  func.func @transform_12(%arg0: i32) -> (i32, i32, i32) {
    %c0_i32 = arith.constant 0 : i32
    %c0_i32_0 = arith.constant 0 : i32
    %c0_i32_1 = arith.constant 0 : i32
    return %arg0, %c0_i32, %c0_i32_0 : i32, i32, i32
  }
  func.func @transform_13(%arg0: i32) -> (i32, i32, i32) {
    %c0_i32 = arith.constant 0 : i32
    %c0_i32_0 = arith.constant 0 : i32
    %c0_i32_1 = arith.constant 0 : i32
    return %arg0, %c0_i32, %c0_i32_0 : i32, i32, i32
  }
  func.func @transform_14(%arg0: i32) -> (i32, i32) {
    %c0_i32 = arith.constant 0 : i32
    %c0_i32_0 = arith.constant 0 : i32
    %c0_i32_1 = arith.constant 0 : i32
    return %c0_i32, %c0_i32_0 : i32, i32
  }
  func.func @transform_15(%arg0: i32) -> (i32, i32) {
    %c0_i32 = arith.constant 0 : i32
    %c0_i32_0 = arith.constant 0 : i32
    %c0_i32_1 = arith.constant 0 : i32
    return %c0_i32, %c0_i32_0 : i32, i32
  }
  func.func @transform_16(%arg0: i32) -> (i32, i32) {
    %c0_i32 = arith.constant 0 : i32
    %c0_i32_0 = arith.constant 0 : i32
    %c0_i32_1 = arith.constant 0 : i32
    return %c0_i32, %c0_i32_0 : i32, i32
  }
}

</mosaic_0001>

<llo_original>
// kernel: tpu_custom_call.1
$region0: #{tpu_custom_call.1}
  #allocation0 [shape = 'u32[]', space=smem, size = 0x4, offset = 0x4, fixed_abs, tag = 'smem constant byte address 0x4 - core index']
  #allocation1 [shape = 'u32[144,128]{1,0:T(1,128)}', space=vmem, size = 0x12000, scoped, tag = 'internal scratch']
  #allocation2 [shape = 'f32[16,256]{1,0:T(8,128)}', space=vmem, size = 0x4000, scoped, tag = 'scratch operand']
  %s0 = inlined_call_operand.hbm [shape: f32[16,256], index: 0, kind: input, shape index: {}]
  %s1 = inlined_call_operand.hbm [shape: f32[16,16], index: 1, kind: input, shape index: {}]
  %s2 = inlined_call_operand.hbm [shape: bf16[2,256,768], index: 2, kind: input, shape index: {}]
  %s3 = inlined_call_operand.hbm [shape: f32[2,1,768], index: 3, kind: input, shape index: {}]
  %s4 = inlined_call_operand.hbm [shape: bf16[2,256,256], index: 4, kind: input, shape index: {}]
  %s5 = inlined_call_operand.hbm [shape: f32[2,1,256], index: 5, kind: input, shape index: {}]
  %s6 = inlined_call_operand.hbm [shape: bf16[2,256,2048], index: 6, kind: input, shape index: {}]
  %s7 = inlined_call_operand.hbm [shape: f32[2,1,2048], index: 7, kind: input, shape index: {}]
  %s8 = inlined_call_operand.hbm [shape: bf16[2,2048,256], index: 8, kind: input, shape index: {}]
  %s9 = inlined_call_operand.hbm [shape: f32[2,1,256], index: 9, kind: input, shape index: {}]
  %s10 = inlined_call_operand.hbm [shape: f32[2,1,256], index: 10, kind: input, shape index: {}]
  %s11 = inlined_call_operand.hbm [shape: f32[2,1,256], index: 11, kind: input, shape index: {}]
  %s12 = inlined_call_operand.hbm [shape: f32[2,1,256], index: 12, kind: input, shape index: {}]
  %s13 = inlined_call_operand.hbm [shape: f32[2,1,256], index: 13, kind: input, shape index: {}]
  %s14 = inlined_call_operand.hbm [shape: bf16[256,128], index: 14, kind: input, shape index: {}]
  %s15 = inlined_call_operand.hbm [shape: f32[1,128], index: 15, kind: input, shape index: {}]
  %s16 = inlined_call_operand.hbm [shape: f32[16,128], index: 16, kind: output, shape index: {}]
  %s17 = sld [smem:[#allocation0]]
  $region169: #{tpu_custom_call.1} parent=0
    _
  %s19 = ssub.s32 1, %s17
  %s20 = scalar_select 0, %s19, %s17
  $region1: #{tpu_custom_call.1} parent=0
    #allocation3 [shape = 'u8[16384]{0}', space=vmem, size = 0x4000, scoped, tag = 'input window, operand 0, single buffered']
    #allocation4 [shape = 's32[2]{0}', space=sflag, size = 0x8, scoped, tag = 'scoped memory for tpu_custom_call.1']
    #allocation5 [shape = 's32[2]{0}', space=sflag, size = 0x8, scoped, tag = 'scoped memory for tpu_custom_call.1']
    #allocation6 [shape = 'u8[8192]{0}', space=vmem, size = 0x2000, scoped, tag = 'input window, operand 1, single buffered']
    #allocation7 [shape = 's32[1]{0}', space=sflag, size = 0x4, scoped, tag = 'scoped memory for tpu_custom_call.1']
    #allocation8 [shape = 'u8[786432]{0}', space=vmem, size = 0xc0000, scoped, tag = 'input window, operand 2']
    #allocation9 [shape = 'u8[6144]{0}', space=vmem, size = 0x1800, scoped, tag = 'input window, operand 3']
    #allocation10 [shape = 'u8[262144]{0}', space=vmem, size = 0x40000, scoped, tag = 'input window, operand 4']
    #allocation11 [shape = 'u8[2048]{0}', space=vmem, size = 0x800, scoped, tag = 'input window, operand 5']
    #allocation12 [shape = 'u8[2097152]{0}', space=vmem, size = 0x200000, scoped, tag = 'input window, operand 6']
    #allocation13 [shape = 'u8[16384]{0}', space=vmem, size = 0x4000, scoped, tag = 'input window, operand 7']
    #allocation14 [shape = 'u8[2097152]{0}', space=vmem, size = 0x200000, scoped, tag = 'input window, operand 8']
    #allocation15 [shape = 'u8[2048]{0}', space=vmem, size = 0x800, scoped, tag = 'input window, operand 9']
    #allocation16 [shape = 'u8[2048]{0}', space=vmem, size = 0x800, scoped, tag = 'input window, operand 10']
    #allocation17 [shape = 'u8[2048]{0}', space=vmem, size = 0x800, scoped, tag = 'input window, operand 11']
    #allocation18 [shape = 'u8[2048]{0}', space=vmem, size = 0x800, scoped, tag = 'input window, operand 12']
    #allocation19 [shape = 'u8[2048]{0}', space=vmem, size = 0x800, scoped, tag = 'input window, operand 13']
    #allocation20 [shape = 'u8[65536]{0}', space=vmem, size = 0x10000, scoped, tag = 'input window, operand 14, single buffered']
    #allocation21 [shape = 'u8[512]{0}', space=vmem, size = 0x400, scoped, tag = 'input window, operand 15, single buffered']
    #allocation22 [shape = 's32[1]{0}', space=sflag, size = 0x4, scoped, tag = 'scoped memory for tpu_custom_call.1']
    #allocation23 [shape = 'u8[8192]{0}', space=vmem, size = 0x2000, scoped, tag = 'output window, operand 0, single buffered']
    %21 = vsyncpa [#allocation4], 0
    %22 = vsyncpa [#allocation7], 0
    %23 = vsyncpa [#allocation22], 0
    %24 = vsyncpa [#allocation5], 0
    loop: start=0, step=1, limit=4
    $region2: #{tpu_custom_call.1} parent=1 // loop_pre_header
      _
    $region3: #{tpu_custom_call.1} parent=1 // loop_header
      %s26 = sphi 0, %s30
      %p27 = scmp.ge.s32.totalorder %s26, 4
      %s34 = sphi 0, %s34
      %s36 = sphi 0, %s34
      %s37 = sphi 0, %s36
      %s51 = sphi 0, %s37
      %s55 = sphi 0, %s55
      %s57 = sphi 0, %s55
      %s58 = sphi 0, %s57
      %s72 = sphi 0, %s58
      %s78 = sphi 0, %s80
      %s81 = sphi 0, %s78
      %s82 = sphi 0, %s81
      %s98 = sphi 0, %s82
      %s104 = sphi 0, %s106
      %s107 = sphi 0, %s104
      %s108 = sphi 0, %s107
      %s124 = sphi 0, %s108
      %s130 = sphi 0, %s132
      %s133 = sphi 0, %s130
      %s134 = sphi 0, %s133
      %s150 = sphi 0, %s134
      %s156 = sphi 0, %s158
      %s159 = sphi 0, %s156
      %s160 = sphi 0, %s159
      %s176 = sphi 0, %s160
      %s182 = sphi 0, %s184
      %s185 = sphi 0, %s182
      %s186 = sphi 0, %s185
      %s202 = sphi 0, %s186
      %s208 = sphi 0, %s210
      %s211 = sphi 0, %s208
      %s212 = sphi 0, %s211
      %s228 = sphi 0, %s212
      %s234 = sphi 0, %s236
      %s237 = sphi 0, %s234
      %s238 = sphi 0, %s237
      %s254 = sphi 0, %s238
      %s260 = sphi 0, %s262
      %s263 = sphi 0, %s260
      %s264 = sphi 0, %s263
      %s280 = sphi 0, %s264
      %s286 = sphi 0, %s288
      %s289 = sphi 0, %s286
      %s290 = sphi 0, %s289
      %s306 = sphi 0, %s290
      %s312 = sphi 0, %s314
      %s315 = sphi 0, %s312
      %s316 = sphi 0, %s315
      %s332 = sphi 0, %s316
      %s338 = sphi 0, %s340
      %s341 = sphi 0, %s338
      %s342 = sphi 0, %s341
      %s358 = sphi 0, %s342
      %s364 = sphi 0, %s366
      %s367 = sphi 0, %s364
      %s368 = sphi 0, %s367
      %s384 = sphi 0, %s368
      %s388 = sphi 0, %s388
      %s390 = sphi 0, %s388
      %s391 = sphi 0, %s390
      %s405 = sphi 0, %s391
      %s409 = sphi 0, %s409
      %s411 = sphi 0, %s409
      %s412 = sphi 0, %s411
      %s426 = sphi 0, %s412
      %s430 = sphi 0, %s430
      %s432 = sphi 0, %s430
      %s433 = sphi 0, %s432
      %s447 = sphi 0, %s433
    $region4: #{tpu_custom_call.1} parent=1 // loop_header_branch
      %29 = sbr.rel (%p27) target = $region8
    $region5: #{tpu_custom_call.1} parent=1 // loop_body
      %s31 = ssub.s32 %s26, 1
      %s32 = ssub.s32 %s26, 2
      %s33 = sadd.s32 %s26, 1
      %s35 = sadd.s32 %s34, 1
      %p38 = scmp.eq.s32.totalorder %s26, 1
      %p39 = scmp.ne.s32.totalorder %s34, %s36
      %p40 = scmp.eq.s32.totalorder %s26, 0
      %p41 = por %p39, %p40
      %p42 = scmp.ne.s32.totalorder %s34, %s36
      %p43 = scmp.eq.s32.totalorder %s31, 1
      %p44 = por %p42, %p43
      %p45 = scmp.ne.s32.totalorder %s36, %s37
      %p46 = scmp.eq.s32.totalorder %s31, 0
      %p47 = por %p45, %p46
      %p48 = scmp.ne.s32.totalorder %s36, %s37
      %p49 = scmp.eq.s32.totalorder %s32, 1
      %p50 = por %p48, %p49
      %p52 = scmp.ne.s32.totalorder %s37, %s51
      %p53 = scmp.eq.s32.totalorder %s32, 0
      %p54 = por %p52, %p53
      %s56 = sadd.s32 %s55, 1
      %p59 = scmp.eq.s32.totalorder %s26, 1
      %p60 = scmp.ne.s32.totalorder %s55, %s57
      %p61 = scmp.eq.s32.totalorder %s26, 0
      %p62 = por %p60, %p61
      %p63 = scmp.ne.s32.totalorder %s55, %s57
      %p64 = scmp.eq.s32.totalorder %s31, 1
      %p65 = por %p63, %p64
      %p66 = scmp.ne.s32.totalorder %s57, %s58
      %p67 = scmp.eq.s32.totalorder %s31, 0
      %p68 = por %p66, %p67
      %p69 = scmp.ne.s32.totalorder %s57, %s58
      %p70 = scmp.eq.s32.totalorder %s32, 1
      %p71 = por %p69, %p70
      %p73 = scmp.ne.s32.totalorder %s58, %s72
      %p74 = scmp.eq.s32.totalorder %s32, 0
      %p75 = por %p73, %p74
      %s76 = ssub.s32 %s26, %s33
      %p77 = scmp.eq.s32.totalorder %s76, 0
      %s79 = sadd.s32 %s78, 1
      %s80 = scalar_select %p77, %s78, %s79
      %p83 = pneg %p77
      %p84 = scmp.eq.s32.totalorder %s26, 1
      %p85 = por %p83, %p84
      %p86 = scmp.ne.s32.totalorder %s78, %s81
      %p87 = scmp.eq.s32.totalorder %s26, 0
      %p88 = por %p86, %p87
      %p89 = scmp.ne.s32.totalorder %s78, %s81
      %p90 = scmp.eq.s32.totalorder %s31, 1
      %p91 = por %p89, %p90
      %p92 = scmp.ne.s32.totalorder %s81, %s82
      %p93 = scmp.eq.s32.totalorder %s31, 0
      %p94 = por %p92, %p93
      %p95 = scmp.ne.s32.totalorder %s81, %s82
      %p96 = scmp.eq.s32.totalorder %s32, 1
      %p97 = por %p95, %p96
      %p99 = scmp.ne.s32.totalorder %s82, %s98
      %p100 = scmp.eq.s32.totalorder %s32, 0
      %p101 = por %p99, %p100
      %s102 = ssub.s32 %s26, %s33
      %p103 = scmp.eq.s32.totalorder %s102, 0
      %s105 = sadd.s32 %s104, 1
      %s106 = scalar_select %p103, %s104, %s105
      %p109 = pneg %p103
      %p110 = scmp.eq.s32.totalorder %s26, 1
      %p111 = por %p109, %p110
      %p112 = scmp.ne.s32.totalorder %s104, %s107
      %p113 = scmp.eq.s32.totalorder %s26, 0
      %p114 = por %p112, %p113
      %p115 = scmp.ne.s32.totalorder %s104, %s107
      %p116 = scmp.eq.s32.totalorder %s31, 1
      %p117 = por %p115, %p116
      %p118 = scmp.ne.s32.totalorder %s107, %s108
      %p119 = scmp.eq.s32.totalorder %s31, 0
      %p120 = por %p118, %p119
      %p121 = scmp.ne.s32.totalorder %s107, %s108
      %p122 = scmp.eq.s32.totalorder %s32, 1
      %p123 = por %p121, %p122
      %p125 = scmp.ne.s32.totalorder %s108, %s124
      %p126 = scmp.eq.s32.totalorder %s32, 0
      %p127 = por %p125, %p126
      %s128 = ssub.s32 %s26, %s33
      %p129 = scmp.eq.s32.totalorder %s128, 0
      %s131 = sadd.s32 %s130, 1
      %s132 = scalar_select %p129, %s130, %s131
      %p135 = pneg %p129
      %p136 = scmp.eq.s32.totalorder %s26, 1
      %p137 = por %p135, %p136
      %p138 = scmp.ne.s32.totalorder %s130, %s133
      %p139 = scmp.eq.s32.totalorder %s26, 0
      %p140 = por %p138, %p139
      %p141 = scmp.ne.s32.totalorder %s130, %s133
      %p142 = scmp.eq.s32.totalorder %s31, 1
      %p143 = por %p141, %p142
      %p144 = scmp.ne.s32.totalorder %s133, %s134
      %p145 = scmp.eq.s32.totalorder %s31, 0
      %p146 = por %p144, %p145
      %p147 = scmp.ne.s32.totalorder %s133, %s134
      %p148 = scmp.eq.s32.totalorder %s32, 1
      %p149 = por %p147, %p148
      %p151 = scmp.ne.s32.totalorder %s134, %s150
      %p152 = scmp.eq.s32.totalorder %s32, 0
      %p153 = por %p151, %p152
      %s154 = ssub.s32 %s26, %s33
      %p155 = scmp.eq.s32.totalorder %s154, 0
      %s157 = sadd.s32 %s156, 1
      %s158 = scalar_select %p155, %s156, %s157
      %p161 = pneg %p155
      %p162 = scmp.eq.s32.totalorder %s26, 1
      %p163 = por %p161, %p162
      %p164 = scmp.ne.s32.totalorder %s156, %s159
      %p165 = scmp.eq.s32.totalorder %s26, 0
      %p166 = por %p164, %p165
      %p167 = scmp.ne.s32.totalorder %s156, %s159
      %p168 = scmp.eq.s32.totalorder %s31, 1
      %p169 = por %p167, %p168
      %p170 = scmp.ne.s32.totalorder %s159, %s160
      %p171 = scmp.eq.s32.totalorder %s31, 0
      %p172 = por %p170, %p171
      %p173 = scmp.ne.s32.totalorder %s159, %s160
      %p174 = scmp.eq.s32.totalorder %s32, 1
      %p175 = por %p173, %p174
      %p177 = scmp.ne.s32.totalorder %s160, %s176
      %p178 = scmp.eq.s32.totalorder %s32, 0
      %p179 = por %p177, %p178
      %s180 = ssub.s32 %s26, %s33
      %p181 = scmp.eq.s32.totalorder %s180, 0
      %s183 = sadd.s32 %s182, 1
      %s184 = scalar_select %p181, %s182, %s183
      %p187 = pneg %p181
      %p188 = scmp.eq.s32.totalorder %s26, 1
      %p189 = por %p187, %p188
      %p190 = scmp.ne.s32.totalorder %s182, %s185
      %p191 = scmp.eq.s32.totalorder %s26, 0
      %p192 = por %p190, %p191
      %p193 = scmp.ne.s32.totalorder %s182, %s185
      %p194 = scmp.eq.s32.totalorder %s31, 1
      %p195 = por %p193, %p194
      %p196 = scmp.ne.s32.totalorder %s185, %s186
      %p197 = scmp.eq.s32.totalorder %s31, 0
      %p198 = por %p196, %p197
      %p199 = scmp.ne.s32.totalorder %s185, %s186
      %p200 = scmp.eq.s32.totalorder %s32, 1
      %p201 = por %p199, %p200
      %p203 = scmp.ne.s32.totalorder %s186, %s202
      %p204 = scmp.eq.s32.totalorder %s32, 0
      %p205 = por %p203, %p204
      %s206 = ssub.s32 %s26, %s33
      %p207 = scmp.eq.s32.totalorder %s206, 0
      %s209 = sadd.s32 %s208, 1
      %s210 = scalar_select %p207, %s208, %s209
      %p213 = pneg %p207
      %p214 = scmp.eq.s32.totalorder %s26, 1
      %p215 = por %p213, %p214
      %p216 = scmp.ne.s32.totalorder %s208, %s211
      %p217 = scmp.eq.s32.totalorder %s26, 0
      %p218 = por %p216, %p217
      %p219 = scmp.ne.s32.totalorder %s208, %s211
      %p220 = scmp.eq.s32.totalorder %s31, 1
      %p221 = por %p219, %p220
      %p222 = scmp.ne.s32.totalorder %s211, %s212
      %p223 = scmp.eq.s32.totalorder %s31, 0
      %p224 = por %p222, %p223
      %p225 = scmp.ne.s32.totalorder %s211, %s212
      %p226 = scmp.eq.s32.totalorder %s32, 1
      %p227 = por %p225, %p226
      %p229 = scmp.ne.s32.totalorder %s212, %s228
      %p230 = scmp.eq.s32.totalorder %s32, 0
      %p231 = por %p229, %p230
      %s232 = ssub.s32 %s26, %s33
      %p233 = scmp.eq.s32.totalorder %s232, 0
      %s235 = sadd.s32 %s234, 1
      %s236 = scalar_select %p233, %s234, %s235
      %p239 = pneg %p233
      %p240 = scmp.eq.s32.totalorder %s26, 1
      %p241 = por %p239, %p240
      %p242 = scmp.ne.s32.totalorder %s234, %s237
      %p243 = scmp.eq.s32.totalorder %s26, 0
      %p244 = por %p242, %p243
      %p245 = scmp.ne.s32.totalorder %s234, %s237
      %p246 = scmp.eq.s32.totalorder %s31, 1
      %p247 = por %p245, %p246
      %p248 = scmp.ne.s32.totalorder %s237, %s238
      %p249 = scmp.eq.s32.totalorder %s31, 0
      %p250 = por %p248, %p249
      %p251 = scmp.ne.s32.totalorder %s237, %s238
      %p252 = scmp.eq.s32.totalorder %s32, 1
      %p253 = por %p251, %p252
      %p255 = scmp.ne.s32.totalorder %s238, %s254
      %p256 = scmp.eq.s32.totalorder %s32, 0
      %p257 = por %p255, %p256
      %s258 = ssub.s32 %s26, %s33
      %p259 = scmp.eq.s32.totalorder %s258, 0
      %s261 = sadd.s32 %s260, 1
      %s262 = scalar_select %p259, %s260, %s261
      %p265 = pneg %p259
      %p266 = scmp.eq.s32.totalorder %s26, 1
      %p267 = por %p265, %p266
      %p268 = scmp.ne.s32.totalorder %s260, %s263
      %p269 = scmp.eq.s32.totalorder %s26, 0
      %p270 = por %p268, %p269
      %p271 = scmp.ne.s32.totalorder %s260, %s263
      %p272 = scmp.eq.s32.totalorder %s31, 1
      %p273 = por %p271, %p272
      %p274 = scmp.ne.s32.totalorder %s263, %s264
      %p275 = scmp.eq.s32.totalorder %s31, 0
      %p276 = por %p274, %p275
      %p277 = scmp.ne.s32.totalorder %s263, %s264
      %p278 = scmp.eq.s32.totalorder %s32, 1
      %p279 = por %p277, %p278
      %p281 = scmp.ne.s32.totalorder %s264, %s280
      %p282 = scmp.eq.s32.totalorder %s32, 0
      %p283 = por %p281, %p282
      %s284 = ssub.s32 %s26, %s33
      %p285 = scmp.eq.s32.totalorder %s284, 0
      %s287 = sadd.s32 %s286, 1
      %s288 = scalar_select %p285, %s286, %s287
      %p291 = pneg %p285
      %p292 = scmp.eq.s32.totalorder %s26, 1
      %p293 = por %p291, %p292
      %p294 = scmp.ne.s32.totalorder %s286, %s289
      %p295 = scmp.eq.s32.totalorder %s26, 0
      %p296 = por %p294, %p295
      %p297 = scmp.ne.s32.totalorder %s286, %s289
      %p298 = scmp.eq.s32.totalorder %s31, 1
      %p299 = por %p297, %p298
      %p300 = scmp.ne.s32.totalorder %s289, %s290
      %p301 = scmp.eq.s32.totalorder %s31, 0
      %p302 = por %p300, %p301
      %p303 = scmp.ne.s32.totalorder %s289, %s290
      %p304 = scmp.eq.s32.totalorder %s32, 1
      %p305 = por %p303, %p304
      %p307 = scmp.ne.s32.totalorder %s290, %s306
      %p308 = scmp.eq.s32.totalorder %s32, 0
      %p309 = por %p307, %p308
      %s310 = ssub.s32 %s26, %s33
      %p311 = scmp.eq.s32.totalorder %s310, 0
      %s313 = sadd.s32 %s312, 1
      %s314 = scalar_select %p311, %s312, %s313
      %p317 = pneg %p311
      %p318 = scmp.eq.s32.totalorder %s26, 1
      %p319 = por %p317, %p318
      %p320 = scmp.ne.s32.totalorder %s312, %s315
      %p321 = scmp.eq.s32.totalorder %s26, 0
      %p322 = por %p320, %p321
      %p323 = scmp.ne.s32.totalorder %s312, %s315
      %p324 = scmp.eq.s32.totalorder %s31, 1
      %p325 = por %p323, %p324
      %p326 = scmp.ne.s32.totalorder %s315, %s316
      %p327 = scmp.eq.s32.totalorder %s31, 0
      %p328 = por %p326, %p327
      %p329 = scmp.ne.s32.totalorder %s315, %s316
      %p330 = scmp.eq.s32.totalorder %s32, 1
      %p331 = por %p329, %p330
      %p333 = scmp.ne.s32.totalorder %s316, %s332
      %p334 = scmp.eq.s32.totalorder %s32, 0
      %p335 = por %p333, %p334
      %s336 = ssub.s32 %s26, %s33
      %p337 = scmp.eq.s32.totalorder %s336, 0
      %s339 = sadd.s32 %s338, 1
      %s340 = scalar_select %p337, %s338, %s339
      %p343 = pneg %p337
      %p344 = scmp.eq.s32.totalorder %s26, 1
      %p345 = por %p343, %p344
      %p346 = scmp.ne.s32.totalorder %s338, %s341
      %p347 = scmp.eq.s32.totalorder %s26, 0
      %p348 = por %p346, %p347
      %p349 = scmp.ne.s32.totalorder %s338, %s341
      %p350 = scmp.eq.s32.totalorder %s31, 1
      %p351 = por %p349, %p350
      %p352 = scmp.ne.s32.totalorder %s341, %s342
      %p353 = scmp.eq.s32.totalorder %s31, 0
      %p354 = por %p352, %p353
      %p355 = scmp.ne.s32.totalorder %s341, %s342
      %p356 = scmp.eq.s32.totalorder %s32, 1
      %p357 = por %p355, %p356
      %p359 = scmp.ne.s32.totalorder %s342, %s358
      %p360 = scmp.eq.s32.totalorder %s32, 0
      %p361 = por %p359, %p360
      %s362 = ssub.s32 %s26, %s33
      %p363 = scmp.eq.s32.totalorder %s362, 0
      %s365 = sadd.s32 %s364, 1
      %s366 = scalar_select %p363, %s364, %s365
      %p369 = pneg %p363
      %p370 = scmp.eq.s32.totalorder %s26, 1
      %p371 = por %p369, %p370
      %p372 = scmp.ne.s32.totalorder %s364, %s367
      %p373 = scmp.eq.s32.totalorder %s26, 0
      %p374 = por %p372, %p373
      %p375 = scmp.ne.s32.totalorder %s364, %s367
      %p376 = scmp.eq.s32.totalorder %s31, 1
      %p377 = por %p375, %p376
      %p378 = scmp.ne.s32.totalorder %s367, %s368
      %p379 = scmp.eq.s32.totalorder %s31, 0
      %p380 = por %p378, %p379
      %p381 = scmp.ne.s32.totalorder %s367, %s368
      %p382 = scmp.eq.s32.totalorder %s32, 1
      %p383 = por %p381, %p382
      %p385 = scmp.ne.s32.totalorder %s368, %s384
      %p386 = scmp.eq.s32.totalorder %s32, 0
      %p387 = por %p385, %p386
      %s389 = sadd.s32 %s388, 1
      %p392 = scmp.eq.s32.totalorder %s26, 1
      %p393 = scmp.ne.s32.totalorder %s388, %s390
      %p394 = scmp.eq.s32.totalorder %s26, 0
      %p395 = por %p393, %p394
      %p396 = scmp.ne.s32.totalorder %s388, %s390
      %p397 = scmp.eq.s32.totalorder %s31, 1
      %p398 = por %p396, %p397
      %p399 = scmp.ne.s32.totalorder %s390, %s391
      %p400 = scmp.eq.s32.totalorder %s31, 0
      %p401 = por %p399, %p400
      %p402 = scmp.ne.s32.totalorder %s390, %s391
      %p403 = scmp.eq.s32.totalorder %s32, 1
      %p404 = por %p402, %p403
      %p406 = scmp.ne.s32.totalorder %s391, %s405
      %p407 = scmp.eq.s32.totalorder %s32, 0
      %p408 = por %p406, %p407
      %s410 = sadd.s32 %s409, 1
      %p413 = scmp.eq.s32.totalorder %s26, 1
      %p414 = scmp.ne.s32.totalorder %s409, %s411
      %p415 = scmp.eq.s32.totalorder %s26, 0
      %p416 = por %p414, %p415
      %p417 = scmp.ne.s32.totalorder %s409, %s411
      %p418 = scmp.eq.s32.totalorder %s31, 1
      %p419 = por %p417, %p418
      %p420 = scmp.ne.s32.totalorder %s411, %s412
      %p421 = scmp.eq.s32.totalorder %s31, 0
      %p422 = por %p420, %p421
      %p423 = scmp.ne.s32.totalorder %s411, %s412
      %p424 = scmp.eq.s32.totalorder %s32, 1
      %p425 = por %p423, %p424
      %p427 = scmp.ne.s32.totalorder %s412, %s426
      %p428 = scmp.eq.s32.totalorder %s32, 0
      %p429 = por %p427, %p428
      %s431 = sadd.s32 %s430, 1
      %p434 = scmp.eq.s32.totalorder %s26, 1
      %p435 = scmp.ne.s32.totalorder %s430, %s432
      %p436 = scmp.eq.s32.totalorder %s26, 0
      %p437 = por %p435, %p436
      %p438 = scmp.ne.s32.totalorder %s430, %s432
      %p439 = scmp.eq.s32.totalorder %s31, 1
      %p440 = por %p438, %p439
      %p441 = scmp.ne.s32.totalorder %s432, %s433
      %p442 = scmp.eq.s32.totalorder %s31, 0
      %p443 = por %p441, %p442
      %p444 = scmp.ne.s32.totalorder %s432, %s433
      %p445 = scmp.eq.s32.totalorder %s32, 1
      %p446 = por %p444, %p445
      %p448 = scmp.ne.s32.totalorder %s433, %s447
      %p449 = scmp.eq.s32.totalorder %s32, 0
      %p450 = por %p448, %p449
      %p451 = scmp.le.s32.totalorder 1, %s26
      %p452 = scmp.lt.s32.totalorder %s26, 3
      %p453 = pnand %p451, %p452
      %p454 = pneg %p453
      // Predicated region
      $region9: #{tpu_custom_call.1} parent=5 // pred_check
        _
      $region10: #{tpu_custom_call.1} parent=5 // pred_check_branch
        %456 = sbr.rel (%p453) target = $region12
      $region11: #{tpu_custom_call.1} parent=5 // pred_region
        %s457 = ssub.s32 %s26, 1
        // Predicated region
        $region13: #{tpu_custom_call.1} parent=11 // pred_check
          %p458 = pneg %p47
        $region14: #{tpu_custom_call.1} parent=11 // pred_check_branch
          %460 = sbr.rel (%p458) target = $region16
        $region15: #{tpu_custom_call.1} parent=11 // pred_region
          %s462 = ssub.s32 512, 512
          %463 = vsyncadd [#allocation4], %s462
          %s464 = sshll.u32 [#allocation3], 4
          %s465 = int_to_ptr.vmem [resolvable:$true] %s464
          %470 = dma.hbm_to_vmem [thread:$0]  %s0, 512, %s465, [#allocation4], 256, 256, 16
        $region16: #{tpu_custom_call.1} parent=11 // pred_fallthru
          _
        // Predicated region
        $region17: #{tpu_custom_call.1} parent=11 // pred_check
          %p471 = pneg %p68
        $region18: #{tpu_custom_call.1} parent=11 // pred_check_branch
          %473 = sbr.rel (%p471) target = $region20
        $region19: #{tpu_custom_call.1} parent=11 // pred_region
          %s475 = ssub.s32 256, 256
          %476 = vsyncadd [#allocation7], %s475
          %s477 = sshll.u32 [#allocation6], 4
          %s478 = int_to_ptr.vmem [resolvable:$true] %s477
          %483 = dma.hbm_to_vmem [thread:$0]  %s1, 256, %s478, [#allocation7], 128, 128, 8
        $region20: #{tpu_custom_call.1} parent=11 // pred_fallthru
          _
        // Predicated region
        $region21: #{tpu_custom_call.1} parent=11 // pred_check
          %p484 = pneg %p401
        $region22: #{tpu_custom_call.1} parent=11 // pred_check_branch
          %486 = sbr.rel (%p484) target = $region24
        $region23: #{tpu_custom_call.1} parent=11 // pred_region
          %s488 = ssub.s32 2048, 2048
          %489 = vsyncadd [#allocation7], %s488
          %s490 = sshll.u32 [#allocation20], 4
          %s491 = int_to_ptr.vmem [resolvable:$true] %s490
          %496 = dma.hbm_to_vmem [thread:$0]  %s14, 2048, %s491, [#allocation7], 64, 64, 4
        $region24: #{tpu_custom_call.1} parent=11 // pred_fallthru
          _
        // Predicated region
        $region25: #{tpu_custom_call.1} parent=11 // pred_check
          %p497 = pneg %p422
        $region26: #{tpu_custom_call.1} parent=11 // pred_check_branch
          %499 = sbr.rel (%p497) target = $region28
        $region27: #{tpu_custom_call.1} parent=11 // pred_region
          %s501 = ssub.s32 16, 16
          %502 = vsyncadd [#allocation22], %s501
          %s504 = sshll.u32 [#allocation21], 4
          %s505 = int_to_ptr.vmem [resolvable:$true] %s504
          %507 = dma.hbm_to_vmem [thread:$0]  %s15, 16, %s505, [#allocation22]
        $region28: #{tpu_custom_call.1} parent=11 // pred_fallthru
          _
      $region12: #{tpu_custom_call.1} parent=5 // pred_fallthru
        _
      %p508 = scmp.lt.s32.totalorder %s26, 2
      // Predicated region
      $region29: #{tpu_custom_call.1} parent=5 // pred_check
        %p509 = pneg %p508
      $region30: #{tpu_custom_call.1} parent=5 // pred_check_branch
        %511 = sbr.rel (%p509) target = $region32
      $region31: #{tpu_custom_call.1} parent=5 // pred_region
        // Predicated region
        $region33: #{tpu_custom_call.1} parent=31 // pred_check
          %p512 = pneg %p88
        $region34: #{tpu_custom_call.1} parent=31 // pred_check_branch
          %514 = sbr.rel (%p512) target = $region36
        $region35: #{tpu_custom_call.1} parent=31 // pred_region
          %s515 = sand.u32 %s26, 1
          %s516 = scalar_lea.sflag [#allocation4], %s515
          %s517 = sand.u32 %s78, 1
          %s518 = smul.addr %s517, 768
          %s519 = scalar_lea.vmem [#allocation8], %s518
          %s521 = ssub.s32 12288, 12288
          %522 = vsyncadd %s516, %s521
          %s523 = smul.addr %s26, 192
          %s524 = smul.addr %s523, 64
          %s525 = scalar_lea.hbm %s2, %s524
          %s526 = sshll.u32 %s519, 4
          %s527 = int_to_ptr.vmem [resolvable:$true] %s526
          %532 = dma.hbm_to_vmem [thread:$0]  %s525, 12288, %s527, %s516, 384, 384, 24
        $region36: #{tpu_custom_call.1} parent=31 // pred_fallthru
          _
        // Predicated region
        $region37: #{tpu_custom_call.1} parent=31 // pred_check
          %p533 = pneg %p114
        $region38: #{tpu_custom_call.1} parent=31 // pred_check_branch
          %535 = sbr.rel (%p533) target = $region40
        $region39: #{tpu_custom_call.1} parent=31 // pred_region
          %s536 = sand.u32 %s26, 1
          %s537 = scalar_lea.sflag [#allocation4], %s536
          %s538 = sand.u32 %s104, 1
          %s539 = smul.addr %s538, 6
          %s540 = scalar_lea.vmem [#allocation9], %s539
          %s542 = ssub.s32 96, 96
          %543 = vsyncadd %s537, %s542
          %s544 = smul.addr %s26, 6
          %s545 = smul.addr %s544, 16
          %s546 = scalar_lea.hbm %s3, %s545
          %s548 = sshll.u32 %s540, 4
          %s549 = int_to_ptr.vmem [resolvable:$true] %s548
          %551 = dma.hbm_to_vmem [thread:$0]  %s546, 96, %s549, %s537
        $region40: #{tpu_custom_call.1} parent=31 // pred_fallthru
          _
        // Predicated region
        $region41: #{tpu_custom_call.1} parent=31 // pred_check
          %p552 = pneg %p140
        $region42: #{tpu_custom_call.1} parent=31 // pred_check_branch
          %554 = sbr.rel (%p552) target = $region44
        $region43: #{tpu_custom_call.1} parent=31 // pred_region
          %s555 = sand.u32 %s26, 1
          %s556 = scalar_lea.sflag [#allocation4], %s555
          %s557 = sand.u32 %s130, 1
          %s558 = smul.addr %s557, 256
          %s559 = scalar_lea.vmem [#allocation10], %s558
          %s561 = ssub.s32 4096, 4096
          %562 = vsyncadd %s556, %s561
          %s563 = smul.addr %s26, 64
          %s564 = smul.addr %s563, 64
          %s565 = scalar_lea.hbm %s4, %s564
          %s566 = sshll.u32 %s559, 4
          %s567 = int_to_ptr.vmem [resolvable:$true] %s566
          %572 = dma.hbm_to_vmem [thread:$0]  %s565, 4096, %s567, %s556, 128, 128, 8
        $region44: #{tpu_custom_call.1} parent=31 // pred_fallthru
          _
        // Predicated region
        $region45: #{tpu_custom_call.1} parent=31 // pred_check
          %p573 = pneg %p166
        $region46: #{tpu_custom_call.1} parent=31 // pred_check_branch
          %575 = sbr.rel (%p573) target = $region48
        $region47: #{tpu_custom_call.1} parent=31 // pred_region
          %s576 = sand.u32 %s26, 1
          %s577 = scalar_lea.sflag [#allocation4], %s576
          %s578 = sand.u32 %s156, 1
          %s579 = smul.addr %s578, 2
          %s580 = scalar_lea.vmem [#allocation11], %s579
          %s582 = ssub.s32 32, 32
          %583 = vsyncadd %s577, %s582
          %s584 = smul.addr %s26, 2
          %s585 = smul.addr %s584, 16
          %s586 = scalar_lea.hbm %s5, %s585
          %s588 = sshll.u32 %s580, 4
          %s589 = int_to_ptr.vmem [resolvable:$true] %s588
          %591 = dma.hbm_to_vmem [thread:$0]  %s586, 32, %s589, %s577
        $region48: #{tpu_custom_call.1} parent=31 // pred_fallthru
          _
        // Predicated region
        $region49: #{tpu_custom_call.1} parent=31 // pred_check
          %p592 = pneg %p192
        $region50: #{tpu_custom_call.1} parent=31 // pred_check_branch
          %594 = sbr.rel (%p592) target = $region52
        $region51: #{tpu_custom_call.1} parent=31 // pred_region
          %s595 = sand.u32 %s26, 1
          %s596 = scalar_lea.sflag [#allocation4], %s595
          %s597 = sand.u32 %s182, 1
          %s598 = smul.addr %s597, 2048
          %s599 = scalar_lea.vmem [#allocation12], %s598
          %s601 = ssub.s32 32768, 32768
          %602 = vsyncadd %s596, %s601
          %s603 = smul.addr %s26, 512
          %s604 = smul.addr %s603, 64
          %s605 = scalar_lea.hbm %s6, %s604
          %s606 = sshll.u32 %s599, 4
          %s607 = int_to_ptr.vmem [resolvable:$true] %s606
          %612 = dma.hbm_to_vmem [thread:$0]  %s605, 32768, %s607, %s596, 1024, 1024, 64
        $region52: #{tpu_custom_call.1} parent=31 // pred_fallthru
          _
        // Predicated region
        $region53: #{tpu_custom_call.1} parent=31 // pred_check
          %p613 = pneg %p218
        $region54: #{tpu_custom_call.1} parent=31 // pred_check_branch
          %615 = sbr.rel (%p613) target = $region56
        $region55: #{tpu_custom_call.1} parent=31 // pred_region
          %s616 = sand.u32 %s26, 1
          %s617 = scalar_lea.sflag [#allocation4], %s616
          %s618 = sand.u32 %s208, 1
          %s619 = smul.addr %s618, 16
          %s620 = scalar_lea.vmem [#allocation13], %s619
          %s622 = ssub.s32 256, 256
          %623 = vsyncadd %s617, %s622
          %s624 = smul.addr %s26, 16
          %s625 = smul.addr %s624, 16
          %s626 = scalar_lea.hbm %s7, %s625
          %s628 = sshll.u32 %s620, 4
          %s629 = int_to_ptr.vmem [resolvable:$true] %s628
          %631 = dma.hbm_to_vmem [thread:$0]  %s626, 256, %s629, %s617
        $region56: #{tpu_custom_call.1} parent=31 // pred_fallthru
          _
        // Predicated region
        $region57: #{tpu_custom_call.1} parent=31 // pred_check
          %p632 = pneg %p244
        $region58: #{tpu_custom_call.1} parent=31 // pred_check_branch
          %634 = sbr.rel (%p632) target = $region60
        $region59: #{tpu_custom_call.1} parent=31 // pred_region
          %s635 = sand.u32 %s26, 1
          %s636 = scalar_lea.sflag [#allocation4], %s635
          %s637 = sand.u32 %s234, 1
          %s638 = smul.addr %s637, 2048
          %s639 = scalar_lea.vmem [#allocation14], %s638
          %s641 = ssub.s32 32768, 32768
          %642 = vsyncadd %s636, %s641
          %s643 = smul.addr %s26, 512
          %s644 = smul.addr %s643, 64
          %s645 = scalar_lea.hbm %s8, %s644
          %s646 = sshll.u32 %s639, 4
          %s647 = int_to_ptr.vmem [resolvable:$true] %s646
          %652 = dma.hbm_to_vmem [thread:$0]  %s645, 32768, %s647, %s636, 128, 128, 8
        $region60: #{tpu_custom_call.1} parent=31 // pred_fallthru
          _
        // Predicated region
        $region61: #{tpu_custom_call.1} parent=31 // pred_check
          %p653 = pneg %p270
        $region62: #{tpu_custom_call.1} parent=31 // pred_check_branch
          %655 = sbr.rel (%p653) target = $region64
        $region63: #{tpu_custom_call.1} parent=31 // pred_region
          %s656 = sand.u32 %s26, 1
          %s657 = scalar_lea.sflag [#allocation4], %s656
          %s658 = sand.u32 %s260, 1
          %s659 = smul.addr %s658, 2
          %s660 = scalar_lea.vmem [#allocation15], %s659
          %s662 = ssub.s32 32, 32
          %663 = vsyncadd %s657, %s662
          %s664 = smul.addr %s26, 2
          %s665 = smul.addr %s664, 16
          %s666 = scalar_lea.hbm %s9, %s665
          %s668 = sshll.u32 %s660, 4
          %s669 = int_to_ptr.vmem [resolvable:$true] %s668
          %671 = dma.hbm_to_vmem [thread:$0]  %s666, 32, %s669, %s657
        $region64: #{tpu_custom_call.1} parent=31 // pred_fallthru
          _
        // Predicated region
        $region65: #{tpu_custom_call.1} parent=31 // pred_check
          %p672 = pneg %p296
        $region66: #{tpu_custom_call.1} parent=31 // pred_check_branch
          %674 = sbr.rel (%p672) target = $region68
        $region67: #{tpu_custom_call.1} parent=31 // pred_region
          %s675 = sand.u32 %s26, 1
          %s676 = scalar_lea.sflag [#allocation4], %s675
          %s677 = sand.u32 %s286, 1
          %s678 = smul.addr %s677, 2
          %s679 = scalar_lea.vmem [#allocation16], %s678
          %s681 = ssub.s32 32, 32
          %682 = vsyncadd %s676, %s681
          %s683 = smul.addr %s26, 2
          %s684 = smul.addr %s683, 16
          %s685 = scalar_lea.hbm %s10, %s684
          %s687 = sshll.u32 %s679, 4
          %s688 = int_to_ptr.vmem [resolvable:$true] %s687
          %690 = dma.hbm_to_vmem [thread:$0]  %s685, 32, %s688, %s676
        $region68: #{tpu_custom_call.1} parent=31 // pred_fallthru
          _
        // Predicated region
        $region69: #{tpu_custom_call.1} parent=31 // pred_check
          %p691 = pneg %p322
        $region70: #{tpu_custom_call.1} parent=31 // pred_check_branch
          %693 = sbr.rel (%p691) target = $region72
        $region71: #{tpu_custom_call.1} parent=31 // pred_region
          %s694 = sand.u32 %s26, 1
          %s695 = scalar_lea.sflag [#allocation4], %s694
          %s696 = sand.u32 %s312, 1
          %s697 = smul.addr %s696, 2
          %s698 = scalar_lea.vmem [#allocation17], %s697
          %s700 = ssub.s32 32, 32
          %701 = vsyncadd %s695, %s700
          %s702 = smul.addr %s26, 2
          %s703 = smul.addr %s702, 16
          %s704 = scalar_lea.hbm %s11, %s703
          %s706 = sshll.u32 %s698, 4
          %s707 = int_to_ptr.vmem [resolvable:$true] %s706
          %709 = dma.hbm_to_vmem [thread:$0]  %s704, 32, %s707, %s695
        $region72: #{tpu_custom_call.1} parent=31 // pred_fallthru
          _
        // Predicated region
        $region73: #{tpu_custom_call.1} parent=31 // pred_check
          %p710 = pneg %p348
        $region74: #{tpu_custom_call.1} parent=31 // pred_check_branch
          %712 = sbr.rel (%p710) target = $region76
        $region75: #{tpu_custom_call.1} parent=31 // pred_region
          %s713 = sand.u32 %s26, 1
          %s714 = scalar_lea.sflag [#allocation4], %s713
          %s715 = sand.u32 %s338, 1
          %s716 = smul.addr %s715, 2
          %s717 = scalar_lea.vmem [#allocation18], %s716
          %s719 = ssub.s32 32, 32
          %720 = vsyncadd %s714, %s719
          %s721 = smul.addr %s26, 2
          %s722 = smul.addr %s721, 16
          %s723 = scalar_lea.hbm %s12, %s722
          %s725 = sshll.u32 %s717, 4
          %s726 = int_to_ptr.vmem [resolvable:$true] %s725
          %728 = dma.hbm_to_vmem [thread:$0]  %s723, 32, %s726, %s714
        $region76: #{tpu_custom_call.1} parent=31 // pred_fallthru
          _
        // Predicated region
        $region77: #{tpu_custom_call.1} parent=31 // pred_check
          %p729 = pneg %p374
        $region78: #{tpu_custom_call.1} parent=31 // pred_check_branch
          %731 = sbr.rel (%p729) target = $region80
        $region79: #{tpu_custom_call.1} parent=31 // pred_region
          %s732 = sand.u32 %s26, 1
          %s733 = scalar_lea.sflag [#allocation4], %s732
          %s734 = sand.u32 %s364, 1
          %s735 = smul.addr %s734, 2
          %s736 = scalar_lea.vmem [#allocation19], %s735
          %s738 = ssub.s32 32, 32
          %739 = vsyncadd %s733, %s738
          %s740 = smul.addr %s26, 2
          %s741 = smul.addr %s740, 16
          %s742 = scalar_lea.hbm %s13, %s741
          %s744 = sshll.u32 %s736, 4
          %s745 = int_to_ptr.vmem [resolvable:$true] %s744
          %747 = dma.hbm_to_vmem [thread:$0]  %s742, 32, %s745, %s733
        $region80: #{tpu_custom_call.1} parent=31 // pred_fallthru
          _
      $region32: #{tpu_custom_call.1} parent=5 // pred_fallthru
        _
      %p748 = scmp.le.s32.totalorder 1, %s26
      %p749 = scmp.lt.s32.totalorder %s26, 3
      %p750 = pnand %p748, %p749
      %p751 = pneg %p750
      // Predicated region
      $region81: #{tpu_custom_call.1} parent=5 // pred_check
        _
      $region82: #{tpu_custom_call.1} parent=5 // pred_check_branch
        %753 = sbr.rel (%p750) target = $region84
      $region83: #{tpu_custom_call.1} parent=5 // pred_region
        %s754 = ssub.s32 %s26, 1
        // Predicated region
        $region85: #{tpu_custom_call.1} parent=83 // pred_check
          %p755 = pneg %p47
        $region86: #{tpu_custom_call.1} parent=83 // pred_check_branch
          %757 = sbr.rel (%p755) target = $region88
        $region87: #{tpu_custom_call.1} parent=83 // pred_region
          %758 = dma.done [#allocation4], 512
        $region88: #{tpu_custom_call.1} parent=83 // pred_fallthru
          _
        // Predicated region
        $region89: #{tpu_custom_call.1} parent=83 // pred_check
          %p759 = pneg %p68
        $region90: #{tpu_custom_call.1} parent=83 // pred_check_branch
          %761 = sbr.rel (%p759) target = $region92
        $region91: #{tpu_custom_call.1} parent=83 // pred_region
          %762 = dma.done [#allocation7], 256
        $region92: #{tpu_custom_call.1} parent=83 // pred_fallthru
          _
        %s763 = sand.u32 %s31, 1
        %s764 = scalar_lea.sflag [#allocation4], %s763
        %s765 = sand.u32 %s81, 1
        %s766 = smul.addr %s765, 768
        %s767 = scalar_lea.vmem [#allocation8], %s766
        // Predicated region
        $region93: #{tpu_custom_call.1} parent=83 // pred_check
          %p768 = pneg %p94
        $region94: #{tpu_custom_call.1} parent=83 // pred_check_branch
          %770 = sbr.rel (%p768) target = $region96
        $region95: #{tpu_custom_call.1} parent=83 // pred_region
          %771 = dma.done %s764, 12288
        $region96: #{tpu_custom_call.1} parent=83 // pred_fallthru
          _
        %s772 = sand.u32 %s31, 1
        %s773 = scalar_lea.sflag [#allocation4], %s772
        %s774 = sand.u32 %s107, 1
        %s775 = smul.addr %s774, 6
        %s776 = scalar_lea.vmem [#allocation9], %s775
        // Predicated region
        $region97: #{tpu_custom_call.1} parent=83 // pred_check
          %p777 = pneg %p120
        $region98: #{tpu_custom_call.1} parent=83 // pred_check_branch
          %779 = sbr.rel (%p777) target = $region100
        $region99: #{tpu_custom_call.1} parent=83 // pred_region
          %780 = dma.done %s773, 96
        $region100: #{tpu_custom_call.1} parent=83 // pred_fallthru
          _
        %s781 = sand.u32 %s31, 1
        %s782 = scalar_lea.sflag [#allocation4], %s781
        %s783 = sand.u32 %s133, 1
        %s784 = smul.addr %s783, 256
        %s785 = scalar_lea.vmem [#allocation10], %s784
        // Predicated region
        $region101: #{tpu_custom_call.1} parent=83 // pred_check
          %p786 = pneg %p146
        $region102: #{tpu_custom_call.1} parent=83 // pred_check_branch
          %788 = sbr.rel (%p786) target = $region104
        $region103: #{tpu_custom_call.1} parent=83 // pred_region
          %789 = dma.done %s782, 4096
        $region104: #{tpu_custom_call.1} parent=83 // pred_fallthru
          _
        %s790 = sand.u32 %s31, 1
        %s791 = scalar_lea.sflag [#allocation4], %s790
        %s792 = sand.u32 %s159, 1
        %s793 = smul.addr %s792, 2
        %s794 = scalar_lea.vmem [#allocation11], %s793
        // Predicated region
        $region105: #{tpu_custom_call.1} parent=83 // pred_check
          %p795 = pneg %p172
        $region106: #{tpu_custom_call.1} parent=83 // pred_check_branch
          %797 = sbr.rel (%p795) target = $region108
        $region107: #{tpu_custom_call.1} parent=83 // pred_region
          %798 = dma.done %s791, 32
        $region108: #{tpu_custom_call.1} parent=83 // pred_fallthru
          _
        %s799 = sand.u32 %s31, 1
        %s800 = scalar_lea.sflag [#allocation4], %s799
        %s801 = sand.u32 %s185, 1
        %s802 = smul.addr %s801, 2048
        %s803 = scalar_lea.vmem [#allocation12], %s802
        // Predicated region
        $region109: #{tpu_custom_call.1} parent=83 // pred_check
          %p804 = pneg %p198
        $region110: #{tpu_custom_call.1} parent=83 // pred_check_branch
          %806 = sbr.rel (%p804) target = $region112
        $region111: #{tpu_custom_call.1} parent=83 // pred_region
          %807 = dma.done %s800, 32768
        $region112: #{tpu_custom_call.1} parent=83 // pred_fallthru
          _
        %s808 = sand.u32 %s31, 1
        %s809 = scalar_lea.sflag [#allocation4], %s808
        %s810 = sand.u32 %s211, 1
        %s811 = smul.addr %s810, 16
        %s812 = scalar_lea.vmem [#allocation13], %s811
        // Predicated region
        $region113: #{tpu_custom_call.1} parent=83 // pred_check
          %p813 = pneg %p224
        $region114: #{tpu_custom_call.1} parent=83 // pred_check_branch
          %815 = sbr.rel (%p813) target = $region116
        $region115: #{tpu_custom_call.1} parent=83 // pred_region
          %816 = dma.done %s809, 256
        $region116: #{tpu_custom_call.1} parent=83 // pred_fallthru
          _
        %s817 = sand.u32 %s31, 1
        %s818 = scalar_lea.sflag [#allocation4], %s817
        %s819 = sand.u32 %s237, 1
        %s820 = smul.addr %s819, 2048
        %s821 = scalar_lea.vmem [#allocation14], %s820
        // Predicated region
        $region117: #{tpu_custom_call.1} parent=83 // pred_check
          %p822 = pneg %p250
        $region118: #{tpu_custom_call.1} parent=83 // pred_check_branch
          %824 = sbr.rel (%p822) target = $region120
        $region119: #{tpu_custom_call.1} parent=83 // pred_region
          %825 = dma.done %s818, 32768
        $region120: #{tpu_custom_call.1} parent=83 // pred_fallthru
          _
        %s826 = sand.u32 %s31, 1
        %s827 = scalar_lea.sflag [#allocation4], %s826
        %s828 = sand.u32 %s263, 1
        %s829 = smul.addr %s828, 2
        %s830 = scalar_lea.vmem [#allocation15], %s829
        // Predicated region
        $region121: #{tpu_custom_call.1} parent=83 // pred_check
          %p831 = pneg %p276
        $region122: #{tpu_custom_call.1} parent=83 // pred_check_branch
          %833 = sbr.rel (%p831) target = $region124
        $region123: #{tpu_custom_call.1} parent=83 // pred_region
          %834 = dma.done %s827, 32
        $region124: #{tpu_custom_call.1} parent=83 // pred_fallthru
          _
        %s835 = sand.u32 %s31, 1
        %s836 = scalar_lea.sflag [#allocation4], %s835
        %s837 = sand.u32 %s289, 1
        %s838 = smul.addr %s837, 2
        %s839 = scalar_lea.vmem [#allocation16], %s838
        // Predicated region
        $region125: #{tpu_custom_call.1} parent=83 // pred_check
          %p840 = pneg %p302
        $region126: #{tpu_custom_call.1} parent=83 // pred_check_branch
          %842 = sbr.rel (%p840) target = $region128
        $region127: #{tpu_custom_call.1} parent=83 // pred_region
          %843 = dma.done %s836, 32
        $region128: #{tpu_custom_call.1} parent=83 // pred_fallthru
          _
        %s844 = sand.u32 %s31, 1
        %s845 = scalar_lea.sflag [#allocation4], %s844
        %s846 = sand.u32 %s315, 1
        %s847 = smul.addr %s846, 2
        %s848 = scalar_lea.vmem [#allocation17], %s847
        // Predicated region
        $region129: #{tpu_custom_call.1} parent=83 // pred_check
          %p849 = pneg %p328
        $region130: #{tpu_custom_call.1} parent=83 // pred_check_branch
          %851 = sbr.rel (%p849) target = $region132
        $region131: #{tpu_custom_call.1} parent=83 // pred_region
          %852 = dma.done %s845, 32
        $region132: #{tpu_custom_call.1} parent=83 // pred_fallthru
          _
        %s853 = sand.u32 %s31, 1
        %s854 = scalar_lea.sflag [#allocation4], %s853
        %s855 = sand.u32 %s341, 1
        %s856 = smul.addr %s855, 2
        %s857 = scalar_lea.vmem [#allocation18], %s856
        // Predicated region
        $region133: #{tpu_custom_call.1} parent=83 // pred_check
          %p858 = pneg %p354
        $region134: #{tpu_custom_call.1} parent=83 // pred_check_branch
          %860 = sbr.rel (%p858) target = $region136
        $region135: #{tpu_custom_call.1} parent=83 // pred_region
          %861 = dma.done %s854, 32
        $region136: #{tpu_custom_call.1} parent=83 // pred_fallthru
          _
        %s862 = sand.u32 %s31, 1
        %s863 = scalar_lea.sflag [#allocation4], %s862
        %s864 = sand.u32 %s367, 1
        %s865 = smul.addr %s864, 2
        %s866 = scalar_lea.vmem [#allocation19], %s865
        // Predicated region
        $region137: #{tpu_custom_call.1} parent=83 // pred_check
          %p867 = pneg %p380
        $region138: #{tpu_custom_call.1} parent=83 // pred_check_branch
          %869 = sbr.rel (%p867) target = $region140
        $region139: #{tpu_custom_call.1} parent=83 // pred_region
          %870 = dma.done %s863, 32
        $region140: #{tpu_custom_call.1} parent=83 // pred_fallthru
          _
        // Predicated region
        $region141: #{tpu_custom_call.1} parent=83 // pred_check
          %p871 = pneg %p401
        $region142: #{tpu_custom_call.1} parent=83 // pred_check_branch
          %873 = sbr.rel (%p871) target = $region144
        $region143: #{tpu_custom_call.1} parent=83 // pred_region
          %874 = dma.done [#allocation7], 2048
        $region144: #{tpu_custom_call.1} parent=83 // pred_fallthru
          _
        // Predicated region
        $region145: #{tpu_custom_call.1} parent=83 // pred_check
          %p875 = pneg %p422
        $region146: #{tpu_custom_call.1} parent=83 // pred_check_branch
          %877 = sbr.rel (%p875) target = $region148
        $region147: #{tpu_custom_call.1} parent=83 // pred_region
          %878 = dma.done [#allocation22], 16
        $region148: #{tpu_custom_call.1} parent=83 // pred_fallthru
          _
        %p879 = pneg %p47
        %p880 = pneg %p44
        %p881 = pneg %p68
        %p882 = pneg %p65
        %s883 = sand.u32 %s31, 1
        %s884 = scalar_lea.sflag [#allocation4], %s883
        %s885 = sand.u32 %s81, 1
        %s886 = smul.addr %s885, 768
        %s887 = scalar_lea.vmem [#allocation8], %s886
        %p888 = pneg %p94
        %p889 = pneg %p91
        %s890 = sand.u32 %s31, 1
        %s891 = scalar_lea.sflag [#allocation4], %s890
        %s892 = sand.u32 %s107, 1
        %s893 = smul.addr %s892, 6
        %s894 = scalar_lea.vmem [#allocation9], %s893
        %p895 = pneg %p120
        %p896 = pneg %p117
        %s897 = sand.u32 %s31, 1
        %s898 = scalar_lea.sflag [#allocation4], %s897
        %s899 = sand.u32 %s133, 1
        %s900 = smul.addr %s899, 256
        %s901 = scalar_lea.vmem [#allocation10], %s900
        %p902 = pneg %p146
        %p903 = pneg %p143
        %s904 = sand.u32 %s31, 1
        %s905 = scalar_lea.sflag [#allocation4], %s904
        %s906 = sand.u32 %s159, 1
        %s907 = smul.addr %s906, 2
        %s908 = scalar_lea.vmem [#allocation11], %s907
        %p909 = pneg %p172
        %p910 = pneg %p169
        %s911 = sand.u32 %s31, 1
        %s912 = scalar_lea.sflag [#allocation4], %s911
        %s913 = sand.u32 %s185, 1
        %s914 = smul.addr %s913, 2048
        %s915 = scalar_lea.vmem [#allocation12], %s914
        %p916 = pneg %p198
        %p917 = pneg %p195
        %s918 = sand.u32 %s31, 1
        %s919 = scalar_lea.sflag [#allocation4], %s918
        %s920 = sand.u32 %s211, 1
        %s921 = smul.addr %s920, 16
        %s922 = scalar_lea.vmem [#allocation13], %s921
        %p923 = pneg %p224
        %p924 = pneg %p221
        %s925 = sand.u32 %s31, 1
        %s926 = scalar_lea.sflag [#allocation4], %s925
        %s927 = sand.u32 %s237, 1
        %s928 = smul.addr %s927, 2048
        %s929 = scalar_lea.vmem [#allocation14], %s928
        %p930 = pneg %p250
        %p931 = pneg %p247
        %s932 = sand.u32 %s31, 1
        %s933 = scalar_lea.sflag [#allocation4], %s932
        %s934 = sand.u32 %s263, 1
        %s935 = smul.addr %s934, 2
        %s936 = scalar_lea.vmem [#allocation15], %s935
        %p937 = pneg %p276
        %p938 = pneg %p273
        %s939 = sand.u32 %s31, 1
        %s940 = scalar_lea.sflag [#allocation4], %s939
        %s941 = sand.u32 %s289, 1
        %s942 = smul.addr %s941, 2
        %s943 = scalar_lea.vmem [#allocation16], %s942
        %p944 = pneg %p302
        %p945 = pneg %p299
        %s946 = sand.u32 %s31, 1
        %s947 = scalar_lea.sflag [#allocation4], %s946
        %s948 = sand.u32 %s315, 1
        %s949 = smul.addr %s948, 2
        %s950 = scalar_lea.vmem [#allocation17], %s949
        %p951 = pneg %p328
        %p952 = pneg %p325
        %s953 = sand.u32 %s31, 1
        %s954 = scalar_lea.sflag [#allocation4], %s953
        %s955 = sand.u32 %s341, 1
        %s956 = smul.addr %s955, 2
        %s957 = scalar_lea.vmem [#allocation18], %s956
        %p958 = pneg %p354
        %p959 = pneg %p351
        %s960 = sand.u32 %s31, 1
        %s961 = scalar_lea.sflag [#allocation4], %s960
        %s962 = sand.u32 %s367, 1
        %s963 = smul.addr %s962, 2
        %s964 = scalar_lea.vmem [#allocation19], %s963
        %p965 = pneg %p380
        %p966 = pneg %p377
        %p967 = pneg %p401
        %p968 = pneg %p398
        %p969 = pneg %p422
        %p970 = pneg %p419
        %p971 = pneg %p443
        %p972 = pneg %p440
        %p974 = scmp.eq.s32.totalorder %s31, 0
        // Predicated region
        $region149: #{tpu_custom_call.1} parent=83 // pred_check
          %p975 = pneg %p974
        $region150: #{tpu_custom_call.1} parent=83 // pred_check_branch
          %977 = sbr.rel (%p975) target = $region152
        $region151: #{tpu_custom_call.1} parent=83 // pred_region
          %v978 = vld [vmem:[#allocation3] sm:$0xff]
          %v979 = vld [vmem:[#allocation3 + $0x8] sm:$0xff]
          %v980 = vld [vmem:[#allocation3 + $0x10] sm:$0xff]
          %v981 = vld [vmem:[#allocation3 + $0x18] sm:$0xff]
          %982 = vst [vmem:[#allocation2] sm:$0xff] %v978
          %983 = vst [vmem:[#allocation2 + $0x8] sm:$0xff] %v979
          %984 = vst [vmem:[#allocation2 + $0x10] sm:$0xff] %v980
          %985 = vst [vmem:[#allocation2 + $0x18] sm:$0xff] %v981
        $region152: #{tpu_custom_call.1} parent=83 // pred_fallthru
          _
        %v986 = vld [vmem:[#allocation2] sm:$0xff]
        %v987 = vld [vmem:[#allocation2 + $0x8] sm:$0xff]
        %v988 = vld [vmem:[#allocation2 + $0x10] sm:$0xff]
        %v989 = vld [vmem:[#allocation2 + $0x18] sm:$0xff]
        %v990 = vpack.c.bf16 %v988, %v986
        %v991 = vpack.c.bf16 %v989, %v987
        %v992 = vld [vmem:[%s767] sm:$0xff]
        %v993 = vld [vmem:[%s767 + $0x8] sm:$0xff]
        %v994 = vld [vmem:[%s767 + $0x10] sm:$0xff]
        %v995 = vld [vmem:[%s767 + $0x18] sm:$0xff]
        %v996 = vld [vmem:[%s767 + $0x20] sm:$0xff]
        %v997 = vld [vmem:[%s767 + $0x28] sm:$0xff]
        %v998 = vld [vmem:[%s767 + $0x30] sm:$0xff]
        %v999 = vld [vmem:[%s767 + $0x38] sm:$0xff]
        %v1000 = vld [vmem:[%s767 + $0x40] sm:$0xff]
        %v1001 = vld [vmem:[%s767 + $0x48] sm:$0xff]
        %v1002 = vld [vmem:[%s767 + $0x50] sm:$0xff]
        %v1003 = vld [vmem:[%s767 + $0x58] sm:$0xff]
        %v1004 = vld [vmem:[%s767 + $0x60] sm:$0xff]
        %v1005 = vld [vmem:[%s767 + $0x68] sm:$0xff]
        %v1006 = vld [vmem:[%s767 + $0x70] sm:$0xff]
        %v1007 = vld [vmem:[%s767 + $0x78] sm:$0xff]
        %v1008 = vld [vmem:[%s767 + $0x80] sm:$0xff]
        %v1009 = vld [vmem:[%s767 + $0x88] sm:$0xff]
        %v1010 = vld [vmem:[%s767 + $0x90] sm:$0xff]
        %v1011 = vld [vmem:[%s767 + $0x98] sm:$0xff]
        %v1012 = vld [vmem:[%s767 + $0xa0] sm:$0xff]
        %v1013 = vld [vmem:[%s767 + $0xa8] sm:$0xff]
        %v1014 = vld [vmem:[%s767 + $0xb0] sm:$0xff]
        %v1015 = vld [vmem:[%s767 + $0xb8] sm:$0xff]
        %v1016 = vld [vmem:[%s767 + $0xc0] sm:$0xff]
        %v1017 = vld [vmem:[%s767 + $0xc8] sm:$0xff]
        %v1018 = vld [vmem:[%s767 + $0xd0] sm:$0xff]
        %v1019 = vld [vmem:[%s767 + $0xd8] sm:$0xff]
        %v1020 = vld [vmem:[%s767 + $0xe0] sm:$0xff]
        %v1021 = vld [vmem:[%s767 + $0xe8] sm:$0xff]
        %v1022 = vld [vmem:[%s767 + $0xf0] sm:$0xff]
        %v1023 = vld [vmem:[%s767 + $0xf8] sm:$0xff]
        %v1024 = vld [vmem:[%s767 + $0x100] sm:$0xff]
        %v1025 = vld [vmem:[%s767 + $0x108] sm:$0xff]
        %v1026 = vld [vmem:[%s767 + $0x110] sm:$0xff]
        %v1027 = vld [vmem:[%s767 + $0x118] sm:$0xff]
        %v1028 = vld [vmem:[%s767 + $0x120] sm:$0xff]
        %v1029 = vld [vmem:[%s767 + $0x128] sm:$0xff]
        %v1030 = vld [vmem:[%s767 + $0x130] sm:$0xff]
        %v1031 = vld [vmem:[%s767 + $0x138] sm:$0xff]
        %v1032 = vld [vmem:[%s767 + $0x140] sm:$0xff]
        %v1033 = vld [vmem:[%s767 + $0x148] sm:$0xff]
        %v1034 = vld [vmem:[%s767 + $0x150] sm:$0xff]
        %v1035 = vld [vmem:[%s767 + $0x158] sm:$0xff]
        %v1036 = vld [vmem:[%s767 + $0x160] sm:$0xff]
        %v1037 = vld [vmem:[%s767 + $0x168] sm:$0xff]
        %v1038 = vld [vmem:[%s767 + $0x170] sm:$0xff]
        %v1039 = vld [vmem:[%s767 + $0x178] sm:$0xff]
        %v1040 = vld [vmem:[%s767 + $0x180] sm:$0xff]
        %v1041 = vld [vmem:[%s767 + $0x188] sm:$0xff]
        %v1042 = vld [vmem:[%s767 + $0x190] sm:$0xff]
        %v1043 = vld [vmem:[%s767 + $0x198] sm:$0xff]
        %v1044 = vld [vmem:[%s767 + $0x1a0] sm:$0xff]
        %v1045 = vld [vmem:[%s767 + $0x1a8] sm:$0xff]
        %v1046 = vld [vmem:[%s767 + $0x1b0] sm:$0xff]
        %v1047 = vld [vmem:[%s767 + $0x1b8] sm:$0xff]
        %v1048 = vld [vmem:[%s767 + $0x1c0] sm:$0xff]
        %v1049 = vld [vmem:[%s767 + $0x1c8] sm:$0xff]
        %v1050 = vld [vmem:[%s767 + $0x1d0] sm:$0xff]
        %v1051 = vld [vmem:[%s767 + $0x1d8] sm:$0xff]
        %v1052 = vld [vmem:[%s767 + $0x1e0] sm:$0xff]
        %v1053 = vld [vmem:[%s767 + $0x1e8] sm:$0xff]
        %v1054 = vld [vmem:[%s767 + $0x1f0] sm:$0xff]
        %v1055 = vld [vmem:[%s767 + $0x1f8] sm:$0xff]
        %v1056 = vld [vmem:[%s767 + $0x200] sm:$0xff]
        %v1057 = vld [vmem:[%s767 + $0x208] sm:$0xff]
        %v1058 = vld [vmem:[%s767 + $0x210] sm:$0xff]
        %v1059 = vld [vmem:[%s767 + $0x218] sm:$0xff]
        %v1060 = vld [vmem:[%s767 + $0x220] sm:$0xff]
        %v1061 = vld [vmem:[%s767 + $0x228] sm:$0xff]
        %v1062 = vld [vmem:[%s767 + $0x230] sm:$0xff]
        %v1063 = vld [vmem:[%s767 + $0x238] sm:$0xff]
        %v1064 = vld [vmem:[%s767 + $0x240] sm:$0xff]
        %v1065 = vld [vmem:[%s767 + $0x248] sm:$0xff]
        %v1066 = vld [vmem:[%s767 + $0x250] sm:$0xff]
        %v1067 = vld [vmem:[%s767 + $0x258] sm:$0xff]
        %v1068 = vld [vmem:[%s767 + $0x260] sm:$0xff]
        %v1069 = vld [vmem:[%s767 + $0x268] sm:$0xff]
        %v1070 = vld [vmem:[%s767 + $0x270] sm:$0xff]
        %v1071 = vld [vmem:[%s767 + $0x278] sm:$0xff]
        %v1072 = vld [vmem:[%s767 + $0x280] sm:$0xff]
        %v1073 = vld [vmem:[%s767 + $0x288] sm:$0xff]
        %v1074 = vld [vmem:[%s767 + $0x290] sm:$0xff]
        %v1075 = vld [vmem:[%s767 + $0x298] sm:$0xff]
        %v1076 = vld [vmem:[%s767 + $0x2a0] sm:$0xff]
        %v1077 = vld [vmem:[%s767 + $0x2a8] sm:$0xff]
        %v1078 = vld [vmem:[%s767 + $0x2b0] sm:$0xff]
        %v1079 = vld [vmem:[%s767 + $0x2b8] sm:$0xff]
        %v1080 = vld [vmem:[%s767 + $0x2c0] sm:$0xff]
        %v1081 = vld [vmem:[%s767 + $0x2c8] sm:$0xff]
        %v1082 = vld [vmem:[%s767 + $0x2d0] sm:$0xff]
        %v1083 = vld [vmem:[%s767 + $0x2d8] sm:$0xff]
        %v1084 = vld [vmem:[%s767 + $0x2e0] sm:$0xff]
        %v1085 = vld [vmem:[%s767 + $0x2e8] sm:$0xff]
        %v1086 = vld [vmem:[%s767 + $0x2f0] sm:$0xff]
        %v1087 = vld [vmem:[%s767 + $0x2f8] sm:$0xff]
        %v1088 = vld [vmem:[%s776] sm:$0x3f]
        %v1090 = vlaneseq
        %v1091 = vshrl.u32 %v1090, 7
        %v1092 = vsub.s32 0, %v1091
        %v1093 = vrot.slane %v1088, %v1092
        %v1094 = vlaneseq
        %v1095 = vshrl.u32 %v1094, 7
        %v1096 = vsub.s32 1, %v1095
        %v1097 = vrot.slane %v1088, %v1096
        %v1098 = vlaneseq
        %v1099 = vshrl.u32 %v1098, 7
        %v1100 = vsub.s32 2, %v1099
        %v1101 = vrot.slane %v1088, %v1100
        %v1102 = vlaneseq
        %v1103 = vshrl.u32 %v1102, 7
        %v1104 = vsub.s32 3, %v1103
        %v1105 = vrot.slane %v1088, %v1104
        %v1106 = vlaneseq
        %v1107 = vshrl.u32 %v1106, 7
        %v1108 = vsub.s32 4, %v1107
        %v1109 = vrot.slane %v1088, %v1108
        %v1110 = vlaneseq
        %v1111 = vshrl.u32 %v1110, 7
        %v1112 = vsub.s32 5, %v1111
        %v1113 = vrot.slane %v1088, %v1112
        %v1216 = vunpack.c.l.b16 %v992
        %v1217 = vunpack.c.h.b16 %v992
        %v1218 = vunpack.c.l.b16 %v993
        %v1219 = vunpack.c.h.b16 %v993
        %v1220 = vunpack.c.l.b16 %v994
        %v1221 = vunpack.c.h.b16 %v994
        %v1222 = vunpack.c.l.b16 %v995
        %v1223 = vunpack.c.h.b16 %v995
        %v1224 = vunpack.c.l.b16 %v996
        %v1225 = vunpack.c.h.b16 %v996
        %v1226 = vunpack.c.l.b16 %v997
        %v1227 = vunpack.c.h.b16 %v997
        %v1228 = vunpack.c.l.b16 %v998
        %v1229 = vunpack.c.h.b16 %v998
        %v1230 = vunpack.c.l.b16 %v999
        %v1231 = vunpack.c.h.b16 %v999
        %v1232 = vunpack.c.l.b16 %v1000
        %v1233 = vunpack.c.h.b16 %v1000
        %v1234 = vunpack.c.l.b16 %v1001
        %v1235 = vunpack.c.h.b16 %v1001
        %v1236 = vunpack.c.l.b16 %v1002
        %v1237 = vunpack.c.h.b16 %v1002
        %v1238 = vunpack.c.l.b16 %v1003
        %v1239 = vunpack.c.h.b16 %v1003
        %v1240 = vunpack.c.l.b16 %v1004
        %v1241 = vunpack.c.h.b16 %v1004
        %v1242 = vunpack.c.l.b16 %v1005
        %v1243 = vunpack.c.h.b16 %v1005
        %v1244 = vunpack.c.l.b16 %v1006
        %v1245 = vunpack.c.h.b16 %v1006
        %v1246 = vunpack.c.l.b16 %v1007
        %v1247 = vunpack.c.h.b16 %v1007
        %v1248 = vunpack.c.l.b16 %v1008
        %v1249 = vunpack.c.h.b16 %v1008
        %v1250 = vunpack.c.l.b16 %v1009
        %v1251 = vunpack.c.h.b16 %v1009
        %v1252 = vunpack.c.l.b16 %v1010
        %v1253 = vunpack.c.h.b16 %v1010
        %v1254 = vunpack.c.l.b16 %v1011
        %v1255 = vunpack.c.h.b16 %v1011
        %v1256 = vunpack.c.l.b16 %v1012
        %v1257 = vunpack.c.h.b16 %v1012
        %v1258 = vunpack.c.l.b16 %v1013
        %v1259 = vunpack.c.h.b16 %v1013
        %v1260 = vunpack.c.l.b16 %v1014
        %v1261 = vunpack.c.h.b16 %v1014
        %v1262 = vunpack.c.l.b16 %v1015
        %v1263 = vunpack.c.h.b16 %v1015
        %v1264 = vunpack.c.l.b16 %v1016
        %v1265 = vunpack.c.h.b16 %v1016
        %v1266 = vunpack.c.l.b16 %v1017
        %v1267 = vunpack.c.h.b16 %v1017
        %v1268 = vunpack.c.l.b16 %v1018
        %v1269 = vunpack.c.h.b16 %v1018
        %v1270 = vunpack.c.l.b16 %v1019
        %v1271 = vunpack.c.h.b16 %v1019
        %v1272 = vunpack.c.l.b16 %v1020
        %v1273 = vunpack.c.h.b16 %v1020
        %v1274 = vunpack.c.l.b16 %v1021
        %v1275 = vunpack.c.h.b16 %v1021
        %v1276 = vunpack.c.l.b16 %v1022
        %v1277 = vunpack.c.h.b16 %v1022
        %v1278 = vunpack.c.l.b16 %v1023
        %v1279 = vunpack.c.h.b16 %v1023
        %v1280 = vunpack.c.l.b16 %v1024
        %v1281 = vunpack.c.h.b16 %v1024
        %v1282 = vunpack.c.l.b16 %v1025
        %v1283 = vunpack.c.h.b16 %v1025
        %v1284 = vunpack.c.l.b16 %v1026
        %v1285 = vunpack.c.h.b16 %v1026
        %v1286 = vunpack.c.l.b16 %v1027
        %v1287 = vunpack.c.h.b16 %v1027
        %v1288 = vunpack.c.l.b16 %v1028
        %v1289 = vunpack.c.h.b16 %v1028
        %v1290 = vunpack.c.l.b16 %v1029
        %v1291 = vunpack.c.h.b16 %v1029
        %v1292 = vunpack.c.l.b16 %v1030
        %v1293 = vunpack.c.h.b16 %v1030
        %v1294 = vunpack.c.l.b16 %v1031
        %v1295 = vunpack.c.h.b16 %v1031
        %v1296 = vunpack.c.l.b16 %v1032
        %v1297 = vunpack.c.h.b16 %v1032
        %v1298 = vunpack.c.l.b16 %v1033
        %v1299 = vunpack.c.h.b16 %v1033
        %v1300 = vunpack.c.l.b16 %v1034
        %v1301 = vunpack.c.h.b16 %v1034
        %v1302 = vunpack.c.l.b16 %v1035
        %v1303 = vunpack.c.h.b16 %v1035
        %v1304 = vunpack.c.l.b16 %v1036
        %v1305 = vunpack.c.h.b16 %v1036
        %v1306 = vunpack.c.l.b16 %v1037
        %v1307 = vunpack.c.h.b16 %v1037
        %v1308 = vunpack.c.l.b16 %v1038
        %v1309 = vunpack.c.h.b16 %v1038
        %v1310 = vunpack.c.l.b16 %v1039
        %v1311 = vunpack.c.h.b16 %v1039
        %v1312 = vunpack.c.l.b16 %v1040
        %v1313 = vunpack.c.h.b16 %v1040
        %v1314 = vunpack.c.l.b16 %v1041
        %v1315 = vunpack.c.h.b16 %v1041
        %v1316 = vunpack.c.l.b16 %v1042
        %v1317 = vunpack.c.h.b16 %v1042
        %v1318 = vunpack.c.l.b16 %v1043
        %v1319 = vunpack.c.h.b16 %v1043
        %v1320 = vunpack.c.l.b16 %v1044
        %v1321 = vunpack.c.h.b16 %v1044
        %v1322 = vunpack.c.l.b16 %v1045
        %v1323 = vunpack.c.h.b16 %v1045
        %v1324 = vunpack.c.l.b16 %v1046
        %v1325 = vunpack.c.h.b16 %v1046
        %v1326 = vunpack.c.l.b16 %v1047
        %v1327 = vunpack.c.h.b16 %v1047
        %v1328 = vunpack.c.l.b16 %v1048
        %v1329 = vunpack.c.h.b16 %v1048
        %v1330 = vunpack.c.l.b16 %v1049
        %v1331 = vunpack.c.h.b16 %v1049
        %v1332 = vunpack.c.l.b16 %v1050
        %v1333 = vunpack.c.h.b16 %v1050
        %v1334 = vunpack.c.l.b16 %v1051
        %v1335 = vunpack.c.h.b16 %v1051
        %v1336 = vunpack.c.l.b16 %v1052
        %v1337 = vunpack.c.h.b16 %v1052
        %v1338 = vunpack.c.l.b16 %v1053
        %v1339 = vunpack.c.h.b16 %v1053
        %v1340 = vunpack.c.l.b16 %v1054
        %v1341 = vunpack.c.h.b16 %v1054
        %v1342 = vunpack.c.l.b16 %v1055
        %v1343 = vunpack.c.h.b16 %v1055
        %v1344 = vunpack.c.l.b16 %v1056
        %v1345 = vunpack.c.h.b16 %v1056
        %v1346 = vunpack.c.l.b16 %v1057
        %v1347 = vunpack.c.h.b16 %v1057
        %v1348 = vunpack.c.l.b16 %v1058
        %v1349 = vunpack.c.h.b16 %v1058
        %v1350 = vunpack.c.l.b16 %v1059
        %v1351 = vunpack.c.h.b16 %v1059
        %v1352 = vunpack.c.l.b16 %v1060
        %v1353 = vunpack.c.h.b16 %v1060
        %v1354 = vunpack.c.l.b16 %v1061
        %v1355 = vunpack.c.h.b16 %v1061
        %v1356 = vunpack.c.l.b16 %v1062
        %v1357 = vunpack.c.h.b16 %v1062
        %v1358 = vunpack.c.l.b16 %v1063
        %v1359 = vunpack.c.h.b16 %v1063
        %v1360 = vunpack.c.l.b16 %v1064
        %v1361 = vunpack.c.h.b16 %v1064
        %v1362 = vunpack.c.l.b16 %v1065
        %v1363 = vunpack.c.h.b16 %v1065
        %v1364 = vunpack.c.l.b16 %v1066
        %v1365 = vunpack.c.h.b16 %v1066
        %v1366 = vunpack.c.l.b16 %v1067
        %v1367 = vunpack.c.h.b16 %v1067
        %v1368 = vunpack.c.l.b16 %v1068
        %v1369 = vunpack.c.h.b16 %v1068
        %v1370 = vunpack.c.l.b16 %v1069
        %v1371 = vunpack.c.h.b16 %v1069
        %v1372 = vunpack.c.l.b16 %v1070
        %v1373 = vunpack.c.h.b16 %v1070
        %v1374 = vunpack.c.l.b16 %v1071
        %v1375 = vunpack.c.h.b16 %v1071
        %v1376 = vunpack.c.l.b16 %v1072
        %v1377 = vunpack.c.h.b16 %v1072
        %v1378 = vunpack.c.l.b16 %v1073
        %v1379 = vunpack.c.h.b16 %v1073
        %v1380 = vunpack.c.l.b16 %v1074
        %v1381 = vunpack.c.h.b16 %v1074
        %v1382 = vunpack.c.l.b16 %v1075
        %v1383 = vunpack.c.h.b16 %v1075
        %v1384 = vunpack.c.l.b16 %v1076
        %v1385 = vunpack.c.h.b16 %v1076
        %v1386 = vunpack.c.l.b16 %v1077
        %v1387 = vunpack.c.h.b16 %v1077
        %v1388 = vunpack.c.l.b16 %v1078
        %v1389 = vunpack.c.h.b16 %v1078
        %v1390 = vunpack.c.l.b16 %v1079
        %v1391 = vunpack.c.h.b16 %v1079
        %v1392 = vunpack.c.l.b16 %v1080
        %v1393 = vunpack.c.h.b16 %v1080
        %v1394 = vunpack.c.l.b16 %v1081
        %v1395 = vunpack.c.h.b16 %v1081
        %v1396 = vunpack.c.l.b16 %v1082
        %v1397 = vunpack.c.h.b16 %v1082
        %v1398 = vunpack.c.l.b16 %v1083
        %v1399 = vunpack.c.h.b16 %v1083
        %v1400 = vunpack.c.l.b16 %v1084
        %v1401 = vunpack.c.h.b16 %v1084
        %v1402 = vunpack.c.l.b16 %v1085
        %v1403 = vunpack.c.h.b16 %v1085
        %v1404 = vunpack.c.l.b16 %v1086
        %v1405 = vunpack.c.h.b16 %v1086
        %v1406 = vunpack.c.l.b16 %v1087
        %v1407 = vunpack.c.h.b16 %v1087
        %v1408 = vpack.c.b16 %v1222, %v1216
        %v1409 = vpack.c.b16 %v1223, %v1217
        %v1410 = vpack.c.b16 %v1224, %v1218
        %v1411 = vpack.c.b16 %v1225, %v1219
        %v1412 = vpack.c.b16 %v1226, %v1220
        %v1413 = vpack.c.b16 %v1227, %v1221
        %v1414 = vpack.c.b16 %v1234, %v1228
        %v1415 = vpack.c.b16 %v1235, %v1229
        %v1416 = vpack.c.b16 %v1236, %v1230
        %v1417 = vpack.c.b16 %v1237, %v1231
        %v1418 = vpack.c.b16 %v1238, %v1232
        %v1419 = vpack.c.b16 %v1239, %v1233
        %v1420 = vpack.c.b16 %v1246, %v1240
        %v1421 = vpack.c.b16 %v1247, %v1241
        %v1422 = vpack.c.b16 %v1248, %v1242
        %v1423 = vpack.c.b16 %v1249, %v1243
        %v1424 = vpack.c.b16 %v1250, %v1244
        %v1425 = vpack.c.b16 %v1251, %v1245
        %v1426 = vpack.c.b16 %v1258, %v1252
        %v1427 = vpack.c.b16 %v1259, %v1253
        %v1428 = vpack.c.b16 %v1260, %v1254
        %v1429 = vpack.c.b16 %v1261, %v1255
        %v1430 = vpack.c.b16 %v1262, %v1256
        %v1431 = vpack.c.b16 %v1263, %v1257
        %v1432 = vpack.c.b16 %v1270, %v1264
        %v1433 = vpack.c.b16 %v1271, %v1265
        %v1434 = vpack.c.b16 %v1272, %v1266
        %v1435 = vpack.c.b16 %v1273, %v1267
        %v1436 = vpack.c.b16 %v1274, %v1268
        %v1437 = vpack.c.b16 %v1275, %v1269
        %v1438 = vpack.c.b16 %v1282, %v1276
        %v1439 = vpack.c.b16 %v1283, %v1277
        %v1440 = vpack.c.b16 %v1284, %v1278
        %v1441 = vpack.c.b16 %v1285, %v1279
        %v1442 = vpack.c.b16 %v1286, %v1280
        %v1443 = vpack.c.b16 %v1287, %v1281
        %v1444 = vpack.c.b16 %v1294, %v1288
        %v1445 = vpack.c.b16 %v1295, %v1289
        %v1446 = vpack.c.b16 %v1296, %v1290
        %v1447 = vpack.c.b16 %v1297, %v1291
        %v1448 = vpack.c.b16 %v1298, %v1292
        %v1449 = vpack.c.b16 %v1299, %v1293
        %v1450 = vpack.c.b16 %v1306, %v1300
        %v1451 = vpack.c.b16 %v1307, %v1301
        %v1452 = vpack.c.b16 %v1308, %v1302
        %v1453 = vpack.c.b16 %v1309, %v1303
        %v1454 = vpack.c.b16 %v1310, %v1304
        %v1455 = vpack.c.b16 %v1311, %v1305
        %v1456 = vpack.c.b16 %v1318, %v1312
        %v1457 = vpack.c.b16 %v1319, %v1313
        %v1458 = vpack.c.b16 %v1320, %v1314
        %v1459 = vpack.c.b16 %v1321, %v1315
        %v1460 = vpack.c.b16 %v1322, %v1316
        %v1461 = vpack.c.b16 %v1323, %v1317
        %v1462 = vpack.c.b16 %v1330, %v1324
        %v1463 = vpack.c.b16 %v1331, %v1325
        %v1464 = vpack.c.b16 %v1332, %v1326
        %v1465 = vpack.c.b16 %v1333, %v1327
        %v1466 = vpack.c.b16 %v1334, %v1328
        %v1467 = vpack.c.b16 %v1335, %v1329
        %v1468 = vpack.c.b16 %v1342, %v1336
        %v1469 = vpack.c.b16 %v1343, %v1337
        %v1470 = vpack.c.b16 %v1344, %v1338
        %v1471 = vpack.c.b16 %v1345, %v1339
        %v1472 = vpack.c.b16 %v1346, %v1340
        %v1473 = vpack.c.b16 %v1347, %v1341
        %v1474 = vpack.c.b16 %v1354, %v1348
        %v1475 = vpack.c.b16 %v1355, %v1349
        %v1476 = vpack.c.b16 %v1356, %v1350
        %v1477 = vpack.c.b16 %v1357, %v1351
        %v1478 = vpack.c.b16 %v1358, %v1352
        %v1479 = vpack.c.b16 %v1359, %v1353
        %v1480 = vpack.c.b16 %v1366, %v1360
        %v1481 = vpack.c.b16 %v1367, %v1361
        %v1482 = vpack.c.b16 %v1368, %v1362
        %v1483 = vpack.c.b16 %v1369, %v1363
        %v1484 = vpack.c.b16 %v1370, %v1364
        %v1485 = vpack.c.b16 %v1371, %v1365
        %v1486 = vpack.c.b16 %v1378, %v1372
        %v1487 = vpack.c.b16 %v1379, %v1373
        %v1488 = vpack.c.b16 %v1380, %v1374
        %v1489 = vpack.c.b16 %v1381, %v1375
        %v1490 = vpack.c.b16 %v1382, %v1376
        %v1491 = vpack.c.b16 %v1383, %v1377
        %v1492 = vpack.c.b16 %v1390, %v1384
        %v1493 = vpack.c.b16 %v1391, %v1385
        %v1494 = vpack.c.b16 %v1392, %v1386
        %v1495 = vpack.c.b16 %v1393, %v1387
        %v1496 = vpack.c.b16 %v1394, %v1388
        %v1497 = vpack.c.b16 %v1395, %v1389
        %v1498 = vpack.c.b16 %v1402, %v1396
        %v1499 = vpack.c.b16 %v1403, %v1397
        %v1500 = vpack.c.b16 %v1404, %v1398
        %v1501 = vpack.c.b16 %v1405, %v1399
        %v1502 = vpack.c.b16 %v1406, %v1400
        %v1503 = vpack.c.b16 %v1407, %v1401
        %1600 = vmatprep.subr.bf16.mxu0 %v1409
        %1601 = vmatpush1.bf16.msra.mxu0 %v1408
        %1602 = vmatprep.subr.bf16.mxu0 %v1415
        %1603 = vmatpush1.bf16.msra.mxu0 %v1414
        %1604 = vmatprep.subr.bf16.mxu0 %v1421
        %1605 = vmatpush1.bf16.msra.mxu0 %v1420
        %1606 = vmatprep.subr.bf16.mxu0 %v1427
        %1607 = vmatpush1.bf16.msra.mxu0 %v1426
        %1608 = vmatprep.subr.bf16.mxu0 %v1433
        %1609 = vmatpush1.bf16.msra.mxu0 %v1432
        %1610 = vmatprep.subr.bf16.mxu0 %v1439
        %1611 = vmatpush1.bf16.msra.mxu0 %v1438
        %1612 = vmatprep.subr.bf16.mxu0 %v1445
        %1613 = vmatpush1.bf16.msra.mxu0 %v1444
        %1614 = vmatprep.subr.bf16.mxu0 %v1451
        %1615 = vmatpush1.bf16.msra.mxu0 %v1450
        %1616 = vmatprep.subr.bf16.mxu0 %v1457
        %1617 = vmatpush1.bf16.msra.mxu0 %v1456
        %1618 = vmatprep.subr.bf16.mxu0 %v1463
        %1619 = vmatpush1.bf16.msra.mxu0 %v1462
        %1620 = vmatprep.subr.bf16.mxu0 %v1469
        %1621 = vmatpush1.bf16.msra.mxu0 %v1468
        %1622 = vmatprep.subr.bf16.mxu0 %v1475
        %1623 = vmatpush1.bf16.msra.mxu0 %v1474
        %1624 = vmatprep.subr.bf16.mxu0 %v1481
        %1625 = vmatpush1.bf16.msra.mxu0 %v1480
        %1626 = vmatprep.subr.bf16.mxu0 %v1487
        %1627 = vmatpush1.bf16.msra.mxu0 %v1486
        %1628 = vmatprep.subr.bf16.mxu0 %v1493
        %1629 = vmatpush1.bf16.msra.mxu0 %v1492
        %1630 = vmatprep.subr.bf16.mxu0 %v1499
        %1631 = vmatpush1.bf16.msra.mxu0 %v1498
        %1632 = vmatprep.mubr.bf16.mxu0 %v991
        %1633 = vmatmul.mubr.bf16.gmra.mrb[0].mxu0 %v990
        %v1634 = vpop.f32.mrb[0].mxu0
        %v1635 = vadd.f32 %v1093, %v1634
        %v1636 = vpop.f32.mrb[0].mxu0
        %v1637 = vadd.f32 %v1097, %v1636
        %v1638 = vpop.f32.mrb[0].mxu0
        %v1639 = vadd.f32 %v1093, %v1638
        %v1640 = vpop.f32.mrb[0].mxu0
        %v1641 = vadd.f32 %v1097, %v1640
        %1642 = vdwg.mxu0
        %1643 = vmatprep.subr.bf16.mxu0 %v1411
        %1644 = vmatpush1.bf16.msra.mxu0 %v1410
        %1645 = vmatprep.subr.bf16.mxu0 %v1417
        %1646 = vmatpush1.bf16.msra.mxu0 %v1416
        %1647 = vmatprep.subr.bf16.mxu0 %v1423
        %1648 = vmatpush1.bf16.msra.mxu0 %v1422
        %1649 = vmatprep.subr.bf16.mxu0 %v1429
        %1650 = vmatpush1.bf16.msra.mxu0 %v1428
        %1651 = vmatprep.subr.bf16.mxu0 %v1435
        %1652 = vmatpush1.bf16.msra.mxu0 %v1434
        %1653 = vmatprep.subr.bf16.mxu0 %v1441
        %1654 = vmatpush1.bf16.msra.mxu0 %v1440
        %1655 = vmatprep.subr.bf16.mxu0 %v1447
        %1656 = vmatpush1.bf16.msra.mxu0 %v1446
        %1657 = vmatprep.subr.bf16.mxu0 %v1453
        %1658 = vmatpush1.bf16.msra.mxu0 %v1452
        %1659 = vmatprep.subr.bf16.mxu0 %v1459
        %1660 = vmatpush1.bf16.msra.mxu0 %v1458
        %1661 = vmatprep.subr.bf16.mxu0 %v1465
        %1662 = vmatpush1.bf16.msra.mxu0 %v1464
        %1663 = vmatprep.subr.bf16.mxu0 %v1471
        %1664 = vmatpush1.bf16.msra.mxu0 %v1470
        %1665 = vmatprep.subr.bf16.mxu0 %v1477
        %1666 = vmatpush1.bf16.msra.mxu0 %v1476
        %1667 = vmatprep.subr.bf16.mxu0 %v1483
        %1668 = vmatpush1.bf16.msra.mxu0 %v1482
        %1669 = vmatprep.subr.bf16.mxu0 %v1489
        %1670 = vmatpush1.bf16.msra.mxu0 %v1488
        %1671 = vmatprep.subr.bf16.mxu0 %v1495
        %1672 = vmatpush1.bf16.msra.mxu0 %v1494
        %1673 = vmatprep.subr.bf16.mxu0 %v1501
        %1674 = vmatpush1.bf16.msra.mxu0 %v1500
        %1675 = vmatprep.mubr.bf16.mxu0 %v991
        %1676 = vmatmul.mubr.bf16.gmra.mrb[0].mxu0 %v990
        %v1677 = vpop.f32.mrb[0].mxu0
        %v1678 = vadd.f32 %v1101, %v1677
        %v1679 = vpop.f32.mrb[0].mxu0
        %v1680 = vadd.f32 %v1105, %v1679
        %v1681 = vpop.f32.mrb[0].mxu0
        %v1682 = vadd.f32 %v1101, %v1681
        %v1683 = vpop.f32.mrb[0].mxu0
        %v1684 = vadd.f32 %v1105, %v1683
        %1685 = vdwg.mxu0
        %1686 = vmatprep.subr.bf16.mxu0 %v1413
        %1687 = vmatpush1.bf16.msra.mxu0 %v1412
        %1688 = vmatprep.subr.bf16.mxu0 %v1419
        %1689 = vmatpush1.bf16.msra.mxu0 %v1418
        %1690 = vmatprep.subr.bf16.mxu0 %v1425
        %1691 = vmatpush1.bf16.msra.mxu0 %v1424
        %1692 = vmatprep.subr.bf16.mxu0 %v1431
        %1693 = vmatpush1.bf16.msra.mxu0 %v1430
        %1694 = vmatprep.subr.bf16.mxu0 %v1437
        %1695 = vmatpush1.bf16.msra.mxu0 %v1436
        %1696 = vmatprep.subr.bf16.mxu0 %v1443
        %1697 = vmatpush1.bf16.msra.mxu0 %v1442
        %1698 = vmatprep.subr.bf16.mxu0 %v1449
        %1699 = vmatpush1.bf16.msra.mxu0 %v1448
        %1700 = vmatprep.subr.bf16.mxu0 %v1455
        %1701 = vmatpush1.bf16.msra.mxu0 %v1454
        %1702 = vmatprep.subr.bf16.mxu0 %v1461
        %1703 = vmatpush1.bf16.msra.mxu0 %v1460
        %1704 = vmatprep.subr.bf16.mxu0 %v1467
        %1705 = vmatpush1.bf16.msra.mxu0 %v1466
        %1706 = vmatprep.subr.bf16.mxu0 %v1473
        %1707 = vmatpush1.bf16.msra.mxu0 %v1472
        %1708 = vmatprep.subr.bf16.mxu0 %v1479
        %1709 = vmatpush1.bf16.msra.mxu0 %v1478
        %1710 = vmatprep.subr.bf16.mxu0 %v1485
        %1711 = vmatpush1.bf16.msra.mxu0 %v1484
        %1712 = vmatprep.subr.bf16.mxu0 %v1491
        %1713 = vmatpush1.bf16.msra.mxu0 %v1490
        %1714 = vmatprep.subr.bf16.mxu0 %v1497
        %1715 = vmatpush1.bf16.msra.mxu0 %v1496
        %1716 = vmatprep.subr.bf16.mxu0 %v1503
        %1717 = vmatpush1.bf16.msra.mxu0 %v1502
        %1718 = vmatprep.mubr.bf16.mxu0 %v991
        %1719 = vmatmul.mubr.bf16.gmra.mrb[0].mxu0 %v990
        %v1720 = vpop.f32.mrb[0].mxu0
        %v1721 = vadd.f32 %v1109, %v1720
        %v1722 = vpop.f32.mrb[0].mxu0
        %v1723 = vadd.f32 %v1113, %v1722
        %v1724 = vpop.f32.mrb[0].mxu0
        %v1725 = vadd.f32 %v1109, %v1724
        %v1726 = vpop.f32.mrb[0].mxu0
        %v1727 = vadd.f32 %v1113, %v1726
        %1728 = vdwg.mxu0
        %v1729 = vmul.f32 %v1635, 0.17677669
        %v1730 = vmul.f32 %v1637, 0.17677669
        %v1731 = vmul.f32 %v1639, 0.17677669
        %v1732 = vmul.f32 %v1641, 0.17677669
        %1735 = vrot.lane.b32.xlu0 %v1729, 96
        %v1736 = vpop.permute.xlu0 %1735
        %1737 = vrot.lane.b32.xlu0 %v1731, 96
        %v1738 = vpop.permute.xlu0 %1737
        %1741 = vrot.lane.b32.xlu0 %v1729, 64
        %v1742 = vpop.permute.xlu0 %1741
        %1743 = vrot.lane.b32.xlu0 %v1731, 64
        %v1744 = vpop.permute.xlu0 %1743
        %1747 = vrot.lane.b32.xlu0 %v1729, 32
        %v1748 = vpop.permute.xlu0 %1747
        %1749 = vrot.lane.b32.xlu0 %v1731, 32
        %v1750 = vpop.permute.xlu0 %1749
        %1755 = vrot.lane.b32.xlu0 %v1730, 96
        %v1756 = vpop.permute.xlu0 %1755
        %1757 = vrot.lane.b32.xlu0 %v1732, 96
        %v1758 = vpop.permute.xlu0 %1757
        %1761 = vrot.lane.b32.xlu0 %v1730, 64
        %v1762 = vpop.permute.xlu0 %1761
        %1763 = vrot.lane.b32.xlu0 %v1732, 64
        %v1764 = vpop.permute.xlu0 %1763
        %1767 = vrot.lane.b32.xlu0 %v1730, 32
        %v1768 = vpop.permute.xlu0 %1767
        %1769 = vrot.lane.b32.xlu0 %v1732, 32
        %v1770 = vpop.permute.xlu0 %1769
        %v1773 = vpack.c.bf16 %v1731, %v1729
        %v1774 = vpack.c.bf16 %v1738, %v1736
        %v1775 = vpack.c.bf16 %v1744, %v1742
        %v1776 = vpack.c.bf16 %v1750, %v1748
        %v1777 = vpack.c.bf16 %v1732, %v1730
        %v1778 = vpack.c.bf16 %v1758, %v1756
        %v1779 = vpack.c.bf16 %v1764, %v1762
        %v1780 = vpack.c.bf16 %v1770, %v1768
        %1783 = vrot.lane.b32.xlu0 %v1678, 96
        %v1784 = vpop.permute.xlu0 %1783
        %1785 = vrot.lane.b32.xlu0 %v1682, 96
        %v1786 = vpop.permute.xlu0 %1785
        %1789 = vrot.lane.b32.xlu0 %v1678, 64
        %v1790 = vpop.permute.xlu0 %1789
        %1791 = vrot.lane.b32.xlu0 %v1682, 64
        %v1792 = vpop.permute.xlu0 %1791
        %1795 = vrot.lane.b32.xlu0 %v1678, 32
        %v1796 = vpop.permute.xlu0 %1795
        %1797 = vrot.lane.b32.xlu0 %v1682, 32
        %v1798 = vpop.permute.xlu0 %1797
        %1803 = vrot.lane.b32.xlu0 %v1680, 96
        %v1804 = vpop.permute.xlu0 %1803
        %1805 = vrot.lane.b32.xlu0 %v1684, 96
        %v1806 = vpop.permute.xlu0 %1805
        %1809 = vrot.lane.b32.xlu0 %v1680, 64
        %v1810 = vpop.permute.xlu0 %1809
        %1811 = vrot.lane.b32.xlu0 %v1684, 64
        %v1812 = vpop.permute.xlu0 %1811
        %1815 = vrot.lane.b32.xlu0 %v1680, 32
        %v1816 = vpop.permute.xlu0 %1815
        %1817 = vrot.lane.b32.xlu0 %v1684, 32
        %v1818 = vpop.permute.xlu0 %1817
        %v1821 = vpack.c.bf16 %v1682, %v1678
        %v1822 = vpack.c.bf16 %v1786, %v1784
        %v1823 = vpack.c.bf16 %v1792, %v1790
        %v1824 = vpack.c.bf16 %v1798, %v1796
        %v1825 = vpack.c.bf16 %v1684, %v1680
        %v1826 = vpack.c.bf16 %v1806, %v1804
        %v1827 = vpack.c.bf16 %v1812, %v1810
        %v1828 = vpack.c.bf16 %v1818, %v1816
        %1831 = vrot.lane.b32.xlu0 %v1721, 96
        %v1832 = vpop.permute.xlu0 %1831
        %1833 = vrot.lane.b32.xlu0 %v1725, 96
        %v1834 = vpop.permute.xlu0 %1833
        %1837 = vrot.lane.b32.xlu0 %v1721, 64
        %v1838 = vpop.permute.xlu0 %1837
        %1839 = vrot.lane.b32.xlu0 %v1725, 64
        %v1840 = vpop.permute.xlu0 %1839
        %1843 = vrot.lane.b32.xlu0 %v1721, 32
        %v1844 = vpop.permute.xlu0 %1843
        %1845 = vrot.lane.b32.xlu0 %v1725, 32
        %v1846 = vpop.permute.xlu0 %1845
        %1851 = vrot.lane.b32.xlu0 %v1723, 96
        %v1852 = vpop.permute.xlu0 %1851
        %1853 = vrot.lane.b32.xlu0 %v1727, 96
        %v1854 = vpop.permute.xlu0 %1853
        %1857 = vrot.lane.b32.xlu0 %v1723, 64
        %v1858 = vpop.permute.xlu0 %1857
        %1859 = vrot.lane.b32.xlu0 %v1727, 64
        %v1860 = vpop.permute.xlu0 %1859
        %1863 = vrot.lane.b32.xlu0 %v1723, 32
        %v1864 = vpop.permute.xlu0 %1863
        %1865 = vrot.lane.b32.xlu0 %v1727, 32
        %v1866 = vpop.permute.xlu0 %1865
        %v1869 = vpack.c.bf16 %v1725, %v1721
        %v1870 = vpack.c.bf16 %v1834, %v1832
        %v1871 = vpack.c.bf16 %v1840, %v1838
        %v1872 = vpack.c.bf16 %v1846, %v1844
        %v1873 = vpack.c.bf16 %v1727, %v1723
        %v1874 = vpack.c.bf16 %v1854, %v1852
        %v1875 = vpack.c.bf16 %v1860, %v1858
        %v1876 = vpack.c.bf16 %v1866, %v1864
        %v1877 = vld [vmem:[#allocation6] sm:$0xff]
        %v1878 = vld [vmem:[#allocation6 + $0x8] sm:$0xff]
        %vm1879 = vcmask 261120
        %v1881 = vsel %vm1879, %v1773, 0
        %v1884 = vsel %vm1879, %v1821, 0
        %1886 = vmatprep.subr.bf16.mxu0 0
        %1887 = vmatpush1.bf16.xpose.msra.mxu0 %v1884
        %1888 = vmatprep.subr.bf16.mxu0 0
        %1889 = vmatpush1.bf16.xpose.msra.mxu0 0
        %1890 = vmatprep.subr.bf16.mxu0 0
        %1891 = vmatpush1.bf16.xpose.msra.mxu0 0
        %1892 = vmatprep.subr.bf16.mxu0 0
        %1893 = vmatpush1.bf16.xpose.msra.mxu0 0
        %1894 = vmatprep.subr.bf16.mxu0 0
        %1895 = vmatpush1.bf16.xpose.msra.mxu0 0
        %1896 = vmatprep.subr.bf16.mxu0 0
        %1897 = vmatpush1.bf16.xpose.msra.mxu0 0
        %1898 = vmatprep.subr.bf16.mxu0 0
        %1899 = vmatpush1.bf16.xpose.msra.mxu0 0
        %1900 = vmatprep.subr.bf16.mxu0 0
        %1901 = vmatpush1.bf16.xpose.msra.mxu0 0
        %1902 = vmatprep.subr.bf16.mxu0 0
        %1903 = vmatpush1.bf16.xpose.msra.mxu0 0
        %1904 = vmatprep.subr.bf16.mxu0 0
        %1905 = vmatpush1.bf16.xpose.msra.mxu0 0
        %1906 = vmatprep.subr.bf16.mxu0 0
        %1907 = vmatpush1.bf16.xpose.msra.mxu0 0
        %1908 = vmatprep.subr.bf16.mxu0 0
        %1909 = vmatpush1.bf16.xpose.msra.mxu0 0
        %1910 = vmatprep.subr.bf16.mxu0 0
        %1911 = vmatpush1.bf16.xpose.msra.mxu0 0
        %1912 = vmatprep.subr.bf16.mxu0 0
        %1913 = vmatpush1.bf16.xpose.msra.mxu0 0
        %1914 = vmatprep.subr.bf16.mxu0 0
        %1915 = vmatpush1.bf16.xpose.msra.mxu0 0
        %1916 = vmatprep.subr.bf16.mxu0 0
        %1917 = vmatpush1.bf16.xpose.msra.mxu0 0
        %1918 = vmatprep.mubr.bf16.mxu0 0
        %1919 = vmatmul.mubr.bf16.gmra.mrb[0].mxu0 %v1881
        %v1920 = vpop.f32.mrb[0].mxu0
        %v1921 = vadd.f32 %v1877, %v1920
        %v1922 = vpop.f32.mrb[0].mxu0
        %v1923 = vpop.f32.mrb[0].mxu0
        %v1924 = vadd.f32 %v1878, %v1923
        %v1925 = vpop.f32.mrb[0].mxu0
        %1926 = vdwg.mxu0
        %v1928 = vsel %vm1879, %v1774, 0
        %v1931 = vsel %vm1879, %v1822, 0
        %1933 = vmatprep.subr.bf16.mxu0 0
        %1934 = vmatpush1.bf16.xpose.msra.mxu0 %v1931
        %1935 = vmatprep.subr.bf16.mxu0 0
        %1936 = vmatpush1.bf16.xpose.msra.mxu0 0
        %1937 = vmatprep.subr.bf16.mxu0 0
        %1938 = vmatpush1.bf16.xpose.msra.mxu0 0
        %1939 = vmatprep.subr.bf16.mxu0 0
        %1940 = vmatpush1.bf16.xpose.msra.mxu0 0
        %1941 = vmatprep.subr.bf16.mxu0 0
        %1942 = vmatpush1.bf16.xpose.msra.mxu0 0
        %1943 = vmatprep.subr.bf16.mxu0 0
        %1944 = vmatpush1.bf16.xpose.msra.mxu0 0
        %1945 = vmatprep.subr.bf16.mxu0 0
        %1946 = vmatpush1.bf16.xpose.msra.mxu0 0
        %1947 = vmatprep.subr.bf16.mxu0 0
        %1948 = vmatpush1.bf16.xpose.msra.mxu0 0
        %1949 = vmatprep.subr.bf16.mxu0 0
        %1950 = vmatpush1.bf16.xpose.msra.mxu0 0
        %1951 = vmatprep.subr.bf16.mxu0 0
        %1952 = vmatpush1.bf16.xpose.msra.mxu0 0
        %1953 = vmatprep.subr.bf16.mxu0 0
        %1954 = vmatpush1.bf16.xpose.msra.mxu0 0
        %1955 = vmatprep.subr.bf16.mxu0 0
        %1956 = vmatpush1.bf16.xpose.msra.mxu0 0
        %1957 = vmatprep.subr.bf16.mxu0 0
        %1958 = vmatpush1.bf16.xpose.msra.mxu0 0
        %1959 = vmatprep.subr.bf16.mxu0 0
        %1960 = vmatpush1.bf16.xpose.msra.mxu0 0
        %1961 = vmatprep.subr.bf16.mxu0 0
        %1962 = vmatpush1.bf16.xpose.msra.mxu0 0
        %1963 = vmatprep.subr.bf16.mxu0 0
        %1964 = vmatpush1.bf16.xpose.msra.mxu0 0
        %1965 = vmatprep.mubr.bf16.mxu0 0
        %1966 = vmatmul.mubr.bf16.gmra.mrb[0].mxu0 %v1928
        %v1967 = vpop.f32.mrb[0].mxu0
        %v1968 = vadd.f32 %v1877, %v1967
        %v1969 = vpop.f32.mrb[0].mxu0
        %v1970 = vpop.f32.mrb[0].mxu0
        %v1971 = vadd.f32 %v1878, %v1970
        %v1972 = vpop.f32.mrb[0].mxu0
        %1973 = vdwg.mxu0
        %v1975 = vsel %vm1879, %v1775, 0
        %v1978 = vsel %vm1879, %v1823, 0
        %1980 = vmatprep.subr.bf16.mxu0 0
        %1981 = vmatpush1.bf16.xpose.msra.mxu0 %v1978
        %1982 = vmatprep.subr.bf16.mxu0 0
        %1983 = vmatpush1.bf16.xpose.msra.mxu0 0
        %1984 = vmatprep.subr.bf16.mxu0 0
        %1985 = vmatpush1.bf16.xpose.msra.mxu0 0
        %1986 = vmatprep.subr.bf16.mxu0 0
        %1987 = vmatpush1.bf16.xpose.msra.mxu0 0
        %1988 = vmatprep.subr.bf16.mxu0 0
        %1989 = vmatpush1.bf16.xpose.msra.mxu0 0
        %1990 = vmatprep.subr.bf16.mxu0 0
        %1991 = vmatpush1.bf16.xpose.msra.mxu0 0
        %1992 = vmatprep.subr.bf16.mxu0 0
        %1993 = vmatpush1.bf16.xpose.msra.mxu0 0
        %1994 = vmatprep.subr.bf16.mxu0 0
        %1995 = vmatpush1.bf16.xpose.msra.mxu0 0
        %1996 = vmatprep.subr.bf16.mxu0 0
        %1997 = vmatpush1.bf16.xpose.msra.mxu0 0
        %1998 = vmatprep.subr.bf16.mxu0 0
        %1999 = vmatpush1.bf16.xpose.msra.mxu0 0
        %2000 = vmatprep.subr.bf16.mxu0 0
        %2001 = vmatpush1.bf16.xpose.msra.mxu0 0
        %2002 = vmatprep.subr.bf16.mxu0 0
        %2003 = vmatpush1.bf16.xpose.msra.mxu0 0
        %2004 = vmatprep.subr.bf16.mxu0 0
        %2005 = vmatpush1.bf16.xpose.msra.mxu0 0
        %2006 = vmatprep.subr.bf16.mxu0 0
        %2007 = vmatpush1.bf16.xpose.msra.mxu0 0
        %2008 = vmatprep.subr.bf16.mxu0 0
        %2009 = vmatpush1.bf16.xpose.msra.mxu0 0
        %2010 = vmatprep.subr.bf16.mxu0 0
        %2011 = vmatpush1.bf16.xpose.msra.mxu0 0
        %2012 = vmatprep.mubr.bf16.mxu0 0
        %2013 = vmatmul.mubr.bf16.gmra.mrb[0].mxu0 %v1975
        %v2014 = vpop.f32.mrb[0].mxu0
        %v2015 = vadd.f32 %v1877, %v2014
        %v2016 = vpop.f32.mrb[0].mxu0
        %v2017 = vpop.f32.mrb[0].mxu0
        %v2018 = vadd.f32 %v1878, %v2017
        %v2019 = vpop.f32.mrb[0].mxu0
        %2020 = vdwg.mxu0
        %v2022 = vsel %vm1879, %v1776, 0
        %v2025 = vsel %vm1879, %v1824, 0
        %2027 = vmatprep.subr.bf16.mxu0 0
        %2028 = vmatpush1.bf16.xpose.msra.mxu0 %v2025
        %2029 = vmatprep.subr.bf16.mxu0 0
        %2030 = vmatpush1.bf16.xpose.msra.mxu0 0
        %2031 = vmatprep.subr.bf16.mxu0 0
        %2032 = vmatpush1.bf16.xpose.msra.mxu0 0
        %2033 = vmatprep.subr.bf16.mxu0 0
        %2034 = vmatpush1.bf16.xpose.msra.mxu0 0
        %2035 = vmatprep.subr.bf16.mxu0 0
        %2036 = vmatpush1.bf16.xpose.msra.mxu0 0
        %2037 = vmatprep.subr.bf16.mxu0 0
        %2038 = vmatpush1.bf16.xpose.msra.mxu0 0
        %2039 = vmatprep.subr.bf16.mxu0 0
        %2040 = vmatpush1.bf16.xpose.msra.mxu0 0
        %2041 = vmatprep.subr.bf16.mxu0 0
        %2042 = vmatpush1.bf16.xpose.msra.mxu0 0
        %2043 = vmatprep.subr.bf16.mxu0 0
        %2044 = vmatpush1.bf16.xpose.msra.mxu0 0
        %2045 = vmatprep.subr.bf16.mxu0 0
        %2046 = vmatpush1.bf16.xpose.msra.mxu0 0
        %2047 = vmatprep.subr.bf16.mxu0 0
        %2048 = vmatpush1.bf16.xpose.msra.mxu0 0
        %2049 = vmatprep.subr.bf16.mxu0 0
        %2050 = vmatpush1.bf16.xpose.msra.mxu0 0
        %2051 = vmatprep.subr.bf16.mxu0 0
        %2052 = vmatpush1.bf16.xpose.msra.mxu0 0
        %2053 = vmatprep.subr.bf16.mxu0 0
        %2054 = vmatpush1.bf16.xpose.msra.mxu0 0
        %2055 = vmatprep.subr.bf16.mxu0 0
        %2056 = vmatpush1.bf16.xpose.msra.mxu0 0
        %2057 = vmatprep.subr.bf16.mxu0 0
        %2058 = vmatpush1.bf16.xpose.msra.mxu0 0
        %2059 = vmatprep.mubr.bf16.mxu0 0
        %2060 = vmatmul.mubr.bf16.gmra.mrb[0].mxu0 %v2022
        %v2061 = vpop.f32.mrb[0].mxu0
        %v2062 = vadd.f32 %v1877, %v2061
        %v2063 = vpop.f32.mrb[0].mxu0
        %v2064 = vpop.f32.mrb[0].mxu0
        %v2065 = vadd.f32 %v1878, %v2064
        %v2066 = vpop.f32.mrb[0].mxu0
        %2067 = vdwg.mxu0
        %v2069 = vsel %vm1879, %v1777, 0
        %v2072 = vsel %vm1879, %v1825, 0
        %2074 = vmatprep.subr.bf16.mxu0 0
        %2075 = vmatpush1.bf16.xpose.msra.mxu0 %v2072
        %2076 = vmatprep.subr.bf16.mxu0 0
        %2077 = vmatpush1.bf16.xpose.msra.mxu0 0
        %2078 = vmatprep.subr.bf16.mxu0 0
        %2079 = vmatpush1.bf16.xpose.msra.mxu0 0
        %2080 = vmatprep.subr.bf16.mxu0 0
        %2081 = vmatpush1.bf16.xpose.msra.mxu0 0
        %2082 = vmatprep.subr.bf16.mxu0 0
        %2083 = vmatpush1.bf16.xpose.msra.mxu0 0
        %2084 = vmatprep.subr.bf16.mxu0 0
        %2085 = vmatpush1.bf16.xpose.msra.mxu0 0
        %2086 = vmatprep.subr.bf16.mxu0 0
        %2087 = vmatpush1.bf16.xpose.msra.mxu0 0
        %2088 = vmatprep.subr.bf16.mxu0 0
        %2089 = vmatpush1.bf16.xpose.msra.mxu0 0
        %2090 = vmatprep.subr.bf16.mxu0 0
        %2091 = vmatpush1.bf16.xpose.msra.mxu0 0
        %2092 = vmatprep.subr.bf16.mxu0 0
        %2093 = vmatpush1.bf16.xpose.msra.mxu0 0
        %2094 = vmatprep.subr.bf16.mxu0 0
        %2095 = vmatpush1.bf16.xpose.msra.mxu0 0
        %2096 = vmatprep.subr.bf16.mxu0 0
        %2097 = vmatpush1.bf16.xpose.msra.mxu0 0
        %2098 = vmatprep.subr.bf16.mxu0 0
        %2099 = vmatpush1.bf16.xpose.msra.mxu0 0
        %2100 = vmatprep.subr.bf16.mxu0 0
        %2101 = vmatpush1.bf16.xpose.msra.mxu0 0
        %2102 = vmatprep.subr.bf16.mxu0 0
        %2103 = vmatpush1.bf16.xpose.msra.mxu0 0
        %2104 = vmatprep.subr.bf16.mxu0 0
        %2105 = vmatpush1.bf16.xpose.msra.mxu0 0
        %2106 = vmatprep.mubr.bf16.mxu0 0
        %2107 = vmatmul.mubr.bf16.gmra.mrb[0].mxu0 %v2069
        %v2108 = vpop.f32.mrb[0].mxu0
        %v2109 = vadd.f32 %v1877, %v2108
        %v2110 = vpop.f32.mrb[0].mxu0
        %v2111 = vpop.f32.mrb[0].mxu0
        %v2112 = vadd.f32 %v1878, %v2111
        %v2113 = vpop.f32.mrb[0].mxu0
        %2114 = vdwg.mxu0
        %v2116 = vsel %vm1879, %v1778, 0
        %v2119 = vsel %vm1879, %v1826, 0
        %2121 = vmatprep.subr.bf16.mxu0 0
        %2122 = vmatpush1.bf16.xpose.msra.mxu0 %v2119
        %2123 = vmatprep.subr.bf16.mxu0 0
        %2124 = vmatpush1.bf16.xpose.msra.mxu0 0
        %2125 = vmatprep.subr.bf16.mxu0 0
        %2126 = vmatpush1.bf16.xpose.msra.mxu0 0
        %2127 = vmatprep.subr.bf16.mxu0 0
        %2128 = vmatpush1.bf16.xpose.msra.mxu0 0
        %2129 = vmatprep.subr.bf16.mxu0 0
        %2130 = vmatpush1.bf16.xpose.msra.mxu0 0
        %2131 = vmatprep.subr.bf16.mxu0 0
        %2132 = vmatpush1.bf16.xpose.msra.mxu0 0
        %2133 = vmatprep.subr.bf16.mxu0 0
        %2134 = vmatpush1.bf16.xpose.msra.mxu0 0
        %2135 = vmatprep.subr.bf16.mxu0 0
        %2136 = vmatpush1.bf16.xpose.msra.mxu0 0
        %2137 = vmatprep.subr.bf16.mxu0 0
        %2138 = vmatpush1.bf16.xpose.msra.mxu0 0
        %2139 = vmatprep.subr.bf16.mxu0 0
        %2140 = vmatpush1.bf16.xpose.msra.mxu0 0
        %2141 = vmatprep.subr.bf16.mxu0 0
        %2142 = vmatpush1.bf16.xpose.msra.mxu0 0
        %2143 = vmatprep.subr.bf16.mxu0 0
        %2144 = vmatpush1.bf16.xpose.msra.mxu0 0
        %2145 = vmatprep.subr.bf16.mxu0 0
        %2146 = vmatpush1.bf16.xpose.msra.mxu0 0
        %2147 = vmatprep.subr.bf16.mxu0 0
        %2148 = vmatpush1.bf16.xpose.msra.mxu0 0
        %2149 = vmatprep.subr.bf16.mxu0 0
        %2150 = vmatpush1.bf16.xpose.msra.mxu0 0
        %2151 = vmatprep.subr.bf16.mxu0 0
        %2152 = vmatpush1.bf16.xpose.msra.mxu0 0
        %2153 = vmatprep.mubr.bf16.mxu0 0
        %2154 = vmatmul.mubr.bf16.gmra.mrb[0].mxu0 %v2116
        %v2155 = vpop.f32.mrb[0].mxu0
        %v2156 = vadd.f32 %v1877, %v2155
        %v2157 = vpop.f32.mrb[0].mxu0
        %v2158 = vpop.f32.mrb[0].mxu0
        %v2159 = vadd.f32 %v1878, %v2158
        %v2160 = vpop.f32.mrb[0].mxu0
        %2161 = vdwg.mxu0
        %v2163 = vsel %vm1879, %v1779, 0
        %v2166 = vsel %vm1879, %v1827, 0
        %2168 = vmatprep.subr.bf16.mxu0 0
        %2169 = vmatpush1.bf16.xpose.msra.mxu0 %v2166
        %2170 = vmatprep.subr.bf16.mxu0 0
        %2171 = vmatpush1.bf16.xpose.msra.mxu0 0
        %2172 = vmatprep.subr.bf16.mxu0 0
        %2173 = vmatpush1.bf16.xpose.msra.mxu0 0
        %2174 = vmatprep.subr.bf16.mxu0 0
        %2175 = vmatpush1.bf16.xpose.msra.mxu0 0
        %2176 = vmatprep.subr.bf16.mxu0 0
        %2177 = vmatpush1.bf16.xpose.msra.mxu0 0
        %2178 = vmatprep.subr.bf16.mxu0 0
        %2179 = vmatpush1.bf16.xpose.msra.mxu0 0
        %2180 = vmatprep.subr.bf16.mxu0 0
        %2181 = vmatpush1.bf16.xpose.msra.mxu0 0
        %2182 = vmatprep.subr.bf16.mxu0 0
        %2183 = vmatpush1.bf16.xpose.msra.mxu0 0
        %2184 = vmatprep.subr.bf16.mxu0 0
        %2185 = vmatpush1.bf16.xpose.msra.mxu0 0
        %2186 = vmatprep.subr.bf16.mxu0 0
        %2187 = vmatpush1.bf16.xpose.msra.mxu0 0
        %2188 = vmatprep.subr.bf16.mxu0 0
        %2189 = vmatpush1.bf16.xpose.msra.mxu0 0
        %2190 = vmatprep.subr.bf16.mxu0 0
        %2191 = vmatpush1.bf16.xpose.msra.mxu0 0
        %2192 = vmatprep.subr.bf16.mxu0 0
        %2193 = vmatpush1.bf16.xpose.msra.mxu0 0
        %2194 = vmatprep.subr.bf16.mxu0 0
        %2195 = vmatpush1.bf16.xpose.msra.mxu0 0
        %2196 = vmatprep.subr.bf16.mxu0 0
        %2197 = vmatpush1.bf16.xpose.msra.mxu0 0
        %2198 = vmatprep.subr.bf16.mxu0 0
        %2199 = vmatpush1.bf16.xpose.msra.mxu0 0
        %2200 = vmatprep.mubr.bf16.mxu0 0
        %2201 = vmatmul.mubr.bf16.gmra.mrb[0].mxu0 %v2163
        %v2202 = vpop.f32.mrb[0].mxu0
        %v2203 = vadd.f32 %v1877, %v2202
        %v2204 = vpop.f32.mrb[0].mxu0
        %v2205 = vpop.f32.mrb[0].mxu0
        %v2206 = vadd.f32 %v1878, %v2205
        %v2207 = vpop.f32.mrb[0].mxu0
        %2208 = vdwg.mxu0
        %v2210 = vsel %vm1879, %v1780, 0
        %v2213 = vsel %vm1879, %v1828, 0
        %2215 = vmatprep.subr.bf16.mxu0 0
        %2216 = vmatpush1.bf16.xpose.msra.mxu0 %v2213
        %2217 = vmatprep.subr.bf16.mxu0 0
        %2218 = vmatpush1.bf16.xpose.msra.mxu0 0
        %2219 = vmatprep.subr.bf16.mxu0 0
        %2220 = vmatpush1.bf16.xpose.msra.mxu0 0
        %2221 = vmatprep.subr.bf16.mxu0 0
        %2222 = vmatpush1.bf16.xpose.msra.mxu0 0
        %2223 = vmatprep.subr.bf16.mxu0 0
        %2224 = vmatpush1.bf16.xpose.msra.mxu0 0
        %2225 = vmatprep.subr.bf16.mxu0 0
        %2226 = vmatpush1.bf16.xpose.msra.mxu0 0
        %2227 = vmatprep.subr.bf16.mxu0 0
        %2228 = vmatpush1.bf16.xpose.msra.mxu0 0
        %2229 = vmatprep.subr.bf16.mxu0 0
        %2230 = vmatpush1.bf16.xpose.msra.mxu0 0
        %2231 = vmatprep.subr.bf16.mxu0 0
        %2232 = vmatpush1.bf16.xpose.msra.mxu0 0
        %2233 = vmatprep.subr.bf16.mxu0 0
        %2234 = vmatpush1.bf16.xpose.msra.mxu0 0
        %2235 = vmatprep.subr.bf16.mxu0 0
        %2236 = vmatpush1.bf16.xpose.msra.mxu0 0
        %2237 = vmatprep.subr.bf16.mxu0 0
        %2238 = vmatpush1.bf16.xpose.msra.mxu0 0
        %2239 = vmatprep.subr.bf16.mxu0 0
        %2240 = vmatpush1.bf16.xpose.msra.mxu0 0
        %2241 = vmatprep.subr.bf16.mxu0 0
        %2242 = vmatpush1.bf16.xpose.msra.mxu0 0
        %2243 = vmatprep.subr.bf16.mxu0 0
        %2244 = vmatpush1.bf16.xpose.msra.mxu0 0
        %2245 = vmatprep.subr.bf16.mxu0 0
        %2246 = vmatpush1.bf16.xpose.msra.mxu0 0
        %2247 = vmatprep.mubr.bf16.mxu0 0
        %2248 = vmatmul.mubr.bf16.gmra.mrb[0].mxu0 %v2210
        %v2249 = vpop.f32.mrb[0].mxu0
        %v2250 = vadd.f32 %v1877, %v2249
        %v2251 = vpop.f32.mrb[0].mxu0
        %v2252 = vpop.f32.mrb[0].mxu0
        %v2253 = vadd.f32 %v1878, %v2252
        %v2254 = vpop.f32.mrb[0].mxu0
        %2255 = vdwg.mxu0
        %vm2256 = vcmask 130048
        %v2257 = vsel %vm2256, %v1921, -inf
        %2258 = vmax.xlane.f32.xlu0 %v2257
        %v2259 = vpop.xlane.xlu0 %2258
        %v2260 = vsel %vm2256, %v1924, -inf
        %2261 = vmax.xlane.f32.xlu0 %v2260
        %v2262 = vpop.xlane.xlu0 %2261
        %v2263 = vsel %vm2256, %v1968, -inf
        %2264 = vmax.xlane.f32.xlu0 %v2263
        %v2265 = vpop.xlane.xlu0 %2264
        %v2266 = vsel %vm2256, %v1971, -inf
        %2267 = vmax.xlane.f32.xlu0 %v2266
        %v2268 = vpop.xlane.xlu0 %2267
        %v2269 = vsel %vm2256, %v2015, -inf
        %2270 = vmax.xlane.f32.xlu0 %v2269
        %v2271 = vpop.xlane.xlu0 %2270
        %v2272 = vsel %vm2256, %v2018, -inf
        %2273 = vmax.xlane.f32.xlu0 %v2272
        %v2274 = vpop.xlane.xlu0 %2273
        %v2275 = vsel %vm2256, %v2062, -inf
        %2276 = vmax.xlane.f32.xlu0 %v2275
        %v2277 = vpop.xlane.xlu0 %2276
        %v2278 = vsel %vm2256, %v2065, -inf
        %2279 = vmax.xlane.f32.xlu0 %v2278
        %v2280 = vpop.xlane.xlu0 %2279
        %v2281 = vsel %vm2256, %v2109, -inf
        %2282 = vmax.xlane.f32.xlu0 %v2281
        %v2283 = vpop.xlane.xlu0 %2282
        %v2284 = vsel %vm2256, %v2112, -inf
        %2285 = vmax.xlane.f32.xlu0 %v2284
        %v2286 = vpop.xlane.xlu0 %2285
        %v2287 = vsel %vm2256, %v2156, -inf
        %2288 = vmax.xlane.f32.xlu0 %v2287
        %v2289 = vpop.xlane.xlu0 %2288
        %v2290 = vsel %vm2256, %v2159, -inf
        %2291 = vmax.xlane.f32.xlu0 %v2290
        %v2292 = vpop.xlane.xlu0 %2291
        %v2293 = vsel %vm2256, %v2203, -inf
        %2294 = vmax.xlane.f32.xlu0 %v2293
        %v2295 = vpop.xlane.xlu0 %2294
        %v2296 = vsel %vm2256, %v2206, -inf
        %2297 = vmax.xlane.f32.xlu0 %v2296
        %v2298 = vpop.xlane.xlu0 %2297
        %v2299 = vsel %vm2256, %v2250, -inf
        %2300 = vmax.xlane.f32.xlu0 %v2299
        %v2301 = vpop.xlane.xlu0 %2300
        %v2302 = vsel %vm2256, %v2253, -inf
        %2303 = vmax.xlane.f32.xlu0 %v2302
        %v2304 = vpop.xlane.xlu0 %2303
        %v2305 = vsub.f32 %v1921, %v2259
        %v2306 = vsub.f32 %v1924, %v2262
        %v2307 = vsub.f32 %v1968, %v2265
        %v2308 = vsub.f32 %v1971, %v2268
        %v2309 = vsub.f32 %v2015, %v2271
        %v2310 = vsub.f32 %v2018, %v2274
        %v2311 = vsub.f32 %v2062, %v2277
        %v2312 = vsub.f32 %v2065, %v2280
        %v2313 = vsub.f32 %v2109, %v2283
        %v2314 = vsub.f32 %v2112, %v2286
        %v2315 = vsub.f32 %v2156, %v2289
        %v2316 = vsub.f32 %v2159, %v2292
        %v2317 = vsub.f32 %v2203, %v2295
        %v2318 = vsub.f32 %v2206, %v2298
        %v2319 = vsub.f32 %v2250, %v2301
        %v2320 = vsub.f32 %v2253, %v2304
        %v2321 = vmul.f32 %v2305, 1.442695
        %v2322 = vpow.pop %v2321
        %v2323 = vmul.f32 %v2306, 1.442695
        %v2324 = vpow.pop %v2323
        %v2325 = vmul.f32 %v2307, 1.442695
        %v2326 = vpow.pop %v2325
        %v2327 = vmul.f32 %v2308, 1.442695
        %v2328 = vpow.pop %v2327
        %v2329 = vmul.f32 %v2309, 1.442695
        %v2330 = vpow.pop %v2329
        %v2331 = vmul.f32 %v2310, 1.442695
        %v2332 = vpow.pop %v2331
        %v2333 = vmul.f32 %v2311, 1.442695
        %v2334 = vpow.pop %v2333
        %v2335 = vmul.f32 %v2312, 1.442695
        %v2336 = vpow.pop %v2335
        %v2337 = vmul.f32 %v2313, 1.442695
        %v2338 = vpow.pop %v2337
        %v2339 = vmul.f32 %v2314, 1.442695
        %v2340 = vpow.pop %v2339
        %v2341 = vmul.f32 %v2315, 1.442695
        %v2342 = vpow.pop %v2341
        %v2343 = vmul.f32 %v2316, 1.442695
        %v2344 = vpow.pop %v2343
        %v2345 = vmul.f32 %v2317, 1.442695
        %v2346 = vpow.pop %v2345
        %v2347 = vmul.f32 %v2318, 1.442695
        %v2348 = vpow.pop %v2347
        %v2349 = vmul.f32 %v2319, 1.442695
        %v2350 = vpow.pop %v2349
        %v2351 = vmul.f32 %v2320, 1.442695
        %v2352 = vpow.pop %v2351
        %v2353 = vsel %vm2256, %v2322, 0.0
        %2354 = vadd.xlane.f32.xlu0 %v2353
        %v2355 = vpop.xlane.xlu0 %2354
        %v2356 = vsel %vm2256, %v2324, 0.0
        %2357 = vadd.xlane.f32.xlu0 %v2356
        %v2358 = vpop.xlane.xlu0 %2357
        %v2359 = vsel %vm2256, %v2326, 0.0
        %2360 = vadd.xlane.f32.xlu0 %v2359
        %v2361 = vpop.xlane.xlu0 %2360
        %v2362 = vsel %vm2256, %v2328, 0.0
        %2363 = vadd.xlane.f32.xlu0 %v2362
        %v2364 = vpop.xlane.xlu0 %2363
        %v2365 = vsel %vm2256, %v2330, 0.0
        %2366 = vadd.xlane.f32.xlu0 %v2365
        %v2367 = vpop.xlane.xlu0 %2366
        %v2368 = vsel %vm2256, %v2332, 0.0
        %2369 = vadd.xlane.f32.xlu0 %v2368
        %v2370 = vpop.xlane.xlu0 %2369
        %v2371 = vsel %vm2256, %v2334, 0.0
        %2372 = vadd.xlane.f32.xlu0 %v2371
        %v2373 = vpop.xlane.xlu0 %2372
        %v2374 = vsel %vm2256, %v2336, 0.0
        %2375 = vadd.xlane.f32.xlu0 %v2374
        %v2376 = vpop.xlane.xlu0 %2375
        %v2377 = vsel %vm2256, %v2338, 0.0
        %2378 = vadd.xlane.f32.xlu0 %v2377
        %v2379 = vpop.xlane.xlu0 %2378
        %v2380 = vsel %vm2256, %v2340, 0.0
        %2381 = vadd.xlane.f32.xlu0 %v2380
        %v2382 = vpop.xlane.xlu0 %2381
        %v2383 = vsel %vm2256, %v2342, 0.0
        %2384 = vadd.xlane.f32.xlu0 %v2383
        %v2385 = vpop.xlane.xlu0 %2384
        %v2386 = vsel %vm2256, %v2344, 0.0
        %2387 = vadd.xlane.f32.xlu0 %v2386
        %v2388 = vpop.xlane.xlu0 %2387
        %v2389 = vsel %vm2256, %v2346, 0.0
        %2390 = vadd.xlane.f32.xlu0 %v2389
        %v2391 = vpop.xlane.xlu0 %2390
        %v2392 = vsel %vm2256, %v2348, 0.0
        %2393 = vadd.xlane.f32.xlu0 %v2392
        %v2394 = vpop.xlane.xlu0 %2393
        %v2395 = vsel %vm2256, %v2350, 0.0
        %2396 = vadd.xlane.f32.xlu0 %v2395
        %v2397 = vpop.xlane.xlu0 %2396
        %v2398 = vsel %vm2256, %v2352, 0.0
        %2399 = vadd.xlane.f32.xlu0 %v2398
        %v2400 = vpop.xlane.xlu0 %2399
        %v2401 = vrcp.pop %v2355
        %v2402 = vmul.f32 %v2322, %v2401
        %v2403 = vrcp.pop %v2358
        %v2404 = vmul.f32 %v2324, %v2403
        %v2405 = vrcp.pop %v2361
        %v2406 = vmul.f32 %v2326, %v2405
        %v2407 = vrcp.pop %v2364
        %v2408 = vmul.f32 %v2328, %v2407
        %v2409 = vrcp.pop %v2367
        %v2410 = vmul.f32 %v2330, %v2409
        %v2411 = vrcp.pop %v2370
        %v2412 = vmul.f32 %v2332, %v2411
        %v2413 = vrcp.pop %v2373
        %v2414 = vmul.f32 %v2334, %v2413
        %v2415 = vrcp.pop %v2376
        %v2416 = vmul.f32 %v2336, %v2415
        %v2417 = vrcp.pop %v2379
        %v2418 = vmul.f32 %v2338, %v2417
        %v2419 = vrcp.pop %v2382
        %v2420 = vmul.f32 %v2340, %v2419
        %v2421 = vrcp.pop %v2385
        %v2422 = vmul.f32 %v2342, %v2421
        %v2423 = vrcp.pop %v2388
        %v2424 = vmul.f32 %v2344, %v2423
        %v2425 = vrcp.pop %v2391
        %v2426 = vmul.f32 %v2346, %v2425
        %v2427 = vrcp.pop %v2394
        %v2428 = vmul.f32 %v2348, %v2427
        %v2429 = vrcp.pop %v2397
        %v2430 = vmul.f32 %v2350, %v2429
        %v2431 = vrcp.pop %v2400
        %v2432 = vmul.f32 %v2352, %v2431
        %v2433 = vpack.c.bf16 %v2404, %v2402
        %v2434 = vpack.c.bf16 %v2408, %v2406
        %v2435 = vpack.c.bf16 %v2412, %v2410
        %v2436 = vpack.c.bf16 %v2416, %v2414
        %v2437 = vpack.c.bf16 %v2420, %v2418
        %v2438 = vpack.c.bf16 %v2424, %v2422
        %v2439 = vpack.c.bf16 %v2428, %v2426
        %v2440 = vpack.c.bf16 %v2432, %v2430
        %v2442 = vsel %vm2256, %v2433, 0
        %2444 = vmatprep.subr.bf16.mxu0 0
        %2445 = vmatpush1.bf16.msra.mxu0 %v1869
        %2446 = vmatprep.subr.bf16.mxu0 0
        %2447 = vmatpush1.bf16.msra.mxu0 0
        %2448 = vmatprep.subr.bf16.mxu0 0
        %2449 = vmatpush1.bf16.msra.mxu0 0
        %2450 = vmatprep.subr.bf16.mxu0 0
        %2451 = vmatpush1.bf16.msra.mxu0 0
        %2452 = vmatprep.subr.bf16.mxu0 0
        %2453 = vmatpush1.bf16.msra.mxu0 0
        %2454 = vmatprep.subr.bf16.mxu0 0
        %2455 = vmatpush1.bf16.msra.mxu0 0
        %2456 = vmatprep.subr.bf16.mxu0 0
        %2457 = vmatpush1.bf16.msra.mxu0 0
        %2458 = vmatprep.subr.bf16.mxu0 0
        %2459 = vmatpush1.bf16.msra.mxu0 0
        %2460 = vmatprep.subr.bf16.mxu0 0
        %2461 = vmatpush1.bf16.msra.mxu0 0
        %2462 = vmatprep.subr.bf16.mxu0 0
        %2463 = vmatpush1.bf16.msra.mxu0 0
        %2464 = vmatprep.subr.bf16.mxu0 0
        %2465 = vmatpush1.bf16.msra.mxu0 0
        %2466 = vmatprep.subr.bf16.mxu0 0
        %2467 = vmatpush1.bf16.msra.mxu0 0
        %2468 = vmatprep.subr.bf16.mxu0 0
        %2469 = vmatpush1.bf16.msra.mxu0 0
        %2470 = vmatprep.subr.bf16.mxu0 0
        %2471 = vmatpush1.bf16.msra.mxu0 0
        %2472 = vmatprep.subr.bf16.mxu0 0
        %2473 = vmatpush1.bf16.msra.mxu0 0
        %2474 = vmatprep.subr.bf16.mxu0 0
        %2475 = vmatpush1.bf16.msra.mxu0 0
        %2476 = vmatprep.mubr.bf16.mxu0 0
        %2477 = vmatmul.mubr.bf16.gmra.mrb[0].mxu0 %v2442
        %v2478 = vpop.f32.mrb[0].mxu0
        %v2479 = vadd.f32 0.0, %v2478
        %v2480 = vpop.f32.mrb[0].mxu0
        %v2481 = vpop.f32.mrb[0].mxu0
        %v2482 = vadd.f32 0.0, %v2481
        %v2483 = vpop.f32.mrb[0].mxu0
        %2484 = vdwg.mxu0
        %v2486 = vsel %vm2256, %v2434, 0
        %2488 = vmatprep.subr.bf16.mxu0 0
        %2489 = vmatpush1.bf16.msra.mxu0 %v1870
        %2490 = vmatprep.subr.bf16.mxu0 0
        %2491 = vmatpush1.bf16.msra.mxu0 0
        %2492 = vmatprep.subr.bf16.mxu0 0
        %2493 = vmatpush1.bf16.msra.mxu0 0
        %2494 = vmatprep.subr.bf16.mxu0 0
        %2495 = vmatpush1.bf16.msra.mxu0 0
        %2496 = vmatprep.subr.bf16.mxu0 0
        %2497 = vmatpush1.bf16.msra.mxu0 0
        %2498 = vmatprep.subr.bf16.mxu0 0
        %2499 = vmatpush1.bf16.msra.mxu0 0
        %2500 = vmatprep.subr.bf16.mxu0 0
        %2501 = vmatpush1.bf16.msra.mxu0 0
        %2502 = vmatprep.subr.bf16.mxu0 0
        %2503 = vmatpush1.bf16.msra.mxu0 0
        %2504 = vmatprep.subr.bf16.mxu0 0
        %2505 = vmatpush1.bf16.msra.mxu0 0
        %2506 = vmatprep.subr.bf16.mxu0 0
        %2507 = vmatpush1.bf16.msra.mxu0 0
        %2508 = vmatprep.subr.bf16.mxu0 0
        %2509 = vmatpush1.bf16.msra.mxu0 0
        %2510 = vmatprep.subr.bf16.mxu0 0
        %2511 = vmatpush1.bf16.msra.mxu0 0
        %2512 = vmatprep.subr.bf16.mxu0 0
        %2513 = vmatpush1.bf16.msra.mxu0 0
        %2514 = vmatprep.subr.bf16.mxu0 0
        %2515 = vmatpush1.bf16.msra.mxu0 0
        %2516 = vmatprep.subr.bf16.mxu0 0
        %2517 = vmatpush1.bf16.msra.mxu0 0
        %2518 = vmatprep.subr.bf16.mxu0 0
        %2519 = vmatpush1.bf16.msra.mxu0 0
        %2520 = vmatprep.mubr.bf16.mxu0 0
        %2521 = vmatmul.mubr.bf16.gmra.mrb[0].mxu0 %v2486
        %v2522 = vpop.f32.mrb[0].mxu0
        %v2523 = vadd.f32 0.0, %v2522
        %v2524 = vpop.f32.mrb[0].mxu0
        %v2525 = vpop.f32.mrb[0].mxu0
        %v2526 = vadd.f32 0.0, %v2525
        %v2527 = vpop.f32.mrb[0].mxu0
        %2528 = vdwg.mxu0
        %v2530 = vsel %vm2256, %v2435, 0
        %2532 = vmatprep.subr.bf16.mxu0 0
        %2533 = vmatpush1.bf16.msra.mxu0 %v1871
        %2534 = vmatprep.subr.bf16.mxu0 0
        %2535 = vmatpush1.bf16.msra.mxu0 0
        %2536 = vmatprep.subr.bf16.mxu0 0
        %2537 = vmatpush1.bf16.msra.mxu0 0
        %2538 = vmatprep.subr.bf16.mxu0 0
        %2539 = vmatpush1.bf16.msra.mxu0 0
        %2540 = vmatprep.subr.bf16.mxu0 0
        %2541 = vmatpush1.bf16.msra.mxu0 0
        %2542 = vmatprep.subr.bf16.mxu0 0
        %2543 = vmatpush1.bf16.msra.mxu0 0
        %2544 = vmatprep.subr.bf16.mxu0 0
        %2545 = vmatpush1.bf16.msra.mxu0 0
        %2546 = vmatprep.subr.bf16.mxu0 0
        %2547 = vmatpush1.bf16.msra.mxu0 0
        %2548 = vmatprep.subr.bf16.mxu0 0
        %2549 = vmatpush1.bf16.msra.mxu0 0
        %2550 = vmatprep.subr.bf16.mxu0 0
        %2551 = vmatpush1.bf16.msra.mxu0 0
        %2552 = vmatprep.subr.bf16.mxu0 0
        %2553 = vmatpush1.bf16.msra.mxu0 0
        %2554 = vmatprep.subr.bf16.mxu0 0
        %2555 = vmatpush1.bf16.msra.mxu0 0
        %2556 = vmatprep.subr.bf16.mxu0 0
        %2557 = vmatpush1.bf16.msra.mxu0 0
        %2558 = vmatprep.subr.bf16.mxu0 0
        %2559 = vmatpush1.bf16.msra.mxu0 0
        %2560 = vmatprep.subr.bf16.mxu0 0
        %2561 = vmatpush1.bf16.msra.mxu0 0
        %2562 = vmatprep.subr.bf16.mxu0 0
        %2563 = vmatpush1.bf16.msra.mxu0 0
        %2564 = vmatprep.mubr.bf16.mxu0 0
        %2565 = vmatmul.mubr.bf16.gmra.mrb[0].mxu0 %v2530
        %v2566 = vpop.f32.mrb[0].mxu0
        %v2567 = vadd.f32 0.0, %v2566
        %v2568 = vpop.f32.mrb[0].mxu0
        %v2569 = vpop.f32.mrb[0].mxu0
        %v2570 = vadd.f32 0.0, %v2569
        %v2571 = vpop.f32.mrb[0].mxu0
        %2572 = vdwg.mxu0
        %v2574 = vsel %vm2256, %v2436, 0
        %2576 = vmatprep.subr.bf16.mxu0 0
        %2577 = vmatpush1.bf16.msra.mxu0 %v1872
        %2578 = vmatprep.subr.bf16.mxu0 0
        %2579 = vmatpush1.bf16.msra.mxu0 0
        %2580 = vmatprep.subr.bf16.mxu0 0
        %2581 = vmatpush1.bf16.msra.mxu0 0
        %2582 = vmatprep.subr.bf16.mxu0 0
        %2583 = vmatpush1.bf16.msra.mxu0 0
        %2584 = vmatprep.subr.bf16.mxu0 0
        %2585 = vmatpush1.bf16.msra.mxu0 0
        %2586 = vmatprep.subr.bf16.mxu0 0
        %2587 = vmatpush1.bf16.msra.mxu0 0
        %2588 = vmatprep.subr.bf16.mxu0 0
        %2589 = vmatpush1.bf16.msra.mxu0 0
        %2590 = vmatprep.subr.bf16.mxu0 0
        %2591 = vmatpush1.bf16.msra.mxu0 0
        %2592 = vmatprep.subr.bf16.mxu0 0
        %2593 = vmatpush1.bf16.msra.mxu0 0
        %2594 = vmatprep.subr.bf16.mxu0 0
        %2595 = vmatpush1.bf16.msra.mxu0 0
        %2596 = vmatprep.subr.bf16.mxu0 0
        %2597 = vmatpush1.bf16.msra.mxu0 0
        %2598 = vmatprep.subr.bf16.mxu0 0
        %2599 = vmatpush1.bf16.msra.mxu0 0
        %2600 = vmatprep.subr.bf16.mxu0 0
        %2601 = vmatpush1.bf16.msra.mxu0 0
        %2602 = vmatprep.subr.bf16.mxu0 0
        %2603 = vmatpush1.bf16.msra.mxu0 0
        %2604 = vmatprep.subr.bf16.mxu0 0
        %2605 = vmatpush1.bf16.msra.mxu0 0
        %2606 = vmatprep.subr.bf16.mxu0 0
        %2607 = vmatpush1.bf16.msra.mxu0 0
        %2608 = vmatprep.mubr.bf16.mxu0 0
        %2609 = vmatmul.mubr.bf16.gmra.mrb[0].mxu0 %v2574
        %v2610 = vpop.f32.mrb[0].mxu0
        %v2611 = vadd.f32 0.0, %v2610
        %v2612 = vpop.f32.mrb[0].mxu0
        %v2613 = vpop.f32.mrb[0].mxu0
        %v2614 = vadd.f32 0.0, %v2613
        %v2615 = vpop.f32.mrb[0].mxu0
        %2616 = vdwg.mxu0
        %v2618 = vsel %vm2256, %v2437, 0
        %2620 = vmatprep.subr.bf16.mxu0 0
        %2621 = vmatpush1.bf16.msra.mxu0 %v1873
        %2622 = vmatprep.subr.bf16.mxu0 0
        %2623 = vmatpush1.bf16.msra.mxu0 0
        %2624 = vmatprep.subr.bf16.mxu0 0
        %2625 = vmatpush1.bf16.msra.mxu0 0
        %2626 = vmatprep.subr.bf16.mxu0 0
        %2627 = vmatpush1.bf16.msra.mxu0 0
        %2628 = vmatprep.subr.bf16.mxu0 0
        %2629 = vmatpush1.bf16.msra.mxu0 0
        %2630 = vmatprep.subr.bf16.mxu0 0
        %2631 = vmatpush1.bf16.msra.mxu0 0
        %2632 = vmatprep.subr.bf16.mxu0 0
        %2633 = vmatpush1.bf16.msra.mxu0 0
        %2634 = vmatprep.subr.bf16.mxu0 0
        %2635 = vmatpush1.bf16.msra.mxu0 0
        %2636 = vmatprep.subr.bf16.mxu0 0
        %2637 = vmatpush1.bf16.msra.mxu0 0
        %2638 = vmatprep.subr.bf16.mxu0 0
        %2639 = vmatpush1.bf16.msra.mxu0 0
        %2640 = vmatprep.subr.bf16.mxu0 0
        %2641 = vmatpush1.bf16.msra.mxu0 0
        %2642 = vmatprep.subr.bf16.mxu0 0
        %2643 = vmatpush1.bf16.msra.mxu0 0
        %2644 = vmatprep.subr.bf16.mxu0 0
        %2645 = vmatpush1.bf16.msra.mxu0 0
        %2646 = vmatprep.subr.bf16.mxu0 0
        %2647 = vmatpush1.bf16.msra.mxu0 0
        %2648 = vmatprep.subr.bf16.mxu0 0
        %2649 = vmatpush1.bf16.msra.mxu0 0
        %2650 = vmatprep.subr.bf16.mxu0 0
        %2651 = vmatpush1.bf16.msra.mxu0 0
        %2652 = vmatprep.mubr.bf16.mxu0 0
        %2653 = vmatmul.mubr.bf16.gmra.mrb[0].mxu0 %v2618
        %v2654 = vpop.f32.mrb[0].mxu0
        %v2655 = vadd.f32 0.0, %v2654
        %v2656 = vpop.f32.mrb[0].mxu0
        %v2657 = vpop.f32.mrb[0].mxu0
        %v2658 = vadd.f32 0.0, %v2657
        %v2659 = vpop.f32.mrb[0].mxu0
        %2660 = vdwg.mxu0
        %v2662 = vsel %vm2256, %v2438, 0
        %2664 = vmatprep.subr.bf16.mxu0 0
        %2665 = vmatpush1.bf16.msra.mxu0 %v1874
        %2666 = vmatprep.subr.bf16.mxu0 0
        %2667 = vmatpush1.bf16.msra.mxu0 0
        %2668 = vmatprep.subr.bf16.mxu0 0
        %2669 = vmatpush1.bf16.msra.mxu0 0
        %2670 = vmatprep.subr.bf16.mxu0 0
        %2671 = vmatpush1.bf16.msra.mxu0 0
        %2672 = vmatprep.subr.bf16.mxu0 0
        %2673 = vmatpush1.bf16.msra.mxu0 0
        %2674 = vmatprep.subr.bf16.mxu0 0
        %2675 = vmatpush1.bf16.msra.mxu0 0
        %2676 = vmatprep.subr.bf16.mxu0 0
        %2677 = vmatpush1.bf16.msra.mxu0 0
        %2678 = vmatprep.subr.bf16.mxu0 0
        %2679 = vmatpush1.bf16.msra.mxu0 0
        %2680 = vmatprep.subr.bf16.mxu0 0
        %2681 = vmatpush1.bf16.msra.mxu0 0
        %2682 = vmatprep.subr.bf16.mxu0 0
        %2683 = vmatpush1.bf16.msra.mxu0 0
        %2684 = vmatprep.subr.bf16.mxu0 0
        %2685 = vmatpush1.bf16.msra.mxu0 0
        %2686 = vmatprep.subr.bf16.mxu0 0
        %2687 = vmatpush1.bf16.msra.mxu0 0
        %2688 = vmatprep.subr.bf16.mxu0 0
        %2689 = vmatpush1.bf16.msra.mxu0 0
        %2690 = vmatprep.subr.bf16.mxu0 0
        %2691 = vmatpush1.bf16.msra.mxu0 0
        %2692 = vmatprep.subr.bf16.mxu0 0
        %2693 = vmatpush1.bf16.msra.mxu0 0
        %2694 = vmatprep.subr.bf16.mxu0 0
        %2695 = vmatpush1.bf16.msra.mxu0 0
        %2696 = vmatprep.mubr.bf16.mxu0 0
        %2697 = vmatmul.mubr.bf16.gmra.mrb[0].mxu0 %v2662
        %v2698 = vpop.f32.mrb[0].mxu0
        %v2699 = vadd.f32 0.0, %v2698
        %v2700 = vpop.f32.mrb[0].mxu0
        %v2701 = vpop.f32.mrb[0].mxu0
        %v2702 = vadd.f32 0.0, %v2701
        %v2703 = vpop.f32.mrb[0].mxu0
        %2704 = vdwg.mxu0
        %v2706 = vsel %vm2256, %v2439, 0
        %2708 = vmatprep.subr.bf16.mxu0 0
        %2709 = vmatpush1.bf16.msra.mxu0 %v1875
        %2710 = vmatprep.subr.bf16.mxu0 0
        %2711 = vmatpush1.bf16.msra.mxu0 0
        %2712 = vmatprep.subr.bf16.mxu0 0
        %2713 = vmatpush1.bf16.msra.mxu0 0
        %2714 = vmatprep.subr.bf16.mxu0 0
        %2715 = vmatpush1.bf16.msra.mxu0 0
        %2716 = vmatprep.subr.bf16.mxu0 0
        %2717 = vmatpush1.bf16.msra.mxu0 0
        %2718 = vmatprep.subr.bf16.mxu0 0
        %2719 = vmatpush1.bf16.msra.mxu0 0
        %2720 = vmatprep.subr.bf16.mxu0 0
        %2721 = vmatpush1.bf16.msra.mxu0 0
        %2722 = vmatprep.subr.bf16.mxu0 0
        %2723 = vmatpush1.bf16.msra.mxu0 0
        %2724 = vmatprep.subr.bf16.mxu0 0
        %2725 = vmatpush1.bf16.msra.mxu0 0
        %2726 = vmatprep.subr.bf16.mxu0 0
        %2727 = vmatpush1.bf16.msra.mxu0 0
        %2728 = vmatprep.subr.bf16.mxu0 0
        %2729 = vmatpush1.bf16.msra.mxu0 0
        %2730 = vmatprep.subr.bf16.mxu0 0
        %2731 = vmatpush1.bf16.msra.mxu0 0
        %2732 = vmatprep.subr.bf16.mxu0 0
        %2733 = vmatpush1.bf16.msra.mxu0 0
        %2734 = vmatprep.subr.bf16.mxu0 0
        %2735 = vmatpush1.bf16.msra.mxu0 0
        %2736 = vmatprep.subr.bf16.mxu0 0
        %2737 = vmatpush1.bf16.msra.mxu0 0
        %2738 = vmatprep.subr.bf16.mxu0 0
        %2739 = vmatpush1.bf16.msra.mxu0 0
        %2740 = vmatprep.mubr.bf16.mxu0 0
        %2741 = vmatmul.mubr.bf16.gmra.mrb[0].mxu0 %v2706
        %v2742 = vpop.f32.mrb[0].mxu0
        %v2743 = vadd.f32 0.0, %v2742
        %v2744 = vpop.f32.mrb[0].mxu0
        %v2745 = vpop.f32.mrb[0].mxu0
        %v2746 = vadd.f32 0.0, %v2745
        %v2747 = vpop.f32.mrb[0].mxu0
        %2748 = vdwg.mxu0
        %v2750 = vsel %vm2256, %v2440, 0
        %2752 = vmatprep.subr.bf16.mxu0 0
        %2753 = vmatpush1.bf16.msra.mxu0 %v1876
        %2754 = vmatprep.subr.bf16.mxu0 0
        %2755 = vmatpush1.bf16.msra.mxu0 0
        %2756 = vmatprep.subr.bf16.mxu0 0
        %2757 = vmatpush1.bf16.msra.mxu0 0
        %2758 = vmatprep.subr.bf16.mxu0 0
        %2759 = vmatpush1.bf16.msra.mxu0 0
        %2760 = vmatprep.subr.bf16.mxu0 0
        %2761 = vmatpush1.bf16.msra.mxu0 0
        %2762 = vmatprep.subr.bf16.mxu0 0
        %2763 = vmatpush1.bf16.msra.mxu0 0
        %2764 = vmatprep.subr.bf16.mxu0 0
        %2765 = vmatpush1.bf16.msra.mxu0 0
        %2766 = vmatprep.subr.bf16.mxu0 0
        %2767 = vmatpush1.bf16.msra.mxu0 0
        %2768 = vmatprep.subr.bf16.mxu0 0
        %2769 = vmatpush1.bf16.msra.mxu0 0
        %2770 = vmatprep.subr.bf16.mxu0 0
        %2771 = vmatpush1.bf16.msra.mxu0 0
        %2772 = vmatprep.subr.bf16.mxu0 0
        %2773 = vmatpush1.bf16.msra.mxu0 0
        %2774 = vmatprep.subr.bf16.mxu0 0
        %2775 = vmatpush1.bf16.msra.mxu0 0
        %2776 = vmatprep.subr.bf16.mxu0 0
        %2777 = vmatpush1.bf16.msra.mxu0 0
        %2778 = vmatprep.subr.bf16.mxu0 0
        %2779 = vmatpush1.bf16.msra.mxu0 0
        %2780 = vmatprep.subr.bf16.mxu0 0
        %2781 = vmatpush1.bf16.msra.mxu0 0
        %2782 = vmatprep.subr.bf16.mxu0 0
        %2783 = vmatpush1.bf16.msra.mxu0 0
        %2784 = vmatprep.mubr.bf16.mxu0 0
        %2785 = vmatmul.mubr.bf16.gmra.mrb[0].mxu0 %v2750
        %v2786 = vpop.f32.mrb[0].mxu0
        %v2787 = vadd.f32 0.0, %v2786
        %v2788 = vpop.f32.mrb[0].mxu0
        %v2789 = vpop.f32.mrb[0].mxu0
        %v2790 = vadd.f32 0.0, %v2789
        %v2791 = vpop.f32.mrb[0].mxu0
        %2792 = vdwg.mxu0
        %2795 = vrot.lane.b32.xlu0 %v2523, 32
        %v2796 = vpop.permute.xlu0 %2795
        %2797 = vrot.lane.b32.xlu0 %v2526, 32
        %v2798 = vpop.permute.xlu0 %2797
        %2803 = vrot.lane.b32.xlu0 %v2567, 64
        %v2804 = vpop.permute.xlu0 %2803
        %2805 = vrot.lane.b32.xlu0 %v2570, 64
        %v2806 = vpop.permute.xlu0 %2805
        %2811 = vrot.lane.b32.xlu0 %v2611, 96
        %v2812 = vpop.permute.xlu0 %2811
        %2813 = vrot.lane.b32.xlu0 %v2614, 96
        %v2814 = vpop.permute.xlu0 %2813
        %2819 = vrot.lane.b32.xlu0 %v2699, 32
        %v2820 = vpop.permute.xlu0 %2819
        %2821 = vrot.lane.b32.xlu0 %v2702, 32
        %v2822 = vpop.permute.xlu0 %2821
        %2827 = vrot.lane.b32.xlu0 %v2743, 64
        %v2828 = vpop.permute.xlu0 %2827
        %2829 = vrot.lane.b32.xlu0 %v2746, 64
        %v2830 = vpop.permute.xlu0 %2829
        %2835 = vrot.lane.b32.xlu0 %v2787, 96
        %v2836 = vpop.permute.xlu0 %2835
        %2837 = vrot.lane.b32.xlu0 %v2790, 96
        %v2838 = vpop.permute.xlu0 %2837
        %v2841 = vsel %vm1879, %v2479, %v2796
        %v2842 = vsel %vm1879, %v2482, %v2798
        %vm2843 = vcmask 523264
        %v2844 = vsel %vm2843, %v2841, %v2804
        %v2845 = vsel %vm2843, %v2842, %v2806
        %vm2846 = vcmask 785408
        %v2847 = vsel %vm2846, %v2844, %v2812
        %v2848 = vsel %vm2846, %v2845, %v2814
        %v2849 = vsel %vm1879, %v2655, %v2820
        %v2850 = vsel %vm1879, %v2658, %v2822
        %v2851 = vsel %vm2843, %v2849, %v2828
        %v2852 = vsel %vm2843, %v2850, %v2830
        %v2853 = vsel %vm2846, %v2851, %v2836
        %v2854 = vsel %vm2846, %v2852, %v2838
        %v2855 = vpack.c.bf16 %v2848, %v2847
        %v2856 = vpack.c.bf16 %v2854, %v2853
        %v2857 = vld [vmem:[%s785] sm:$0xff]
        %v2858 = vld [vmem:[%s785 + $0x8] sm:$0xff]
        %v2859 = vld [vmem:[%s785 + $0x10] sm:$0xff]
        %v2860 = vld [vmem:[%s785 + $0x18] sm:$0xff]
        %v2861 = vld [vmem:[%s785 + $0x20] sm:$0xff]
        %v2862 = vld [vmem:[%s785 + $0x28] sm:$0xff]
        %v2863 = vld [vmem:[%s785 + $0x30] sm:$0xff]
        %v2864 = vld [vmem:[%s785 + $0x38] sm:$0xff]
        %v2865 = vld [vmem:[%s785 + $0x40] sm:$0xff]
        %v2866 = vld [vmem:[%s785 + $0x48] sm:$0xff]
        %v2867 = vld [vmem:[%s785 + $0x50] sm:$0xff]
        %v2868 = vld [vmem:[%s785 + $0x58] sm:$0xff]
        %v2869 = vld [vmem:[%s785 + $0x60] sm:$0xff]
        %v2870 = vld [vmem:[%s785 + $0x68] sm:$0xff]
        %v2871 = vld [vmem:[%s785 + $0x70] sm:$0xff]
        %v2872 = vld [vmem:[%s785 + $0x78] sm:$0xff]
        %v2873 = vld [vmem:[%s785 + $0x80] sm:$0xff]
        %v2874 = vld [vmem:[%s785 + $0x88] sm:$0xff]
        %v2875 = vld [vmem:[%s785 + $0x90] sm:$0xff]
        %v2876 = vld [vmem:[%s785 + $0x98] sm:$0xff]
        %v2877 = vld [vmem:[%s785 + $0xa0] sm:$0xff]
        %v2878 = vld [vmem:[%s785 + $0xa8] sm:$0xff]
        %v2879 = vld [vmem:[%s785 + $0xb0] sm:$0xff]
        %v2880 = vld [vmem:[%s785 + $0xb8] sm:$0xff]
        %v2881 = vld [vmem:[%s785 + $0xc0] sm:$0xff]
        %v2882 = vld [vmem:[%s785 + $0xc8] sm:$0xff]
        %v2883 = vld [vmem:[%s785 + $0xd0] sm:$0xff]
        %v2884 = vld [vmem:[%s785 + $0xd8] sm:$0xff]
        %v2885 = vld [vmem:[%s785 + $0xe0] sm:$0xff]
        %v2886 = vld [vmem:[%s785 + $0xe8] sm:$0xff]
        %v2887 = vld [vmem:[%s785 + $0xf0] sm:$0xff]
        %v2888 = vld [vmem:[%s785 + $0xf8] sm:$0xff]
        %v2889 = vld [vmem:[%s794] sm:$0x3]
        %v2891 = vlaneseq
        %v2892 = vshrl.u32 %v2891, 7
        %v2893 = vsub.s32 0, %v2892
        %v2894 = vrot.slane %v2889, %v2893
        %v2895 = vlaneseq
        %v2896 = vshrl.u32 %v2895, 7
        %v2897 = vsub.s32 1, %v2896
        %v2898 = vrot.slane %v2889, %v2897
        %v2933 = vunpack.c.l.b16 %v2857
        %v2934 = vunpack.c.h.b16 %v2857
        %v2935 = vunpack.c.l.b16 %v2858
        %v2936 = vunpack.c.h.b16 %v2858
        %v2937 = vunpack.c.l.b16 %v2859
        %v2938 = vunpack.c.h.b16 %v2859
        %v2939 = vunpack.c.l.b16 %v2860
        %v2940 = vunpack.c.h.b16 %v2860
        %v2941 = vunpack.c.l.b16 %v2861
        %v2942 = vunpack.c.h.b16 %v2861
        %v2943 = vunpack.c.l.b16 %v2862
        %v2944 = vunpack.c.h.b16 %v2862
        %v2945 = vunpack.c.l.b16 %v2863
        %v2946 = vunpack.c.h.b16 %v2863
        %v2947 = vunpack.c.l.b16 %v2864
        %v2948 = vunpack.c.h.b16 %v2864
        %v2949 = vunpack.c.l.b16 %v2865
        %v2950 = vunpack.c.h.b16 %v2865
        %v2951 = vunpack.c.l.b16 %v2866
        %v2952 = vunpack.c.h.b16 %v2866
        %v2953 = vunpack.c.l.b16 %v2867
        %v2954 = vunpack.c.h.b16 %v2867
        %v2955 = vunpack.c.l.b16 %v2868
        %v2956 = vunpack.c.h.b16 %v2868
        %v2957 = vunpack.c.l.b16 %v2869
        %v2958 = vunpack.c.h.b16 %v2869
        %v2959 = vunpack.c.l.b16 %v2870
        %v2960 = vunpack.c.h.b16 %v2870
        %v2961 = vunpack.c.l.b16 %v2871
        %v2962 = vunpack.c.h.b16 %v2871
        %v2963 = vunpack.c.l.b16 %v2872
        %v2964 = vunpack.c.h.b16 %v2872
        %v2965 = vunpack.c.l.b16 %v2873
        %v2966 = vunpack.c.h.b16 %v2873
        %v2967 = vunpack.c.l.b16 %v2874
        %v2968 = vunpack.c.h.b16 %v2874
        %v2969 = vunpack.c.l.b16 %v2875
        %v2970 = vunpack.c.h.b16 %v2875
        %v2971 = vunpack.c.l.b16 %v2876
        %v2972 = vunpack.c.h.b16 %v2876
        %v2973 = vunpack.c.l.b16 %v2877
        %v2974 = vunpack.c.h.b16 %v2877
        %v2975 = vunpack.c.l.b16 %v2878
        %v2976 = vunpack.c.h.b16 %v2878
        %v2977 = vunpack.c.l.b16 %v2879
        %v2978 = vunpack.c.h.b16 %v2879
        %v2979 = vunpack.c.l.b16 %v2880
        %v2980 = vunpack.c.h.b16 %v2880
        %v2981 = vunpack.c.l.b16 %v2881
        %v2982 = vunpack.c.h.b16 %v2881
        %v2983 = vunpack.c.l.b16 %v2882
        %v2984 = vunpack.c.h.b16 %v2882
        %v2985 = vunpack.c.l.b16 %v2883
        %v2986 = vunpack.c.h.b16 %v2883
        %v2987 = vunpack.c.l.b16 %v2884
        %v2988 = vunpack.c.h.b16 %v2884
        %v2989 = vunpack.c.l.b16 %v2885
        %v2990 = vunpack.c.h.b16 %v2885
        %v2991 = vunpack.c.l.b16 %v2886
        %v2992 = vunpack.c.h.b16 %v2886
        %v2993 = vunpack.c.l.b16 %v2887
        %v2994 = vunpack.c.h.b16 %v2887
        %v2995 = vunpack.c.l.b16 %v2888
        %v2996 = vunpack.c.h.b16 %v2888
        %v2997 = vpack.c.b16 %v2935, %v2933
        %v2998 = vpack.c.b16 %v2936, %v2934
        %v2999 = vpack.c.b16 %v2939, %v2937
        %v3000 = vpack.c.b16 %v2940, %v2938
        %v3001 = vpack.c.b16 %v2943, %v2941
        %v3002 = vpack.c.b16 %v2944, %v2942
        %v3003 = vpack.c.b16 %v2947, %v2945
        %v3004 = vpack.c.b16 %v2948, %v2946
        %v3005 = vpack.c.b16 %v2951, %v2949
        %v3006 = vpack.c.b16 %v2952, %v2950
        %v3007 = vpack.c.b16 %v2955, %v2953
        %v3008 = vpack.c.b16 %v2956, %v2954
        %v3009 = vpack.c.b16 %v2959, %v2957
        %v3010 = vpack.c.b16 %v2960, %v2958
        %v3011 = vpack.c.b16 %v2963, %v2961
        %v3012 = vpack.c.b16 %v2964, %v2962
        %v3013 = vpack.c.b16 %v2967, %v2965
        %v3014 = vpack.c.b16 %v2968, %v2966
        %v3015 = vpack.c.b16 %v2971, %v2969
        %v3016 = vpack.c.b16 %v2972, %v2970
        %v3017 = vpack.c.b16 %v2975, %v2973
        %v3018 = vpack.c.b16 %v2976, %v2974
        %v3019 = vpack.c.b16 %v2979, %v2977
        %v3020 = vpack.c.b16 %v2980, %v2978
        %v3021 = vpack.c.b16 %v2983, %v2981
        %v3022 = vpack.c.b16 %v2984, %v2982
        %v3023 = vpack.c.b16 %v2987, %v2985
        %v3024 = vpack.c.b16 %v2988, %v2986
        %v3025 = vpack.c.b16 %v2991, %v2989
        %v3026 = vpack.c.b16 %v2992, %v2990
        %v3027 = vpack.c.b16 %v2995, %v2993
        %v3028 = vpack.c.b16 %v2996, %v2994
        %3061 = vmatprep.subr.bf16.mxu0 %v2998
        %3062 = vmatpush1.bf16.msra.mxu0 %v2997
        %3063 = vmatprep.subr.bf16.mxu0 %v3000
        %3064 = vmatpush1.bf16.msra.mxu0 %v2999
        %3065 = vmatprep.subr.bf16.mxu0 %v3002
        %3066 = vmatpush1.bf16.msra.mxu0 %v3001
        %3067 = vmatprep.subr.bf16.mxu0 %v3004
        %3068 = vmatpush1.bf16.msra.mxu0 %v3003
        %3069 = vmatprep.subr.bf16.mxu0 %v3006
        %3070 = vmatpush1.bf16.msra.mxu0 %v3005
        %3071 = vmatprep.subr.bf16.mxu0 %v3008
        %3072 = vmatpush1.bf16.msra.mxu0 %v3007
        %3073 = vmatprep.subr.bf16.mxu0 %v3010
        %3074 = vmatpush1.bf16.msra.mxu0 %v3009
        %3075 = vmatprep.subr.bf16.mxu0 %v3012
        %3076 = vmatpush1.bf16.msra.mxu0 %v3011
        %3077 = vmatprep.subr.bf16.mxu0 %v3014
        %3078 = vmatpush1.bf16.msra.mxu0 %v3013
        %3079 = vmatprep.subr.bf16.mxu0 %v3016
        %3080 = vmatpush1.bf16.msra.mxu0 %v3015
        %3081 = vmatprep.subr.bf16.mxu0 %v3018
        %3082 = vmatpush1.bf16.msra.mxu0 %v3017
        %3083 = vmatprep.subr.bf16.mxu0 %v3020
        %3084 = vmatpush1.bf16.msra.mxu0 %v3019
        %3085 = vmatprep.subr.bf16.mxu0 %v3022
        %3086 = vmatpush1.bf16.msra.mxu0 %v3021
        %3087 = vmatprep.subr.bf16.mxu0 %v3024
        %3088 = vmatpush1.bf16.msra.mxu0 %v3023
        %3089 = vmatprep.subr.bf16.mxu0 %v3026
        %3090 = vmatpush1.bf16.msra.mxu0 %v3025
        %3091 = vmatprep.subr.bf16.mxu0 %v3028
        %3092 = vmatpush1.bf16.msra.mxu0 %v3027
        %3093 = vmatprep.mubr.bf16.mxu0 %v2856
        %3094 = vmatmul.mubr.bf16.gmra.mrb[0].mxu0 %v2855
        %v3095 = vpop.f32.mrb[0].mxu0
        %v3096 = vadd.f32 %v2894, %v3095
        %v3097 = vpop.f32.mrb[0].mxu0
        %v3098 = vadd.f32 %v2898, %v3097
        %v3099 = vpop.f32.mrb[0].mxu0
        %v3100 = vadd.f32 %v2894, %v3099
        %v3101 = vpop.f32.mrb[0].mxu0
        %v3102 = vadd.f32 %v2898, %v3101
        %3103 = vdwg.mxu0
        %v3104 = vadd.f32 %v986, %v3096
        %v3105 = vadd.f32 %v987, %v3098
        %v3106 = vadd.f32 %v988, %v3100
        %v3107 = vadd.f32 %v989, %v3102
        %v3108 = vld [vmem:[%s839] sm:$0x3]
        %v3109 = vld [vmem:[%s848] sm:$0x3]
        %v3110 = vadd.f32 %v3104, %v3105
        %3111 = vadd.xlane.f32.xlu0 %v3110
        %v3112 = vpop.xlane.xlu0 %3111
        %v3113 = vadd.f32 %v3106, %v3107
        %3114 = vadd.xlane.f32.xlu0 %v3113
        %v3115 = vpop.xlane.xlu0 %3114
        %v3116 = vrcp.pop 256.0
        %v3117 = vmul.f32 %v3112, %v3116
        %v3118 = vmul.f32 %v3115, %v3116
        %v3119 = vsub.f32 %v3104, %v3117
        %v3120 = vsub.f32 %v3105, %v3117
        %v3121 = vsub.f32 %v3106, %v3118
        %v3122 = vsub.f32 %v3107, %v3118
        %v3123 = vmul.f32 %v3119, %v3119
        %v3124 = vmul.f32 %v3120, %v3120
        %v3125 = vmul.f32 %v3121, %v3121
        %v3126 = vmul.f32 %v3122, %v3122
        %v3127 = vadd.f32 %v3123, %v3124
        %3128 = vadd.xlane.f32.xlu0 %v3127
        %v3129 = vpop.xlane.xlu0 %3128
        %v3130 = vadd.f32 %v3125, %v3126
        %3131 = vadd.xlane.f32.xlu0 %v3130
        %v3132 = vpop.xlane.xlu0 %3131
        %v3133 = vmul.f32 %v3129, %v3116
        %v3134 = vmul.f32 %v3132, %v3116
        %v3135 = vadd.f32 %v3133, 1e-05
        %v3136 = vadd.f32 %v3134, 1e-05
        %v3137 = vrsqrt.pop %v3135
        %v3138 = vrsqrt.pop %v3136
        %v3139 = vmul.f32 %v3119, %v3137
        %v3140 = vmul.f32 %v3120, %v3137
        %v3141 = vmul.f32 %v3121, %v3138
        %v3142 = vmul.f32 %v3122, %v3138
        %v3144 = vlaneseq
        %v3145 = vshrl.u32 %v3144, 7
        %v3146 = vsub.s32 0, %v3145
        %v3147 = vrot.slane %v3108, %v3146
        %v3148 = vlaneseq
        %v3149 = vshrl.u32 %v3148, 7
        %v3150 = vsub.s32 1, %v3149
        %v3151 = vrot.slane %v3108, %v3150
        %v3154 = vmul.f32 %v3139, %v3147
        %v3155 = vmul.f32 %v3140, %v3151
        %v3156 = vmul.f32 %v3141, %v3147
        %v3157 = vmul.f32 %v3142, %v3151
        %v3159 = vlaneseq
        %v3160 = vshrl.u32 %v3159, 7
        %v3161 = vsub.s32 0, %v3160
        %v3162 = vrot.slane %v3109, %v3161
        %v3163 = vlaneseq
        %v3164 = vshrl.u32 %v3163, 7
        %v3165 = vsub.s32 1, %v3164
        %v3166 = vrot.slane %v3109, %v3165
        %v3169 = vadd.f32 %v3154, %v3162
        %v3170 = vadd.f32 %v3155, %v3166
        %v3171 = vadd.f32 %v3156, %v3162
        %v3172 = vadd.f32 %v3157, %v3166
        %v3173 = vpack.c.bf16 %v3171, %v3169
        %v3174 = vpack.c.bf16 %v3172, %v3170
        %v3175 = vld [vmem:[%s803] sm:$0xff]
        %v3176 = vld [vmem:[%s803 + $0x8] sm:$0xff]
        %v3177 = vld [vmem:[%s803 + $0x40] sm:$0xff]
        %v3178 = vld [vmem:[%s803 + $0x48] sm:$0xff]
        %v3179 = vld [vmem:[%s803 + $0x80] sm:$0xff]
        %v3180 = vld [vmem:[%s803 + $0x88] sm:$0xff]
        %v3181 = vld [vmem:[%s803 + $0xc0] sm:$0xff]
        %v3182 = vld [vmem:[%s803 + $0xc8] sm:$0xff]
        %v3183 = vld [vmem:[%s803 + $0x100] sm:$0xff]
        %v3184 = vld [vmem:[%s803 + $0x108] sm:$0xff]
        %v3185 = vld [vmem:[%s803 + $0x140] sm:$0xff]
        %v3186 = vld [vmem:[%s803 + $0x148] sm:$0xff]
        %v3187 = vld [vmem:[%s803 + $0x180] sm:$0xff]
        %v3188 = vld [vmem:[%s803 + $0x188] sm:$0xff]
        %v3189 = vld [vmem:[%s803 + $0x1c0] sm:$0xff]
        %v3190 = vld [vmem:[%s803 + $0x1c8] sm:$0xff]
        %v3191 = vld [vmem:[%s803 + $0x200] sm:$0xff]
        %v3192 = vld [vmem:[%s803 + $0x208] sm:$0xff]
        %v3193 = vld [vmem:[%s803 + $0x240] sm:$0xff]
        %v3194 = vld [vmem:[%s803 + $0x248] sm:$0xff]
        %v3195 = vld [vmem:[%s803 + $0x280] sm:$0xff]
        %v3196 = vld [vmem:[%s803 + $0x288] sm:$0xff]
        %v3197 = vld [vmem:[%s803 + $0x2c0] sm:$0xff]
        %v3198 = vld [vmem:[%s803 + $0x2c8] sm:$0xff]
        %v3199 = vld [vmem:[%s803 + $0x300] sm:$0xff]
        %v3200 = vld [vmem:[%s803 + $0x308] sm:$0xff]
        %v3201 = vld [vmem:[%s803 + $0x340] sm:$0xff]
        %v3202 = vld [vmem:[%s803 + $0x348] sm:$0xff]
        %v3203 = vld [vmem:[%s803 + $0x380] sm:$0xff]
        %v3204 = vld [vmem:[%s803 + $0x388] sm:$0xff]
        %v3205 = vld [vmem:[%s803 + $0x3c0] sm:$0xff]
        %v3206 = vld [vmem:[%s803 + $0x3c8] sm:$0xff]
        %v3207 = vld [vmem:[%s803 + $0x400] sm:$0xff]
        %v3208 = vld [vmem:[%s803 + $0x408] sm:$0xff]
        %v3209 = vld [vmem:[%s803 + $0x440] sm:$0xff]
        %v3210 = vld [vmem:[%s803 + $0x448] sm:$0xff]
        %v3211 = vld [vmem:[%s803 + $0x480] sm:$0xff]
        %v3212 = vld [vmem:[%s803 + $0x488] sm:$0xff]
        %v3213 = vld [vmem:[%s803 + $0x4c0] sm:$0xff]
        %v3214 = vld [vmem:[%s803 + $0x4c8] sm:$0xff]
        %v3215 = vld [vmem:[%s803 + $0x500] sm:$0xff]
        %v3216 = vld [vmem:[%s803 + $0x508] sm:$0xff]
        %v3217 = vld [vmem:[%s803 + $0x540] sm:$0xff]
        %v3218 = vld [vmem:[%s803 + $0x548] sm:$0xff]
        %v3219 = vld [vmem:[%s803 + $0x580] sm:$0xff]
        %v3220 = vld [vmem:[%s803 + $0x588] sm:$0xff]
        %v3221 = vld [vmem:[%s803 + $0x5c0] sm:$0xff]
        %v3222 = vld [vmem:[%s803 + $0x5c8] sm:$0xff]
        %v3223 = vld [vmem:[%s803 + $0x600] sm:$0xff]
        %v3224 = vld [vmem:[%s803 + $0x608] sm:$0xff]
        %v3225 = vld [vmem:[%s803 + $0x640] sm:$0xff]
        %v3226 = vld [vmem:[%s803 + $0x648] sm:$0xff]
        %v3227 = vld [vmem:[%s803 + $0x680] sm:$0xff]
        %v3228 = vld [vmem:[%s803 + $0x688] sm:$0xff]
        %v3229 = vld [vmem:[%s803 + $0x6c0] sm:$0xff]
        %v3230 = vld [vmem:[%s803 + $0x6c8] sm:$0xff]
        %v3231 = vld [vmem:[%s803 + $0x700] sm:$0xff]
        %v3232 = vld [vmem:[%s803 + $0x708] sm:$0xff]
        %v3233 = vld [vmem:[%s803 + $0x740] sm:$0xff]
        %v3234 = vld [vmem:[%s803 + $0x748] sm:$0xff]
        %v3235 = vld [vmem:[%s803 + $0x780] sm:$0xff]
        %v3236 = vld [vmem:[%s803 + $0x788] sm:$0xff]
        %v3237 = vld [vmem:[%s803 + $0x7c0] sm:$0xff]
        %v3238 = vld [vmem:[%s803 + $0x7c8] sm:$0xff]
        %v3239 = vld [vmem:[%s812] sm:$0xf]
        %v3241 = vlaneseq
        %v3242 = vshrl.u32 %v3241, 7
        %v3243 = vsub.s32 0, %v3242
        %v3244 = vrot.slane %v3239, %v3243
        %v3245 = vlaneseq
        %v3246 = vshrl.u32 %v3245, 7
        %v3247 = vsub.s32 1, %v3246
        %v3248 = vrot.slane %v3239, %v3247
        %v3249 = vlaneseq
        %v3250 = vshrl.u32 %v3249, 7
        %v3251 = vsub.s32 2, %v3250
        %v3252 = vrot.slane %v3239, %v3251
        %v3253 = vlaneseq
        %v3254 = vshrl.u32 %v3253, 7
        %v3255 = vsub.s32 3, %v3254
        %v3256 = vrot.slane %v3239, %v3255
        %v3325 = vunpack.c.l.b16 %v3175
        %v3326 = vunpack.c.h.b16 %v3175
        %v3327 = vunpack.c.l.b16 %v3176
        %v3328 = vunpack.c.h.b16 %v3176
        %v3329 = vunpack.c.l.b16 %v3177
        %v3330 = vunpack.c.h.b16 %v3177
        %v3331 = vunpack.c.l.b16 %v3178
        %v3332 = vunpack.c.h.b16 %v3178
        %v3333 = vunpack.c.l.b16 %v3179
        %v3334 = vunpack.c.h.b16 %v3179
        %v3335 = vunpack.c.l.b16 %v3180
        %v3336 = vunpack.c.h.b16 %v3180
        %v3337 = vunpack.c.l.b16 %v3181
        %v3338 = vunpack.c.h.b16 %v3181
        %v3339 = vunpack.c.l.b16 %v3182
        %v3340 = vunpack.c.h.b16 %v3182
        %v3341 = vunpack.c.l.b16 %v3183
        %v3342 = vunpack.c.h.b16 %v3183
        %v3343 = vunpack.c.l.b16 %v3184
        %v3344 = vunpack.c.h.b16 %v3184
        %v3345 = vunpack.c.l.b16 %v3185
        %v3346 = vunpack.c.h.b16 %v3185
        %v3347 = vunpack.c.l.b16 %v3186
        %v3348 = vunpack.c.h.b16 %v3186
        %v3349 = vunpack.c.l.b16 %v3187
        %v3350 = vunpack.c.h.b16 %v3187
        %v3351 = vunpack.c.l.b16 %v3188
        %v3352 = vunpack.c.h.b16 %v3188
        %v3353 = vunpack.c.l.b16 %v3189
        %v3354 = vunpack.c.h.b16 %v3189
        %v3355 = vunpack.c.l.b16 %v3190
        %v3356 = vunpack.c.h.b16 %v3190
        %v3357 = vunpack.c.l.b16 %v3191
        %v3358 = vunpack.c.h.b16 %v3191
        %v3359 = vunpack.c.l.b16 %v3192
        %v3360 = vunpack.c.h.b16 %v3192
        %v3361 = vunpack.c.l.b16 %v3193
        %v3362 = vunpack.c.h.b16 %v3193
        %v3363 = vunpack.c.l.b16 %v3194
        %v3364 = vunpack.c.h.b16 %v3194
        %v3365 = vunpack.c.l.b16 %v3195
        %v3366 = vunpack.c.h.b16 %v3195
        %v3367 = vunpack.c.l.b16 %v3196
        %v3368 = vunpack.c.h.b16 %v3196
        %v3369 = vunpack.c.l.b16 %v3197
        %v3370 = vunpack.c.h.b16 %v3197
        %v3371 = vunpack.c.l.b16 %v3198
        %v3372 = vunpack.c.h.b16 %v3198
        %v3373 = vunpack.c.l.b16 %v3199
        %v3374 = vunpack.c.h.b16 %v3199
        %v3375 = vunpack.c.l.b16 %v3200
        %v3376 = vunpack.c.h.b16 %v3200
        %v3377 = vunpack.c.l.b16 %v3201
        %v3378 = vunpack.c.h.b16 %v3201
        %v3379 = vunpack.c.l.b16 %v3202
        %v3380 = vunpack.c.h.b16 %v3202
        %v3381 = vunpack.c.l.b16 %v3203
        %v3382 = vunpack.c.h.b16 %v3203
        %v3383 = vunpack.c.l.b16 %v3204
        %v3384 = vunpack.c.h.b16 %v3204
        %v3385 = vunpack.c.l.b16 %v3205
        %v3386 = vunpack.c.h.b16 %v3205
        %v3387 = vunpack.c.l.b16 %v3206
        %v3388 = vunpack.c.h.b16 %v3206
        %v3389 = vunpack.c.l.b16 %v3207
        %v3390 = vunpack.c.h.b16 %v3207
        %v3391 = vunpack.c.l.b16 %v3208
        %v3392 = vunpack.c.h.b16 %v3208
        %v3393 = vunpack.c.l.b16 %v3209
        %v3394 = vunpack.c.h.b16 %v3209
        %v3395 = vunpack.c.l.b16 %v3210
        %v3396 = vunpack.c.h.b16 %v3210
        %v3397 = vunpack.c.l.b16 %v3211
        %v3398 = vunpack.c.h.b16 %v3211
        %v3399 = vunpack.c.l.b16 %v3212
        %v3400 = vunpack.c.h.b16 %v3212
        %v3401 = vunpack.c.l.b16 %v3213
        %v3402 = vunpack.c.h.b16 %v3213
        %v3403 = vunpack.c.l.b16 %v3214
        %v3404 = vunpack.c.h.b16 %v3214
        %v3405 = vunpack.c.l.b16 %v3215
        %v3406 = vunpack.c.h.b16 %v3215
        %v3407 = vunpack.c.l.b16 %v3216
        %v3408 = vunpack.c.h.b16 %v3216
        %v3409 = vunpack.c.l.b16 %v3217
        %v3410 = vunpack.c.h.b16 %v3217
        %v3411 = vunpack.c.l.b16 %v3218
        %v3412 = vunpack.c.h.b16 %v3218
        %v3413 = vunpack.c.l.b16 %v3219
        %v3414 = vunpack.c.h.b16 %v3219
        %v3415 = vunpack.c.l.b16 %v3220
        %v3416 = vunpack.c.h.b16 %v3220
        %v3417 = vunpack.c.l.b16 %v3221
        %v3418 = vunpack.c.h.b16 %v3221
        %v3419 = vunpack.c.l.b16 %v3222
        %v3420 = vunpack.c.h.b16 %v3222
        %v3421 = vunpack.c.l.b16 %v3223
        %v3422 = vunpack.c.h.b16 %v3223
        %v3423 = vunpack.c.l.b16 %v3224
        %v3424 = vunpack.c.h.b16 %v3224
        %v3425 = vunpack.c.l.b16 %v3225
        %v3426 = vunpack.c.h.b16 %v3225
        %v3427 = vunpack.c.l.b16 %v3226
        %v3428 = vunpack.c.h.b16 %v3226
        %v3429 = vunpack.c.l.b16 %v3227
        %v3430 = vunpack.c.h.b16 %v3227
        %v3431 = vunpack.c.l.b16 %v3228
        %v3432 = vunpack.c.h.b16 %v3228
        %v3433 = vunpack.c.l.b16 %v3229
        %v3434 = vunpack.c.h.b16 %v3229
        %v3435 = vunpack.c.l.b16 %v3230
        %v3436 = vunpack.c.h.b16 %v3230
        %v3437 = vunpack.c.l.b16 %v3231
        %v3438 = vunpack.c.h.b16 %v3231
        %v3439 = vunpack.c.l.b16 %v3232
        %v3440 = vunpack.c.h.b16 %v3232
        %v3441 = vunpack.c.l.b16 %v3233
        %v3442 = vunpack.c.h.b16 %v3233
        %v3443 = vunpack.c.l.b16 %v3234
        %v3444 = vunpack.c.h.b16 %v3234
        %v3445 = vunpack.c.l.b16 %v3235
        %v3446 = vunpack.c.h.b16 %v3235
        %v3447 = vunpack.c.l.b16 %v3236
        %v3448 = vunpack.c.h.b16 %v3236
        %v3449 = vunpack.c.l.b16 %v3237
        %v3450 = vunpack.c.h.b16 %v3237
        %v3451 = vunpack.c.l.b16 %v3238
        %v3452 = vunpack.c.h.b16 %v3238
        %v3453 = vpack.c.b16 %v3329, %v3325
        %v3454 = vpack.c.b16 %v3330, %v3326
        %v3455 = vpack.c.b16 %v3331, %v3327
        %v3456 = vpack.c.b16 %v3332, %v3328
        %v3457 = vpack.c.b16 %v3337, %v3333
        %v3458 = vpack.c.b16 %v3338, %v3334
        %v3459 = vpack.c.b16 %v3339, %v3335
        %v3460 = vpack.c.b16 %v3340, %v3336
        %v3461 = vpack.c.b16 %v3345, %v3341
        %v3462 = vpack.c.b16 %v3346, %v3342
        %v3463 = vpack.c.b16 %v3347, %v3343
        %v3464 = vpack.c.b16 %v3348, %v3344
        %v3465 = vpack.c.b16 %v3353, %v3349
        %v3466 = vpack.c.b16 %v3354, %v3350
        %v3467 = vpack.c.b16 %v3355, %v3351
        %v3468 = vpack.c.b16 %v3356, %v3352
        %v3469 = vpack.c.b16 %v3361, %v3357
        %v3470 = vpack.c.b16 %v3362, %v3358
        %v3471 = vpack.c.b16 %v3363, %v3359
        %v3472 = vpack.c.b16 %v3364, %v3360
        %v3473 = vpack.c.b16 %v3369, %v3365
        %v3474 = vpack.c.b16 %v3370, %v3366
        %v3475 = vpack.c.b16 %v3371, %v3367
        %v3476 = vpack.c.b16 %v3372, %v3368
        %v3477 = vpack.c.b16 %v3377, %v3373
        %v3478 = vpack.c.b16 %v3378, %v3374
        %v3479 = vpack.c.b16 %v3379, %v3375
        %v3480 = vpack.c.b16 %v3380, %v3376
        %v3481 = vpack.c.b16 %v3385, %v3381
        %v3482 = vpack.c.b16 %v3386, %v3382
        %v3483 = vpack.c.b16 %v3387, %v3383
        %v3484 = vpack.c.b16 %v3388, %v3384
        %v3485 = vpack.c.b16 %v3393, %v3389
        %v3486 = vpack.c.b16 %v3394, %v3390
        %v3487 = vpack.c.b16 %v3395, %v3391
        %v3488 = vpack.c.b16 %v3396, %v3392
        %v3489 = vpack.c.b16 %v3401, %v3397
        %v3490 = vpack.c.b16 %v3402, %v3398
        %v3491 = vpack.c.b16 %v3403, %v3399
        %v3492 = vpack.c.b16 %v3404, %v3400
        %v3493 = vpack.c.b16 %v3409, %v3405
        %v3494 = vpack.c.b16 %v3410, %v3406
        %v3495 = vpack.c.b16 %v3411, %v3407
        %v3496 = vpack.c.b16 %v3412, %v3408
        %v3497 = vpack.c.b16 %v3417, %v3413
        %v3498 = vpack.c.b16 %v3418, %v3414
        %v3499 = vpack.c.b16 %v3419, %v3415
        %v3500 = vpack.c.b16 %v3420, %v3416
        %v3501 = vpack.c.b16 %v3425, %v3421
        %v3502 = vpack.c.b16 %v3426, %v3422
        %v3503 = vpack.c.b16 %v3427, %v3423
        %v3504 = vpack.c.b16 %v3428, %v3424
        %v3505 = vpack.c.b16 %v3433, %v3429
        %v3506 = vpack.c.b16 %v3434, %v3430
        %v3507 = vpack.c.b16 %v3435, %v3431
        %v3508 = vpack.c.b16 %v3436, %v3432
        %v3509 = vpack.c.b16 %v3441, %v3437
        %v3510 = vpack.c.b16 %v3442, %v3438
        %v3511 = vpack.c.b16 %v3443, %v3439
        %v3512 = vpack.c.b16 %v3444, %v3440
        %v3513 = vpack.c.b16 %v3449, %v3445
        %v3514 = vpack.c.b16 %v3450, %v3446
        %v3515 = vpack.c.b16 %v3451, %v3447
        %v3516 = vpack.c.b16 %v3452, %v3448
        %3581 = vmatprep.subr.bf16.mxu0 %v3454
        %3582 = vmatpush1.bf16.msra.mxu0 %v3453
        %3583 = vmatprep.subr.bf16.mxu0 %v3458
        %3584 = vmatpush1.bf16.msra.mxu0 %v3457
        %3585 = vmatprep.subr.bf16.mxu0 %v3462
        %3586 = vmatpush1.bf16.msra.mxu0 %v3461
        %3587 = vmatprep.subr.bf16.mxu0 %v3466
        %3588 = vmatpush1.bf16.msra.mxu0 %v3465
        %3589 = vmatprep.subr.bf16.mxu0 %v3470
        %3590 = vmatpush1.bf16.msra.mxu0 %v3469
        %3591 = vmatprep.subr.bf16.mxu0 %v3474
        %3592 = vmatpush1.bf16.msra.mxu0 %v3473
        %3593 = vmatprep.subr.bf16.mxu0 %v3478
        %3594 = vmatpush1.bf16.msra.mxu0 %v3477
        %3595 = vmatprep.subr.bf16.mxu0 %v3482
        %3596 = vmatpush1.bf16.msra.mxu0 %v3481
        %3597 = vmatprep.subr.bf16.mxu0 %v3486
        %3598 = vmatpush1.bf16.msra.mxu0 %v3485
        %3599 = vmatprep.subr.bf16.mxu0 %v3490
        %3600 = vmatpush1.bf16.msra.mxu0 %v3489
        %3601 = vmatprep.subr.bf16.mxu0 %v3494
        %3602 = vmatpush1.bf16.msra.mxu0 %v3493
        %3603 = vmatprep.subr.bf16.mxu0 %v3498
        %3604 = vmatpush1.bf16.msra.mxu0 %v3497
        %3605 = vmatprep.subr.bf16.mxu0 %v3502
        %3606 = vmatpush1.bf16.msra.mxu0 %v3501
        %3607 = vmatprep.subr.bf16.mxu0 %v3506
        %3608 = vmatpush1.bf16.msra.mxu0 %v3505
        %3609 = vmatprep.subr.bf16.mxu0 %v3510
        %3610 = vmatpush1.bf16.msra.mxu0 %v3509
        %3611 = vmatprep.subr.bf16.mxu0 %v3514
        %3612 = vmatpush1.bf16.msra.mxu0 %v3513
        %3613 = vmatprep.mubr.bf16.mxu0 %v3174
        %3614 = vmatmul.mubr.bf16.gmra.mrb[0].mxu0 %v3173
        %v3615 = vpop.f32.mrb[0].mxu0
        %v3616 = vadd.f32 %v3244, %v3615
        %v3617 = vpop.f32.mrb[0].mxu0
        %v3618 = vadd.f32 %v3248, %v3617
        %v3619 = vpop.f32.mrb[0].mxu0
        %v3620 = vadd.f32 %v3244, %v3619
        %v3621 = vpop.f32.mrb[0].mxu0
        %v3622 = vadd.f32 %v3248, %v3621
        %3623 = vdwg.mxu0
        %3624 = vmatprep.subr.bf16.mxu0 %v3456
        %3625 = vmatpush1.bf16.msra.mxu0 %v3455
        %3626 = vmatprep.subr.bf16.mxu0 %v3460
        %3627 = vmatpush1.bf16.msra.mxu0 %v3459
        %3628 = vmatprep.subr.bf16.mxu0 %v3464
        %3629 = vmatpush1.bf16.msra.mxu0 %v3463
        %3630 = vmatprep.subr.bf16.mxu0 %v3468
        %3631 = vmatpush1.bf16.msra.mxu0 %v3467
        %3632 = vmatprep.subr.bf16.mxu0 %v3472
        %3633 = vmatpush1.bf16.msra.mxu0 %v3471
        %3634 = vmatprep.subr.bf16.mxu0 %v3476
        %3635 = vmatpush1.bf16.msra.mxu0 %v3475
        %3636 = vmatprep.subr.bf16.mxu0 %v3480
        %3637 = vmatpush1.bf16.msra.mxu0 %v3479
        %3638 = vmatprep.subr.bf16.mxu0 %v3484
        %3639 = vmatpush1.bf16.msra.mxu0 %v3483
        %3640 = vmatprep.subr.bf16.mxu0 %v3488
        %3641 = vmatpush1.bf16.msra.mxu0 %v3487
        %3642 = vmatprep.subr.bf16.mxu0 %v3492
        %3643 = vmatpush1.bf16.msra.mxu0 %v3491
        %3644 = vmatprep.subr.bf16.mxu0 %v3496
        %3645 = vmatpush1.bf16.msra.mxu0 %v3495
        %3646 = vmatprep.subr.bf16.mxu0 %v3500
        %3647 = vmatpush1.bf16.msra.mxu0 %v3499
        %3648 = vmatprep.subr.bf16.mxu0 %v3504
        %3649 = vmatpush1.bf16.msra.mxu0 %v3503
        %3650 = vmatprep.subr.bf16.mxu0 %v3508
        %3651 = vmatpush1.bf16.msra.mxu0 %v3507
        %3652 = vmatprep.subr.bf16.mxu0 %v3512
        %3653 = vmatpush1.bf16.msra.mxu0 %v3511
        %3654 = vmatprep.subr.bf16.mxu0 %v3516
        %3655 = vmatpush1.bf16.msra.mxu0 %v3515
        %3656 = vmatprep.mubr.bf16.mxu0 %v3174
        %3657 = vmatmul.mubr.bf16.gmra.mrb[0].mxu0 %v3173
        %v3658 = vpop.f32.mrb[0].mxu0
        %v3659 = vadd.f32 %v3252, %v3658
        %v3660 = vpop.f32.mrb[0].mxu0
        %v3661 = vadd.f32 %v3256, %v3660
        %v3662 = vpop.f32.mrb[0].mxu0
        %v3663 = vadd.f32 %v3252, %v3662
        %v3664 = vpop.f32.mrb[0].mxu0
        %v3665 = vadd.f32 %v3256, %v3664
        %3666 = vdwg.mxu0
        %v3667 = vmax.f32 %v3616, 0.0
        %v3668 = vmax.f32 %v3618, 0.0
        %v3669 = vmax.f32 %v3659, 0.0
        %v3670 = vmax.f32 %v3661, 0.0
        %v3671 = vmax.f32 %v3620, 0.0
        %v3672 = vmax.f32 %v3622, 0.0
        %v3673 = vmax.f32 %v3663, 0.0
        %v3674 = vmax.f32 %v3665, 0.0
        %v3675 = vpack.c.bf16 %v3671, %v3667
        %v3676 = vpack.c.bf16 %v3672, %v3668
        %v3677 = vpack.c.bf16 %v3673, %v3669
        %v3678 = vpack.c.bf16 %v3674, %v3670
        %v3679 = vld [vmem:[%s821] sm:$0xff]
        %v3680 = vld [vmem:[%s821 + $0x8] sm:$0xff]
        %v3681 = vld [vmem:[%s821 + $0x10] sm:$0xff]
        %v3682 = vld [vmem:[%s821 + $0x18] sm:$0xff]
        %v3683 = vld [vmem:[%s821 + $0x20] sm:$0xff]
        %v3684 = vld [vmem:[%s821 + $0x28] sm:$0xff]
        %v3685 = vld [vmem:[%s821 + $0x30] sm:$0xff]
        %v3686 = vld [vmem:[%s821 + $0x38] sm:$0xff]
        %v3687 = vld [vmem:[%s821 + $0x40] sm:$0xff]
        %v3688 = vld [vmem:[%s821 + $0x48] sm:$0xff]
        %v3689 = vld [vmem:[%s821 + $0x50] sm:$0xff]
        %v3690 = vld [vmem:[%s821 + $0x58] sm:$0xff]
        %v3691 = vld [vmem:[%s821 + $0x60] sm:$0xff]
        %v3692 = vld [vmem:[%s821 + $0x68] sm:$0xff]
        %v3693 = vld [vmem:[%s821 + $0x70] sm:$0xff]
        %v3694 = vld [vmem:[%s821 + $0x78] sm:$0xff]
        %v3695 = vld [vmem:[%s821 + $0x80] sm:$0xff]
        %v3696 = vld [vmem:[%s821 + $0x88] sm:$0xff]
        %v3697 = vld [vmem:[%s821 + $0x90] sm:$0xff]
        %v3698 = vld [vmem:[%s821 + $0x98] sm:$0xff]
        %v3699 = vld [vmem:[%s821 + $0xa0] sm:$0xff]
        %v3700 = vld [vmem:[%s821 + $0xa8] sm:$0xff]
        %v3701 = vld [vmem:[%s821 + $0xb0] sm:$0xff]
        %v3702 = vld [vmem:[%s821 + $0xb8] sm:$0xff]
        %v3703 = vld [vmem:[%s821 + $0xc0] sm:$0xff]
        %v3704 = vld [vmem:[%s821 + $0xc8] sm:$0xff]
        %v3705 = vld [vmem:[%s821 + $0xd0] sm:$0xff]
        %v3706 = vld [vmem:[%s821 + $0xd8] sm:$0xff]
        %v3707 = vld [vmem:[%s821 + $0xe0] sm:$0xff]
        %v3708 = vld [vmem:[%s821 + $0xe8] sm:$0xff]
        %v3709 = vld [vmem:[%s821 + $0xf0] sm:$0xff]
        %v3710 = vld [vmem:[%s821 + $0xf8] sm:$0xff]
        %v3711 = vld [vmem:[%s821 + $0x100] sm:$0xff]
        %v3712 = vld [vmem:[%s821 + $0x108] sm:$0xff]
        %v3713 = vld [vmem:[%s821 + $0x110] sm:$0xff]
        %v3714 = vld [vmem:[%s821 + $0x118] sm:$0xff]
        %v3715 = vld [vmem:[%s821 + $0x120] sm:$0xff]
        %v3716 = vld [vmem:[%s821 + $0x128] sm:$0xff]
        %v3717 = vld [vmem:[%s821 + $0x130] sm:$0xff]
        %v3718 = vld [vmem:[%s821 + $0x138] sm:$0xff]
        %v3719 = vld [vmem:[%s821 + $0x140] sm:$0xff]
        %v3720 = vld [vmem:[%s821 + $0x148] sm:$0xff]
        %v3721 = vld [vmem:[%s821 + $0x150] sm:$0xff]
        %v3722 = vld [vmem:[%s821 + $0x158] sm:$0xff]
        %v3723 = vld [vmem:[%s821 + $0x160] sm:$0xff]
        %v3724 = vld [vmem:[%s821 + $0x168] sm:$0xff]
        %v3725 = vld [vmem:[%s821 + $0x170] sm:$0xff]
        %v3726 = vld [vmem:[%s821 + $0x178] sm:$0xff]
        %v3727 = vld [vmem:[%s821 + $0x180] sm:$0xff]
        %v3728 = vld [vmem:[%s821 + $0x188] sm:$0xff]
        %v3729 = vld [vmem:[%s821 + $0x190] sm:$0xff]
        %v3730 = vld [vmem:[%s821 + $0x198] sm:$0xff]
        %v3731 = vld [vmem:[%s821 + $0x1a0] sm:$0xff]
        %v3732 = vld [vmem:[%s821 + $0x1a8] sm:$0xff]
        %v3733 = vld [vmem:[%s821 + $0x1b0] sm:$0xff]
        %v3734 = vld [vmem:[%s821 + $0x1b8] sm:$0xff]
        %v3735 = vld [vmem:[%s821 + $0x1c0] sm:$0xff]
        %v3736 = vld [vmem:[%s821 + $0x1c8] sm:$0xff]
        %v3737 = vld [vmem:[%s821 + $0x1d0] sm:$0xff]
        %v3738 = vld [vmem:[%s821 + $0x1d8] sm:$0xff]
        %v3739 = vld [vmem:[%s821 + $0x1e0] sm:$0xff]
        %v3740 = vld [vmem:[%s821 + $0x1e8] sm:$0xff]
        %v3741 = vld [vmem:[%s821 + $0x1f0] sm:$0xff]
        %v3742 = vld [vmem:[%s821 + $0x1f8] sm:$0xff]
        %v3743 = vld [vmem:[%s803 + $0x10] sm:$0xff]
        %v3744 = vld [vmem:[%s803 + $0x18] sm:$0xff]
        %v3745 = vld [vmem:[%s803 + $0x50] sm:$0xff]
        %v3746 = vld [vmem:[%s803 + $0x58] sm:$0xff]
        %v3747 = vld [vmem:[%s803 + $0x90] sm:$0xff]
        %v3748 = vld [vmem:[%s803 + $0x98] sm:$0xff]
        %v3749 = vld [vmem:[%s803 + $0xd0] sm:$0xff]
        %v3750 = vld [vmem:[%s803 + $0xd8] sm:$0xff]
        %v3751 = vld [vmem:[%s803 + $0x110] sm:$0xff]
        %v3752 = vld [vmem:[%s803 + $0x118] sm:$0xff]
        %v3753 = vld [vmem:[%s803 + $0x150] sm:$0xff]
        %v3754 = vld [vmem:[%s803 + $0x158] sm:$0xff]
        %v3755 = vld [vmem:[%s803 + $0x190] sm:$0xff]
        %v3756 = vld [vmem:[%s803 + $0x198] sm:$0xff]
        %v3757 = vld [vmem:[%s803 + $0x1d0] sm:$0xff]
        %v3758 = vld [vmem:[%s803 + $0x1d8] sm:$0xff]
        %v3759 = vld [vmem:[%s803 + $0x210] sm:$0xff]
        %v3760 = vld [vmem:[%s803 + $0x218] sm:$0xff]
        %v3761 = vld [vmem:[%s803 + $0x250] sm:$0xff]
        %v3762 = vld [vmem:[%s803 + $0x258] sm:$0xff]
        %v3763 = vld [vmem:[%s803 + $0x290] sm:$0xff]
        %v3764 = vld [vmem:[%s803 + $0x298] sm:$0xff]
        %v3765 = vld [vmem:[%s803 + $0x2d0] sm:$0xff]
        %v3766 = vld [vmem:[%s803 + $0x2d8] sm:$0xff]
        %v3767 = vld [vmem:[%s803 + $0x310] sm:$0xff]
        %v3768 = vld [vmem:[%s803 + $0x318] sm:$0xff]
        %v3769 = vld [vmem:[%s803 + $0x350] sm:$0xff]
        %v3770 = vld [vmem:[%s803 + $0x358] sm:$0xff]
        %v3771 = vld [vmem:[%s803 + $0x390] sm:$0xff]
        %v3772 = vld [vmem:[%s803 + $0x398] sm:$0xff]
        %v3773 = vld [vmem:[%s803 + $0x3d0] sm:$0xff]
        %v3774 = vld [vmem:[%s803 + $0x3d8] sm:$0xff]
        %v3775 = vld [vmem:[%s803 + $0x410] sm:$0xff]
        %v3776 = vld [vmem:[%s803 + $0x418] sm:$0xff]
        %v3777 = vld [vmem:[%s803 + $0x450] sm:$0xff]
        %v3778 = vld [vmem:[%s803 + $0x458] sm:$0xff]
        %v3779 = vld [vmem:[%s803 + $0x490] sm:$0xff]
        %v3780 = vld [vmem:[%s803 + $0x498] sm:$0xff]
        %v3781 = vld [vmem:[%s803 + $0x4d0] sm:$0xff]
        %v3782 = vld [vmem:[%s803 + $0x4d8] sm:$0xff]
        %v3783 = vld [vmem:[%s803 + $0x510] sm:$0xff]
        %v3784 = vld [vmem:[%s803 + $0x518] sm:$0xff]
        %v3785 = vld [vmem:[%s803 + $0x550] sm:$0xff]
        %v3786 = vld [vmem:[%s803 + $0x558] sm:$0xff]
        %v3787 = vld [vmem:[%s803 + $0x590] sm:$0xff]
        %v3788 = vld [vmem:[%s803 + $0x598] sm:$0xff]
        %v3789 = vld [vmem:[%s803 + $0x5d0] sm:$0xff]
        %v3790 = vld [vmem:[%s803 + $0x5d8] sm:$0xff]
        %v3791 = vld [vmem:[%s803 + $0x610] sm:$0xff]
        %v3792 = vld [vmem:[%s803 + $0x618] sm:$0xff]
        %v3793 = vld [vmem:[%s803 + $0x650] sm:$0xff]
        %v3794 = vld [vmem:[%s803 + $0x658] sm:$0xff]
        %v3795 = vld [vmem:[%s803 + $0x690] sm:$0xff]
        %v3796 = vld [vmem:[%s803 + $0x698] sm:$0xff]
        %v3797 = vld [vmem:[%s803 + $0x6d0] sm:$0xff]
        %v3798 = vld [vmem:[%s803 + $0x6d8] sm:$0xff]
        %v3799 = vld [vmem:[%s803 + $0x710] sm:$0xff]
        %v3800 = vld [vmem:[%s803 + $0x718] sm:$0xff]
        %v3801 = vld [vmem:[%s803 + $0x750] sm:$0xff]
        %v3802 = vld [vmem:[%s803 + $0x758] sm:$0xff]
        %v3803 = vld [vmem:[%s803 + $0x790] sm:$0xff]
        %v3804 = vld [vmem:[%s803 + $0x798] sm:$0xff]
        %v3805 = vld [vmem:[%s803 + $0x7d0] sm:$0xff]
        %v3806 = vld [vmem:[%s803 + $0x7d8] sm:$0xff]
        %v3807 = vld [vmem:[%s812 + $0x4] sm:$0xf]
        %v3809 = vlaneseq
        %v3810 = vshrl.u32 %v3809, 7
        %v3811 = vsub.s32 0, %v3810
        %v3812 = vrot.slane %v3807, %v3811
        %v3813 = vlaneseq
        %v3814 = vshrl.u32 %v3813, 7
        %v3815 = vsub.s32 1, %v3814
        %v3816 = vrot.slane %v3807, %v3815
        %v3817 = vlaneseq
        %v3818 = vshrl.u32 %v3817, 7
        %v3819 = vsub.s32 2, %v3818
        %v3820 = vrot.slane %v3807, %v3819
        %v3821 = vlaneseq
        %v3822 = vshrl.u32 %v3821, 7
        %v3823 = vsub.s32 3, %v3822
        %v3824 = vrot.slane %v3807, %v3823
        %v3893 = vunpack.c.l.b16 %v3743
        %v3894 = vunpack.c.h.b16 %v3743
        %v3895 = vunpack.c.l.b16 %v3744
        %v3896 = vunpack.c.h.b16 %v3744
        %v3897 = vunpack.c.l.b16 %v3745
        %v3898 = vunpack.c.h.b16 %v3745
        %v3899 = vunpack.c.l.b16 %v3746
        %v3900 = vunpack.c.h.b16 %v3746
        %v3901 = vunpack.c.l.b16 %v3747
        %v3902 = vunpack.c.h.b16 %v3747
        %v3903 = vunpack.c.l.b16 %v3748
        %v3904 = vunpack.c.h.b16 %v3748
        %v3905 = vunpack.c.l.b16 %v3749
        %v3906 = vunpack.c.h.b16 %v3749
        %v3907 = vunpack.c.l.b16 %v3750
        %v3908 = vunpack.c.h.b16 %v3750
        %v3909 = vunpack.c.l.b16 %v3751
        %v3910 = vunpack.c.h.b16 %v3751
        %v3911 = vunpack.c.l.b16 %v3752
        %v3912 = vunpack.c.h.b16 %v3752
        %v3913 = vunpack.c.l.b16 %v3753
        %v3914 = vunpack.c.h.b16 %v3753
        %v3915 = vunpack.c.l.b16 %v3754
        %v3916 = vunpack.c.h.b16 %v3754
        %v3917 = vunpack.c.l.b16 %v3755
        %v3918 = vunpack.c.h.b16 %v3755
        %v3919 = vunpack.c.l.b16 %v3756
        %v3920 = vunpack.c.h.b16 %v3756
        %v3921 = vunpack.c.l.b16 %v3757
        %v3922 = vunpack.c.h.b16 %v3757
        %v3923 = vunpack.c.l.b16 %v3758
        %v3924 = vunpack.c.h.b16 %v3758
        %v3925 = vunpack.c.l.b16 %v3759
        %v3926 = vunpack.c.h.b16 %v3759
        %v3927 = vunpack.c.l.b16 %v3760
        %v3928 = vunpack.c.h.b16 %v3760
        %v3929 = vunpack.c.l.b16 %v3761
        %v3930 = vunpack.c.h.b16 %v3761
        %v3931 = vunpack.c.l.b16 %v3762
        %v3932 = vunpack.c.h.b16 %v3762
        %v3933 = vunpack.c.l.b16 %v3763
        %v3934 = vunpack.c.h.b16 %v3763
        %v3935 = vunpack.c.l.b16 %v3764
        %v3936 = vunpack.c.h.b16 %v3764
        %v3937 = vunpack.c.l.b16 %v3765
        %v3938 = vunpack.c.h.b16 %v3765
        %v3939 = vunpack.c.l.b16 %v3766
        %v3940 = vunpack.c.h.b16 %v3766
        %v3941 = vunpack.c.l.b16 %v3767
        %v3942 = vunpack.c.h.b16 %v3767
        %v3943 = vunpack.c.l.b16 %v3768
        %v3944 = vunpack.c.h.b16 %v3768
        %v3945 = vunpack.c.l.b16 %v3769
        %v3946 = vunpack.c.h.b16 %v3769
        %v3947 = vunpack.c.l.b16 %v3770
        %v3948 = vunpack.c.h.b16 %v3770
        %v3949 = vunpack.c.l.b16 %v3771
        %v3950 = vunpack.c.h.b16 %v3771
        %v3951 = vunpack.c.l.b16 %v3772
        %v3952 = vunpack.c.h.b16 %v3772
        %v3953 = vunpack.c.l.b16 %v3773
        %v3954 = vunpack.c.h.b16 %v3773
        %v3955 = vunpack.c.l.b16 %v3774
        %v3956 = vunpack.c.h.b16 %v3774
        %v3957 = vunpack.c.l.b16 %v3775
        %v3958 = vunpack.c.h.b16 %v3775
        %v3959 = vunpack.c.l.b16 %v3776
        %v3960 = vunpack.c.h.b16 %v3776
        %v3961 = vunpack.c.l.b16 %v3777
        %v3962 = vunpack.c.h.b16 %v3777
        %v3963 = vunpack.c.l.b16 %v3778
        %v3964 = vunpack.c.h.b16 %v3778
        %v3965 = vunpack.c.l.b16 %v3779
        %v3966 = vunpack.c.h.b16 %v3779
        %v3967 = vunpack.c.l.b16 %v3780
        %v3968 = vunpack.c.h.b16 %v3780
        %v3969 = vunpack.c.l.b16 %v3781
        %v3970 = vunpack.c.h.b16 %v3781
        %v3971 = vunpack.c.l.b16 %v3782
        %v3972 = vunpack.c.h.b16 %v3782
        %v3973 = vunpack.c.l.b16 %v3783
        %v3974 = vunpack.c.h.b16 %v3783
        %v3975 = vunpack.c.l.b16 %v3784
        %v3976 = vunpack.c.h.b16 %v3784
        %v3977 = vunpack.c.l.b16 %v3785
        %v3978 = vunpack.c.h.b16 %v3785
        %v3979 = vunpack.c.l.b16 %v3786
        %v3980 = vunpack.c.h.b16 %v3786
        %v3981 = vunpack.c.l.b16 %v3787
        %v3982 = vunpack.c.h.b16 %v3787
        %v3983 = vunpack.c.l.b16 %v3788
        %v3984 = vunpack.c.h.b16 %v3788
        %v3985 = vunpack.c.l.b16 %v3789
        %v3986 = vunpack.c.h.b16 %v3789
        %v3987 = vunpack.c.l.b16 %v3790
        %v3988 = vunpack.c.h.b16 %v3790
        %v3989 = vunpack.c.l.b16 %v3791
        %v3990 = vunpack.c.h.b16 %v3791
        %v3991 = vunpack.c.l.b16 %v3792
        %v3992 = vunpack.c.h.b16 %v3792
        %v3993 = vunpack.c.l.b16 %v3793
        %v3994 = vunpack.c.h.b16 %v3793
        %v3995 = vunpack.c.l.b16 %v3794
        %v3996 = vunpack.c.h.b16 %v3794
        %v3997 = vunpack.c.l.b16 %v3795
        %v3998 = vunpack.c.h.b16 %v3795
        %v3999 = vunpack.c.l.b16 %v3796
        %v4000 = vunpack.c.h.b16 %v3796
        %v4001 = vunpack.c.l.b16 %v3797
        %v4002 = vunpack.c.h.b16 %v3797
        %v4003 = vunpack.c.l.b16 %v3798
        %v4004 = vunpack.c.h.b16 %v3798
        %v4005 = vunpack.c.l.b16 %v3799
        %v4006 = vunpack.c.h.b16 %v3799
        %v4007 = vunpack.c.l.b16 %v3800
        %v4008 = vunpack.c.h.b16 %v3800
        %v4009 = vunpack.c.l.b16 %v3801
        %v4010 = vunpack.c.h.b16 %v3801
        %v4011 = vunpack.c.l.b16 %v3802
        %v4012 = vunpack.c.h.b16 %v3802
        %v4013 = vunpack.c.l.b16 %v3803
        %v4014 = vunpack.c.h.b16 %v3803
        %v4015 = vunpack.c.l.b16 %v3804
        %v4016 = vunpack.c.h.b16 %v3804
        %v4017 = vunpack.c.l.b16 %v3805
        %v4018 = vunpack.c.h.b16 %v3805
        %v4019 = vunpack.c.l.b16 %v3806
        %v4020 = vunpack.c.h.b16 %v3806
        %v4021 = vpack.c.b16 %v3897, %v3893
        %v4022 = vpack.c.b16 %v3898, %v3894
        %v4023 = vpack.c.b16 %v3899, %v3895
        %v4024 = vpack.c.b16 %v3900, %v3896
        %v4025 = vpack.c.b16 %v3905, %v3901
        %v4026 = vpack.c.b16 %v3906, %v3902
        %v4027 = vpack.c.b16 %v3907, %v3903
        %v4028 = vpack.c.b16 %v3908, %v3904
        %v4029 = vpack.c.b16 %v3913, %v3909
        %v4030 = vpack.c.b16 %v3914, %v3910
        %v4031 = vpack.c.b16 %v3915, %v3911
        %v4032 = vpack.c.b16 %v3916, %v3912
        %v4033 = vpack.c.b16 %v3921, %v3917
        %v4034 = vpack.c.b16 %v3922, %v3918
        %v4035 = vpack.c.b16 %v3923, %v3919
        %v4036 = vpack.c.b16 %v3924, %v3920
        %v4037 = vpack.c.b16 %v3929, %v3925
        %v4038 = vpack.c.b16 %v3930, %v3926
        %v4039 = vpack.c.b16 %v3931, %v3927
        %v4040 = vpack.c.b16 %v3932, %v3928
        %v4041 = vpack.c.b16 %v3937, %v3933
        %v4042 = vpack.c.b16 %v3938, %v3934
        %v4043 = vpack.c.b16 %v3939, %v3935
        %v4044 = vpack.c.b16 %v3940, %v3936
        %v4045 = vpack.c.b16 %v3945, %v3941
        %v4046 = vpack.c.b16 %v3946, %v3942
        %v4047 = vpack.c.b16 %v3947, %v3943
        %v4048 = vpack.c.b16 %v3948, %v3944
        %v4049 = vpack.c.b16 %v3953, %v3949
        %v4050 = vpack.c.b16 %v3954, %v3950
        %v4051 = vpack.c.b16 %v3955, %v3951
        %v4052 = vpack.c.b16 %v3956, %v3952
        %v4053 = vpack.c.b16 %v3961, %v3957
        %v4054 = vpack.c.b16 %v3962, %v3958
        %v4055 = vpack.c.b16 %v3963, %v3959
        %v4056 = vpack.c.b16 %v3964, %v3960
        %v4057 = vpack.c.b16 %v3969, %v3965
        %v4058 = vpack.c.b16 %v3970, %v3966
        %v4059 = vpack.c.b16 %v3971, %v3967
        %v4060 = vpack.c.b16 %v3972, %v3968
        %v4061 = vpack.c.b16 %v3977, %v3973
        %v4062 = vpack.c.b16 %v3978, %v3974
        %v4063 = vpack.c.b16 %v3979, %v3975
        %v4064 = vpack.c.b16 %v3980, %v3976
        %v4065 = vpack.c.b16 %v3985, %v3981
        %v4066 = vpack.c.b16 %v3986, %v3982
        %v4067 = vpack.c.b16 %v3987, %v3983
        %v4068 = vpack.c.b16 %v3988, %v3984
        %v4069 = vpack.c.b16 %v3993, %v3989
        %v4070 = vpack.c.b16 %v3994, %v3990
        %v4071 = vpack.c.b16 %v3995, %v3991
        %v4072 = vpack.c.b16 %v3996, %v3992
        %v4073 = vpack.c.b16 %v4001, %v3997
        %v4074 = vpack.c.b16 %v4002, %v3998
        %v4075 = vpack.c.b16 %v4003, %v3999
        %v4076 = vpack.c.b16 %v4004, %v4000
        %v4077 = vpack.c.b16 %v4009, %v4005
        %v4078 = vpack.c.b16 %v4010, %v4006
        %v4079 = vpack.c.b16 %v4011, %v4007
        %v4080 = vpack.c.b16 %v4012, %v4008
        %v4081 = vpack.c.b16 %v4017, %v4013
        %v4082 = vpack.c.b16 %v4018, %v4014
        %v4083 = vpack.c.b16 %v4019, %v4015
        %v4084 = vpack.c.b16 %v4020, %v4016
        %4149 = vmatprep.subr.bf16.mxu0 %v4022
        %4150 = vmatpush1.bf16.msra.mxu0 %v4021
        %4151 = vmatprep.subr.bf16.mxu0 %v4026
        %4152 = vmatpush1.bf16.msra.mxu0 %v4025
        %4153 = vmatprep.subr.bf16.mxu0 %v4030
        %4154 = vmatpush1.bf16.msra.mxu0 %v4029
        %4155 = vmatprep.subr.bf16.mxu0 %v4034
        %4156 = vmatpush1.bf16.msra.mxu0 %v4033
        %4157 = vmatprep.subr.bf16.mxu0 %v4038
        %4158 = vmatpush1.bf16.msra.mxu0 %v4037
        %4159 = vmatprep.subr.bf16.mxu0 %v4042
        %4160 = vmatpush1.bf16.msra.mxu0 %v4041
        %4161 = vmatprep.subr.bf16.mxu0 %v4046
        %4162 = vmatpush1.bf16.msra.mxu0 %v4045
        %4163 = vmatprep.subr.bf16.mxu0 %v4050
        %4164 = vmatpush1.bf16.msra.mxu0 %v4049
        %4165 = vmatprep.subr.bf16.mxu0 %v4054
        %4166 = vmatpush1.bf16.msra.mxu0 %v4053
        %4167 = vmatprep.subr.bf16.mxu0 %v4058
        %4168 = vmatpush1.bf16.msra.mxu0 %v4057
        %4169 = vmatprep.subr.bf16.mxu0 %v4062
        %4170 = vmatpush1.bf16.msra.mxu0 %v4061
        %4171 = vmatprep.subr.bf16.mxu0 %v4066
        %4172 = vmatpush1.bf16.msra.mxu0 %v4065
        %4173 = vmatprep.subr.bf16.mxu0 %v4070
        %4174 = vmatpush1.bf16.msra.mxu0 %v4069
        %4175 = vmatprep.subr.bf16.mxu0 %v4074
        %4176 = vmatpush1.bf16.msra.mxu0 %v4073
        %4177 = vmatprep.subr.bf16.mxu0 %v4078
        %4178 = vmatpush1.bf16.msra.mxu0 %v4077
        %4179 = vmatprep.subr.bf16.mxu0 %v4082
        %4180 = vmatpush1.bf16.msra.mxu0 %v4081
        %4181 = vmatprep.mubr.bf16.mxu0 %v3174
        %4182 = vmatmul.mubr.bf16.gmra.mrb[0].mxu0 %v3173
        %v4183 = vpop.f32.mrb[0].mxu0
        %v4184 = vadd.f32 %v3812, %v4183
        %v4185 = vpop.f32.mrb[0].mxu0
        %v4186 = vadd.f32 %v3816, %v4185
        %v4187 = vpop.f32.mrb[0].mxu0
        %v4188 = vadd.f32 %v3812, %v4187
        %v4189 = vpop.f32.mrb[0].mxu0
        %v4190 = vadd.f32 %v3816, %v4189
        %4191 = vdwg.mxu0
        %4192 = vmatprep.subr.bf16.mxu0 %v4024
        %4193 = vmatpush1.bf16.msra.mxu0 %v4023
        %4194 = vmatprep.subr.bf16.mxu0 %v4028
        %4195 = vmatpush1.bf16.msra.mxu0 %v4027
        %4196 = vmatprep.subr.bf16.mxu0 %v4032
        %4197 = vmatpush1.bf16.msra.mxu0 %v4031
        %4198 = vmatprep.subr.bf16.mxu0 %v4036
        %4199 = vmatpush1.bf16.msra.mxu0 %v4035
        %4200 = vmatprep.subr.bf16.mxu0 %v4040
        %4201 = vmatpush1.bf16.msra.mxu0 %v4039
        %4202 = vmatprep.subr.bf16.mxu0 %v4044
        %4203 = vmatpush1.bf16.msra.mxu0 %v4043
        %4204 = vmatprep.subr.bf16.mxu0 %v4048
        %4205 = vmatpush1.bf16.msra.mxu0 %v4047
        %4206 = vmatprep.subr.bf16.mxu0 %v4052
        %4207 = vmatpush1.bf16.msra.mxu0 %v4051
        %4208 = vmatprep.subr.bf16.mxu0 %v4056
        %4209 = vmatpush1.bf16.msra.mxu0 %v4055
        %4210 = vmatprep.subr.bf16.mxu0 %v4060
        %4211 = vmatpush1.bf16.msra.mxu0 %v4059
        %4212 = vmatprep.subr.bf16.mxu0 %v4064
        %4213 = vmatpush1.bf16.msra.mxu0 %v4063
        %4214 = vmatprep.subr.bf16.mxu0 %v4068
        %4215 = vmatpush1.bf16.msra.mxu0 %v4067
        %4216 = vmatprep.subr.bf16.mxu0 %v4072
        %4217 = vmatpush1.bf16.msra.mxu0 %v4071
        %4218 = vmatprep.subr.bf16.mxu0 %v4076
        %4219 = vmatpush1.bf16.msra.mxu0 %v4075
        %4220 = vmatprep.subr.bf16.mxu0 %v4080
        %4221 = vmatpush1.bf16.msra.mxu0 %v4079
        %4222 = vmatprep.subr.bf16.mxu0 %v4084
        %4223 = vmatpush1.bf16.msra.mxu0 %v4083
        %4224 = vmatprep.mubr.bf16.mxu0 %v3174
        %4225 = vmatmul.mubr.bf16.gmra.mrb[0].mxu0 %v3173
        %v4226 = vpop.f32.mrb[0].mxu0
        %v4227 = vadd.f32 %v3820, %v4226
        %v4228 = vpop.f32.mrb[0].mxu0
        %v4229 = vadd.f32 %v3824, %v4228
        %v4230 = vpop.f32.mrb[0].mxu0
        %v4231 = vadd.f32 %v3820, %v4230
        %v4232 = vpop.f32.mrb[0].mxu0
        %v4233 = vadd.f32 %v3824, %v4232
        %4234 = vdwg.mxu0
        %v4235 = vmax.f32 %v4184, 0.0
        %v4236 = vmax.f32 %v4186, 0.0
        %v4237 = vmax.f32 %v4227, 0.0
        %v4238 = vmax.f32 %v4229, 0.0
        %v4239 = vmax.f32 %v4188, 0.0
        %v4240 = vmax.f32 %v4190, 0.0
        %v4241 = vmax.f32 %v4231, 0.0
        %v4242 = vmax.f32 %v4233, 0.0
        %v4243 = vpack.c.bf16 %v4239, %v4235
        %v4244 = vpack.c.bf16 %v4240, %v4236
        %v4245 = vpack.c.bf16 %v4241, %v4237
        %v4246 = vpack.c.bf16 %v4242, %v4238
        %v4247 = vld [vmem:[%s821 + $0x200] sm:$0xff]
        %v4248 = vld [vmem:[%s821 + $0x208] sm:$0xff]
        %v4249 = vld [vmem:[%s821 + $0x210] sm:$0xff]
        %v4250 = vld [vmem:[%s821 + $0x218] sm:$0xff]
        %v4251 = vld [vmem:[%s821 + $0x220] sm:$0xff]
        %v4252 = vld [vmem:[%s821 + $0x228] sm:$0xff]
        %v4253 = vld [vmem:[%s821 + $0x230] sm:$0xff]
        %v4254 = vld [vmem:[%s821 + $0x238] sm:$0xff]
        %v4255 = vld [vmem:[%s821 + $0x240] sm:$0xff]
        %v4256 = vld [vmem:[%s821 + $0x248] sm:$0xff]
        %v4257 = vld [vmem:[%s821 + $0x250] sm:$0xff]
        %v4258 = vld [vmem:[%s821 + $0x258] sm:$0xff]
        %v4259 = vld [vmem:[%s821 + $0x260] sm:$0xff]
        %v4260 = vld [vmem:[%s821 + $0x268] sm:$0xff]
        %v4261 = vld [vmem:[%s821 + $0x270] sm:$0xff]
        %v4262 = vld [vmem:[%s821 + $0x278] sm:$0xff]
        %v4263 = vld [vmem:[%s821 + $0x280] sm:$0xff]
        %v4264 = vld [vmem:[%s821 + $0x288] sm:$0xff]
        %v4265 = vld [vmem:[%s821 + $0x290] sm:$0xff]
        %v4266 = vld [vmem:[%s821 + $0x298] sm:$0xff]
        %v4267 = vld [vmem:[%s821 + $0x2a0] sm:$0xff]
        %v4268 = vld [vmem:[%s821 + $0x2a8] sm:$0xff]
        %v4269 = vld [vmem:[%s821 + $0x2b0] sm:$0xff]
        %v4270 = vld [vmem:[%s821 + $0x2b8] sm:$0xff]
        %v4271 = vld [vmem:[%s821 + $0x2c0] sm:$0xff]
        %v4272 = vld [vmem:[%s821 + $0x2c8] sm:$0xff]
        %v4273 = vld [vmem:[%s821 + $0x2d0] sm:$0xff]
        %v4274 = vld [vmem:[%s821 + $0x2d8] sm:$0xff]
        %v4275 = vld [vmem:[%s821 + $0x2e0] sm:$0xff]
        %v4276 = vld [vmem:[%s821 + $0x2e8] sm:$0xff]
        %v4277 = vld [vmem:[%s821 + $0x2f0] sm:$0xff]
        %v4278 = vld [vmem:[%s821 + $0x2f8] sm:$0xff]
        %v4279 = vld [vmem:[%s821 + $0x300] sm:$0xff]
        %v4280 = vld [vmem:[%s821 + $0x308] sm:$0xff]
        %v4281 = vld [vmem:[%s821 + $0x310] sm:$0xff]
        %v4282 = vld [vmem:[%s821 + $0x318] sm:$0xff]
        %v4283 = vld [vmem:[%s821 + $0x320] sm:$0xff]
        %v4284 = vld [vmem:[%s821 + $0x328] sm:$0xff]
        %v4285 = vld [vmem:[%s821 + $0x330] sm:$0xff]
        %v4286 = vld [vmem:[%s821 + $0x338] sm:$0xff]
        %v4287 = vld [vmem:[%s821 + $0x340] sm:$0xff]
        %v4288 = vld [vmem:[%s821 + $0x348] sm:$0xff]
        %v4289 = vld [vmem:[%s821 + $0x350] sm:$0xff]
        %v4290 = vld [vmem:[%s821 + $0x358] sm:$0xff]
        %v4291 = vld [vmem:[%s821 + $0x360] sm:$0xff]
        %v4292 = vld [vmem:[%s821 + $0x368] sm:$0xff]
        %v4293 = vld [vmem:[%s821 + $0x370] sm:$0xff]
        %v4294 = vld [vmem:[%s821 + $0x378] sm:$0xff]
        %v4295 = vld [vmem:[%s821 + $0x380] sm:$0xff]
        %v4296 = vld [vmem:[%s821 + $0x388] sm:$0xff]
        %v4297 = vld [vmem:[%s821 + $0x390] sm:$0xff]
        %v4298 = vld [vmem:[%s821 + $0x398] sm:$0xff]
        %v4299 = vld [vmem:[%s821 + $0x3a0] sm:$0xff]
        %v4300 = vld [vmem:[%s821 + $0x3a8] sm:$0xff]
        %v4301 = vld [vmem:[%s821 + $0x3b0] sm:$0xff]
        %v4302 = vld [vmem:[%s821 + $0x3b8] sm:$0xff]
        %v4303 = vld [vmem:[%s821 + $0x3c0] sm:$0xff]
        %v4304 = vld [vmem:[%s821 + $0x3c8] sm:$0xff]
        %v4305 = vld [vmem:[%s821 + $0x3d0] sm:$0xff]
        %v4306 = vld [vmem:[%s821 + $0x3d8] sm:$0xff]
        %v4307 = vld [vmem:[%s821 + $0x3e0] sm:$0xff]
        %v4308 = vld [vmem:[%s821 + $0x3e8] sm:$0xff]
        %v4309 = vld [vmem:[%s821 + $0x3f0] sm:$0xff]
        %v4310 = vld [vmem:[%s821 + $0x3f8] sm:$0xff]
        %v4375 = vunpack.c.l.b16 %v4247
        %v4376 = vunpack.c.h.b16 %v4247
        %v4377 = vunpack.c.l.b16 %v4248
        %v4378 = vunpack.c.h.b16 %v4248
        %v4379 = vunpack.c.l.b16 %v4249
        %v4380 = vunpack.c.h.b16 %v4249
        %v4381 = vunpack.c.l.b16 %v4250
        %v4382 = vunpack.c.h.b16 %v4250
        %v4383 = vunpack.c.l.b16 %v4251
        %v4384 = vunpack.c.h.b16 %v4251
        %v4385 = vunpack.c.l.b16 %v4252
        %v4386 = vunpack.c.h.b16 %v4252
        %v4387 = vunpack.c.l.b16 %v4253
        %v4388 = vunpack.c.h.b16 %v4253
        %v4389 = vunpack.c.l.b16 %v4254
        %v4390 = vunpack.c.h.b16 %v4254
        %v4391 = vunpack.c.l.b16 %v4255
        %v4392 = vunpack.c.h.b16 %v4255
        %v4393 = vunpack.c.l.b16 %v4256
        %v4394 = vunpack.c.h.b16 %v4256
        %v4395 = vunpack.c.l.b16 %v4257
        %v4396 = vunpack.c.h.b16 %v4257
        %v4397 = vunpack.c.l.b16 %v4258
        %v4398 = vunpack.c.h.b16 %v4258
        %v4399 = vunpack.c.l.b16 %v4259
        %v4400 = vunpack.c.h.b16 %v4259
        %v4401 = vunpack.c.l.b16 %v4260
        %v4402 = vunpack.c.h.b16 %v4260
        %v4403 = vunpack.c.l.b16 %v4261
        %v4404 = vunpack.c.h.b16 %v4261
        %v4405 = vunpack.c.l.b16 %v4262
        %v4406 = vunpack.c.h.b16 %v4262
        %v4407 = vunpack.c.l.b16 %v4263
        %v4408 = vunpack.c.h.b16 %v4263
        %v4409 = vunpack.c.l.b16 %v4264
        %v4410 = vunpack.c.h.b16 %v4264
        %v4411 = vunpack.c.l.b16 %v4265
        %v4412 = vunpack.c.h.b16 %v4265
        %v4413 = vunpack.c.l.b16 %v4266
        %v4414 = vunpack.c.h.b16 %v4266
        %v4415 = vunpack.c.l.b16 %v4267
        %v4416 = vunpack.c.h.b16 %v4267
        %v4417 = vunpack.c.l.b16 %v4268
        %v4418 = vunpack.c.h.b16 %v4268
        %v4419 = vunpack.c.l.b16 %v4269
        %v4420 = vunpack.c.h.b16 %v4269
        %v4421 = vunpack.c.l.b16 %v4270
        %v4422 = vunpack.c.h.b16 %v4270
        %v4423 = vunpack.c.l.b16 %v4271
        %v4424 = vunpack.c.h.b16 %v4271
        %v4425 = vunpack.c.l.b16 %v4272
        %v4426 = vunpack.c.h.b16 %v4272
        %v4427 = vunpack.c.l.b16 %v4273
        %v4428 = vunpack.c.h.b16 %v4273
        %v4429 = vunpack.c.l.b16 %v4274
        %v4430 = vunpack.c.h.b16 %v4274
        %v4431 = vunpack.c.l.b16 %v4275
        %v4432 = vunpack.c.h.b16 %v4275
        %v4433 = vunpack.c.l.b16 %v4276
        %v4434 = vunpack.c.h.b16 %v4276
        %v4435 = vunpack.c.l.b16 %v4277
        %v4436 = vunpack.c.h.b16 %v4277
        %v4437 = vunpack.c.l.b16 %v4278
        %v4438 = vunpack.c.h.b16 %v4278
        %v4439 = vunpack.c.l.b16 %v4279
        %v4440 = vunpack.c.h.b16 %v4279
        %v4441 = vunpack.c.l.b16 %v4280
        %v4442 = vunpack.c.h.b16 %v4280
        %v4443 = vunpack.c.l.b16 %v4281
        %v4444 = vunpack.c.h.b16 %v4281
        %v4445 = vunpack.c.l.b16 %v4282
        %v4446 = vunpack.c.h.b16 %v4282
        %v4447 = vunpack.c.l.b16 %v4283
        %v4448 = vunpack.c.h.b16 %v4283
        %v4449 = vunpack.c.l.b16 %v4284
        %v4450 = vunpack.c.h.b16 %v4284
        %v4451 = vunpack.c.l.b16 %v4285
        %v4452 = vunpack.c.h.b16 %v4285
        %v4453 = vunpack.c.l.b16 %v4286
        %v4454 = vunpack.c.h.b16 %v4286
        %v4455 = vunpack.c.l.b16 %v4287
        %v4456 = vunpack.c.h.b16 %v4287
        %v4457 = vunpack.c.l.b16 %v4288
        %v4458 = vunpack.c.h.b16 %v4288
        %v4459 = vunpack.c.l.b16 %v4289
        %v4460 = vunpack.c.h.b16 %v4289
        %v4461 = vunpack.c.l.b16 %v4290
        %v4462 = vunpack.c.h.b16 %v4290
        %v4463 = vunpack.c.l.b16 %v4291
        %v4464 = vunpack.c.h.b16 %v4291
        %v4465 = vunpack.c.l.b16 %v4292
        %v4466 = vunpack.c.h.b16 %v4292
        %v4467 = vunpack.c.l.b16 %v4293
        %v4468 = vunpack.c.h.b16 %v4293
        %v4469 = vunpack.c.l.b16 %v4294
        %v4470 = vunpack.c.h.b16 %v4294
        %v4471 = vunpack.c.l.b16 %v4295
        %v4472 = vunpack.c.h.b16 %v4295
        %v4473 = vunpack.c.l.b16 %v4296
        %v4474 = vunpack.c.h.b16 %v4296
        %v4475 = vunpack.c.l.b16 %v4297
        %v4476 = vunpack.c.h.b16 %v4297
        %v4477 = vunpack.c.l.b16 %v4298
        %v4478 = vunpack.c.h.b16 %v4298
        %v4479 = vunpack.c.l.b16 %v4299
        %v4480 = vunpack.c.h.b16 %v4299
        %v4481 = vunpack.c.l.b16 %v4300
        %v4482 = vunpack.c.h.b16 %v4300
        %v4483 = vunpack.c.l.b16 %v4301
        %v4484 = vunpack.c.h.b16 %v4301
        %v4485 = vunpack.c.l.b16 %v4302
        %v4486 = vunpack.c.h.b16 %v4302
        %v4487 = vunpack.c.l.b16 %v4303
        %v4488 = vunpack.c.h.b16 %v4303
        %v4489 = vunpack.c.l.b16 %v4304
        %v4490 = vunpack.c.h.b16 %v4304
        %v4491 = vunpack.c.l.b16 %v4305
        %v4492 = vunpack.c.h.b16 %v4305
        %v4493 = vunpack.c.l.b16 %v4306
        %v4494 = vunpack.c.h.b16 %v4306
        %v4495 = vunpack.c.l.b16 %v4307
        %v4496 = vunpack.c.h.b16 %v4307
        %v4497 = vunpack.c.l.b16 %v4308
        %v4498 = vunpack.c.h.b16 %v4308
        %v4499 = vunpack.c.l.b16 %v4309
        %v4500 = vunpack.c.h.b16 %v4309
        %v4501 = vunpack.c.l.b16 %v4310
        %v4502 = vunpack.c.h.b16 %v4310
        %v4503 = vpack.c.b16 %v4377, %v4375
        %v4504 = vpack.c.b16 %v4378, %v4376
        %v4505 = vpack.c.b16 %v4381, %v4379
        %v4506 = vpack.c.b16 %v4382, %v4380
        %v4507 = vpack.c.b16 %v4385, %v4383
        %v4508 = vpack.c.b16 %v4386, %v4384
        %v4509 = vpack.c.b16 %v4389, %v4387
        %v4510 = vpack.c.b16 %v4390, %v4388
        %v4511 = vpack.c.b16 %v4393, %v4391
        %v4512 = vpack.c.b16 %v4394, %v4392
        %v4513 = vpack.c.b16 %v4397, %v4395
        %v4514 = vpack.c.b16 %v4398, %v4396
        %v4515 = vpack.c.b16 %v4401, %v4399
        %v4516 = vpack.c.b16 %v4402, %v4400
        %v4517 = vpack.c.b16 %v4405, %v4403
        %v4518 = vpack.c.b16 %v4406, %v4404
        %v4519 = vpack.c.b16 %v4409, %v4407
        %v4520 = vpack.c.b16 %v4410, %v4408
        %v4521 = vpack.c.b16 %v4413, %v4411
        %v4522 = vpack.c.b16 %v4414, %v4412
        %v4523 = vpack.c.b16 %v4417, %v4415
        %v4524 = vpack.c.b16 %v4418, %v4416
        %v4525 = vpack.c.b16 %v4421, %v4419
        %v4526 = vpack.c.b16 %v4422, %v4420
        %v4527 = vpack.c.b16 %v4425, %v4423
        %v4528 = vpack.c.b16 %v4426, %v4424
        %v4529 = vpack.c.b16 %v4429, %v4427
        %v4530 = vpack.c.b16 %v4430, %v4428
        %v4531 = vpack.c.b16 %v4433, %v4431
        %v4532 = vpack.c.b16 %v4434, %v4432
        %v4533 = vpack.c.b16 %v4437, %v4435
        %v4534 = vpack.c.b16 %v4438, %v4436
        %v4535 = vpack.c.b16 %v4441, %v4439
        %v4536 = vpack.c.b16 %v4442, %v4440
        %v4537 = vpack.c.b16 %v4445, %v4443
        %v4538 = vpack.c.b16 %v4446, %v4444
        %v4539 = vpack.c.b16 %v4449, %v4447
        %v4540 = vpack.c.b16 %v4450, %v4448
        %v4541 = vpack.c.b16 %v4453, %v4451
        %v4542 = vpack.c.b16 %v4454, %v4452
        %v4543 = vpack.c.b16 %v4457, %v4455
        %v4544 = vpack.c.b16 %v4458, %v4456
        %v4545 = vpack.c.b16 %v4461, %v4459
        %v4546 = vpack.c.b16 %v4462, %v4460
        %v4547 = vpack.c.b16 %v4465, %v4463
        %v4548 = vpack.c.b16 %v4466, %v4464
        %v4549 = vpack.c.b16 %v4469, %v4467
        %v4550 = vpack.c.b16 %v4470, %v4468
        %v4551 = vpack.c.b16 %v4473, %v4471
        %v4552 = vpack.c.b16 %v4474, %v4472
        %v4553 = vpack.c.b16 %v4477, %v4475
        %v4554 = vpack.c.b16 %v4478, %v4476
        %v4555 = vpack.c.b16 %v4481, %v4479
        %v4556 = vpack.c.b16 %v4482, %v4480
        %v4557 = vpack.c.b16 %v4485, %v4483
        %v4558 = vpack.c.b16 %v4486, %v4484
        %v4559 = vpack.c.b16 %v4489, %v4487
        %v4560 = vpack.c.b16 %v4490, %v4488
        %v4561 = vpack.c.b16 %v4493, %v4491
        %v4562 = vpack.c.b16 %v4494, %v4492
        %v4563 = vpack.c.b16 %v4497, %v4495
        %v4564 = vpack.c.b16 %v4498, %v4496
        %v4565 = vpack.c.b16 %v4501, %v4499
        %v4566 = vpack.c.b16 %v4502, %v4500
        %4631 = vmatprep.subr.bf16.mxu0 %v4504
        %4632 = vmatpush1.bf16.msra.mxu0 %v4503
        %4633 = vmatprep.subr.bf16.mxu0 %v4506
        %4634 = vmatpush1.bf16.msra.mxu0 %v4505
        %4635 = vmatprep.subr.bf16.mxu0 %v4508
        %4636 = vmatpush1.bf16.msra.mxu0 %v4507
        %4637 = vmatprep.subr.bf16.mxu0 %v4510
        %4638 = vmatpush1.bf16.msra.mxu0 %v4509
        %4639 = vmatprep.subr.bf16.mxu0 %v4512
        %4640 = vmatpush1.bf16.msra.mxu0 %v4511
        %4641 = vmatprep.subr.bf16.mxu0 %v4514
        %4642 = vmatpush1.bf16.msra.mxu0 %v4513
        %4643 = vmatprep.subr.bf16.mxu0 %v4516
        %4644 = vmatpush1.bf16.msra.mxu0 %v4515
        %4645 = vmatprep.subr.bf16.mxu0 %v4518
        %4646 = vmatpush1.bf16.msra.mxu0 %v4517
        %4647 = vmatprep.subr.bf16.mxu0 %v4520
        %4648 = vmatpush1.bf16.msra.mxu0 %v4519
        %4649 = vmatprep.subr.bf16.mxu0 %v4522
        %4650 = vmatpush1.bf16.msra.mxu0 %v4521
        %4651 = vmatprep.subr.bf16.mxu0 %v4524
        %4652 = vmatpush1.bf16.msra.mxu0 %v4523
        %4653 = vmatprep.subr.bf16.mxu0 %v4526
        %4654 = vmatpush1.bf16.msra.mxu0 %v4525
        %4655 = vmatprep.subr.bf16.mxu0 %v4528
        %4656 = vmatpush1.bf16.msra.mxu0 %v4527
        %4657 = vmatprep.subr.bf16.mxu0 %v4530
        %4658 = vmatpush1.bf16.msra.mxu0 %v4529
        %4659 = vmatprep.subr.bf16.mxu0 %v4532
        %4660 = vmatpush1.bf16.msra.mxu0 %v4531
        %4661 = vmatprep.subr.bf16.mxu0 %v4534
        %4662 = vmatpush1.bf16.msra.mxu0 %v4533
        %4663 = vmatprep.mubr.bf16.mxu0 %v4244
        %4664 = vmatmul.mubr.bf16.gmra.mrb[0].mxu0 %v4243
        %v4665 = vpop.f32.mrb[0].mxu0
        %v4666 = vadd.f32 0.0, %v4665
        %v4667 = vpop.f32.mrb[0].mxu0
        %v4668 = vadd.f32 0.0, %v4667
        %v4669 = vpop.f32.mrb[0].mxu0
        %v4670 = vadd.f32 0.0, %v4669
        %v4671 = vpop.f32.mrb[0].mxu0
        %v4672 = vadd.f32 0.0, %v4671
        %4673 = vdwg.mxu0
        %4674 = vmatprep.subr.bf16.mxu0 %v4536
        %4675 = vmatpush1.bf16.msra.mxu0 %v4535
        %4676 = vmatprep.subr.bf16.mxu0 %v4538
        %4677 = vmatpush1.bf16.msra.mxu0 %v4537
        %4678 = vmatprep.subr.bf16.mxu0 %v4540
        %4679 = vmatpush1.bf16.msra.mxu0 %v4539
        %4680 = vmatprep.subr.bf16.mxu0 %v4542
        %4681 = vmatpush1.bf16.msra.mxu0 %v4541
        %4682 = vmatprep.subr.bf16.mxu0 %v4544
        %4683 = vmatpush1.bf16.msra.mxu0 %v4543
        %4684 = vmatprep.subr.bf16.mxu0 %v4546
        %4685 = vmatpush1.bf16.msra.mxu0 %v4545
        %4686 = vmatprep.subr.bf16.mxu0 %v4548
        %4687 = vmatpush1.bf16.msra.mxu0 %v4547
        %4688 = vmatprep.subr.bf16.mxu0 %v4550
        %4689 = vmatpush1.bf16.msra.mxu0 %v4549
        %4690 = vmatprep.subr.bf16.mxu0 %v4552
        %4691 = vmatpush1.bf16.msra.mxu0 %v4551
        %4692 = vmatprep.subr.bf16.mxu0 %v4554
        %4693 = vmatpush1.bf16.msra.mxu0 %v4553
        %4694 = vmatprep.subr.bf16.mxu0 %v4556
        %4695 = vmatpush1.bf16.msra.mxu0 %v4555
        %4696 = vmatprep.subr.bf16.mxu0 %v4558
        %4697 = vmatpush1.bf16.msra.mxu0 %v4557
        %4698 = vmatprep.subr.bf16.mxu0 %v4560
        %4699 = vmatpush1.bf16.msra.mxu0 %v4559
        %4700 = vmatprep.subr.bf16.mxu0 %v4562
        %4701 = vmatpush1.bf16.msra.mxu0 %v4561
        %4702 = vmatprep.subr.bf16.mxu0 %v4564
        %4703 = vmatpush1.bf16.msra.mxu0 %v4563
        %4704 = vmatprep.subr.bf16.mxu0 %v4566
        %4705 = vmatpush1.bf16.msra.mxu0 %v4565
        %4706 = vmatprep.mubr.bf16.mxu0 %v4246
        %4707 = vmatmul.mubr.bf16.gmra.mrb[0].mxu0 %v4245
        %v4708 = vpop.f32.mrb[0].mxu0
        %v4709 = vadd.f32 %v4666, %v4708
        %v4710 = vpop.f32.mrb[0].mxu0
        %v4711 = vadd.f32 %v4668, %v4710
        %v4712 = vpop.f32.mrb[0].mxu0
        %v4713 = vadd.f32 %v4670, %v4712
        %v4714 = vpop.f32.mrb[0].mxu0
        %v4715 = vadd.f32 %v4672, %v4714
        %4716 = vdwg.mxu0
        %v4781 = vunpack.c.l.b16 %v3679
        %v4782 = vunpack.c.h.b16 %v3679
        %v4783 = vunpack.c.l.b16 %v3680
        %v4784 = vunpack.c.h.b16 %v3680
        %v4785 = vunpack.c.l.b16 %v3681
        %v4786 = vunpack.c.h.b16 %v3681
        %v4787 = vunpack.c.l.b16 %v3682
        %v4788 = vunpack.c.h.b16 %v3682
        %v4789 = vunpack.c.l.b16 %v3683
        %v4790 = vunpack.c.h.b16 %v3683
        %v4791 = vunpack.c.l.b16 %v3684
        %v4792 = vunpack.c.h.b16 %v3684
        %v4793 = vunpack.c.l.b16 %v3685
        %v4794 = vunpack.c.h.b16 %v3685
        %v4795 = vunpack.c.l.b16 %v3686
        %v4796 = vunpack.c.h.b16 %v3686
        %v4797 = vunpack.c.l.b16 %v3687
        %v4798 = vunpack.c.h.b16 %v3687
        %v4799 = vunpack.c.l.b16 %v3688
        %v4800 = vunpack.c.h.b16 %v3688
        %v4801 = vunpack.c.l.b16 %v3689
        %v4802 = vunpack.c.h.b16 %v3689
        %v4803 = vunpack.c.l.b16 %v3690
        %v4804 = vunpack.c.h.b16 %v3690
        %v4805 = vunpack.c.l.b16 %v3691
        %v4806 = vunpack.c.h.b16 %v3691
        %v4807 = vunpack.c.l.b16 %v3692
        %v4808 = vunpack.c.h.b16 %v3692
        %v4809 = vunpack.c.l.b16 %v3693
        %v4810 = vunpack.c.h.b16 %v3693
        %v4811 = vunpack.c.l.b16 %v3694
        %v4812 = vunpack.c.h.b16 %v3694
        %v4813 = vunpack.c.l.b16 %v3695
        %v4814 = vunpack.c.h.b16 %v3695
        %v4815 = vunpack.c.l.b16 %v3696
        %v4816 = vunpack.c.h.b16 %v3696
        %v4817 = vunpack.c.l.b16 %v3697
        %v4818 = vunpack.c.h.b16 %v3697
        %v4819 = vunpack.c.l.b16 %v3698
        %v4820 = vunpack.c.h.b16 %v3698
        %v4821 = vunpack.c.l.b16 %v3699
        %v4822 = vunpack.c.h.b16 %v3699
        %v4823 = vunpack.c.l.b16 %v3700
        %v4824 = vunpack.c.h.b16 %v3700
        %v4825 = vunpack.c.l.b16 %v3701
        %v4826 = vunpack.c.h.b16 %v3701
        %v4827 = vunpack.c.l.b16 %v3702
        %v4828 = vunpack.c.h.b16 %v3702
        %v4829 = vunpack.c.l.b16 %v3703
        %v4830 = vunpack.c.h.b16 %v3703
        %v4831 = vunpack.c.l.b16 %v3704
        %v4832 = vunpack.c.h.b16 %v3704
        %v4833 = vunpack.c.l.b16 %v3705
        %v4834 = vunpack.c.h.b16 %v3705
        %v4835 = vunpack.c.l.b16 %v3706
        %v4836 = vunpack.c.h.b16 %v3706
        %v4837 = vunpack.c.l.b16 %v3707
        %v4838 = vunpack.c.h.b16 %v3707
        %v4839 = vunpack.c.l.b16 %v3708
        %v4840 = vunpack.c.h.b16 %v3708
        %v4841 = vunpack.c.l.b16 %v3709
        %v4842 = vunpack.c.h.b16 %v3709
        %v4843 = vunpack.c.l.b16 %v3710
        %v4844 = vunpack.c.h.b16 %v3710
        %v4845 = vunpack.c.l.b16 %v3711
        %v4846 = vunpack.c.h.b16 %v3711
        %v4847 = vunpack.c.l.b16 %v3712
        %v4848 = vunpack.c.h.b16 %v3712
        %v4849 = vunpack.c.l.b16 %v3713
        %v4850 = vunpack.c.h.b16 %v3713
        %v4851 = vunpack.c.l.b16 %v3714
        %v4852 = vunpack.c.h.b16 %v3714
        %v4853 = vunpack.c.l.b16 %v3715
        %v4854 = vunpack.c.h.b16 %v3715
        %v4855 = vunpack.c.l.b16 %v3716
        %v4856 = vunpack.c.h.b16 %v3716
        %v4857 = vunpack.c.l.b16 %v3717
        %v4858 = vunpack.c.h.b16 %v3717
        %v4859 = vunpack.c.l.b16 %v3718
        %v4860 = vunpack.c.h.b16 %v3718
        %v4861 = vunpack.c.l.b16 %v3719
        %v4862 = vunpack.c.h.b16 %v3719
        %v4863 = vunpack.c.l.b16 %v3720
        %v4864 = vunpack.c.h.b16 %v3720
        %v4865 = vunpack.c.l.b16 %v3721
        %v4866 = vunpack.c.h.b16 %v3721
        %v4867 = vunpack.c.l.b16 %v3722
        %v4868 = vunpack.c.h.b16 %v3722
        %v4869 = vunpack.c.l.b16 %v3723
        %v4870 = vunpack.c.h.b16 %v3723
        %v4871 = vunpack.c.l.b16 %v3724
        %v4872 = vunpack.c.h.b16 %v3724
        %v4873 = vunpack.c.l.b16 %v3725
        %v4874 = vunpack.c.h.b16 %v3725
        %v4875 = vunpack.c.l.b16 %v3726
        %v4876 = vunpack.c.h.b16 %v3726
        %v4877 = vunpack.c.l.b16 %v3727
        %v4878 = vunpack.c.h.b16 %v3727
        %v4879 = vunpack.c.l.b16 %v3728
        %v4880 = vunpack.c.h.b16 %v3728
        %v4881 = vunpack.c.l.b16 %v3729
        %v4882 = vunpack.c.h.b16 %v3729
        %v4883 = vunpack.c.l.b16 %v3730
        %v4884 = vunpack.c.h.b16 %v3730
        %v4885 = vunpack.c.l.b16 %v3731
        %v4886 = vunpack.c.h.b16 %v3731
        %v4887 = vunpack.c.l.b16 %v3732
        %v4888 = vunpack.c.h.b16 %v3732
        %v4889 = vunpack.c.l.b16 %v3733
        %v4890 = vunpack.c.h.b16 %v3733
        %v4891 = vunpack.c.l.b16 %v3734
        %v4892 = vunpack.c.h.b16 %v3734
        %v4893 = vunpack.c.l.b16 %v3735
        %v4894 = vunpack.c.h.b16 %v3735
        %v4895 = vunpack.c.l.b16 %v3736
        %v4896 = vunpack.c.h.b16 %v3736
        %v4897 = vunpack.c.l.b16 %v3737
        %v4898 = vunpack.c.h.b16 %v3737
        %v4899 = vunpack.c.l.b16 %v3738
        %v4900 = vunpack.c.h.b16 %v3738
        %v4901 = vunpack.c.l.b16 %v3739
        %v4902 = vunpack.c.h.b16 %v3739
        %v4903 = vunpack.c.l.b16 %v3740
        %v4904 = vunpack.c.h.b16 %v3740
        %v4905 = vunpack.c.l.b16 %v3741
        %v4906 = vunpack.c.h.b16 %v3741
        %v4907 = vunpack.c.l.b16 %v3742
        %v4908 = vunpack.c.h.b16 %v3742
        %v4909 = vpack.c.b16 %v4783, %v4781
        %v4910 = vpack.c.b16 %v4784, %v4782
        %v4911 = vpack.c.b16 %v4787, %v4785
        %v4912 = vpack.c.b16 %v4788, %v4786
        %v4913 = vpack.c.b16 %v4791, %v4789
        %v4914 = vpack.c.b16 %v4792, %v4790
        %v4915 = vpack.c.b16 %v4795, %v4793
        %v4916 = vpack.c.b16 %v4796, %v4794
        %v4917 = vpack.c.b16 %v4799, %v4797
        %v4918 = vpack.c.b16 %v4800, %v4798
        %v4919 = vpack.c.b16 %v4803, %v4801
        %v4920 = vpack.c.b16 %v4804, %v4802
        %v4921 = vpack.c.b16 %v4807, %v4805
        %v4922 = vpack.c.b16 %v4808, %v4806
        %v4923 = vpack.c.b16 %v4811, %v4809
        %v4924 = vpack.c.b16 %v4812, %v4810
        %v4925 = vpack.c.b16 %v4815, %v4813
        %v4926 = vpack.c.b16 %v4816, %v4814
        %v4927 = vpack.c.b16 %v4819, %v4817
        %v4928 = vpack.c.b16 %v4820, %v4818
        %v4929 = vpack.c.b16 %v4823, %v4821
        %v4930 = vpack.c.b16 %v4824, %v4822
        %v4931 = vpack.c.b16 %v4827, %v4825
        %v4932 = vpack.c.b16 %v4828, %v4826
        %v4933 = vpack.c.b16 %v4831, %v4829
        %v4934 = vpack.c.b16 %v4832, %v4830
        %v4935 = vpack.c.b16 %v4835, %v4833
        %v4936 = vpack.c.b16 %v4836, %v4834
        %v4937 = vpack.c.b16 %v4839, %v4837
        %v4938 = vpack.c.b16 %v4840, %v4838
        %v4939 = vpack.c.b16 %v4843, %v4841
        %v4940 = vpack.c.b16 %v4844, %v4842
        %v4941 = vpack.c.b16 %v4847, %v4845
        %v4942 = vpack.c.b16 %v4848, %v4846
        %v4943 = vpack.c.b16 %v4851, %v4849
        %v4944 = vpack.c.b16 %v4852, %v4850
        %v4945 = vpack.c.b16 %v4855, %v4853
        %v4946 = vpack.c.b16 %v4856, %v4854
        %v4947 = vpack.c.b16 %v4859, %v4857
        %v4948 = vpack.c.b16 %v4860, %v4858
        %v4949 = vpack.c.b16 %v4863, %v4861
        %v4950 = vpack.c.b16 %v4864, %v4862
        %v4951 = vpack.c.b16 %v4867, %v4865
        %v4952 = vpack.c.b16 %v4868, %v4866
        %v4953 = vpack.c.b16 %v4871, %v4869
        %v4954 = vpack.c.b16 %v4872, %v4870
        %v4955 = vpack.c.b16 %v4875, %v4873
        %v4956 = vpack.c.b16 %v4876, %v4874
        %v4957 = vpack.c.b16 %v4879, %v4877
        %v4958 = vpack.c.b16 %v4880, %v4878
        %v4959 = vpack.c.b16 %v4883, %v4881
        %v4960 = vpack.c.b16 %v4884, %v4882
        %v4961 = vpack.c.b16 %v4887, %v4885
        %v4962 = vpack.c.b16 %v4888, %v4886
        %v4963 = vpack.c.b16 %v4891, %v4889
        %v4964 = vpack.c.b16 %v4892, %v4890
        %v4965 = vpack.c.b16 %v4895, %v4893
        %v4966 = vpack.c.b16 %v4896, %v4894
        %v4967 = vpack.c.b16 %v4899, %v4897
        %v4968 = vpack.c.b16 %v4900, %v4898
        %v4969 = vpack.c.b16 %v4903, %v4901
        %v4970 = vpack.c.b16 %v4904, %v4902
        %v4971 = vpack.c.b16 %v4907, %v4905
        %v4972 = vpack.c.b16 %v4908, %v4906
        %5037 = vmatprep.subr.bf16.mxu0 %v4910
        %5038 = vmatpush1.bf16.msra.mxu0 %v4909
        %5039 = vmatprep.subr.bf16.mxu0 %v4912
        %5040 = vmatpush1.bf16.msra.mxu0 %v4911
        %5041 = vmatprep.subr.bf16.mxu0 %v4914
        %5042 = vmatpush1.bf16.msra.mxu0 %v4913
        %5043 = vmatprep.subr.bf16.mxu0 %v4916
        %5044 = vmatpush1.bf16.msra.mxu0 %v4915
        %5045 = vmatprep.subr.bf16.mxu0 %v4918
        %5046 = vmatpush1.bf16.msra.mxu0 %v4917
        %5047 = vmatprep.subr.bf16.mxu0 %v4920
        %5048 = vmatpush1.bf16.msra.mxu0 %v4919
        %5049 = vmatprep.subr.bf16.mxu0 %v4922
        %5050 = vmatpush1.bf16.msra.mxu0 %v4921
        %5051 = vmatprep.subr.bf16.mxu0 %v4924
        %5052 = vmatpush1.bf16.msra.mxu0 %v4923
        %5053 = vmatprep.subr.bf16.mxu0 %v4926
        %5054 = vmatpush1.bf16.msra.mxu0 %v4925
        %5055 = vmatprep.subr.bf16.mxu0 %v4928
        %5056 = vmatpush1.bf16.msra.mxu0 %v4927
        %5057 = vmatprep.subr.bf16.mxu0 %v4930
        %5058 = vmatpush1.bf16.msra.mxu0 %v4929
        %5059 = vmatprep.subr.bf16.mxu0 %v4932
        %5060 = vmatpush1.bf16.msra.mxu0 %v4931
        %5061 = vmatprep.subr.bf16.mxu0 %v4934
        %5062 = vmatpush1.bf16.msra.mxu0 %v4933
        %5063 = vmatprep.subr.bf16.mxu0 %v4936
        %5064 = vmatpush1.bf16.msra.mxu0 %v4935
        %5065 = vmatprep.subr.bf16.mxu0 %v4938
        %5066 = vmatpush1.bf16.msra.mxu0 %v4937
        %5067 = vmatprep.subr.bf16.mxu0 %v4940
        %5068 = vmatpush1.bf16.msra.mxu0 %v4939
        %5069 = vmatprep.mubr.bf16.mxu0 %v3676
        %5070 = vmatmul.mubr.bf16.gmra.mrb[0].mxu0 %v3675
        %v5071 = vpop.f32.mrb[0].mxu0
        %v5072 = vadd.f32 %v4709, %v5071
        %v5073 = vpop.f32.mrb[0].mxu0
        %v5074 = vadd.f32 %v4711, %v5073
        %v5075 = vpop.f32.mrb[0].mxu0
        %v5076 = vadd.f32 %v4713, %v5075
        %v5077 = vpop.f32.mrb[0].mxu0
        %v5078 = vadd.f32 %v4715, %v5077
        %5079 = vdwg.mxu0
        %5080 = vmatprep.subr.bf16.mxu0 %v4942
        %5081 = vmatpush1.bf16.msra.mxu0 %v4941
        %5082 = vmatprep.subr.bf16.mxu0 %v4944
        %5083 = vmatpush1.bf16.msra.mxu0 %v4943
        %5084 = vmatprep.subr.bf16.mxu0 %v4946
        %5085 = vmatpush1.bf16.msra.mxu0 %v4945
        %5086 = vmatprep.subr.bf16.mxu0 %v4948
        %5087 = vmatpush1.bf16.msra.mxu0 %v4947
        %5088 = vmatprep.subr.bf16.mxu0 %v4950
        %5089 = vmatpush1.bf16.msra.mxu0 %v4949
        %5090 = vmatprep.subr.bf16.mxu0 %v4952
        %5091 = vmatpush1.bf16.msra.mxu0 %v4951
        %5092 = vmatprep.subr.bf16.mxu0 %v4954
        %5093 = vmatpush1.bf16.msra.mxu0 %v4953
        %5094 = vmatprep.subr.bf16.mxu0 %v4956
        %5095 = vmatpush1.bf16.msra.mxu0 %v4955
        %5096 = vmatprep.subr.bf16.mxu0 %v4958
        %5097 = vmatpush1.bf16.msra.mxu0 %v4957
        %5098 = vmatprep.subr.bf16.mxu0 %v4960
        %5099 = vmatpush1.bf16.msra.mxu0 %v4959
        %5100 = vmatprep.subr.bf16.mxu0 %v4962
        %5101 = vmatpush1.bf16.msra.mxu0 %v4961
        %5102 = vmatprep.subr.bf16.mxu0 %v4964
        %5103 = vmatpush1.bf16.msra.mxu0 %v4963
        %5104 = vmatprep.subr.bf16.mxu0 %v4966
        %5105 = vmatpush1.bf16.msra.mxu0 %v4965
        %5106 = vmatprep.subr.bf16.mxu0 %v4968
        %5107 = vmatpush1.bf16.msra.mxu0 %v4967
        %5108 = vmatprep.subr.bf16.mxu0 %v4970
        %5109 = vmatpush1.bf16.msra.mxu0 %v4969
        %5110 = vmatprep.subr.bf16.mxu0 %v4972
        %5111 = vmatpush1.bf16.msra.mxu0 %v4971
        %5112 = vmatprep.mubr.bf16.mxu0 %v3678
        %5113 = vmatmul.mubr.bf16.gmra.mrb[0].mxu0 %v3677
        %v5114 = vpop.f32.mrb[0].mxu0
        %v5115 = vadd.f32 %v5072, %v5114
        %v5116 = vpop.f32.mrb[0].mxu0
        %v5117 = vadd.f32 %v5074, %v5116
        %v5118 = vpop.f32.mrb[0].mxu0
        %v5119 = vadd.f32 %v5076, %v5118
        %v5120 = vpop.f32.mrb[0].mxu0
        %v5121 = vadd.f32 %v5078, %v5120
        %5122 = vdwg.mxu0
        %v5123 = vld [vmem:[%s803 + $0x20] sm:$0xff]
        %v5124 = vld [vmem:[%s803 + $0x28] sm:$0xff]
        %v5125 = vld [vmem:[%s803 + $0x60] sm:$0xff]
        %v5126 = vld [vmem:[%s803 + $0x68] sm:$0xff]
        %v5127 = vld [vmem:[%s803 + $0xa0] sm:$0xff]
        %v5128 = vld [vmem:[%s803 + $0xa8] sm:$0xff]
        %v5129 = vld [vmem:[%s803 + $0xe0] sm:$0xff]
        %v5130 = vld [vmem:[%s803 + $0xe8] sm:$0xff]
        %v5131 = vld [vmem:[%s803 + $0x120] sm:$0xff]
        %v5132 = vld [vmem:[%s803 + $0x128] sm:$0xff]
        %v5133 = vld [vmem:[%s803 + $0x160] sm:$0xff]
        %v5134 = vld [vmem:[%s803 + $0x168] sm:$0xff]
        %v5135 = vld [vmem:[%s803 + $0x1a0] sm:$0xff]
        %v5136 = vld [vmem:[%s803 + $0x1a8] sm:$0xff]
        %v5137 = vld [vmem:[%s803 + $0x1e0] sm:$0xff]
        %v5138 = vld [vmem:[%s803 + $0x1e8] sm:$0xff]
        %v5139 = vld [vmem:[%s803 + $0x220] sm:$0xff]
        %v5140 = vld [vmem:[%s803 + $0x228] sm:$0xff]
        %v5141 = vld [vmem:[%s803 + $0x260] sm:$0xff]
        %v5142 = vld [vmem:[%s803 + $0x268] sm:$0xff]
        %v5143 = vld [vmem:[%s803 + $0x2a0] sm:$0xff]
        %v5144 = vld [vmem:[%s803 + $0x2a8] sm:$0xff]
        %v5145 = vld [vmem:[%s803 + $0x2e0] sm:$0xff]
        %v5146 = vld [vmem:[%s803 + $0x2e8] sm:$0xff]
        %v5147 = vld [vmem:[%s803 + $0x320] sm:$0xff]
        %v5148 = vld [vmem:[%s803 + $0x328] sm:$0xff]
        %v5149 = vld [vmem:[%s803 + $0x360] sm:$0xff]
        %v5150 = vld [vmem:[%s803 + $0x368] sm:$0xff]
        %v5151 = vld [vmem:[%s803 + $0x3a0] sm:$0xff]
        %v5152 = vld [vmem:[%s803 + $0x3a8] sm:$0xff]
        %v5153 = vld [vmem:[%s803 + $0x3e0] sm:$0xff]
        %v5154 = vld [vmem:[%s803 + $0x3e8] sm:$0xff]
        %v5155 = vld [vmem:[%s803 + $0x420] sm:$0xff]
        %v5156 = vld [vmem:[%s803 + $0x428] sm:$0xff]
        %v5157 = vld [vmem:[%s803 + $0x460] sm:$0xff]
        %v5158 = vld [vmem:[%s803 + $0x468] sm:$0xff]
        %v5159 = vld [vmem:[%s803 + $0x4a0] sm:$0xff]
        %v5160 = vld [vmem:[%s803 + $0x4a8] sm:$0xff]
        %v5161 = vld [vmem:[%s803 + $0x4e0] sm:$0xff]
        %v5162 = vld [vmem:[%s803 + $0x4e8] sm:$0xff]
        %v5163 = vld [vmem:[%s803 + $0x520] sm:$0xff]
        %v5164 = vld [vmem:[%s803 + $0x528] sm:$0xff]
        %v5165 = vld [vmem:[%s803 + $0x560] sm:$0xff]
        %v5166 = vld [vmem:[%s803 + $0x568] sm:$0xff]
        %v5167 = vld [vmem:[%s803 + $0x5a0] sm:$0xff]
        %v5168 = vld [vmem:[%s803 + $0x5a8] sm:$0xff]
        %v5169 = vld [vmem:[%s803 + $0x5e0] sm:$0xff]
        %v5170 = vld [vmem:[%s803 + $0x5e8] sm:$0xff]
        %v5171 = vld [vmem:[%s803 + $0x620] sm:$0xff]
        %v5172 = vld [vmem:[%s803 + $0x628] sm:$0xff]
        %v5173 = vld [vmem:[%s803 + $0x660] sm:$0xff]
        %v5174 = vld [vmem:[%s803 + $0x668] sm:$0xff]
        %v5175 = vld [vmem:[%s803 + $0x6a0] sm:$0xff]
        %v5176 = vld [vmem:[%s803 + $0x6a8] sm:$0xff]
        %v5177 = vld [vmem:[%s803 + $0x6e0] sm:$0xff]
        %v5178 = vld [vmem:[%s803 + $0x6e8] sm:$0xff]
        %v5179 = vld [vmem:[%s803 + $0x720] sm:$0xff]
        %v5180 = vld [vmem:[%s803 + $0x728] sm:$0xff]
        %v5181 = vld [vmem:[%s803 + $0x760] sm:$0xff]
        %v5182 = vld [vmem:[%s803 + $0x768] sm:$0xff]
        %v5183 = vld [vmem:[%s803 + $0x7a0] sm:$0xff]
        %v5184 = vld [vmem:[%s803 + $0x7a8] sm:$0xff]
        %v5185 = vld [vmem:[%s803 + $0x7e0] sm:$0xff]
        %v5186 = vld [vmem:[%s803 + $0x7e8] sm:$0xff]
        %v5187 = vld [vmem:[%s812 + $0x8] sm:$0xf]
        %v5189 = vlaneseq
        %v5190 = vshrl.u32 %v5189, 7
        %v5191 = vsub.s32 0, %v5190
        %v5192 = vrot.slane %v5187, %v5191
        %v5193 = vlaneseq
        %v5194 = vshrl.u32 %v5193, 7
        %v5195 = vsub.s32 1, %v5194
        %v5196 = vrot.slane %v5187, %v5195
        %v5197 = vlaneseq
        %v5198 = vshrl.u32 %v5197, 7
        %v5199 = vsub.s32 2, %v5198
        %v5200 = vrot.slane %v5187, %v5199
        %v5201 = vlaneseq
        %v5202 = vshrl.u32 %v5201, 7
        %v5203 = vsub.s32 3, %v5202
        %v5204 = vrot.slane %v5187, %v5203
        %v5273 = vunpack.c.l.b16 %v5123
        %v5274 = vunpack.c.h.b16 %v5123
        %v5275 = vunpack.c.l.b16 %v5124
        %v5276 = vunpack.c.h.b16 %v5124
        %v5277 = vunpack.c.l.b16 %v5125
        %v5278 = vunpack.c.h.b16 %v5125
        %v5279 = vunpack.c.l.b16 %v5126
        %v5280 = vunpack.c.h.b16 %v5126
        %v5281 = vunpack.c.l.b16 %v5127
        %v5282 = vunpack.c.h.b16 %v5127
        %v5283 = vunpack.c.l.b16 %v5128
        %v5284 = vunpack.c.h.b16 %v5128
        %v5285 = vunpack.c.l.b16 %v5129
        %v5286 = vunpack.c.h.b16 %v5129
        %v5287 = vunpack.c.l.b16 %v5130
        %v5288 = vunpack.c.h.b16 %v5130
        %v5289 = vunpack.c.l.b16 %v5131
        %v5290 = vunpack.c.h.b16 %v5131
        %v5291 = vunpack.c.l.b16 %v5132
        %v5292 = vunpack.c.h.b16 %v5132
        %v5293 = vunpack.c.l.b16 %v5133
        %v5294 = vunpack.c.h.b16 %v5133
        %v5295 = vunpack.c.l.b16 %v5134
        %v5296 = vunpack.c.h.b16 %v5134
        %v5297 = vunpack.c.l.b16 %v5135
        %v5298 = vunpack.c.h.b16 %v5135
        %v5299 = vunpack.c.l.b16 %v5136
        %v5300 = vunpack.c.h.b16 %v5136
        %v5301 = vunpack.c.l.b16 %v5137
        %v5302 = vunpack.c.h.b16 %v5137
        %v5303 = vunpack.c.l.b16 %v5138
        %v5304 = vunpack.c.h.b16 %v5138
        %v5305 = vunpack.c.l.b16 %v5139
        %v5306 = vunpack.c.h.b16 %v5139
        %v5307 = vunpack.c.l.b16 %v5140
        %v5308 = vunpack.c.h.b16 %v5140
        %v5309 = vunpack.c.l.b16 %v5141
        %v5310 = vunpack.c.h.b16 %v5141
        %v5311 = vunpack.c.l.b16 %v5142
        %v5312 = vunpack.c.h.b16 %v5142
        %v5313 = vunpack.c.l.b16 %v5143
        %v5314 = vunpack.c.h.b16 %v5143
        %v5315 = vunpack.c.l.b16 %v5144
        %v5316 = vunpack.c.h.b16 %v5144
        %v5317 = vunpack.c.l.b16 %v5145
        %v5318 = vunpack.c.h.b16 %v5145
        %v5319 = vunpack.c.l.b16 %v5146
        %v5320 = vunpack.c.h.b16 %v5146
        %v5321 = vunpack.c.l.b16 %v5147
        %v5322 = vunpack.c.h.b16 %v5147
        %v5323 = vunpack.c.l.b16 %v5148
        %v5324 = vunpack.c.h.b16 %v5148
        %v5325 = vunpack.c.l.b16 %v5149
        %v5326 = vunpack.c.h.b16 %v5149
        %v5327 = vunpack.c.l.b16 %v5150
        %v5328 = vunpack.c.h.b16 %v5150
        %v5329 = vunpack.c.l.b16 %v5151
        %v5330 = vunpack.c.h.b16 %v5151
        %v5331 = vunpack.c.l.b16 %v5152
        %v5332 = vunpack.c.h.b16 %v5152
        %v5333 = vunpack.c.l.b16 %v5153
        %v5334 = vunpack.c.h.b16 %v5153
        %v5335 = vunpack.c.l.b16 %v5154
        %v5336 = vunpack.c.h.b16 %v5154
        %v5337 = vunpack.c.l.b16 %v5155
        %v5338 = vunpack.c.h.b16 %v5155
        %v5339 = vunpack.c.l.b16 %v5156
        %v5340 = vunpack.c.h.b16 %v5156
        %v5341 = vunpack.c.l.b16 %v5157
        %v5342 = vunpack.c.h.b16 %v5157
        %v5343 = vunpack.c.l.b16 %v5158
        %v5344 = vunpack.c.h.b16 %v5158
        %v5345 = vunpack.c.l.b16 %v5159
        %v5346 = vunpack.c.h.b16 %v5159
        %v5347 = vunpack.c.l.b16 %v5160
        %v5348 = vunpack.c.h.b16 %v5160
        %v5349 = vunpack.c.l.b16 %v5161
        %v5350 = vunpack.c.h.b16 %v5161
        %v5351 = vunpack.c.l.b16 %v5162
        %v5352 = vunpack.c.h.b16 %v5162
        %v5353 = vunpack.c.l.b16 %v5163
        %v5354 = vunpack.c.h.b16 %v5163
        %v5355 = vunpack.c.l.b16 %v5164
        %v5356 = vunpack.c.h.b16 %v5164
        %v5357 = vunpack.c.l.b16 %v5165
        %v5358 = vunpack.c.h.b16 %v5165
        %v5359 = vunpack.c.l.b16 %v5166
        %v5360 = vunpack.c.h.b16 %v5166
        %v5361 = vunpack.c.l.b16 %v5167
        %v5362 = vunpack.c.h.b16 %v5167
        %v5363 = vunpack.c.l.b16 %v5168
        %v5364 = vunpack.c.h.b16 %v5168
        %v5365 = vunpack.c.l.b16 %v5169
        %v5366 = vunpack.c.h.b16 %v5169
        %v5367 = vunpack.c.l.b16 %v5170
        %v5368 = vunpack.c.h.b16 %v5170
        %v5369 = vunpack.c.l.b16 %v5171
        %v5370 = vunpack.c.h.b16 %v5171
        %v5371 = vunpack.c.l.b16 %v5172
        %v5372 = vunpack.c.h.b16 %v5172
        %v5373 = vunpack.c.l.b16 %v5173
        %v5374 = vunpack.c.h.b16 %v5173
        %v5375 = vunpack.c.l.b16 %v5174
        %v5376 = vunpack.c.h.b16 %v5174
        %v5377 = vunpack.c.l.b16 %v5175
        %v5378 = vunpack.c.h.b16 %v5175
        %v5379 = vunpack.c.l.b16 %v5176
        %v5380 = vunpack.c.h.b16 %v5176
        %v5381 = vunpack.c.l.b16 %v5177
        %v5382 = vunpack.c.h.b16 %v5177
        %v5383 = vunpack.c.l.b16 %v5178
        %v5384 = vunpack.c.h.b16 %v5178
        %v5385 = vunpack.c.l.b16 %v5179
        %v5386 = vunpack.c.h.b16 %v5179
        %v5387 = vunpack.c.l.b16 %v5180
        %v5388 = vunpack.c.h.b16 %v5180
        %v5389 = vunpack.c.l.b16 %v5181
        %v5390 = vunpack.c.h.b16 %v5181
        %v5391 = vunpack.c.l.b16 %v5182
        %v5392 = vunpack.c.h.b16 %v5182
        %v5393 = vunpack.c.l.b16 %v5183
        %v5394 = vunpack.c.h.b16 %v5183
        %v5395 = vunpack.c.l.b16 %v5184
        %v5396 = vunpack.c.h.b16 %v5184
        %v5397 = vunpack.c.l.b16 %v5185
        %v5398 = vunpack.c.h.b16 %v5185
        %v5399 = vunpack.c.l.b16 %v5186
        %v5400 = vunpack.c.h.b16 %v5186
        %v5401 = vpack.c.b16 %v5277, %v5273
        %v5402 = vpack.c.b16 %v5278, %v5274
        %v5403 = vpack.c.b16 %v5279, %v5275
        %v5404 = vpack.c.b16 %v5280, %v5276
        %v5405 = vpack.c.b16 %v5285, %v5281
        %v5406 = vpack.c.b16 %v5286, %v5282
        %v5407 = vpack.c.b16 %v5287, %v5283
        %v5408 = vpack.c.b16 %v5288, %v5284
        %v5409 = vpack.c.b16 %v5293, %v5289
        %v5410 = vpack.c.b16 %v5294, %v5290
        %v5411 = vpack.c.b16 %v5295, %v5291
        %v5412 = vpack.c.b16 %v5296, %v5292
        %v5413 = vpack.c.b16 %v5301, %v5297
        %v5414 = vpack.c.b16 %v5302, %v5298
        %v5415 = vpack.c.b16 %v5303, %v5299
        %v5416 = vpack.c.b16 %v5304, %v5300
        %v5417 = vpack.c.b16 %v5309, %v5305
        %v5418 = vpack.c.b16 %v5310, %v5306
        %v5419 = vpack.c.b16 %v5311, %v5307
        %v5420 = vpack.c.b16 %v5312, %v5308
        %v5421 = vpack.c.b16 %v5317, %v5313
        %v5422 = vpack.c.b16 %v5318, %v5314
        %v5423 = vpack.c.b16 %v5319, %v5315
        %v5424 = vpack.c.b16 %v5320, %v5316
        %v5425 = vpack.c.b16 %v5325, %v5321
        %v5426 = vpack.c.b16 %v5326, %v5322
        %v5427 = vpack.c.b16 %v5327, %v5323
        %v5428 = vpack.c.b16 %v5328, %v5324
        %v5429 = vpack.c.b16 %v5333, %v5329
        %v5430 = vpack.c.b16 %v5334, %v5330
        %v5431 = vpack.c.b16 %v5335, %v5331
        %v5432 = vpack.c.b16 %v5336, %v5332
        %v5433 = vpack.c.b16 %v5341, %v5337
        %v5434 = vpack.c.b16 %v5342, %v5338
        %v5435 = vpack.c.b16 %v5343, %v5339
        %v5436 = vpack.c.b16 %v5344, %v5340
        %v5437 = vpack.c.b16 %v5349, %v5345
        %v5438 = vpack.c.b16 %v5350, %v5346
        %v5439 = vpack.c.b16 %v5351, %v5347
        %v5440 = vpack.c.b16 %v5352, %v5348
        %v5441 = vpack.c.b16 %v5357, %v5353
        %v5442 = vpack.c.b16 %v5358, %v5354
        %v5443 = vpack.c.b16 %v5359, %v5355
        %v5444 = vpack.c.b16 %v5360, %v5356
        %v5445 = vpack.c.b16 %v5365, %v5361
        %v5446 = vpack.c.b16 %v5366, %v5362
        %v5447 = vpack.c.b16 %v5367, %v5363
        %v5448 = vpack.c.b16 %v5368, %v5364
        %v5449 = vpack.c.b16 %v5373, %v5369
        %v5450 = vpack.c.b16 %v5374, %v5370
        %v5451 = vpack.c.b16 %v5375, %v5371
        %v5452 = vpack.c.b16 %v5376, %v5372
        %v5453 = vpack.c.b16 %v5381, %v5377
        %v5454 = vpack.c.b16 %v5382, %v5378
        %v5455 = vpack.c.b16 %v5383, %v5379
        %v5456 = vpack.c.b16 %v5384, %v5380
        %v5457 = vpack.c.b16 %v5389, %v5385
        %v5458 = vpack.c.b16 %v5390, %v5386
        %v5459 = vpack.c.b16 %v5391, %v5387
        %v5460 = vpack.c.b16 %v5392, %v5388
        %v5461 = vpack.c.b16 %v5397, %v5393
        %v5462 = vpack.c.b16 %v5398, %v5394
        %v5463 = vpack.c.b16 %v5399, %v5395
        %v5464 = vpack.c.b16 %v5400, %v5396
        %5529 = vmatprep.subr.bf16.mxu0 %v5402
        %5530 = vmatpush1.bf16.msra.mxu0 %v5401
        %5531 = vmatprep.subr.bf16.mxu0 %v5406
        %5532 = vmatpush1.bf16.msra.mxu0 %v5405
        %5533 = vmatprep.subr.bf16.mxu0 %v5410
        %5534 = vmatpush1.bf16.msra.mxu0 %v5409
        %5535 = vmatprep.subr.bf16.mxu0 %v5414
        %5536 = vmatpush1.bf16.msra.mxu0 %v5413
        %5537 = vmatprep.subr.bf16.mxu0 %v5418
        %5538 = vmatpush1.bf16.msra.mxu0 %v5417
        %5539 = vmatprep.subr.bf16.mxu0 %v5422
        %5540 = vmatpush1.bf16.msra.mxu0 %v5421
        %5541 = vmatprep.subr.bf16.mxu0 %v5426
        %5542 = vmatpush1.bf16.msra.mxu0 %v5425
        %5543 = vmatprep.subr.bf16.mxu0 %v5430
        %5544 = vmatpush1.bf16.msra.mxu0 %v5429
        %5545 = vmatprep.subr.bf16.mxu0 %v5434
        %5546 = vmatpush1.bf16.msra.mxu0 %v5433
        %5547 = vmatprep.subr.bf16.mxu0 %v5438
        %5548 = vmatpush1.bf16.msra.mxu0 %v5437
        %5549 = vmatprep.subr.bf16.mxu0 %v5442
        %5550 = vmatpush1.bf16.msra.mxu0 %v5441
        %5551 = vmatprep.subr.bf16.mxu0 %v5446
        %5552 = vmatpush1.bf16.msra.mxu0 %v5445
        %5553 = vmatprep.subr.bf16.mxu0 %v5450
        %5554 = vmatpush1.bf16.msra.mxu0 %v5449
        %5555 = vmatprep.subr.bf16.mxu0 %v5454
        %5556 = vmatpush1.bf16.msra.mxu0 %v5453
        %5557 = vmatprep.subr.bf16.mxu0 %v5458
        %5558 = vmatpush1.bf16.msra.mxu0 %v5457
        %5559 = vmatprep.subr.bf16.mxu0 %v5462
        %5560 = vmatpush1.bf16.msra.mxu0 %v5461
        %5561 = vmatprep.mubr.bf16.mxu0 %v3174
        %5562 = vmatmul.mubr.bf16.gmra.mrb[0].mxu0 %v3173
        %v5563 = vpop.f32.mrb[0].mxu0
        %v5564 = vadd.f32 %v5192, %v5563
        %v5565 = vpop.f32.mrb[0].mxu0
        %v5566 = vadd.f32 %v5196, %v5565
        %v5567 = vpop.f32.mrb[0].mxu0
        %v5568 = vadd.f32 %v5192, %v5567
        %v5569 = vpop.f32.mrb[0].mxu0
        %v5570 = vadd.f32 %v5196, %v5569
        %5571 = vdwg.mxu0
        %5572 = vmatprep.subr.bf16.mxu0 %v5404
        %5573 = vmatpush1.bf16.msra.mxu0 %v5403
        %5574 = vmatprep.subr.bf16.mxu0 %v5408
        %5575 = vmatpush1.bf16.msra.mxu0 %v5407
        %5576 = vmatprep.subr.bf16.mxu0 %v5412
        %5577 = vmatpush1.bf16.msra.mxu0 %v5411
        %5578 = vmatprep.subr.bf16.mxu0 %v5416
        %5579 = vmatpush1.bf16.msra.mxu0 %v5415
        %5580 = vmatprep.subr.bf16.mxu0 %v5420
        %5581 = vmatpush1.bf16.msra.mxu0 %v5419
        %5582 = vmatprep.subr.bf16.mxu0 %v5424
        %5583 = vmatpush1.bf16.msra.mxu0 %v5423
        %5584 = vmatprep.subr.bf16.mxu0 %v5428
        %5585 = vmatpush1.bf16.msra.mxu0 %v5427
        %5586 = vmatprep.subr.bf16.mxu0 %v5432
        %5587 = vmatpush1.bf16.msra.mxu0 %v5431
        %5588 = vmatprep.subr.bf16.mxu0 %v5436
        %5589 = vmatpush1.bf16.msra.mxu0 %v5435
        %5590 = vmatprep.subr.bf16.mxu0 %v5440
        %5591 = vmatpush1.bf16.msra.mxu0 %v5439
        %5592 = vmatprep.subr.bf16.mxu0 %v5444
        %5593 = vmatpush1.bf16.msra.mxu0 %v5443
        %5594 = vmatprep.subr.bf16.mxu0 %v5448
        %5595 = vmatpush1.bf16.msra.mxu0 %v5447
        %5596 = vmatprep.subr.bf16.mxu0 %v5452
        %5597 = vmatpush1.bf16.msra.mxu0 %v5451
        %5598 = vmatprep.subr.bf16.mxu0 %v5456
        %5599 = vmatpush1.bf16.msra.mxu0 %v5455
        %5600 = vmatprep.subr.bf16.mxu0 %v5460
        %5601 = vmatpush1.bf16.msra.mxu0 %v5459
        %5602 = vmatprep.subr.bf16.mxu0 %v5464
        %5603 = vmatpush1.bf16.msra.mxu0 %v5463
        %5604 = vmatprep.mubr.bf16.mxu0 %v3174
        %5605 = vmatmul.mubr.bf16.gmra.mrb[0].mxu0 %v3173
        %v5606 = vpop.f32.mrb[0].mxu0
        %v5607 = vadd.f32 %v5200, %v5606
        %v5608 = vpop.f32.mrb[0].mxu0
        %v5609 = vadd.f32 %v5204, %v5608
        %v5610 = vpop.f32.mrb[0].mxu0
        %v5611 = vadd.f32 %v5200, %v5610
        %v5612 = vpop.f32.mrb[0].mxu0
        %v5613 = vadd.f32 %v5204, %v5612
        %5614 = vdwg.mxu0
        %v5615 = vmax.f32 %v5564, 0.0
        %v5616 = vmax.f32 %v5566, 0.0
        %v5617 = vmax.f32 %v5607, 0.0
        %v5618 = vmax.f32 %v5609, 0.0
        %v5619 = vmax.f32 %v5568, 0.0
        %v5620 = vmax.f32 %v5570, 0.0
        %v5621 = vmax.f32 %v5611, 0.0
        %v5622 = vmax.f32 %v5613, 0.0
        %v5623 = vpack.c.bf16 %v5619, %v5615
        %v5624 = vpack.c.bf16 %v5620, %v5616
        %v5625 = vpack.c.bf16 %v5621, %v5617
        %v5626 = vpack.c.bf16 %v5622, %v5618
        %v5627 = vld [vmem:[%s821 + $0x400] sm:$0xff]
        %v5628 = vld [vmem:[%s821 + $0x408] sm:$0xff]
        %v5629 = vld [vmem:[%s821 + $0x410] sm:$0xff]
        %v5630 = vld [vmem:[%s821 + $0x418] sm:$0xff]
        %v5631 = vld [vmem:[%s821 + $0x420] sm:$0xff]
        %v5632 = vld [vmem:[%s821 + $0x428] sm:$0xff]
        %v5633 = vld [vmem:[%s821 + $0x430] sm:$0xff]
        %v5634 = vld [vmem:[%s821 + $0x438] sm:$0xff]
        %v5635 = vld [vmem:[%s821 + $0x440] sm:$0xff]
        %v5636 = vld [vmem:[%s821 + $0x448] sm:$0xff]
        %v5637 = vld [vmem:[%s821 + $0x450] sm:$0xff]
        %v5638 = vld [vmem:[%s821 + $0x458] sm:$0xff]
        %v5639 = vld [vmem:[%s821 + $0x460] sm:$0xff]
        %v5640 = vld [vmem:[%s821 + $0x468] sm:$0xff]
        %v5641 = vld [vmem:[%s821 + $0x470] sm:$0xff]
        %v5642 = vld [vmem:[%s821 + $0x478] sm:$0xff]
        %v5643 = vld [vmem:[%s821 + $0x480] sm:$0xff]
        %v5644 = vld [vmem:[%s821 + $0x488] sm:$0xff]
        %v5645 = vld [vmem:[%s821 + $0x490] sm:$0xff]
        %v5646 = vld [vmem:[%s821 + $0x498] sm:$0xff]
        %v5647 = vld [vmem:[%s821 + $0x4a0] sm:$0xff]
        %v5648 = vld [vmem:[%s821 + $0x4a8] sm:$0xff]
        %v5649 = vld [vmem:[%s821 + $0x4b0] sm:$0xff]
        %v5650 = vld [vmem:[%s821 + $0x4b8] sm:$0xff]
        %v5651 = vld [vmem:[%s821 + $0x4c0] sm:$0xff]
        %v5652 = vld [vmem:[%s821 + $0x4c8] sm:$0xff]
        %v5653 = vld [vmem:[%s821 + $0x4d0] sm:$0xff]
        %v5654 = vld [vmem:[%s821 + $0x4d8] sm:$0xff]
        %v5655 = vld [vmem:[%s821 + $0x4e0] sm:$0xff]
        %v5656 = vld [vmem:[%s821 + $0x4e8] sm:$0xff]
        %v5657 = vld [vmem:[%s821 + $0x4f0] sm:$0xff]
        %v5658 = vld [vmem:[%s821 + $0x4f8] sm:$0xff]
        %v5659 = vld [vmem:[%s821 + $0x500] sm:$0xff]
        %v5660 = vld [vmem:[%s821 + $0x508] sm:$0xff]
        %v5661 = vld [vmem:[%s821 + $0x510] sm:$0xff]
        %v5662 = vld [vmem:[%s821 + $0x518] sm:$0xff]
        %v5663 = vld [vmem:[%s821 + $0x520] sm:$0xff]
        %v5664 = vld [vmem:[%s821 + $0x528] sm:$0xff]
        %v5665 = vld [vmem:[%s821 + $0x530] sm:$0xff]
        %v5666 = vld [vmem:[%s821 + $0x538] sm:$0xff]
        %v5667 = vld [vmem:[%s821 + $0x540] sm:$0xff]
        %v5668 = vld [vmem:[%s821 + $0x548] sm:$0xff]
        %v5669 = vld [vmem:[%s821 + $0x550] sm:$0xff]
        %v5670 = vld [vmem:[%s821 + $0x558] sm:$0xff]
        %v5671 = vld [vmem:[%s821 + $0x560] sm:$0xff]
        %v5672 = vld [vmem:[%s821 + $0x568] sm:$0xff]
        %v5673 = vld [vmem:[%s821 + $0x570] sm:$0xff]
        %v5674 = vld [vmem:[%s821 + $0x578] sm:$0xff]
        %v5675 = vld [vmem:[%s821 + $0x580] sm:$0xff]
        %v5676 = vld [vmem:[%s821 + $0x588] sm:$0xff]
        %v5677 = vld [vmem:[%s821 + $0x590] sm:$0xff]
        %v5678 = vld [vmem:[%s821 + $0x598] sm:$0xff]
        %v5679 = vld [vmem:[%s821 + $0x5a0] sm:$0xff]
        %v5680 = vld [vmem:[%s821 + $0x5a8] sm:$0xff]
        %v5681 = vld [vmem:[%s821 + $0x5b0] sm:$0xff]
        %v5682 = vld [vmem:[%s821 + $0x5b8] sm:$0xff]
        %v5683 = vld [vmem:[%s821 + $0x5c0] sm:$0xff]
        %v5684 = vld [vmem:[%s821 + $0x5c8] sm:$0xff]
        %v5685 = vld [vmem:[%s821 + $0x5d0] sm:$0xff]
        %v5686 = vld [vmem:[%s821 + $0x5d8] sm:$0xff]
        %v5687 = vld [vmem:[%s821 + $0x5e0] sm:$0xff]
        %v5688 = vld [vmem:[%s821 + $0x5e8] sm:$0xff]
        %v5689 = vld [vmem:[%s821 + $0x5f0] sm:$0xff]
        %v5690 = vld [vmem:[%s821 + $0x5f8] sm:$0xff]
        %v5755 = vunpack.c.l.b16 %v5627
        %v5756 = vunpack.c.h.b16 %v5627
        %v5757 = vunpack.c.l.b16 %v5628
        %v5758 = vunpack.c.h.b16 %v5628
        %v5759 = vunpack.c.l.b16 %v5629
        %v5760 = vunpack.c.h.b16 %v5629
        %v5761 = vunpack.c.l.b16 %v5630
        %v5762 = vunpack.c.h.b16 %v5630
        %v5763 = vunpack.c.l.b16 %v5631
        %v5764 = vunpack.c.h.b16 %v5631
        %v5765 = vunpack.c.l.b16 %v5632
        %v5766 = vunpack.c.h.b16 %v5632
        %v5767 = vunpack.c.l.b16 %v5633
        %v5768 = vunpack.c.h.b16 %v5633
        %v5769 = vunpack.c.l.b16 %v5634
        %v5770 = vunpack.c.h.b16 %v5634
        %v5771 = vunpack.c.l.b16 %v5635
        %v5772 = vunpack.c.h.b16 %v5635
        %v5773 = vunpack.c.l.b16 %v5636
        %v5774 = vunpack.c.h.b16 %v5636
        %v5775 = vunpack.c.l.b16 %v5637
        %v5776 = vunpack.c.h.b16 %v5637
        %v5777 = vunpack.c.l.b16 %v5638
        %v5778 = vunpack.c.h.b16 %v5638
        %v5779 = vunpack.c.l.b16 %v5639
        %v5780 = vunpack.c.h.b16 %v5639
        %v5781 = vunpack.c.l.b16 %v5640
        %v5782 = vunpack.c.h.b16 %v5640
        %v5783 = vunpack.c.l.b16 %v5641
        %v5784 = vunpack.c.h.b16 %v5641
        %v5785 = vunpack.c.l.b16 %v5642
        %v5786 = vunpack.c.h.b16 %v5642
        %v5787 = vunpack.c.l.b16 %v5643
        %v5788 = vunpack.c.h.b16 %v5643
        %v5789 = vunpack.c.l.b16 %v5644
        %v5790 = vunpack.c.h.b16 %v5644
        %v5791 = vunpack.c.l.b16 %v5645
        %v5792 = vunpack.c.h.b16 %v5645
        %v5793 = vunpack.c.l.b16 %v5646
        %v5794 = vunpack.c.h.b16 %v5646
        %v5795 = vunpack.c.l.b16 %v5647
        %v5796 = vunpack.c.h.b16 %v5647
        %v5797 = vunpack.c.l.b16 %v5648
        %v5798 = vunpack.c.h.b16 %v5648
        %v5799 = vunpack.c.l.b16 %v5649
        %v5800 = vunpack.c.h.b16 %v5649
        %v5801 = vunpack.c.l.b16 %v5650
        %v5802 = vunpack.c.h.b16 %v5650
        %v5803 = vunpack.c.l.b16 %v5651
        %v5804 = vunpack.c.h.b16 %v5651
        %v5805 = vunpack.c.l.b16 %v5652
        %v5806 = vunpack.c.h.b16 %v5652
        %v5807 = vunpack.c.l.b16 %v5653
        %v5808 = vunpack.c.h.b16 %v5653
        %v5809 = vunpack.c.l.b16 %v5654
        %v5810 = vunpack.c.h.b16 %v5654
        %v5811 = vunpack.c.l.b16 %v5655
        %v5812 = vunpack.c.h.b16 %v5655
        %v5813 = vunpack.c.l.b16 %v5656
        %v5814 = vunpack.c.h.b16 %v5656
        %v5815 = vunpack.c.l.b16 %v5657
        %v5816 = vunpack.c.h.b16 %v5657
        %v5817 = vunpack.c.l.b16 %v5658
        %v5818 = vunpack.c.h.b16 %v5658
        %v5819 = vunpack.c.l.b16 %v5659
        %v5820 = vunpack.c.h.b16 %v5659
        %v5821 = vunpack.c.l.b16 %v5660
        %v5822 = vunpack.c.h.b16 %v5660
        %v5823 = vunpack.c.l.b16 %v5661
        %v5824 = vunpack.c.h.b16 %v5661
        %v5825 = vunpack.c.l.b16 %v5662
        %v5826 = vunpack.c.h.b16 %v5662
        %v5827 = vunpack.c.l.b16 %v5663
        %v5828 = vunpack.c.h.b16 %v5663
        %v5829 = vunpack.c.l.b16 %v5664
        %v5830 = vunpack.c.h.b16 %v5664
        %v5831 = vunpack.c.l.b16 %v5665
        %v5832 = vunpack.c.h.b16 %v5665
        %v5833 = vunpack.c.l.b16 %v5666
        %v5834 = vunpack.c.h.b16 %v5666
        %v5835 = vunpack.c.l.b16 %v5667
        %v5836 = vunpack.c.h.b16 %v5667
        %v5837 = vunpack.c.l.b16 %v5668
        %v5838 = vunpack.c.h.b16 %v5668
        %v5839 = vunpack.c.l.b16 %v5669
        %v5840 = vunpack.c.h.b16 %v5669
        %v5841 = vunpack.c.l.b16 %v5670
        %v5842 = vunpack.c.h.b16 %v5670
        %v5843 = vunpack.c.l.b16 %v5671
        %v5844 = vunpack.c.h.b16 %v5671
        %v5845 = vunpack.c.l.b16 %v5672
        %v5846 = vunpack.c.h.b16 %v5672
        %v5847 = vunpack.c.l.b16 %v5673
        %v5848 = vunpack.c.h.b16 %v5673
        %v5849 = vunpack.c.l.b16 %v5674
        %v5850 = vunpack.c.h.b16 %v5674
        %v5851 = vunpack.c.l.b16 %v5675
        %v5852 = vunpack.c.h.b16 %v5675
        %v5853 = vunpack.c.l.b16 %v5676
        %v5854 = vunpack.c.h.b16 %v5676
        %v5855 = vunpack.c.l.b16 %v5677
        %v5856 = vunpack.c.h.b16 %v5677
        %v5857 = vunpack.c.l.b16 %v5678
        %v5858 = vunpack.c.h.b16 %v5678
        %v5859 = vunpack.c.l.b16 %v5679
        %v5860 = vunpack.c.h.b16 %v5679
        %v5861 = vunpack.c.l.b16 %v5680
        %v5862 = vunpack.c.h.b16 %v5680
        %v5863 = vunpack.c.l.b16 %v5681
        %v5864 = vunpack.c.h.b16 %v5681
        %v5865 = vunpack.c.l.b16 %v5682
        %v5866 = vunpack.c.h.b16 %v5682
        %v5867 = vunpack.c.l.b16 %v5683
        %v5868 = vunpack.c.h.b16 %v5683
        %v5869 = vunpack.c.l.b16 %v5684
        %v5870 = vunpack.c.h.b16 %v5684
        %v5871 = vunpack.c.l.b16 %v5685
        %v5872 = vunpack.c.h.b16 %v5685
        %v5873 = vunpack.c.l.b16 %v5686
        %v5874 = vunpack.c.h.b16 %v5686
        %v5875 = vunpack.c.l.b16 %v5687
        %v5876 = vunpack.c.h.b16 %v5687
        %v5877 = vunpack.c.l.b16 %v5688
        %v5878 = vunpack.c.h.b16 %v5688
        %v5879 = vunpack.c.l.b16 %v5689
        %v5880 = vunpack.c.h.b16 %v5689
        %v5881 = vunpack.c.l.b16 %v5690
        %v5882 = vunpack.c.h.b16 %v5690
        %v5883 = vpack.c.b16 %v5757, %v5755
        %v5884 = vpack.c.b16 %v5758, %v5756
        %v5885 = vpack.c.b16 %v5761, %v5759
        %v5886 = vpack.c.b16 %v5762, %v5760
        %v5887 = vpack.c.b16 %v5765, %v5763
        %v5888 = vpack.c.b16 %v5766, %v5764
        %v5889 = vpack.c.b16 %v5769, %v5767
        %v5890 = vpack.c.b16 %v5770, %v5768
        %v5891 = vpack.c.b16 %v5773, %v5771
        %v5892 = vpack.c.b16 %v5774, %v5772
        %v5893 = vpack.c.b16 %v5777, %v5775
        %v5894 = vpack.c.b16 %v5778, %v5776
        %v5895 = vpack.c.b16 %v5781, %v5779
        %v5896 = vpack.c.b16 %v5782, %v5780
        %v5897 = vpack.c.b16 %v5785, %v5783
        %v5898 = vpack.c.b16 %v5786, %v5784
        %v5899 = vpack.c.b16 %v5789, %v5787
        %v5900 = vpack.c.b16 %v5790, %v5788
        %v5901 = vpack.c.b16 %v5793, %v5791
        %v5902 = vpack.c.b16 %v5794, %v5792
        %v5903 = vpack.c.b16 %v5797, %v5795
        %v5904 = vpack.c.b16 %v5798, %v5796
        %v5905 = vpack.c.b16 %v5801, %v5799
        %v5906 = vpack.c.b16 %v5802, %v5800
        %v5907 = vpack.c.b16 %v5805, %v5803
        %v5908 = vpack.c.b16 %v5806, %v5804
        %v5909 = vpack.c.b16 %v5809, %v5807
        %v5910 = vpack.c.b16 %v5810, %v5808
        %v5911 = vpack.c.b16 %v5813, %v5811
        %v5912 = vpack.c.b16 %v5814, %v5812
        %v5913 = vpack.c.b16 %v5817, %v5815
        %v5914 = vpack.c.b16 %v5818, %v5816
        %v5915 = vpack.c.b16 %v5821, %v5819
        %v5916 = vpack.c.b16 %v5822, %v5820
        %v5917 = vpack.c.b16 %v5825, %v5823
        %v5918 = vpack.c.b16 %v5826, %v5824
        %v5919 = vpack.c.b16 %v5829, %v5827
        %v5920 = vpack.c.b16 %v5830, %v5828
        %v5921 = vpack.c.b16 %v5833, %v5831
        %v5922 = vpack.c.b16 %v5834, %v5832
        %v5923 = vpack.c.b16 %v5837, %v5835
        %v5924 = vpack.c.b16 %v5838, %v5836
        %v5925 = vpack.c.b16 %v5841, %v5839
        %v5926 = vpack.c.b16 %v5842, %v5840
        %v5927 = vpack.c.b16 %v5845, %v5843
        %v5928 = vpack.c.b16 %v5846, %v5844
        %v5929 = vpack.c.b16 %v5849, %v5847
        %v5930 = vpack.c.b16 %v5850, %v5848
        %v5931 = vpack.c.b16 %v5853, %v5851
        %v5932 = vpack.c.b16 %v5854, %v5852
        %v5933 = vpack.c.b16 %v5857, %v5855
        %v5934 = vpack.c.b16 %v5858, %v5856
        %v5935 = vpack.c.b16 %v5861, %v5859
        %v5936 = vpack.c.b16 %v5862, %v5860
        %v5937 = vpack.c.b16 %v5865, %v5863
        %v5938 = vpack.c.b16 %v5866, %v5864
        %v5939 = vpack.c.b16 %v5869, %v5867
        %v5940 = vpack.c.b16 %v5870, %v5868
        %v5941 = vpack.c.b16 %v5873, %v5871
        %v5942 = vpack.c.b16 %v5874, %v5872
        %v5943 = vpack.c.b16 %v5877, %v5875
        %v5944 = vpack.c.b16 %v5878, %v5876
        %v5945 = vpack.c.b16 %v5881, %v5879
        %v5946 = vpack.c.b16 %v5882, %v5880
        %6011 = vmatprep.subr.bf16.mxu0 %v5884
        %6012 = vmatpush1.bf16.msra.mxu0 %v5883
        %6013 = vmatprep.subr.bf16.mxu0 %v5886
        %6014 = vmatpush1.bf16.msra.mxu0 %v5885
        %6015 = vmatprep.subr.bf16.mxu0 %v5888
        %6016 = vmatpush1.bf16.msra.mxu0 %v5887
        %6017 = vmatprep.subr.bf16.mxu0 %v5890
        %6018 = vmatpush1.bf16.msra.mxu0 %v5889
        %6019 = vmatprep.subr.bf16.mxu0 %v5892
        %6020 = vmatpush1.bf16.msra.mxu0 %v5891
        %6021 = vmatprep.subr.bf16.mxu0 %v5894
        %6022 = vmatpush1.bf16.msra.mxu0 %v5893
        %6023 = vmatprep.subr.bf16.mxu0 %v5896
        %6024 = vmatpush1.bf16.msra.mxu0 %v5895
        %6025 = vmatprep.subr.bf16.mxu0 %v5898
        %6026 = vmatpush1.bf16.msra.mxu0 %v5897
        %6027 = vmatprep.subr.bf16.mxu0 %v5900
        %6028 = vmatpush1.bf16.msra.mxu0 %v5899
        %6029 = vmatprep.subr.bf16.mxu0 %v5902
        %6030 = vmatpush1.bf16.msra.mxu0 %v5901
        %6031 = vmatprep.subr.bf16.mxu0 %v5904
        %6032 = vmatpush1.bf16.msra.mxu0 %v5903
        %6033 = vmatprep.subr.bf16.mxu0 %v5906
        %6034 = vmatpush1.bf16.msra.mxu0 %v5905
        %6035 = vmatprep.subr.bf16.mxu0 %v5908
        %6036 = vmatpush1.bf16.msra.mxu0 %v5907
        %6037 = vmatprep.subr.bf16.mxu0 %v5910
        %6038 = vmatpush1.bf16.msra.mxu0 %v5909
        %6039 = vmatprep.subr.bf16.mxu0 %v5912
        %6040 = vmatpush1.bf16.msra.mxu0 %v5911
        %6041 = vmatprep.subr.bf16.mxu0 %v5914
        %6042 = vmatpush1.bf16.msra.mxu0 %v5913
        %6043 = vmatprep.mubr.bf16.mxu0 %v5624
        %6044 = vmatmul.mubr.bf16.gmra.mrb[0].mxu0 %v5623
        %v6045 = vpop.f32.mrb[0].mxu0
        %v6046 = vadd.f32 0.0, %v6045
        %v6047 = vpop.f32.mrb[0].mxu0
        %v6048 = vadd.f32 0.0, %v6047
        %v6049 = vpop.f32.mrb[0].mxu0
        %v6050 = vadd.f32 0.0, %v6049
        %v6051 = vpop.f32.mrb[0].mxu0
        %v6052 = vadd.f32 0.0, %v6051
        %6053 = vdwg.mxu0
        %6054 = vmatprep.subr.bf16.mxu0 %v5916
        %6055 = vmatpush1.bf16.msra.mxu0 %v5915
        %6056 = vmatprep.subr.bf16.mxu0 %v5918
        %6057 = vmatpush1.bf16.msra.mxu0 %v5917
        %6058 = vmatprep.subr.bf16.mxu0 %v5920
        %6059 = vmatpush1.bf16.msra.mxu0 %v5919
        %6060 = vmatprep.subr.bf16.mxu0 %v5922
        %6061 = vmatpush1.bf16.msra.mxu0 %v5921
        %6062 = vmatprep.subr.bf16.mxu0 %v5924
        %6063 = vmatpush1.bf16.msra.mxu0 %v5923
        %6064 = vmatprep.subr.bf16.mxu0 %v5926
        %6065 = vmatpush1.bf16.msra.mxu0 %v5925
        %6066 = vmatprep.subr.bf16.mxu0 %v5928
        %6067 = vmatpush1.bf16.msra.mxu0 %v5927
        %6068 = vmatprep.subr.bf16.mxu0 %v5930
        %6069 = vmatpush1.bf16.msra.mxu0 %v5929
        %6070 = vmatprep.subr.bf16.mxu0 %v5932
        %6071 = vmatpush1.bf16.msra.mxu0 %v5931
        %6072 = vmatprep.subr.bf16.mxu0 %v5934
        %6073 = vmatpush1.bf16.msra.mxu0 %v5933
        %6074 = vmatprep.subr.bf16.mxu0 %v5936
        %6075 = vmatpush1.bf16.msra.mxu0 %v5935
        %6076 = vmatprep.subr.bf16.mxu0 %v5938
        %6077 = vmatpush1.bf16.msra.mxu0 %v5937
        %6078 = vmatprep.subr.bf16.mxu0 %v5940
        %6079 = vmatpush1.bf16.msra.mxu0 %v5939
        %6080 = vmatprep.subr.bf16.mxu0 %v5942
        %6081 = vmatpush1.bf16.msra.mxu0 %v5941
        %6082 = vmatprep.subr.bf16.mxu0 %v5944
        %6083 = vmatpush1.bf16.msra.mxu0 %v5943
        %6084 = vmatprep.subr.bf16.mxu0 %v5946
        %6085 = vmatpush1.bf16.msra.mxu0 %v5945
        %6086 = vmatprep.mubr.bf16.mxu0 %v5626
        %6087 = vmatmul.mubr.bf16.gmra.mrb[0].mxu0 %v5625
        %v6088 = vpop.f32.mrb[0].mxu0
        %v6089 = vadd.f32 %v6046, %v6088
        %v6090 = vpop.f32.mrb[0].mxu0
        %v6091 = vadd.f32 %v6048, %v6090
        %v6092 = vpop.f32.mrb[0].mxu0
        %v6093 = vadd.f32 %v6050, %v6092
        %v6094 = vpop.f32.mrb[0].mxu0
        %v6095 = vadd.f32 %v6052, %v6094
        %6096 = vdwg.mxu0
        %v6097 = vadd.f32 %v5115, %v6089
        %v6098 = vadd.f32 %v5117, %v6091
        %v6099 = vadd.f32 %v5119, %v6093
        %v6100 = vadd.f32 %v5121, %v6095
        %v6101 = vld [vmem:[%s803 + $0x30] sm:$0xff]
        %v6102 = vld [vmem:[%s803 + $0x38] sm:$0xff]
        %v6103 = vld [vmem:[%s803 + $0x70] sm:$0xff]
        %v6104 = vld [vmem:[%s803 + $0x78] sm:$0xff]
        %v6105 = vld [vmem:[%s803 + $0xb0] sm:$0xff]
        %v6106 = vld [vmem:[%s803 + $0xb8] sm:$0xff]
        %v6107 = vld [vmem:[%s803 + $0xf0] sm:$0xff]
        %v6108 = vld [vmem:[%s803 + $0xf8] sm:$0xff]
        %v6109 = vld [vmem:[%s803 + $0x130] sm:$0xff]
        %v6110 = vld [vmem:[%s803 + $0x138] sm:$0xff]
        %v6111 = vld [vmem:[%s803 + $0x170] sm:$0xff]
        %v6112 = vld [vmem:[%s803 + $0x178] sm:$0xff]
        %v6113 = vld [vmem:[%s803 + $0x1b0] sm:$0xff]
        %v6114 = vld [vmem:[%s803 + $0x1b8] sm:$0xff]
        %v6115 = vld [vmem:[%s803 + $0x1f0] sm:$0xff]
        %v6116 = vld [vmem:[%s803 + $0x1f8] sm:$0xff]
        %v6117 = vld [vmem:[%s803 + $0x230] sm:$0xff]
        %v6118 = vld [vmem:[%s803 + $0x238] sm:$0xff]
        %v6119 = vld [vmem:[%s803 + $0x270] sm:$0xff]
        %v6120 = vld [vmem:[%s803 + $0x278] sm:$0xff]
        %v6121 = vld [vmem:[%s803 + $0x2b0] sm:$0xff]
        %v6122 = vld [vmem:[%s803 + $0x2b8] sm:$0xff]
        %v6123 = vld [vmem:[%s803 + $0x2f0] sm:$0xff]
        %v6124 = vld [vmem:[%s803 + $0x2f8] sm:$0xff]
        %v6125 = vld [vmem:[%s803 + $0x330] sm:$0xff]
        %v6126 = vld [vmem:[%s803 + $0x338] sm:$0xff]
        %v6127 = vld [vmem:[%s803 + $0x370] sm:$0xff]
        %v6128 = vld [vmem:[%s803 + $0x378] sm:$0xff]
        %v6129 = vld [vmem:[%s803 + $0x3b0] sm:$0xff]
        %v6130 = vld [vmem:[%s803 + $0x3b8] sm:$0xff]
        %v6131 = vld [vmem:[%s803 + $0x3f0] sm:$0xff]
        %v6132 = vld [vmem:[%s803 + $0x3f8] sm:$0xff]
        %v6133 = vld [vmem:[%s803 + $0x430] sm:$0xff]
        %v6134 = vld [vmem:[%s803 + $0x438] sm:$0xff]
        %v6135 = vld [vmem:[%s803 + $0x470] sm:$0xff]
        %v6136 = vld [vmem:[%s803 + $0x478] sm:$0xff]
        %v6137 = vld [vmem:[%s803 + $0x4b0] sm:$0xff]
        %v6138 = vld [vmem:[%s803 + $0x4b8] sm:$0xff]
        %v6139 = vld [vmem:[%s803 + $0x4f0] sm:$0xff]
        %v6140 = vld [vmem:[%s803 + $0x4f8] sm:$0xff]
        %v6141 = vld [vmem:[%s803 + $0x530] sm:$0xff]
        %v6142 = vld [vmem:[%s803 + $0x538] sm:$0xff]
        %v6143 = vld [vmem:[%s803 + $0x570] sm:$0xff]
        %v6144 = vld [vmem:[%s803 + $0x578] sm:$0xff]
        %v6145 = vld [vmem:[%s803 + $0x5b0] sm:$0xff]
        %v6146 = vld [vmem:[%s803 + $0x5b8] sm:$0xff]
        %v6147 = vld [vmem:[%s803 + $0x5f0] sm:$0xff]
        %v6148 = vld [vmem:[%s803 + $0x5f8] sm:$0xff]
        %v6149 = vld [vmem:[%s803 + $0x630] sm:$0xff]
        %v6150 = vld [vmem:[%s803 + $0x638] sm:$0xff]
        %v6151 = vld [vmem:[%s803 + $0x670] sm:$0xff]
        %v6152 = vld [vmem:[%s803 + $0x678] sm:$0xff]
        %v6153 = vld [vmem:[%s803 + $0x6b0] sm:$0xff]
        %v6154 = vld [vmem:[%s803 + $0x6b8] sm:$0xff]
        %v6155 = vld [vmem:[%s803 + $0x6f0] sm:$0xff]
        %v6156 = vld [vmem:[%s803 + $0x6f8] sm:$0xff]
        %v6157 = vld [vmem:[%s803 + $0x730] sm:$0xff]
        %v6158 = vld [vmem:[%s803 + $0x738] sm:$0xff]
        %v6159 = vld [vmem:[%s803 + $0x770] sm:$0xff]
        %v6160 = vld [vmem:[%s803 + $0x778] sm:$0xff]
        %v6161 = vld [vmem:[%s803 + $0x7b0] sm:$0xff]
        %v6162 = vld [vmem:[%s803 + $0x7b8] sm:$0xff]
        %v6163 = vld [vmem:[%s803 + $0x7f0] sm:$0xff]
        %v6164 = vld [vmem:[%s803 + $0x7f8] sm:$0xff]
        %v6165 = vld [vmem:[%s812 + $0xc] sm:$0xf]
        %v6167 = vlaneseq
        %v6168 = vshrl.u32 %v6167, 7
        %v6169 = vsub.s32 0, %v6168
        %v6170 = vrot.slane %v6165, %v6169
        %v6171 = vlaneseq
        %v6172 = vshrl.u32 %v6171, 7
        %v6173 = vsub.s32 1, %v6172
        %v6174 = vrot.slane %v6165, %v6173
        %v6175 = vlaneseq
        %v6176 = vshrl.u32 %v6175, 7
        %v6177 = vsub.s32 2, %v6176
        %v6178 = vrot.slane %v6165, %v6177
        %v6179 = vlaneseq
        %v6180 = vshrl.u32 %v6179, 7
        %v6181 = vsub.s32 3, %v6180
        %v6182 = vrot.slane %v6165, %v6181
        %v6251 = vunpack.c.l.b16 %v6101
        %v6252 = vunpack.c.h.b16 %v6101
        %v6253 = vunpack.c.l.b16 %v6102
        %v6254 = vunpack.c.h.b16 %v6102
        %v6255 = vunpack.c.l.b16 %v6103
        %v6256 = vunpack.c.h.b16 %v6103
        %v6257 = vunpack.c.l.b16 %v6104
        %v6258 = vunpack.c.h.b16 %v6104
        %v6259 = vunpack.c.l.b16 %v6105
        %v6260 = vunpack.c.h.b16 %v6105
        %v6261 = vunpack.c.l.b16 %v6106
        %v6262 = vunpack.c.h.b16 %v6106
        %v6263 = vunpack.c.l.b16 %v6107
        %v6264 = vunpack.c.h.b16 %v6107
        %v6265 = vunpack.c.l.b16 %v6108
        %v6266 = vunpack.c.h.b16 %v6108
        %v6267 = vunpack.c.l.b16 %v6109
        %v6268 = vunpack.c.h.b16 %v6109
        %v6269 = vunpack.c.l.b16 %v6110
        %v6270 = vunpack.c.h.b16 %v6110
        %v6271 = vunpack.c.l.b16 %v6111
        %v6272 = vunpack.c.h.b16 %v6111
        %v6273 = vunpack.c.l.b16 %v6112
        %v6274 = vunpack.c.h.b16 %v6112
        %v6275 = vunpack.c.l.b16 %v6113
        %v6276 = vunpack.c.h.b16 %v6113
        %v6277 = vunpack.c.l.b16 %v6114
        %v6278 = vunpack.c.h.b16 %v6114
        %v6279 = vunpack.c.l.b16 %v6115
        %v6280 = vunpack.c.h.b16 %v6115
        %v6281 = vunpack.c.l.b16 %v6116
        %v6282 = vunpack.c.h.b16 %v6116
        %v6283 = vunpack.c.l.b16 %v6117
        %v6284 = vunpack.c.h.b16 %v6117
        %v6285 = vunpack.c.l.b16 %v6118
        %v6286 = vunpack.c.h.b16 %v6118
        %v6287 = vunpack.c.l.b16 %v6119
        %v6288 = vunpack.c.h.b16 %v6119
        %v6289 = vunpack.c.l.b16 %v6120
        %v6290 = vunpack.c.h.b16 %v6120
        %v6291 = vunpack.c.l.b16 %v6121
        %v6292 = vunpack.c.h.b16 %v6121
        %v6293 = vunpack.c.l.b16 %v6122
        %v6294 = vunpack.c.h.b16 %v6122
        %v6295 = vunpack.c.l.b16 %v6123
        %v6296 = vunpack.c.h.b16 %v6123
        %v6297 = vunpack.c.l.b16 %v6124
        %v6298 = vunpack.c.h.b16 %v6124
        %v6299 = vunpack.c.l.b16 %v6125
        %v6300 = vunpack.c.h.b16 %v6125
        %v6301 = vunpack.c.l.b16 %v6126
        %v6302 = vunpack.c.h.b16 %v6126
        %v6303 = vunpack.c.l.b16 %v6127
        %v6304 = vunpack.c.h.b16 %v6127
        %v6305 = vunpack.c.l.b16 %v6128
        %v6306 = vunpack.c.h.b16 %v6128
        %v6307 = vunpack.c.l.b16 %v6129
        %v6308 = vunpack.c.h.b16 %v6129
        %v6309 = vunpack.c.l.b16 %v6130
        %v6310 = vunpack.c.h.b16 %v6130
        %v6311 = vunpack.c.l.b16 %v6131
        %v6312 = vunpack.c.h.b16 %v6131
        %v6313 = vunpack.c.l.b16 %v6132
        %v6314 = vunpack.c.h.b16 %v6132
        %v6315 = vunpack.c.l.b16 %v6133
        %v6316 = vunpack.c.h.b16 %v6133
        %v6317 = vunpack.c.l.b16 %v6134
        %v6318 = vunpack.c.h.b16 %v6134
        %v6319 = vunpack.c.l.b16 %v6135
        %v6320 = vunpack.c.h.b16 %v6135
        %v6321 = vunpack.c.l.b16 %v6136
        %v6322 = vunpack.c.h.b16 %v6136
        %v6323 = vunpack.c.l.b16 %v6137
        %v6324 = vunpack.c.h.b16 %v6137
        %v6325 = vunpack.c.l.b16 %v6138
        %v6326 = vunpack.c.h.b16 %v6138
        %v6327 = vunpack.c.l.b16 %v6139
        %v6328 = vunpack.c.h.b16 %v6139
        %v6329 = vunpack.c.l.b16 %v6140
        %v6330 = vunpack.c.h.b16 %v6140
        %v6331 = vunpack.c.l.b16 %v6141
        %v6332 = vunpack.c.h.b16 %v6141
        %v6333 = vunpack.c.l.b16 %v6142
        %v6334 = vunpack.c.h.b16 %v6142
        %v6335 = vunpack.c.l.b16 %v6143
        %v6336 = vunpack.c.h.b16 %v6143
        %v6337 = vunpack.c.l.b16 %v6144
        %v6338 = vunpack.c.h.b16 %v6144
        %v6339 = vunpack.c.l.b16 %v6145
        %v6340 = vunpack.c.h.b16 %v6145
        %v6341 = vunpack.c.l.b16 %v6146
        %v6342 = vunpack.c.h.b16 %v6146
        %v6343 = vunpack.c.l.b16 %v6147
        %v6344 = vunpack.c.h.b16 %v6147
        %v6345 = vunpack.c.l.b16 %v6148
        %v6346 = vunpack.c.h.b16 %v6148
        %v6347 = vunpack.c.l.b16 %v6149
        %v6348 = vunpack.c.h.b16 %v6149
        %v6349 = vunpack.c.l.b16 %v6150
        %v6350 = vunpack.c.h.b16 %v6150
        %v6351 = vunpack.c.l.b16 %v6151
        %v6352 = vunpack.c.h.b16 %v6151
        %v6353 = vunpack.c.l.b16 %v6152
        %v6354 = vunpack.c.h.b16 %v6152
        %v6355 = vunpack.c.l.b16 %v6153
        %v6356 = vunpack.c.h.b16 %v6153
        %v6357 = vunpack.c.l.b16 %v6154
        %v6358 = vunpack.c.h.b16 %v6154
        %v6359 = vunpack.c.l.b16 %v6155
        %v6360 = vunpack.c.h.b16 %v6155
        %v6361 = vunpack.c.l.b16 %v6156
        %v6362 = vunpack.c.h.b16 %v6156
        %v6363 = vunpack.c.l.b16 %v6157
        %v6364 = vunpack.c.h.b16 %v6157
        %v6365 = vunpack.c.l.b16 %v6158
        %v6366 = vunpack.c.h.b16 %v6158
        %v6367 = vunpack.c.l.b16 %v6159
        %v6368 = vunpack.c.h.b16 %v6159
        %v6369 = vunpack.c.l.b16 %v6160
        %v6370 = vunpack.c.h.b16 %v6160
        %v6371 = vunpack.c.l.b16 %v6161
        %v6372 = vunpack.c.h.b16 %v6161
        %v6373 = vunpack.c.l.b16 %v6162
        %v6374 = vunpack.c.h.b16 %v6162
        %v6375 = vunpack.c.l.b16 %v6163
        %v6376 = vunpack.c.h.b16 %v6163
        %v6377 = vunpack.c.l.b16 %v6164
        %v6378 = vunpack.c.h.b16 %v6164
        %v6379 = vpack.c.b16 %v6255, %v6251
        %v6380 = vpack.c.b16 %v6256, %v6252
        %v6381 = vpack.c.b16 %v6257, %v6253
        %v6382 = vpack.c.b16 %v6258, %v6254
        %v6383 = vpack.c.b16 %v6263, %v6259
        %v6384 = vpack.c.b16 %v6264, %v6260
        %v6385 = vpack.c.b16 %v6265, %v6261
        %v6386 = vpack.c.b16 %v6266, %v6262
        %v6387 = vpack.c.b16 %v6271, %v6267
        %v6388 = vpack.c.b16 %v6272, %v6268
        %v6389 = vpack.c.b16 %v6273, %v6269
        %v6390 = vpack.c.b16 %v6274, %v6270
        %v6391 = vpack.c.b16 %v6279, %v6275
        %v6392 = vpack.c.b16 %v6280, %v6276
        %v6393 = vpack.c.b16 %v6281, %v6277
        %v6394 = vpack.c.b16 %v6282, %v6278
        %v6395 = vpack.c.b16 %v6287, %v6283
        %v6396 = vpack.c.b16 %v6288, %v6284
        %v6397 = vpack.c.b16 %v6289, %v6285
        %v6398 = vpack.c.b16 %v6290, %v6286
        %v6399 = vpack.c.b16 %v6295, %v6291
        %v6400 = vpack.c.b16 %v6296, %v6292
        %v6401 = vpack.c.b16 %v6297, %v6293
        %v6402 = vpack.c.b16 %v6298, %v6294
        %v6403 = vpack.c.b16 %v6303, %v6299
        %v6404 = vpack.c.b16 %v6304, %v6300
        %v6405 = vpack.c.b16 %v6305, %v6301
        %v6406 = vpack.c.b16 %v6306, %v6302
        %v6407 = vpack.c.b16 %v6311, %v6307
        %v6408 = vpack.c.b16 %v6312, %v6308
        %v6409 = vpack.c.b16 %v6313, %v6309
        %v6410 = vpack.c.b16 %v6314, %v6310
        %v6411 = vpack.c.b16 %v6319, %v6315
        %v6412 = vpack.c.b16 %v6320, %v6316
        %v6413 = vpack.c.b16 %v6321, %v6317
        %v6414 = vpack.c.b16 %v6322, %v6318
        %v6415 = vpack.c.b16 %v6327, %v6323
        %v6416 = vpack.c.b16 %v6328, %v6324
        %v6417 = vpack.c.b16 %v6329, %v6325
        %v6418 = vpack.c.b16 %v6330, %v6326
        %v6419 = vpack.c.b16 %v6335, %v6331
        %v6420 = vpack.c.b16 %v6336, %v6332
        %v6421 = vpack.c.b16 %v6337, %v6333
        %v6422 = vpack.c.b16 %v6338, %v6334
        %v6423 = vpack.c.b16 %v6343, %v6339
        %v6424 = vpack.c.b16 %v6344, %v6340
        %v6425 = vpack.c.b16 %v6345, %v6341
        %v6426 = vpack.c.b16 %v6346, %v6342
        %v6427 = vpack.c.b16 %v6351, %v6347
        %v6428 = vpack.c.b16 %v6352, %v6348
        %v6429 = vpack.c.b16 %v6353, %v6349
        %v6430 = vpack.c.b16 %v6354, %v6350
        %v6431 = vpack.c.b16 %v6359, %v6355
        %v6432 = vpack.c.b16 %v6360, %v6356
        %v6433 = vpack.c.b16 %v6361, %v6357
        %v6434 = vpack.c.b16 %v6362, %v6358
        %v6435 = vpack.c.b16 %v6367, %v6363
        %v6436 = vpack.c.b16 %v6368, %v6364
        %v6437 = vpack.c.b16 %v6369, %v6365
        %v6438 = vpack.c.b16 %v6370, %v6366
        %v6439 = vpack.c.b16 %v6375, %v6371
        %v6440 = vpack.c.b16 %v6376, %v6372
        %v6441 = vpack.c.b16 %v6377, %v6373
        %v6442 = vpack.c.b16 %v6378, %v6374
        %6507 = vmatprep.subr.bf16.mxu0 %v6380
        %6508 = vmatpush1.bf16.msra.mxu0 %v6379
        %6509 = vmatprep.subr.bf16.mxu0 %v6384
        %6510 = vmatpush1.bf16.msra.mxu0 %v6383
        %6511 = vmatprep.subr.bf16.mxu0 %v6388
        %6512 = vmatpush1.bf16.msra.mxu0 %v6387
        %6513 = vmatprep.subr.bf16.mxu0 %v6392
        %6514 = vmatpush1.bf16.msra.mxu0 %v6391
        %6515 = vmatprep.subr.bf16.mxu0 %v6396
        %6516 = vmatpush1.bf16.msra.mxu0 %v6395
        %6517 = vmatprep.subr.bf16.mxu0 %v6400
        %6518 = vmatpush1.bf16.msra.mxu0 %v6399
        %6519 = vmatprep.subr.bf16.mxu0 %v6404
        %6520 = vmatpush1.bf16.msra.mxu0 %v6403
        %6521 = vmatprep.subr.bf16.mxu0 %v6408
        %6522 = vmatpush1.bf16.msra.mxu0 %v6407
        %6523 = vmatprep.subr.bf16.mxu0 %v6412
        %6524 = vmatpush1.bf16.msra.mxu0 %v6411
        %6525 = vmatprep.subr.bf16.mxu0 %v6416
        %6526 = vmatpush1.bf16.msra.mxu0 %v6415
        %6527 = vmatprep.subr.bf16.mxu0 %v6420
        %6528 = vmatpush1.bf16.msra.mxu0 %v6419
        %6529 = vmatprep.subr.bf16.mxu0 %v6424
        %6530 = vmatpush1.bf16.msra.mxu0 %v6423
        %6531 = vmatprep.subr.bf16.mxu0 %v6428
        %6532 = vmatpush1.bf16.msra.mxu0 %v6427
        %6533 = vmatprep.subr.bf16.mxu0 %v6432
        %6534 = vmatpush1.bf16.msra.mxu0 %v6431
        %6535 = vmatprep.subr.bf16.mxu0 %v6436
        %6536 = vmatpush1.bf16.msra.mxu0 %v6435
        %6537 = vmatprep.subr.bf16.mxu0 %v6440
        %6538 = vmatpush1.bf16.msra.mxu0 %v6439
        %6539 = vmatprep.mubr.bf16.mxu0 %v3174
        %6540 = vmatmul.mubr.bf16.gmra.mrb[0].mxu0 %v3173
        %v6541 = vpop.f32.mrb[0].mxu0
        %v6542 = vadd.f32 %v6170, %v6541
        %v6543 = vpop.f32.mrb[0].mxu0
        %v6544 = vadd.f32 %v6174, %v6543
        %v6545 = vpop.f32.mrb[0].mxu0
        %v6546 = vadd.f32 %v6170, %v6545
        %v6547 = vpop.f32.mrb[0].mxu0
        %v6548 = vadd.f32 %v6174, %v6547
        %6549 = vdwg.mxu0
        %6550 = vmatprep.subr.bf16.mxu0 %v6382
        %6551 = vmatpush1.bf16.msra.mxu0 %v6381
        %6552 = vmatprep.subr.bf16.mxu0 %v6386
        %6553 = vmatpush1.bf16.msra.mxu0 %v6385
        %6554 = vmatprep.subr.bf16.mxu0 %v6390
        %6555 = vmatpush1.bf16.msra.mxu0 %v6389
        %6556 = vmatprep.subr.bf16.mxu0 %v6394
        %6557 = vmatpush1.bf16.msra.mxu0 %v6393
        %6558 = vmatprep.subr.bf16.mxu0 %v6398
        %6559 = vmatpush1.bf16.msra.mxu0 %v6397
        %6560 = vmatprep.subr.bf16.mxu0 %v6402
        %6561 = vmatpush1.bf16.msra.mxu0 %v6401
        %6562 = vmatprep.subr.bf16.mxu0 %v6406
        %6563 = vmatpush1.bf16.msra.mxu0 %v6405
        %6564 = vmatprep.subr.bf16.mxu0 %v6410
        %6565 = vmatpush1.bf16.msra.mxu0 %v6409
        %6566 = vmatprep.subr.bf16.mxu0 %v6414
        %6567 = vmatpush1.bf16.msra.mxu0 %v6413
        %6568 = vmatprep.subr.bf16.mxu0 %v6418
        %6569 = vmatpush1.bf16.msra.mxu0 %v6417
        %6570 = vmatprep.subr.bf16.mxu0 %v6422
        %6571 = vmatpush1.bf16.msra.mxu0 %v6421
        %6572 = vmatprep.subr.bf16.mxu0 %v6426
        %6573 = vmatpush1.bf16.msra.mxu0 %v6425
        %6574 = vmatprep.subr.bf16.mxu0 %v6430
        %6575 = vmatpush1.bf16.msra.mxu0 %v6429
        %6576 = vmatprep.subr.bf16.mxu0 %v6434
        %6577 = vmatpush1.bf16.msra.mxu0 %v6433
        %6578 = vmatprep.subr.bf16.mxu0 %v6438
        %6579 = vmatpush1.bf16.msra.mxu0 %v6437
        %6580 = vmatprep.subr.bf16.mxu0 %v6442
        %6581 = vmatpush1.bf16.msra.mxu0 %v6441
        %6582 = vmatprep.mubr.bf16.mxu0 %v3174
        %6583 = vmatmul.mubr.bf16.gmra.mrb[0].mxu0 %v3173
        %v6584 = vpop.f32.mrb[0].mxu0
        %v6585 = vadd.f32 %v6178, %v6584
        %v6586 = vpop.f32.mrb[0].mxu0
        %v6587 = vadd.f32 %v6182, %v6586
        %v6588 = vpop.f32.mrb[0].mxu0
        %v6589 = vadd.f32 %v6178, %v6588
        %v6590 = vpop.f32.mrb[0].mxu0
        %v6591 = vadd.f32 %v6182, %v6590
        %6592 = vdwg.mxu0
        %v6593 = vmax.f32 %v6542, 0.0
        %v6594 = vmax.f32 %v6544, 0.0
        %v6595 = vmax.f32 %v6585, 0.0
        %v6596 = vmax.f32 %v6587, 0.0
        %v6597 = vmax.f32 %v6546, 0.0
        %v6598 = vmax.f32 %v6548, 0.0
        %v6599 = vmax.f32 %v6589, 0.0
        %v6600 = vmax.f32 %v6591, 0.0
        %v6601 = vpack.c.bf16 %v6597, %v6593
        %v6602 = vpack.c.bf16 %v6598, %v6594
        %v6603 = vpack.c.bf16 %v6599, %v6595
        %v6604 = vpack.c.bf16 %v6600, %v6596
        %v6605 = vld [vmem:[%s821 + $0x600] sm:$0xff]
        %v6606 = vld [vmem:[%s821 + $0x608] sm:$0xff]
        %v6607 = vld [vmem:[%s821 + $0x610] sm:$0xff]
        %v6608 = vld [vmem:[%s821 + $0x618] sm:$0xff]
        %v6609 = vld [vmem:[%s821 + $0x620] sm:$0xff]
        %v6610 = vld [vmem:[%s821 + $0x628] sm:$0xff]
        %v6611 = vld [vmem:[%s821 + $0x630] sm:$0xff]
        %v6612 = vld [vmem:[%s821 + $0x638] sm:$0xff]
        %v6613 = vld [vmem:[%s821 + $0x640] sm:$0xff]
        %v6614 = vld [vmem:[%s821 + $0x648] sm:$0xff]
        %v6615 = vld [vmem:[%s821 + $0x650] sm:$0xff]
        %v6616 = vld [vmem:[%s821 + $0x658] sm:$0xff]
        %v6617 = vld [vmem:[%s821 + $0x660] sm:$0xff]
        %v6618 = vld [vmem:[%s821 + $0x668] sm:$0xff]
        %v6619 = vld [vmem:[%s821 + $0x670] sm:$0xff]
        %v6620 = vld [vmem:[%s821 + $0x678] sm:$0xff]
        %v6621 = vld [vmem:[%s821 + $0x680] sm:$0xff]
        %v6622 = vld [vmem:[%s821 + $0x688] sm:$0xff]
        %v6623 = vld [vmem:[%s821 + $0x690] sm:$0xff]
        %v6624 = vld [vmem:[%s821 + $0x698] sm:$0xff]
        %v6625 = vld [vmem:[%s821 + $0x6a0] sm:$0xff]
        %v6626 = vld [vmem:[%s821 + $0x6a8] sm:$0xff]
        %v6627 = vld [vmem:[%s821 + $0x6b0] sm:$0xff]
        %v6628 = vld [vmem:[%s821 + $0x6b8] sm:$0xff]
        %v6629 = vld [vmem:[%s821 + $0x6c0] sm:$0xff]
        %v6630 = vld [vmem:[%s821 + $0x6c8] sm:$0xff]
        %v6631 = vld [vmem:[%s821 + $0x6d0] sm:$0xff]
        %v6632 = vld [vmem:[%s821 + $0x6d8] sm:$0xff]
        %v6633 = vld [vmem:[%s821 + $0x6e0] sm:$0xff]
        %v6634 = vld [vmem:[%s821 + $0x6e8] sm:$0xff]
        %v6635 = vld [vmem:[%s821 + $0x6f0] sm:$0xff]
        %v6636 = vld [vmem:[%s821 + $0x6f8] sm:$0xff]
        %v6637 = vld [vmem:[%s821 + $0x700] sm:$0xff]
        %v6638 = vld [vmem:[%s821 + $0x708] sm:$0xff]
        %v6639 = vld [vmem:[%s821 + $0x710] sm:$0xff]
        %v6640 = vld [vmem:[%s821 + $0x718] sm:$0xff]
        %v6641 = vld [vmem:[%s821 + $0x720] sm:$0xff]
        %v6642 = vld [vmem:[%s821 + $0x728] sm:$0xff]
        %v6643 = vld [vmem:[%s821 + $0x730] sm:$0xff]
        %v6644 = vld [vmem:[%s821 + $0x738] sm:$0xff]
        %v6645 = vld [vmem:[%s821 + $0x740] sm:$0xff]
        %v6646 = vld [vmem:[%s821 + $0x748] sm:$0xff]
        %v6647 = vld [vmem:[%s821 + $0x750] sm:$0xff]
        %v6648 = vld [vmem:[%s821 + $0x758] sm:$0xff]
        %v6649 = vld [vmem:[%s821 + $0x760] sm:$0xff]
        %v6650 = vld [vmem:[%s821 + $0x768] sm:$0xff]
        %v6651 = vld [vmem:[%s821 + $0x770] sm:$0xff]
        %v6652 = vld [vmem:[%s821 + $0x778] sm:$0xff]
        %v6653 = vld [vmem:[%s821 + $0x780] sm:$0xff]
        %v6654 = vld [vmem:[%s821 + $0x788] sm:$0xff]
        %v6655 = vld [vmem:[%s821 + $0x790] sm:$0xff]
        %v6656 = vld [vmem:[%s821 + $0x798] sm:$0xff]
        %v6657 = vld [vmem:[%s821 + $0x7a0] sm:$0xff]
        %v6658 = vld [vmem:[%s821 + $0x7a8] sm:$0xff]
        %v6659 = vld [vmem:[%s821 + $0x7b0] sm:$0xff]
        %v6660 = vld [vmem:[%s821 + $0x7b8] sm:$0xff]
        %v6661 = vld [vmem:[%s821 + $0x7c0] sm:$0xff]
        %v6662 = vld [vmem:[%s821 + $0x7c8] sm:$0xff]
        %v6663 = vld [vmem:[%s821 + $0x7d0] sm:$0xff]
        %v6664 = vld [vmem:[%s821 + $0x7d8] sm:$0xff]
        %v6665 = vld [vmem:[%s821 + $0x7e0] sm:$0xff]
        %v6666 = vld [vmem:[%s821 + $0x7e8] sm:$0xff]
        %v6667 = vld [vmem:[%s821 + $0x7f0] sm:$0xff]
        %v6668 = vld [vmem:[%s821 + $0x7f8] sm:$0xff]
        %v6733 = vunpack.c.l.b16 %v6605
        %v6734 = vunpack.c.h.b16 %v6605
        %v6735 = vunpack.c.l.b16 %v6606
        %v6736 = vunpack.c.h.b16 %v6606
        %v6737 = vunpack.c.l.b16 %v6607
        %v6738 = vunpack.c.h.b16 %v6607
        %v6739 = vunpack.c.l.b16 %v6608
        %v6740 = vunpack.c.h.b16 %v6608
        %v6741 = vunpack.c.l.b16 %v6609
        %v6742 = vunpack.c.h.b16 %v6609
        %v6743 = vunpack.c.l.b16 %v6610
        %v6744 = vunpack.c.h.b16 %v6610
        %v6745 = vunpack.c.l.b16 %v6611
        %v6746 = vunpack.c.h.b16 %v6611
        %v6747 = vunpack.c.l.b16 %v6612
        %v6748 = vunpack.c.h.b16 %v6612
        %v6749 = vunpack.c.l.b16 %v6613
        %v6750 = vunpack.c.h.b16 %v6613
        %v6751 = vunpack.c.l.b16 %v6614
        %v6752 = vunpack.c.h.b16 %v6614
        %v6753 = vunpack.c.l.b16 %v6615
        %v6754 = vunpack.c.h.b16 %v6615
        %v6755 = vunpack.c.l.b16 %v6616
        %v6756 = vunpack.c.h.b16 %v6616
        %v6757 = vunpack.c.l.b16 %v6617
        %v6758 = vunpack.c.h.b16 %v6617
        %v6759 = vunpack.c.l.b16 %v6618
        %v6760 = vunpack.c.h.b16 %v6618
        %v6761 = vunpack.c.l.b16 %v6619
        %v6762 = vunpack.c.h.b16 %v6619
        %v6763 = vunpack.c.l.b16 %v6620
        %v6764 = vunpack.c.h.b16 %v6620
        %v6765 = vunpack.c.l.b16 %v6621
        %v6766 = vunpack.c.h.b16 %v6621
        %v6767 = vunpack.c.l.b16 %v6622
        %v6768 = vunpack.c.h.b16 %v6622
        %v6769 = vunpack.c.l.b16 %v6623
        %v6770 = vunpack.c.h.b16 %v6623
        %v6771 = vunpack.c.l.b16 %v6624
        %v6772 = vunpack.c.h.b16 %v6624
        %v6773 = vunpack.c.l.b16 %v6625
        %v6774 = vunpack.c.h.b16 %v6625
        %v6775 = vunpack.c.l.b16 %v6626
        %v6776 = vunpack.c.h.b16 %v6626
        %v6777 = vunpack.c.l.b16 %v6627
        %v6778 = vunpack.c.h.b16 %v6627
        %v6779 = vunpack.c.l.b16 %v6628
        %v6780 = vunpack.c.h.b16 %v6628
        %v6781 = vunpack.c.l.b16 %v6629
        %v6782 = vunpack.c.h.b16 %v6629
        %v6783 = vunpack.c.l.b16 %v6630
        %v6784 = vunpack.c.h.b16 %v6630
        %v6785 = vunpack.c.l.b16 %v6631
        %v6786 = vunpack.c.h.b16 %v6631
        %v6787 = vunpack.c.l.b16 %v6632
        %v6788 = vunpack.c.h.b16 %v6632
        %v6789 = vunpack.c.l.b16 %v6633
        %v6790 = vunpack.c.h.b16 %v6633
        %v6791 = vunpack.c.l.b16 %v6634
        %v6792 = vunpack.c.h.b16 %v6634
        %v6793 = vunpack.c.l.b16 %v6635
        %v6794 = vunpack.c.h.b16 %v6635
        %v6795 = vunpack.c.l.b16 %v6636
        %v6796 = vunpack.c.h.b16 %v6636
        %v6797 = vunpack.c.l.b16 %v6637
        %v6798 = vunpack.c.h.b16 %v6637
        %v6799 = vunpack.c.l.b16 %v6638
        %v6800 = vunpack.c.h.b16 %v6638
        %v6801 = vunpack.c.l.b16 %v6639
        %v6802 = vunpack.c.h.b16 %v6639
        %v6803 = vunpack.c.l.b16 %v6640
        %v6804 = vunpack.c.h.b16 %v6640
        %v6805 = vunpack.c.l.b16 %v6641
        %v6806 = vunpack.c.h.b16 %v6641
        %v6807 = vunpack.c.l.b16 %v6642
        %v6808 = vunpack.c.h.b16 %v6642
        %v6809 = vunpack.c.l.b16 %v6643
        %v6810 = vunpack.c.h.b16 %v6643
        %v6811 = vunpack.c.l.b16 %v6644
        %v6812 = vunpack.c.h.b16 %v6644
        %v6813 = vunpack.c.l.b16 %v6645
        %v6814 = vunpack.c.h.b16 %v6645
        %v6815 = vunpack.c.l.b16 %v6646
        %v6816 = vunpack.c.h.b16 %v6646
        %v6817 = vunpack.c.l.b16 %v6647
        %v6818 = vunpack.c.h.b16 %v6647
        %v6819 = vunpack.c.l.b16 %v6648
        %v6820 = vunpack.c.h.b16 %v6648
        %v6821 = vunpack.c.l.b16 %v6649
        %v6822 = vunpack.c.h.b16 %v6649
        %v6823 = vunpack.c.l.b16 %v6650
        %v6824 = vunpack.c.h.b16 %v6650
        %v6825 = vunpack.c.l.b16 %v6651
        %v6826 = vunpack.c.h.b16 %v6651
        %v6827 = vunpack.c.l.b16 %v6652
        %v6828 = vunpack.c.h.b16 %v6652
        %v6829 = vunpack.c.l.b16 %v6653
        %v6830 = vunpack.c.h.b16 %v6653
        %v6831 = vunpack.c.l.b16 %v6654
        %v6832 = vunpack.c.h.b16 %v6654
        %v6833 = vunpack.c.l.b16 %v6655
        %v6834 = vunpack.c.h.b16 %v6655
        %v6835 = vunpack.c.l.b16 %v6656
        %v6836 = vunpack.c.h.b16 %v6656
        %v6837 = vunpack.c.l.b16 %v6657
        %v6838 = vunpack.c.h.b16 %v6657
        %v6839 = vunpack.c.l.b16 %v6658
        %v6840 = vunpack.c.h.b16 %v6658
        %v6841 = vunpack.c.l.b16 %v6659
        %v6842 = vunpack.c.h.b16 %v6659
        %v6843 = vunpack.c.l.b16 %v6660
        %v6844 = vunpack.c.h.b16 %v6660
        %v6845 = vunpack.c.l.b16 %v6661
        %v6846 = vunpack.c.h.b16 %v6661
        %v6847 = vunpack.c.l.b16 %v6662
        %v6848 = vunpack.c.h.b16 %v6662
        %v6849 = vunpack.c.l.b16 %v6663
        %v6850 = vunpack.c.h.b16 %v6663
        %v6851 = vunpack.c.l.b16 %v6664
        %v6852 = vunpack.c.h.b16 %v6664
        %v6853 = vunpack.c.l.b16 %v6665
        %v6854 = vunpack.c.h.b16 %v6665
        %v6855 = vunpack.c.l.b16 %v6666
        %v6856 = vunpack.c.h.b16 %v6666
        %v6857 = vunpack.c.l.b16 %v6667
        %v6858 = vunpack.c.h.b16 %v6667
        %v6859 = vunpack.c.l.b16 %v6668
        %v6860 = vunpack.c.h.b16 %v6668
        %v6861 = vpack.c.b16 %v6735, %v6733
        %v6862 = vpack.c.b16 %v6736, %v6734
        %v6863 = vpack.c.b16 %v6739, %v6737
        %v6864 = vpack.c.b16 %v6740, %v6738
        %v6865 = vpack.c.b16 %v6743, %v6741
        %v6866 = vpack.c.b16 %v6744, %v6742
        %v6867 = vpack.c.b16 %v6747, %v6745
        %v6868 = vpack.c.b16 %v6748, %v6746
        %v6869 = vpack.c.b16 %v6751, %v6749
        %v6870 = vpack.c.b16 %v6752, %v6750
        %v6871 = vpack.c.b16 %v6755, %v6753
        %v6872 = vpack.c.b16 %v6756, %v6754
        %v6873 = vpack.c.b16 %v6759, %v6757
        %v6874 = vpack.c.b16 %v6760, %v6758
        %v6875 = vpack.c.b16 %v6763, %v6761
        %v6876 = vpack.c.b16 %v6764, %v6762
        %v6877 = vpack.c.b16 %v6767, %v6765
        %v6878 = vpack.c.b16 %v6768, %v6766
        %v6879 = vpack.c.b16 %v6771, %v6769
        %v6880 = vpack.c.b16 %v6772, %v6770
        %v6881 = vpack.c.b16 %v6775, %v6773
        %v6882 = vpack.c.b16 %v6776, %v6774
        %v6883 = vpack.c.b16 %v6779, %v6777
        %v6884 = vpack.c.b16 %v6780, %v6778
        %v6885 = vpack.c.b16 %v6783, %v6781
        %v6886 = vpack.c.b16 %v6784, %v6782
        %v6887 = vpack.c.b16 %v6787, %v6785
        %v6888 = vpack.c.b16 %v6788, %v6786
        %v6889 = vpack.c.b16 %v6791, %v6789
        %v6890 = vpack.c.b16 %v6792, %v6790
        %v6891 = vpack.c.b16 %v6795, %v6793
        %v6892 = vpack.c.b16 %v6796, %v6794
        %v6893 = vpack.c.b16 %v6799, %v6797
        %v6894 = vpack.c.b16 %v6800, %v6798
        %v6895 = vpack.c.b16 %v6803, %v6801
        %v6896 = vpack.c.b16 %v6804, %v6802
        %v6897 = vpack.c.b16 %v6807, %v6805
        %v6898 = vpack.c.b16 %v6808, %v6806
        %v6899 = vpack.c.b16 %v6811, %v6809
        %v6900 = vpack.c.b16 %v6812, %v6810
        %v6901 = vpack.c.b16 %v6815, %v6813
        %v6902 = vpack.c.b16 %v6816, %v6814
        %v6903 = vpack.c.b16 %v6819, %v6817
        %v6904 = vpack.c.b16 %v6820, %v6818
        %v6905 = vpack.c.b16 %v6823, %v6821
        %v6906 = vpack.c.b16 %v6824, %v6822
        %v6907 = vpack.c.b16 %v6827, %v6825
        %v6908 = vpack.c.b16 %v6828, %v6826
        %v6909 = vpack.c.b16 %v6831, %v6829
        %v6910 = vpack.c.b16 %v6832, %v6830
        %v6911 = vpack.c.b16 %v6835, %v6833
        %v6912 = vpack.c.b16 %v6836, %v6834
        %v6913 = vpack.c.b16 %v6839, %v6837
        %v6914 = vpack.c.b16 %v6840, %v6838
        %v6915 = vpack.c.b16 %v6843, %v6841
        %v6916 = vpack.c.b16 %v6844, %v6842
        %v6917 = vpack.c.b16 %v6847, %v6845
        %v6918 = vpack.c.b16 %v6848, %v6846
        %v6919 = vpack.c.b16 %v6851, %v6849
        %v6920 = vpack.c.b16 %v6852, %v6850
        %v6921 = vpack.c.b16 %v6855, %v6853
        %v6922 = vpack.c.b16 %v6856, %v6854
        %v6923 = vpack.c.b16 %v6859, %v6857
        %v6924 = vpack.c.b16 %v6860, %v6858
        %6989 = vmatprep.subr.bf16.mxu0 %v6862
        %6990 = vmatpush1.bf16.msra.mxu0 %v6861
        %6991 = vmatprep.subr.bf16.mxu0 %v6864
        %6992 = vmatpush1.bf16.msra.mxu0 %v6863
        %6993 = vmatprep.subr.bf16.mxu0 %v6866
        %6994 = vmatpush1.bf16.msra.mxu0 %v6865
        %6995 = vmatprep.subr.bf16.mxu0 %v6868
        %6996 = vmatpush1.bf16.msra.mxu0 %v6867
        %6997 = vmatprep.subr.bf16.mxu0 %v6870
        %6998 = vmatpush1.bf16.msra.mxu0 %v6869
        %6999 = vmatprep.subr.bf16.mxu0 %v6872
        %7000 = vmatpush1.bf16.msra.mxu0 %v6871
        %7001 = vmatprep.subr.bf16.mxu0 %v6874
        %7002 = vmatpush1.bf16.msra.mxu0 %v6873
        %7003 = vmatprep.subr.bf16.mxu0 %v6876
        %7004 = vmatpush1.bf16.msra.mxu0 %v6875
        %7005 = vmatprep.subr.bf16.mxu0 %v6878
        %7006 = vmatpush1.bf16.msra.mxu0 %v6877
        %7007 = vmatprep.subr.bf16.mxu0 %v6880
        %7008 = vmatpush1.bf16.msra.mxu0 %v6879
        %7009 = vmatprep.subr.bf16.mxu0 %v6882
        %7010 = vmatpush1.bf16.msra.mxu0 %v6881
        %7011 = vmatprep.subr.bf16.mxu0 %v6884
        %7012 = vmatpush1.bf16.msra.mxu0 %v6883
        %7013 = vmatprep.subr.bf16.mxu0 %v6886
        %7014 = vmatpush1.bf16.msra.mxu0 %v6885
        %7015 = vmatprep.subr.bf16.mxu0 %v6888
        %7016 = vmatpush1.bf16.msra.mxu0 %v6887
        %7017 = vmatprep.subr.bf16.mxu0 %v6890
        %7018 = vmatpush1.bf16.msra.mxu0 %v6889
        %7019 = vmatprep.subr.bf16.mxu0 %v6892
        %7020 = vmatpush1.bf16.msra.mxu0 %v6891
        %7021 = vmatprep.mubr.bf16.mxu0 %v6602
        %7022 = vmatmul.mubr.bf16.gmra.mrb[0].mxu0 %v6601
        %v7023 = vpop.f32.mrb[0].mxu0
        %v7024 = vadd.f32 0.0, %v7023
        %v7025 = vpop.f32.mrb[0].mxu0
        %v7026 = vadd.f32 0.0, %v7025
        %v7027 = vpop.f32.mrb[0].mxu0
        %v7028 = vadd.f32 0.0, %v7027
        %v7029 = vpop.f32.mrb[0].mxu0
        %v7030 = vadd.f32 0.0, %v7029
        %7031 = vdwg.mxu0
        %7032 = vmatprep.subr.bf16.mxu0 %v6894
        %7033 = vmatpush1.bf16.msra.mxu0 %v6893
        %7034 = vmatprep.subr.bf16.mxu0 %v6896
        %7035 = vmatpush1.bf16.msra.mxu0 %v6895
        %7036 = vmatprep.subr.bf16.mxu0 %v6898
        %7037 = vmatpush1.bf16.msra.mxu0 %v6897
        %7038 = vmatprep.subr.bf16.mxu0 %v6900
        %7039 = vmatpush1.bf16.msra.mxu0 %v6899
        %7040 = vmatprep.subr.bf16.mxu0 %v6902
        %7041 = vmatpush1.bf16.msra.mxu0 %v6901
        %7042 = vmatprep.subr.bf16.mxu0 %v6904
        %7043 = vmatpush1.bf16.msra.mxu0 %v6903
        %7044 = vmatprep.subr.bf16.mxu0 %v6906
        %7045 = vmatpush1.bf16.msra.mxu0 %v6905
        %7046 = vmatprep.subr.bf16.mxu0 %v6908
        %7047 = vmatpush1.bf16.msra.mxu0 %v6907
        %7048 = vmatprep.subr.bf16.mxu0 %v6910
        %7049 = vmatpush1.bf16.msra.mxu0 %v6909
        %7050 = vmatprep.subr.bf16.mxu0 %v6912
        %7051 = vmatpush1.bf16.msra.mxu0 %v6911
        %7052 = vmatprep.subr.bf16.mxu0 %v6914
        %7053 = vmatpush1.bf16.msra.mxu0 %v6913
        %7054 = vmatprep.subr.bf16.mxu0 %v6916
        %7055 = vmatpush1.bf16.msra.mxu0 %v6915
        %7056 = vmatprep.subr.bf16.mxu0 %v6918
        %7057 = vmatpush1.bf16.msra.mxu0 %v6917
        %7058 = vmatprep.subr.bf16.mxu0 %v6920
        %7059 = vmatpush1.bf16.msra.mxu0 %v6919
        %7060 = vmatprep.subr.bf16.mxu0 %v6922
        %7061 = vmatpush1.bf16.msra.mxu0 %v6921
        %7062 = vmatprep.subr.bf16.mxu0 %v6924
        %7063 = vmatpush1.bf16.msra.mxu0 %v6923
        %7064 = vmatprep.mubr.bf16.mxu0 %v6604
        %7065 = vmatmul.mubr.bf16.gmra.mrb[0].mxu0 %v6603
        %v7066 = vpop.f32.mrb[0].mxu0
        %v7067 = vadd.f32 %v7024, %v7066
        %v7068 = vpop.f32.mrb[0].mxu0
        %v7069 = vadd.f32 %v7026, %v7068
        %v7070 = vpop.f32.mrb[0].mxu0
        %v7071 = vadd.f32 %v7028, %v7070
        %v7072 = vpop.f32.mrb[0].mxu0
        %v7073 = vadd.f32 %v7030, %v7072
        %7074 = vdwg.mxu0
        %v7075 = vadd.f32 %v6097, %v7067
        %v7076 = vadd.f32 %v6098, %v7069
        %v7077 = vadd.f32 %v6099, %v7071
        %v7078 = vadd.f32 %v6100, %v7073
        %v7079 = vadd.f32 %v3169, %v7075
        %v7080 = vadd.f32 %v3170, %v7076
        %v7081 = vadd.f32 %v3171, %v7077
        %v7082 = vadd.f32 %v3172, %v7078
        %v7083 = vld [vmem:[%s830] sm:$0x3]
        %v7085 = vlaneseq
        %v7086 = vshrl.u32 %v7085, 7
        %v7087 = vsub.s32 0, %v7086
        %v7088 = vrot.slane %v7083, %v7087
        %v7089 = vlaneseq
        %v7090 = vshrl.u32 %v7089, 7
        %v7091 = vsub.s32 1, %v7090
        %v7092 = vrot.slane %v7083, %v7091
        %v7095 = vadd.f32 %v7079, %v7088
        %v7096 = vadd.f32 %v7080, %v7092
        %v7097 = vadd.f32 %v7081, %v7088
        %v7098 = vadd.f32 %v7082, %v7092
        %v7099 = vld [vmem:[%s857] sm:$0x3]
        %v7100 = vld [vmem:[%s866] sm:$0x3]
        %v7101 = vadd.f32 %v7095, %v7096
        %7102 = vadd.xlane.f32.xlu0 %v7101
        %v7103 = vpop.xlane.xlu0 %7102
        %v7104 = vadd.f32 %v7097, %v7098
        %7105 = vadd.xlane.f32.xlu0 %v7104
        %v7106 = vpop.xlane.xlu0 %7105
        %v7107 = vmul.f32 %v7103, %v3116
        %v7108 = vmul.f32 %v7106, %v3116
        %v7109 = vsub.f32 %v7095, %v7107
        %v7110 = vsub.f32 %v7096, %v7107
        %v7111 = vsub.f32 %v7097, %v7108
        %v7112 = vsub.f32 %v7098, %v7108
        %v7113 = vmul.f32 %v7109, %v7109
        %v7114 = vmul.f32 %v7110, %v7110
        %v7115 = vmul.f32 %v7111, %v7111
        %v7116 = vmul.f32 %v7112, %v7112
        %v7117 = vadd.f32 %v7113, %v7114
        %7118 = vadd.xlane.f32.xlu0 %v7117
        %v7119 = vpop.xlane.xlu0 %7118
        %v7120 = vadd.f32 %v7115, %v7116
        %7121 = vadd.xlane.f32.xlu0 %v7120
        %v7122 = vpop.xlane.xlu0 %7121
        %v7123 = vmul.f32 %v7119, %v3116
        %v7124 = vmul.f32 %v7122, %v3116
        %v7125 = vadd.f32 %v7123, 1e-05
        %v7126 = vadd.f32 %v7124, 1e-05
        %v7127 = vrsqrt.pop %v7125
        %v7128 = vrsqrt.pop %v7126
        %v7129 = vmul.f32 %v7109, %v7127
        %v7130 = vmul.f32 %v7110, %v7127
        %v7131 = vmul.f32 %v7111, %v7128
        %v7132 = vmul.f32 %v7112, %v7128
        %v7134 = vlaneseq
        %v7135 = vshrl.u32 %v7134, 7
        %v7136 = vsub.s32 0, %v7135
        %v7137 = vrot.slane %v7099, %v7136
        %v7138 = vlaneseq
        %v7139 = vshrl.u32 %v7138, 7
        %v7140 = vsub.s32 1, %v7139
        %v7141 = vrot.slane %v7099, %v7140
        %v7144 = vmul.f32 %v7129, %v7137
        %v7145 = vmul.f32 %v7130, %v7141
        %v7146 = vmul.f32 %v7131, %v7137
        %v7147 = vmul.f32 %v7132, %v7141
        %v7149 = vlaneseq
        %v7150 = vshrl.u32 %v7149, 7
        %v7151 = vsub.s32 0, %v7150
        %v7152 = vrot.slane %v7100, %v7151
        %v7153 = vlaneseq
        %v7154 = vshrl.u32 %v7153, 7
        %v7155 = vsub.s32 1, %v7154
        %v7156 = vrot.slane %v7100, %v7155
        %v7159 = vadd.f32 %v7144, %v7152
        %v7160 = vadd.f32 %v7145, %v7156
        %v7161 = vadd.f32 %v7146, %v7152
        %v7162 = vadd.f32 %v7147, %v7156
        %7163 = vst [vmem:[#allocation2] sm:$0xff] %v7159
        %7164 = vst [vmem:[#allocation2 + $0x8] sm:$0xff] %v7160
        %7165 = vst [vmem:[#allocation2 + $0x10] sm:$0xff] %v7161
        %7166 = vst [vmem:[#allocation2 + $0x18] sm:$0xff] %v7162
        %p7167 = scmp.eq.s32.totalorder %s31, 1
        // Predicated region
        $region153: #{tpu_custom_call.1} parent=83 // pred_check
          %p7168 = pneg %p7167
        $region154: #{tpu_custom_call.1} parent=83 // pred_check_branch
          %7170 = sbr.rel (%p7168) target = $region156
        $region155: #{tpu_custom_call.1} parent=83 // pred_region
          %vm7171 = vcmp.ne.f32.partialorder %v7159, %v7159
          %vm7172 = vcmp.ne.f32.partialorder %v7160, %v7160
          %vm7173 = vcmp.ne.f32.partialorder %v7161, %v7161
          %vm7174 = vcmp.ne.f32.partialorder %v7162, %v7162
          %v7175 = vsel %vm7171, 0.0, %v7159
          %v7176 = vsel %vm7172, 0.0, %v7160
          %v7177 = vsel %vm7173, 0.0, %v7161
          %v7178 = vsel %vm7174, 0.0, %v7162
          %v7179 = vpack.c.bf16 %v7177, %v7175
          %v7180 = vpack.c.bf16 %v7178, %v7176
          %v7181 = vld [vmem:[#allocation20] sm:$0xf]
          %v7182 = vld [vmem:[#allocation20 + $0x4] sm:$0xf]
          %v7183 = vld [vmem:[#allocation20 + $0x8] sm:$0xf]
          %v7184 = vld [vmem:[#allocation20 + $0xc] sm:$0xf]
          %v7185 = vld [vmem:[#allocation20 + $0x10] sm:$0xf]
          %v7186 = vld [vmem:[#allocation20 + $0x14] sm:$0xf]
          %v7187 = vld [vmem:[#allocation20 + $0x18] sm:$0xf]
          %v7188 = vld [vmem:[#allocation20 + $0x1c] sm:$0xf]
          %v7189 = vld [vmem:[#allocation20 + $0x20] sm:$0xf]
          %v7190 = vld [vmem:[#allocation20 + $0x24] sm:$0xf]
          %v7191 = vld [vmem:[#allocation20 + $0x28] sm:$0xf]
          %v7192 = vld [vmem:[#allocation20 + $0x2c] sm:$0xf]
          %v7193 = vld [vmem:[#allocation20 + $0x30] sm:$0xf]
          %v7194 = vld [vmem:[#allocation20 + $0x34] sm:$0xf]
          %v7195 = vld [vmem:[#allocation20 + $0x38] sm:$0xf]
          %v7196 = vld [vmem:[#allocation20 + $0x3c] sm:$0xf]
          %v7197 = vld [vmem:[#allocation20 + $0x40] sm:$0xf]
          %v7198 = vld [vmem:[#allocation20 + $0x44] sm:$0xf]
          %v7199 = vld [vmem:[#allocation20 + $0x48] sm:$0xf]
          %v7200 = vld [vmem:[#allocation20 + $0x4c] sm:$0xf]
          %v7201 = vld [vmem:[#allocation20 + $0x50] sm:$0xf]
          %v7202 = vld [vmem:[#allocation20 + $0x54] sm:$0xf]
          %v7203 = vld [vmem:[#allocation20 + $0x58] sm:$0xf]
          %v7204 = vld [vmem:[#allocation20 + $0x5c] sm:$0xf]
          %v7205 = vld [vmem:[#allocation20 + $0x60] sm:$0xf]
          %v7206 = vld [vmem:[#allocation20 + $0x64] sm:$0xf]
          %v7207 = vld [vmem:[#allocation20 + $0x68] sm:$0xf]
          %v7208 = vld [vmem:[#allocation20 + $0x6c] sm:$0xf]
          %v7209 = vld [vmem:[#allocation20 + $0x70] sm:$0xf]
          %v7210 = vld [vmem:[#allocation20 + $0x74] sm:$0xf]
          %v7211 = vld [vmem:[#allocation20 + $0x78] sm:$0xf]
          %v7212 = vld [vmem:[#allocation20 + $0x7c] sm:$0xf]
          %v7213 = vld [vmem:[#allocation21] sm:$0x1]
          %v7215 = vlaneseq
          %v7216 = vshrl.u32 %v7215, 7
          %v7217 = vsub.s32 0, %v7216
          %v7218 = vrot.slane %v7213, %v7217
          %v7252 = vunpack.c.l.b16 %v7181
          %v7253 = vunpack.c.l.b16 %v7182
          %v7254 = vunpack.c.l.b16 %v7183
          %v7255 = vunpack.c.l.b16 %v7184
          %v7256 = vunpack.c.l.b16 %v7185
          %v7257 = vunpack.c.l.b16 %v7186
          %v7258 = vunpack.c.l.b16 %v7187
          %v7259 = vunpack.c.l.b16 %v7188
          %v7260 = vunpack.c.l.b16 %v7189
          %v7261 = vunpack.c.l.b16 %v7190
          %v7262 = vunpack.c.l.b16 %v7191
          %v7263 = vunpack.c.l.b16 %v7192
          %v7264 = vunpack.c.l.b16 %v7193
          %v7265 = vunpack.c.l.b16 %v7194
          %v7266 = vunpack.c.l.b16 %v7195
          %v7267 = vunpack.c.l.b16 %v7196
          %v7268 = vunpack.c.l.b16 %v7197
          %v7269 = vunpack.c.l.b16 %v7198
          %v7270 = vunpack.c.l.b16 %v7199
          %v7271 = vunpack.c.l.b16 %v7200
          %v7272 = vunpack.c.l.b16 %v7201
          %v7273 = vunpack.c.l.b16 %v7202
          %v7274 = vunpack.c.l.b16 %v7203
          %v7275 = vunpack.c.l.b16 %v7204
          %v7276 = vunpack.c.l.b16 %v7205
          %v7277 = vunpack.c.l.b16 %v7206
          %v7278 = vunpack.c.l.b16 %v7207
          %v7279 = vunpack.c.l.b16 %v7208
          %v7280 = vunpack.c.l.b16 %v7209
          %v7281 = vunpack.c.l.b16 %v7210
          %v7282 = vunpack.c.l.b16 %v7211
          %v7283 = vunpack.c.l.b16 %v7212
          %v7284 = vpack.c.b16 %v7253, %v7252
          %v7285 = vpack.c.b16 %v7255, %v7254
          %v7286 = vpack.c.b16 %v7257, %v7256
          %v7287 = vpack.c.b16 %v7259, %v7258
          %v7288 = vpack.c.b16 %v7261, %v7260
          %v7289 = vpack.c.b16 %v7263, %v7262
          %v7290 = vpack.c.b16 %v7265, %v7264
          %v7291 = vpack.c.b16 %v7267, %v7266
          %v7292 = vpack.c.b16 %v7269, %v7268
          %v7293 = vpack.c.b16 %v7271, %v7270
          %v7294 = vpack.c.b16 %v7273, %v7272
          %v7295 = vpack.c.b16 %v7275, %v7274
          %v7296 = vpack.c.b16 %v7277, %v7276
          %v7297 = vpack.c.b16 %v7279, %v7278
          %v7298 = vpack.c.b16 %v7281, %v7280
          %v7299 = vpack.c.b16 %v7283, %v7282
          %7316 = vmatprep.subr.bf16.mxu0 0
          %7317 = vmatpush1.bf16.msra.mxu0 %v7284
          %7318 = vmatprep.subr.bf16.mxu0 0
          %7319 = vmatpush1.bf16.msra.mxu0 %v7285
          %7320 = vmatprep.subr.bf16.mxu0 0
          %7321 = vmatpush1.bf16.msra.mxu0 %v7286
          %7322 = vmatprep.subr.bf16.mxu0 0
          %7323 = vmatpush1.bf16.msra.mxu0 %v7287
          %7324 = vmatprep.subr.bf16.mxu0 0
          %7325 = vmatpush1.bf16.msra.mxu0 %v7288
          %7326 = vmatprep.subr.bf16.mxu0 0
          %7327 = vmatpush1.bf16.msra.mxu0 %v7289
          %7328 = vmatprep.subr.bf16.mxu0 0
          %7329 = vmatpush1.bf16.msra.mxu0 %v7290
          %7330 = vmatprep.subr.bf16.mxu0 0
          %7331 = vmatpush1.bf16.msra.mxu0 %v7291
          %7332 = vmatprep.subr.bf16.mxu0 0
          %7333 = vmatpush1.bf16.msra.mxu0 %v7292
          %7334 = vmatprep.subr.bf16.mxu0 0
          %7335 = vmatpush1.bf16.msra.mxu0 %v7293
          %7336 = vmatprep.subr.bf16.mxu0 0
          %7337 = vmatpush1.bf16.msra.mxu0 %v7294
          %7338 = vmatprep.subr.bf16.mxu0 0
          %7339 = vmatpush1.bf16.msra.mxu0 %v7295
          %7340 = vmatprep.subr.bf16.mxu0 0
          %7341 = vmatpush1.bf16.msra.mxu0 %v7296
          %7342 = vmatprep.subr.bf16.mxu0 0
          %7343 = vmatpush1.bf16.msra.mxu0 %v7297
          %7344 = vmatprep.subr.bf16.mxu0 0
          %7345 = vmatpush1.bf16.msra.mxu0 %v7298
          %7346 = vmatprep.subr.bf16.mxu0 0
          %7347 = vmatpush1.bf16.msra.mxu0 %v7299
          %7348 = vmatprep.mubr.bf16.mxu0 %v7180
          %7349 = vmatmul.mubr.bf16.gmra.mrb[0].mxu0 %v7179
          %v7350 = vpop.f32.mrb[0].mxu0
          %v7351 = vadd.f32 %v7218, %v7350
          %v7352 = vpop.f32.mrb[0].mxu0
          %v7353 = vpop.f32.mrb[0].mxu0
          %v7354 = vadd.f32 %v7218, %v7353
          %v7355 = vpop.f32.mrb[0].mxu0
          %7356 = vdwg.mxu0
          %7357 = vst [vmem:[#allocation23] sm:$0xff] %v7351
          %7358 = vst [vmem:[#allocation23 + $0x8] sm:$0xff] %v7354
        $region156: #{tpu_custom_call.1} parent=83 // pred_fallthru
          _
        // Predicated region
        $region157: #{tpu_custom_call.1} parent=83 // pred_check
          %p7359 = pneg %p440
        $region158: #{tpu_custom_call.1} parent=83 // pred_check_branch
          %7361 = sbr.rel (%p7359) target = $region160
        $region159: #{tpu_custom_call.1} parent=83 // pred_region
          %s7363 = ssub.s32 256, 256
          %7364 = vsyncadd [#allocation5], %s7363
          %s7365 = sshll.u32 [#allocation23], 4
          %s7366 = int_to_ptr.vmem [resolvable:$true] %s7365
          %7371 = dma.vmem_to_hbm [thread:$0]  %s7366, 256, %s16, [#allocation5], 128, 128, 8
        $region160: #{tpu_custom_call.1} parent=83 // pred_fallthru
          _
        // Predicated region
        $region161: #{tpu_custom_call.1} parent=83 // pred_check
          %p7372 = pneg %p440
        $region162: #{tpu_custom_call.1} parent=83 // pred_check_branch
          %7374 = sbr.rel (%p7372) target = $region164
        $region163: #{tpu_custom_call.1} parent=83 // pred_region
          %7375 = dma.done [#allocation5], 256
        $region164: #{tpu_custom_call.1} parent=83 // pred_fallthru
          _
      $region84: #{tpu_custom_call.1} parent=5 // pred_fallthru
        _
      %p7376 = scmp.le.s32.totalorder 2, %s26
      // Predicated region
      $region165: #{tpu_custom_call.1} parent=5 // pred_check
        %p7377 = pneg %p7376
      $region166: #{tpu_custom_call.1} parent=5 // pred_check_branch
        %7379 = sbr.rel (%p7377) target = $region168
      $region167: #{tpu_custom_call.1} parent=5 // pred_region
        %s7380 = ssub.s32 %s26, 2
      $region168: #{tpu_custom_call.1} parent=5 // pred_fallthru
        _
    $region6: #{tpu_custom_call.1} parent=1 // loop_footer
      %s30 = sadd.s32 1, %s26
    $region7: #{tpu_custom_call.1} parent=1 // loop_footer_branch
      %25 = sbr.rel target = $region3
    $region8: #{tpu_custom_call.1} parent=1 // loop_exit
      _
    %7381 = vsyncpa [#allocation4], 1
    %s7382 = scalar_lea.sflag [#allocation4], 1
    %7383 = vsyncpa %s7382, 1
    %7384 = vsyncpa [#allocation7], 1
    %7385 = vsyncpa [#allocation22], 1
    %7386 = vsyncpa [#allocation5], 1
    %s7387 = scalar_lea.sflag [#allocation5], 1
    %7388 = vsyncpa %s7387, 1

</llo_original>
